<compile_context>
chip_gen: v7x
topology: tpu7x:2x2x1
jax: 0.10.0
libtpu: 0.0.40
codegen_flags: <defaults>
</compile_context>

<pallas_src>
import functools

import jax
import jax.numpy as jnp
import numpy as np
from jax.experimental import pallas as pl
from jax.experimental.pallas import tpu as pltpu

_EPS = 1e-5


# ----------------------------- VMEM / tiling policy ---------------------------

def _vmem_policy():
    """Return (vmem_limit_bytes, per-grid-step byte budget), generation-aware."""
    try:
        cap = int(pltpu.get_tpu_info().vmem_capacity_bytes)
    except Exception:
        cap = 64 * 1024 * 1024                    # conservative (v7x-sized) fallback
    limit = min(96 * 1024 * 1024, (cap * 3) // 4)  # ~48 MiB on v7x, 96 MiB on v5e/v6e
    return limit, limit // 4


_VMEM_LIMIT, _STEP_BUDGET = _vmem_policy()


def _conv_step_bytes(th, W, cin, cout):
    """Rough per-grid-step VMEM working set of the fused conv kernel."""
    bf2, f4 = 2, 4
    main = th * (W + 2) * cin * bf2          # main input row block (bf16)
    halo = 2 * (W + 2) * cin * bf2           # 2-row halo block
    wmat = 9 * cin * cout * bf2              # weights
    yblk = th * W * cout * bf2               # bf16 output block
    win = (th + 2) * (W + 2) * cin * bf2     # assembled window scratch
    acc = th * W * cout * f4                 # f32 accumulator value
    tap = th * W * cin * bf2                 # per-tap sliced operand
    # HBM-backed blocks are double-buffered by the pipeline.
    return 2 * (main + halo + wmat + yblk) + win + acc + 2 * tap


def _pick_h_tile(H, W, cin, cout, budget):
    """Largest even row tile th dividing H whose working set fits the budget."""
    assert H % 2 == 0, "fused conv3x3 kernel requires an even spatial height"
    for th in range(H, 1, -1):
        if H % th or th % 2:
            continue
        if th != H and (th * W) % 8 != 0:    # keep output row blocks sublane-aligned
            continue
        if _conv_step_bytes(th, W, cin, cout) <= budget:
            return th
    raise ValueError(
        f"no conv row tile fits the {budget}-byte VMEM budget "
        f"(H={H}, W={W}, cin={cin}, cout={cout})")


def _pick_row_tile(M, C, in_bytes, out_bytes, budget):
    """Largest multiple-of-8 divisor of M whose (double-buffered) tiles fit."""
    assert M % 8 == 0, "N*H*W must be a multiple of 8"
    for tm in range(M, 0, -1):
        if M % tm or (tm != M and tm % 8):
            continue
        if 2 * tm * C * (in_bytes + out_bytes) <= budget:
            return tm
    return 8


# ------------- kernel 1: fused im2col conv3x3 + per-tile BN statistics --------

def _conv3x3_stats_kernel(x_main_ref, x_halo_ref, w_ref,
                          y_ref, psum_ref, pssq_ref, xwin_ref,
                          *, th, W, cin, cout):
    # Assemble the (th+2, W+2, cin) halo'd input window in VMEM from the two
    # row blocks delivered by the pipeline (no im2col slab in HBM).
    xwin_ref[0:th, :, :] = x_main_ref[0]
    xwin_ref[th:th + 2, :, :] = x_halo_ref[0]

    # 3x3 / pad=1 conv == sum of nine shifted (th*W, cin)@(cin, cout) MXU dots.
    acc = jnp.zeros((th * W, cout), jnp.float32)
    for t in range(9):
        kh, kw = divmod(t, 3)
        xs = xwin_ref[kh:kh + th, kw:kw + W, :].reshape(th * W, cin)
        acc = acc + jnp.dot(xs, w_ref[t], preferred_element_type=jnp.float32)

    # bf16 intermediate (halves HBM writeback + re-read); stats stay in f32.
    y_ref[0] = acc.astype(y_ref.dtype)
    psum_ref[0, 0] = jnp.sum(acc, axis=0, keepdims=True)
    pssq_ref[0, 0] = jnp.sum(acc * acc, axis=0, keepdims=True)


def conv3x3_stats(x_nhwc, w):
    """Fused 3x3/pad=1 conv (no bias) with per-tile BN partial statistics.

    x_nhwc : (N, H, W, Cin) bf16
    w      : (9, Cin, Cout) bf16 taps, tap t = kh*3 + kw
    Returns y (N, H*W, Cout) bf16, psum/pssq (N, num_h, 1, Cout) f32 partials.
    """
    N, H, W, cin = x_nhwc.shape
    cout = w.shape[-1]
    th = _pick_h_tile(H, W, cin, cout, _STEP_BUDGET)
    num_h = H // th
    x_pad = jnp.pad(x_nhwc, ((0, 0), (1, 1), (1, 1), (0, 0)))
    Wp2 = W + 2

    kernel = functools.partial(_conv3x3_stats_kernel, th=th, W=W, cin=cin, cout=cout)
    out_shape = (
        jax.ShapeDtypeStruct((N, H * W, cout), jnp.bfloat16),
        jax.ShapeDtypeStruct((N, num_h, 1, cout), jnp.float32),
        jax.ShapeDtypeStruct((N, num_h, 1, cout), jnp.float32),
    )
    return pl.pallas_call(
        kernel,
        out_shape=out_shape,
        grid=(N, num_h),
        in_specs=[
            # main rows [h*th, h*th + th) of the padded image
            pl.BlockSpec((1, th, Wp2, cin), lambda n, h: (n, h, 0, 0)),
            # 2-row halo [h*th + th, h*th + th + 2)  (block size 2 -> index (h+1)*th/2)
            pl.BlockSpec((1, 2, Wp2, cin), lambda n, h: (n, (h + 1) * (th // 2), 0, 0)),
            # full weight tensor, constant across the grid
            pl.BlockSpec((9, cin, cout), lambda n, h: (0, 0, 0)),
        ],
        out_specs=(
            pl.BlockSpec((1, th * W, cout), lambda n, h: (n, h, 0)),
            pl.BlockSpec((1, 1, 1, cout), lambda n, h: (n, h, 0, 0)),
            pl.BlockSpec((1, 1, 1, cout), lambda n, h: (n, h, 0, 0)),
        ),
        scratch_shapes=[pltpu.VMEM((th + 2, Wp2, cin), jnp.bfloat16)],
        compiler_params=pltpu.CompilerParams(
            dimension_semantics=("parallel", "parallel"),   # no cross-step state
            vmem_limit_bytes=_VMEM_LIMIT,
        ),
    )(x_pad, x_pad, w)


# ----------------- kernel 2: per-channel affine (BN) + ReLU ------------------

def _bn_relu_kernel(y_ref, scale_ref, shift_ref, o_ref):
    y = y_ref[...].astype(jnp.float32)
    o_ref[...] = jnp.maximum(y * scale_ref[...] + shift_ref[...], 0.0).astype(o_ref.dtype)


def bn_relu_apply(y_2d, scale, shift, out_dtype):
    M, C = y_2d.shape
    in_b = jnp.dtype(y_2d.dtype).itemsize
    out_b = jnp.dtype(out_dtype).itemsize
    tm = _pick_row_tile(M, C, in_b, out_b, _STEP_BUDGET)
    return pl.pallas_call(
        _bn_relu_kernel,
        out_shape=jax.ShapeDtypeStruct((M, C), out_dtype),
        grid=(M // tm,),
        in_specs=[
            pl.BlockSpec((tm, C), lambda i: (i, 0)),
            pl.BlockSpec((1, C), lambda i: (0, 0)),
            pl.BlockSpec((1, C), lambda i: (0, 0)),
        ],
        out_specs=pl.BlockSpec((tm, C), lambda i: (i, 0)),
        compiler_params=pltpu.CompilerParams(
            dimension_semantics=("parallel",),
            vmem_limit_bytes=_VMEM_LIMIT,
        ),
    )(y_2d, scale.reshape(1, C), shift.reshape(1, C))


# ------------------------------ plain-JAX glue -------------------------------

def conv_bn_relu_stage(x_nhwc, w, gamma, beta, out_dtype):
    """conv3x3 (bias-free) + train-mode BN + ReLU."""
    N, H, W, _ = x_nhwc.shape
    cout = w.shape[-1]
    M = N * H * W
    y, ps, pq = conv3x3_stats(x_nhwc, w)
    s = jnp.sum(ps, axis=(0, 1, 2))
    ss = jnp.sum(pq, axis=(0, 1, 2))
    mean = s / M
    var = jnp.maximum(ss / M - mean * mean, 0.0)      # biased var (torch train BN)
    inv = jax.lax.rsqrt(var + _EPS)
    scale = gamma * inv
    shift = beta - mean * scale                       # (dropped conv bias cancels here)
    out = bn_relu_apply(y.reshape(M, cout), scale, shift, out_dtype)
    return out.reshape(N, H, W, cout)


def vgg_block_forward(x_nchw, params):
    x = jnp.transpose(x_nchw, (0, 2, 3, 1)).astype(jnp.bfloat16)  # NCHW->NHWC, cast early
    h = conv_bn_relu_stage(x, params['w1'], params['g1'], params['be1'], jnp.bfloat16)
    out = conv_bn_relu_stage(h, params['w2'], params['g2'], params['be2'], jnp.float32)
    return jnp.transpose(out, (0, 3, 1, 2))           # back to NCHW


# ----------------------------- parameter handling ----------------------------

def init_params(key, in_c, mid_c, out_c):
    """Returns (kernel_params, raw_params).  Kernel conv weights are bf16
    (9, Cin, Cout) taps; the conv biases are only kept for the reference
    (they cancel exactly under the following BatchNorm)."""
    k1, k2, k3, k4 = jax.random.split(key, 4)
    cw1 = jax.random.normal(k1, (mid_c, in_c, 3, 3), jnp.float32) / np.sqrt(9.0 * in_c)
    cb1 = 0.01 * jax.random.normal(k2, (mid_c,), jnp.float32)
    cw2 = jax.random.normal(k3, (out_c, mid_c, 3, 3), jnp.float32) / np.sqrt(9.0 * mid_c)
    cb2 = 0.01 * jax.random.normal(k4, (out_c,), jnp.float32)
    g1, be1 = jnp.ones((mid_c,), jnp.float32), jnp.zeros((mid_c,), jnp.float32)
    g2, be2 = jnp.ones((out_c,), jnp.float32), jnp.zeros((out_c,), jnp.float32)

    def taps(w_oihw):  # (O, I, 3, 3) -> (9, I, O), tap t = kh*3 + kw
        o, i = w_oihw.shape[0], w_oihw.shape[1]
        return jnp.transpose(w_oihw, (2, 3, 1, 0)).reshape(9, i, o).astype(jnp.bfloat16)

    kp = {'w1': taps(cw1), 'g1': g1, 'be1': be1,
          'w2': taps(cw2), 'g2': g2, 'be2': be2}
    raw = {'cw1': cw1, 'cb1': cb1, 'cw2': cw2, 'cb2': cb2,
           'g1': g1, 'be1': be1, 'g2': g2, 'be2': be2}
    return kp, raw


# ------------------------------ f32 XLA reference ----------------------------

def reference_forward(x_nchw, raw):
    def conv(x, w, b):
        y = jax.lax.conv_general_dilated(
            x, w, (1, 1), ((1, 1), (1, 1)),
            dimension_numbers=('NCHW', 'OIHW', 'NCHW'))
        return y + b.reshape(1, -1, 1, 1)

    def bn_relu(y, g, be):
        mean = y.mean(axis=(0, 2, 3), keepdims=True)
        var = y.var(axis=(0, 2, 3), keepdims=True)        # biased, train-mode BN
        yn = (y - mean) * jax.lax.rsqrt(var + _EPS)
        yn = yn * g.reshape(1, -1, 1, 1) + be.reshape(1, -1, 1, 1)
        return jnp.maximum(yn, 0.0)

    h = bn_relu(conv(x_nchw, raw['cw1'], raw['cb1']), raw['g1'], raw['be1'])
    h = bn_relu(conv(h, raw['cw2'], raw['cb2']), raw['g2'], raw['be2'])
    return h


# ----------------------------------- main ------------------------------------

if __name__ == "__main__":
    key = jax.random.PRNGKey(0)
    kx, kparam = jax.random.split(key)

    N, IN_C, MID_C, OUT_C, H, W = 2, 4, 32, 16, 16, 16
    x = jax.random.normal(kx, (N, IN_C, H, W), jnp.float32)

    params, raw_params = init_params(kparam, IN_C, MID_C, OUT_C)

    fwd = jax.jit(vgg_block_forward)
    out = jax.block_until_ready(fwd(x, params))

    assert out.shape == (N, OUT_C, H, W), out.shape
    assert bool(jnp.all(jnp.isfinite(out)))

    ref = jax.block_until_ready(jax.jit(reference_forward)(x, raw_params))
    # Error budget: bf16 matmul operands + bf16 inter-kernel activations give
    # ~1e-2 absolute error per normalized element after two stages; tolerance
    # is tightened vs. the previous blanket 2e-1.
    np.testing.assert_allclose(np.asarray(out), np.asarray(ref),
                               rtol=5e-2, atol=1e-1)
    print("KERNEL_OK")
</pallas_src>

<mosaic_0001>
module attributes {stable_mosaic.version = 11 : i64} {
  func.func @_bn_relu_kernel(%arg0: i32, %arg1: memref<512x32xbf16, #tpu.memory_space<vmem>>, %arg2: memref<1x32xf32, #tpu.memory_space<vmem>>, %arg3: memref<1x32xf32, #tpu.memory_space<vmem>>, %arg4: memref<512x32xbf16, #tpu.memory_space<vmem>>) attributes {dimension_semantics = [#tpu.dimension_semantics<parallel>], iteration_bounds = array<i64: 1>, scalar_prefetch = 0 : i64, scratch_operands = 0 : i64, tpu.core_type = #tpu.core_type<tc>, window_params = [{transform_indices = @transform_0, window_bounds = array<i64: 512, 32>}, {pipeline_mode = #tpu.pipeline_mode<synchronous>, transform_indices = @transform_1, window_bounds = array<i64: 1, 32>}, {pipeline_mode = #tpu.pipeline_mode<synchronous>, transform_indices = @transform_2, window_bounds = array<i64: 1, 32>}, {transform_indices = @transform_3, window_bounds = array<i64: 512, 32>}]} {
    %c0 = arith.constant 0 : index
    %c0_0 = arith.constant 0 : index
    %0 = vector.load %arg1[%c0, %c0_0] : memref<512x32xbf16, #tpu.memory_space<vmem>>, vector<512x32xbf16>
    %1 = arith.extf %0 : vector<512x32xbf16> to vector<512x32xf32>
    %c0_1 = arith.constant 0 : index
    %c0_2 = arith.constant 0 : index
    %2 = vector.load %arg2[%c0_1, %c0_2] : memref<1x32xf32, #tpu.memory_space<vmem>>, vector<1x32xf32>
    %3 = vector.broadcast %2 : vector<1x32xf32> to vector<512x32xf32>
    %4 = arith.mulf %1, %3 : vector<512x32xf32>
    %c0_3 = arith.constant 0 : index
    %c0_4 = arith.constant 0 : index
    %5 = vector.load %arg3[%c0_3, %c0_4] : memref<1x32xf32, #tpu.memory_space<vmem>>, vector<1x32xf32>
    %6 = vector.broadcast %5 : vector<1x32xf32> to vector<512x32xf32>
    %7 = arith.addf %4, %6 : vector<512x32xf32>
    %cst = arith.constant 0.000000e+00 : f32
    %8 = vector.broadcast %cst : f32 to vector<512x32xf32>
    %9 = arith.maximumf %7, %8 : vector<512x32xf32>
    %10 = arith.truncf %9 : vector<512x32xf32> to vector<512x32xbf16>
    %c0_5 = arith.constant 0 : index
    %c0_6 = arith.constant 0 : index
    %11 = vector.load %arg4[%c0_5, %c0_6] : memref<512x32xbf16, #tpu.memory_space<vmem>>, vector<512x32xbf16>
    tpu.vector_store %arg4[%c0_5, %c0_6], %10 {strides = array<i32>} : memref<512x32xbf16, #tpu.memory_space<vmem>>, vector<512x32xbf16>,
    return
  }
  func.func @transform_0(%arg0: i32) -> (i32, i32) {
    %c0_i32 = arith.constant 0 : i32
    %c0_i32_0 = arith.constant 0 : i32
    return %arg0, %c0_i32 : i32, i32
  }
  func.func @transform_1(%arg0: i32) -> (i32, i32) {
    %c0_i32 = arith.constant 0 : i32
    %c0_i32_0 = arith.constant 0 : i32
    %c0_i32_1 = arith.constant 0 : i32
    return %c0_i32, %c0_i32_0 : i32, i32
  }
  func.func @transform_2(%arg0: i32) -> (i32, i32) {
    %c0_i32 = arith.constant 0 : i32
    %c0_i32_0 = arith.constant 0 : i32
    %c0_i32_1 = arith.constant 0 : i32
    return %c0_i32, %c0_i32_0 : i32, i32
  }
  func.func @transform_3(%arg0: i32) -> (i32, i32) {
    %c0_i32 = arith.constant 0 : i32
    %c0_i32_0 = arith.constant 0 : i32
    return %arg0, %c0_i32 : i32, i32
  }
}

module attributes {stable_mosaic.version = 11 : i64} {
  func.func @_conv3x3_stats_kernel(%arg0: i32, %arg1: i32, %arg2: memref<1x16x18x4xbf16, #tpu.memory_space<vmem>>, %arg3: memref<1x2x18x4xbf16, #tpu.memory_space<vmem>>, %arg4: memref<9x4x32xbf16, #tpu.memory_space<vmem>>, %arg5: memref<1x256x32xbf16, #tpu.memory_space<vmem>>, %arg6: memref<1x1x1x32xf32, #tpu.memory_space<vmem>>, %arg7: memref<1x1x1x32xf32, #tpu.memory_space<vmem>>, %arg8: memref<18x18x4xbf16, #tpu.memory_space<vmem>>) attributes {dimension_semantics = [#tpu.dimension_semantics<parallel>, #tpu.dimension_semantics<parallel>], iteration_bounds = array<i64: 2, 1>, scalar_prefetch = 0 : i64, scratch_operands = 1 : i64, tpu.core_type = #tpu.core_type<tc>, window_params = [{transform_indices = @transform_0, window_bounds = array<i64: 1, 16, 18, 4>}, {transform_indices = @transform_1, window_bounds = array<i64: 1, 2, 18, 4>}, {pipeline_mode = #tpu.pipeline_mode<synchronous>, transform_indices = @transform_2, window_bounds = array<i64: 9, 4, 32>}, {transform_indices = @transform_3, window_bounds = array<i64: 1, 256, 32>}, {transform_indices = @transform_4, window_bounds = array<i64: 1, 1, 1, 32>}, {transform_indices = @transform_5, window_bounds = array<i64: 1, 1, 1, 32>}]} {
    %c0 = arith.constant 0 : index
    %c0_0 = arith.constant 0 : index
    %c0_1 = arith.constant 0 : index
    %c0_2 = arith.constant 0 : index
    %0 = vector.load %arg2[%c0, %c0_0, %c0_1, %c0_2] : memref<1x16x18x4xbf16, #tpu.memory_space<vmem>>, vector<1x16x18x4xbf16>
    %1 = vector.shape_cast %0 : vector<1x16x18x4xbf16> to vector<16x18x4xbf16>
    %c0_3 = arith.constant 0 : index
    %c0_4 = arith.constant 0 : index
    %c0_5 = arith.constant 0 : index
    %2 = vector.load %arg8[%c0_3, %c0_4, %c0_5] : memref<18x18x4xbf16, #tpu.memory_space<vmem>>, vector<16x18x4xbf16>
    tpu.vector_store %arg8[%c0_3, %c0_4, %c0_5], %1 {strides = array<i32>} : memref<18x18x4xbf16, #tpu.memory_space<vmem>>, vector<16x18x4xbf16>,
    %c0_6 = arith.constant 0 : index
    %c0_7 = arith.constant 0 : index
    %c0_8 = arith.constant 0 : index
    %c0_9 = arith.constant 0 : index
    %3 = vector.load %arg3[%c0_6, %c0_7, %c0_8, %c0_9] : memref<1x2x18x4xbf16, #tpu.memory_space<vmem>>, vector<1x2x18x4xbf16>
    %4 = vector.shape_cast %3 : vector<1x2x18x4xbf16> to vector<2x18x4xbf16>
    %c16 = arith.constant 16 : index
    %c0_10 = arith.constant 0 : index
    %c0_11 = arith.constant 0 : index
    %5 = vector.load %arg8[%c16, %c0_10, %c0_11] : memref<18x18x4xbf16, #tpu.memory_space<vmem>>, vector<2x18x4xbf16>
    tpu.vector_store %arg8[%c16, %c0_10, %c0_11], %4 {strides = array<i32>} : memref<18x18x4xbf16, #tpu.memory_space<vmem>>, vector<2x18x4xbf16>,
    %cst = arith.constant 0.000000e+00 : f32
    %6 = vector.broadcast %cst : f32 to vector<256x32xf32>
    %c0_12 = arith.constant 0 : index
    %c0_13 = arith.constant 0 : index
    %c0_14 = arith.constant 0 : index
    %7 = vector.load %arg8[%c0_12, %c0_13, %c0_14] : memref<18x18x4xbf16, #tpu.memory_space<vmem>>, vector<16x16x4xbf16>
    %8 = vector.shape_cast %7 : vector<16x16x4xbf16> to vector<256x4xbf16>
    %c0_15 = arith.constant 0 : index
    %c0_16 = arith.constant 0 : index
    %c0_17 = arith.constant 0 : index
    %9 = vector.load %arg4[%c0_15, %c0_16, %c0_17] : memref<9x4x32xbf16, #tpu.memory_space<vmem>>, vector<1x4x32xbf16>
    %10 = vector.shape_cast %9 : vector<1x4x32xbf16> to vector<4x32xbf16>
    %cst_18 = arith.constant dense<0.000000e+00> : vector<256x32xf32>
    %11 = tpu.matmul %8, %10, %cst_18 {dimension_numbers = #tpu.dot_dimension_numbers<[1], [0], [0], [1], [0, 0, 1, 1], [], []>} : vector<256x4xbf16>, vector<4x32xbf16>, vector<256x32xf32> -> vector<256x32xf32>
    %12 = arith.addf %6, %11 : vector<256x32xf32>
    %c0_19 = arith.constant 0 : index
    %c1 = arith.constant 1 : index
    %c0_20 = arith.constant 0 : index
    %13 = vector.load %arg8[%c0_19, %c1, %c0_20] : memref<18x18x4xbf16, #tpu.memory_space<vmem>>, vector<16x16x4xbf16>
    %14 = vector.shape_cast %13 : vector<16x16x4xbf16> to vector<256x4xbf16>
    %c1_21 = arith.constant 1 : index
    %c0_22 = arith.constant 0 : index
    %c0_23 = arith.constant 0 : index
    %15 = vector.load %arg4[%c1_21, %c0_22, %c0_23] : memref<9x4x32xbf16, #tpu.memory_space<vmem>>, vector<1x4x32xbf16>
    %16 = vector.shape_cast %15 : vector<1x4x32xbf16> to vector<4x32xbf16>
    %cst_24 = arith.constant dense<0.000000e+00> : vector<256x32xf32>
    %17 = tpu.matmul %14, %16, %cst_24 {dimension_numbers = #tpu.dot_dimension_numbers<[1], [0], [0], [1], [0, 0, 1, 1], [], []>} : vector<256x4xbf16>, vector<4x32xbf16>, vector<256x32xf32> -> vector<256x32xf32>
    %18 = arith.addf %12, %17 : vector<256x32xf32>
    %c0_25 = arith.constant 0 : index
    %c2 = arith.constant 2 : index
    %c0_26 = arith.constant 0 : index
    %19 = vector.load %arg8[%c0_25, %c2, %c0_26] : memref<18x18x4xbf16, #tpu.memory_space<vmem>>, vector<16x16x4xbf16>
    %20 = vector.shape_cast %19 : vector<16x16x4xbf16> to vector<256x4xbf16>
    %c2_27 = arith.constant 2 : index
    %c0_28 = arith.constant 0 : index
    %c0_29 = arith.constant 0 : index
    %21 = vector.load %arg4[%c2_27, %c0_28, %c0_29] : memref<9x4x32xbf16, #tpu.memory_space<vmem>>, vector<1x4x32xbf16>
    %22 = vector.shape_cast %21 : vector<1x4x32xbf16> to vector<4x32xbf16>
    %cst_30 = arith.constant dense<0.000000e+00> : vector<256x32xf32>
    %23 = tpu.matmul %20, %22, %cst_30 {dimension_numbers = #tpu.dot_dimension_numbers<[1], [0], [0], [1], [0, 0, 1, 1], [], []>} : vector<256x4xbf16>, vector<4x32xbf16>, vector<256x32xf32> -> vector<256x32xf32>
    %24 = arith.addf %18, %23 : vector<256x32xf32>
    %c1_31 = arith.constant 1 : index
    %c0_32 = arith.constant 0 : index
    %c0_33 = arith.constant 0 : index
    %25 = vector.load %arg8[%c1_31, %c0_32, %c0_33] : memref<18x18x4xbf16, #tpu.memory_space<vmem>>, vector<16x16x4xbf16>
    %26 = vector.shape_cast %25 : vector<16x16x4xbf16> to vector<256x4xbf16>
    %c3 = arith.constant 3 : index
    %c0_34 = arith.constant 0 : index
    %c0_35 = arith.constant 0 : index
    %27 = vector.load %arg4[%c3, %c0_34, %c0_35] : memref<9x4x32xbf16, #tpu.memory_space<vmem>>, vector<1x4x32xbf16>
    %28 = vector.shape_cast %27 : vector<1x4x32xbf16> to vector<4x32xbf16>
    %cst_36 = arith.constant dense<0.000000e+00> : vector<256x32xf32>
    %29 = tpu.matmul %26, %28, %cst_36 {dimension_numbers = #tpu.dot_dimension_numbers<[1], [0], [0], [1], [0, 0, 1, 1], [], []>} : vector<256x4xbf16>, vector<4x32xbf16>, vector<256x32xf32> -> vector<256x32xf32>
    %30 = arith.addf %24, %29 : vector<256x32xf32>
    %c1_37 = arith.constant 1 : index
    %c1_38 = arith.constant 1 : index
    %c0_39 = arith.constant 0 : index
    %31 = vector.load %arg8[%c1_37, %c1_38, %c0_39] : memref<18x18x4xbf16, #tpu.memory_space<vmem>>, vector<16x16x4xbf16>
    %32 = vector.shape_cast %31 : vector<16x16x4xbf16> to vector<256x4xbf16>
    %c4 = arith.constant 4 : index
    %c0_40 = arith.constant 0 : index
    %c0_41 = arith.constant 0 : index
    %33 = vector.load %arg4[%c4, %c0_40, %c0_41] : memref<9x4x32xbf16, #tpu.memory_space<vmem>>, vector<1x4x32xbf16>
    %34 = vector.shape_cast %33 : vector<1x4x32xbf16> to vector<4x32xbf16>
    %cst_42 = arith.constant dense<0.000000e+00> : vector<256x32xf32>
    %35 = tpu.matmul %32, %34, %cst_42 {dimension_numbers = #tpu.dot_dimension_numbers<[1], [0], [0], [1], [0, 0, 1, 1], [], []>} : vector<256x4xbf16>, vector<4x32xbf16>, vector<256x32xf32> -> vector<256x32xf32>
    %36 = arith.addf %30, %35 : vector<256x32xf32>
    %c1_43 = arith.constant 1 : index
    %c2_44 = arith.constant 2 : index
    %c0_45 = arith.constant 0 : index
    %37 = vector.load %arg8[%c1_43, %c2_44, %c0_45] : memref<18x18x4xbf16, #tpu.memory_space<vmem>>, vector<16x16x4xbf16>
    %38 = vector.shape_cast %37 : vector<16x16x4xbf16> to vector<256x4xbf16>
    %c5 = arith.constant 5 : index
    %c0_46 = arith.constant 0 : index
    %c0_47 = arith.constant 0 : index
    %39 = vector.load %arg4[%c5, %c0_46, %c0_47] : memref<9x4x32xbf16, #tpu.memory_space<vmem>>, vector<1x4x32xbf16>
    %40 = vector.shape_cast %39 : vector<1x4x32xbf16> to vector<4x32xbf16>
    %cst_48 = arith.constant dense<0.000000e+00> : vector<256x32xf32>
    %41 = tpu.matmul %38, %40, %cst_48 {dimension_numbers = #tpu.dot_dimension_numbers<[1], [0], [0], [1], [0, 0, 1, 1], [], []>} : vector<256x4xbf16>, vector<4x32xbf16>, vector<256x32xf32> -> vector<256x32xf32>
    %42 = arith.addf %36, %41 : vector<256x32xf32>
    %c2_49 = arith.constant 2 : index
    %c0_50 = arith.constant 0 : index
    %c0_51 = arith.constant 0 : index
    %43 = vector.load %arg8[%c2_49, %c0_50, %c0_51] : memref<18x18x4xbf16, #tpu.memory_space<vmem>>, vector<16x16x4xbf16>
    %44 = vector.shape_cast %43 : vector<16x16x4xbf16> to vector<256x4xbf16>
    %c6 = arith.constant 6 : index
    %c0_52 = arith.constant 0 : index
    %c0_53 = arith.constant 0 : index
    %45 = vector.load %arg4[%c6, %c0_52, %c0_53] : memref<9x4x32xbf16, #tpu.memory_space<vmem>>, vector<1x4x32xbf16>
    %46 = vector.shape_cast %45 : vector<1x4x32xbf16> to vector<4x32xbf16>
    %cst_54 = arith.constant dense<0.000000e+00> : vector<256x32xf32>
    %47 = tpu.matmul %44, %46, %cst_54 {dimension_numbers = #tpu.dot_dimension_numbers<[1], [0], [0], [1], [0, 0, 1, 1], [], []>} : vector<256x4xbf16>, vector<4x32xbf16>, vector<256x32xf32> -> vector<256x32xf32>
    %48 = arith.addf %42, %47 : vector<256x32xf32>
    %c2_55 = arith.constant 2 : index
    %c1_56 = arith.constant 1 : index
    %c0_57 = arith.constant 0 : index
    %49 = vector.load %arg8[%c2_55, %c1_56, %c0_57] : memref<18x18x4xbf16, #tpu.memory_space<vmem>>, vector<16x16x4xbf16>
    %50 = vector.shape_cast %49 : vector<16x16x4xbf16> to vector<256x4xbf16>
    %c7 = arith.constant 7 : index
    %c0_58 = arith.constant 0 : index
    %c0_59 = arith.constant 0 : index
    %51 = vector.load %arg4[%c7, %c0_58, %c0_59] : memref<9x4x32xbf16, #tpu.memory_space<vmem>>, vector<1x4x32xbf16>
    %52 = vector.shape_cast %51 : vector<1x4x32xbf16> to vector<4x32xbf16>
    %cst_60 = arith.constant dense<0.000000e+00> : vector<256x32xf32>
    %53 = tpu.matmul %50, %52, %cst_60 {dimension_numbers = #tpu.dot_dimension_numbers<[1], [0], [0], [1], [0, 0, 1, 1], [], []>} : vector<256x4xbf16>, vector<4x32xbf16>, vector<256x32xf32> -> vector<256x32xf32>
    %54 = arith.addf %48, %53 : vector<256x32xf32>
    %c2_61 = arith.constant 2 : index
    %c2_62 = arith.constant 2 : index
    %c0_63 = arith.constant 0 : index
    %55 = vector.load %arg8[%c2_61, %c2_62, %c0_63] : memref<18x18x4xbf16, #tpu.memory_space<vmem>>, vector<16x16x4xbf16>
    %56 = vector.shape_cast %55 : vector<16x16x4xbf16> to vector<256x4xbf16>
    %c8 = arith.constant 8 : index
    %c0_64 = arith.constant 0 : index
    %c0_65 = arith.constant 0 : index
    %57 = vector.load %arg4[%c8, %c0_64, %c0_65] : memref<9x4x32xbf16, #tpu.memory_space<vmem>>, vector<1x4x32xbf16>
    %58 = vector.shape_cast %57 : vector<1x4x32xbf16> to vector<4x32xbf16>
    %cst_66 = arith.constant dense<0.000000e+00> : vector<256x32xf32>
    %59 = tpu.matmul %56, %58, %cst_66 {dimension_numbers = #tpu.dot_dimension_numbers<[1], [0], [0], [1], [0, 0, 1, 1], [], []>} : vector<256x4xbf16>, vector<4x32xbf16>, vector<256x32xf32> -> vector<256x32xf32>
    %60 = arith.addf %54, %59 : vector<256x32xf32>
    %61 = arith.truncf %60 : vector<256x32xf32> to vector<256x32xbf16>
    %c0_67 = arith.constant 0 : index
    %c0_68 = arith.constant 0 : index
    %c0_69 = arith.constant 0 : index
    %62 = vector.load %arg5[%c0_67, %c0_68, %c0_69] : memref<1x256x32xbf16, #tpu.memory_space<vmem>>, vector<1x256x32xbf16>
    %63 = vector.shape_cast %62 : vector<1x256x32xbf16> to vector<256x32xbf16>
    %64 = vector.shape_cast %61 : vector<256x32xbf16> to vector<1x256x32xbf16>
    tpu.vector_store %arg5[%c0_67, %c0_68, %c0_69], %64 {strides = array<i32>} : memref<1x256x32xbf16, #tpu.memory_space<vmem>>, vector<1x256x32xbf16>,
    %cst_70 = arith.constant dense<0.000000e+00> : vector<32xf32>
    %65 = vector.multi_reduction <add>, %60, %cst_70 [0] : vector<256x32xf32> to vector<32xf32>
    %66 = vector.shape_cast %65 : vector<32xf32> to vector<1x32xf32>
    %c0_71 = arith.constant 0 : index
    %c0_72 = arith.constant 0 : index
    %c0_73 = arith.constant 0 : index
    %c0_74 = arith.constant 0 : index
    %67 = vector.load %arg6[%c0_71, %c0_72, %c0_73, %c0_74] : memref<1x1x1x32xf32, #tpu.memory_space<vmem>>, vector<1x1x1x32xf32>
    %68 = vector.shape_cast %67 : vector<1x1x1x32xf32> to vector<1x32xf32>
    %69 = vector.shape_cast %66 : vector<1x32xf32> to vector<1x1x1x32xf32>
    tpu.vector_store %arg6[%c0_71, %c0_72, %c0_73, %c0_74], %69 {strides = array<i32>} : memref<1x1x1x32xf32, #tpu.memory_space<vmem>>, vector<1x1x1x32xf32>,
    %70 = arith.mulf %60, %60 : vector<256x32xf32>
    %cst_75 = arith.constant dense<0.000000e+00> : vector<32xf32>
    %71 = vector.multi_reduction <add>, %70, %cst_75 [0] : vector<256x32xf32> to vector<32xf32>
    %72 = vector.shape_cast %71 : vector<32xf32> to vector<1x32xf32>
    %c0_76 = arith.constant 0 : index
    %c0_77 = arith.constant 0 : index
    %c0_78 = arith.constant 0 : index
    %c0_79 = arith.constant 0 : index
    %73 = vector.load %arg7[%c0_76, %c0_77, %c0_78, %c0_79] : memref<1x1x1x32xf32, #tpu.memory_space<vmem>>, vector<1x1x1x32xf32>
    %74 = vector.shape_cast %73 : vector<1x1x1x32xf32> to vector<1x32xf32>
    %75 = vector.shape_cast %72 : vector<1x32xf32> to vector<1x1x1x32xf32>
    tpu.vector_store %arg7[%c0_76, %c0_77, %c0_78, %c0_79], %75 {strides = array<i32>} : memref<1x1x1x32xf32, #tpu.memory_space<vmem>>, vector<1x1x1x32xf32>,
    return
  }
  func.func @transform_0(%arg0: i32, %arg1: i32) -> (i32, i32, i32, i32) {
    %c0_i32 = arith.constant 0 : i32
    %c0_i32_0 = arith.constant 0 : i32
    %c0_i32_1 = arith.constant 0 : i32
    return %arg0, %arg1, %c0_i32, %c0_i32_0 : i32, i32, i32, i32
  }
  func.func @transform_1(%arg0: i32, %arg1: i32) -> (i32, i32, i32, i32) {
    %c1_i32 = arith.constant 1 : i32
    %0 = arith.addi %arg1, %c1_i32 : i32
    %c8_i32 = arith.constant 8 : i32
    %1 = arith.muli %0, %c8_i32 : i32
    %c0_i32 = arith.constant 0 : i32
    %c0_i32_0 = arith.constant 0 : i32
    %c0_i32_1 = arith.constant 0 : i32
    return %arg0, %1, %c0_i32, %c0_i32_0 : i32, i32, i32, i32
  }
  func.func @transform_2(%arg0: i32, %arg1: i32) -> (i32, i32, i32) {
    %c0_i32 = arith.constant 0 : i32
    %c0_i32_0 = arith.constant 0 : i32
    %c0_i32_1 = arith.constant 0 : i32
    %c0_i32_2 = arith.constant 0 : i32
    return %c0_i32, %c0_i32_0, %c0_i32_1 : i32, i32, i32
  }
  func.func @transform_3(%arg0: i32, %arg1: i32) -> (i32, i32, i32) {
    %c0_i32 = arith.constant 0 : i32
    %c0_i32_0 = arith.constant 0 : i32
    return %arg0, %arg1, %c0_i32 : i32, i32, i32
  }
  func.func @transform_4(%arg0: i32, %arg1: i32) -> (i32, i32, i32, i32) {
    %c0_i32 = arith.constant 0 : i32
    %c0_i32_0 = arith.constant 0 : i32
    %c0_i32_1 = arith.constant 0 : i32
    return %arg0, %arg1, %c0_i32, %c0_i32_0 : i32, i32, i32, i32
  }
  func.func @transform_5(%arg0: i32, %arg1: i32) -> (i32, i32, i32, i32) {
    %c0_i32 = arith.constant 0 : i32
    %c0_i32_0 = arith.constant 0 : i32
    %c0_i32_1 = arith.constant 0 : i32
    return %arg0, %arg1, %c0_i32, %c0_i32_0 : i32, i32, i32, i32
  }
}

module attributes {stable_mosaic.version = 11 : i64} {
  func.func @_conv3x3_stats_kernel(%arg0: i32, %arg1: i32, %arg2: memref<1x16x18x32xbf16, #tpu.memory_space<vmem>>, %arg3: memref<1x2x18x32xbf16, #tpu.memory_space<vmem>>, %arg4: memref<9x32x16xbf16, #tpu.memory_space<vmem>>, %arg5: memref<1x256x16xbf16, #tpu.memory_space<vmem>>, %arg6: memref<1x1x1x16xf32, #tpu.memory_space<vmem>>, %arg7: memref<1x1x1x16xf32, #tpu.memory_space<vmem>>, %arg8: memref<18x18x32xbf16, #tpu.memory_space<vmem>>) attributes {dimension_semantics = [#tpu.dimension_semantics<parallel>, #tpu.dimension_semantics<parallel>], iteration_bounds = array<i64: 2, 1>, scalar_prefetch = 0 : i64, scratch_operands = 1 : i64, tpu.core_type = #tpu.core_type<tc>, window_params = [{transform_indices = @transform_0, window_bounds = array<i64: 1, 16, 18, 32>}, {transform_indices = @transform_1, window_bounds = array<i64: 1, 2, 18, 32>}, {pipeline_mode = #tpu.pipeline_mode<synchronous>, transform_indices = @transform_2, window_bounds = array<i64: 9, 32, 16>}, {transform_indices = @transform_3, window_bounds = array<i64: 1, 256, 16>}, {transform_indices = @transform_4, window_bounds = array<i64: 1, 1, 1, 16>}, {transform_indices = @transform_5, window_bounds = array<i64: 1, 1, 1, 16>}]} {
    %c0 = arith.constant 0 : index
    %c0_0 = arith.constant 0 : index
    %c0_1 = arith.constant 0 : index
    %c0_2 = arith.constant 0 : index
    %0 = vector.load %arg2[%c0, %c0_0, %c0_1, %c0_2] : memref<1x16x18x32xbf16, #tpu.memory_space<vmem>>, vector<1x16x18x32xbf16>
    %1 = vector.shape_cast %0 : vector<1x16x18x32xbf16> to vector<16x18x32xbf16>
    %c0_3 = arith.constant 0 : index
    %c0_4 = arith.constant 0 : index
    %c0_5 = arith.constant 0 : index
    %2 = vector.load %arg8[%c0_3, %c0_4, %c0_5] : memref<18x18x32xbf16, #tpu.memory_space<vmem>>, vector<16x18x32xbf16>
    tpu.vector_store %arg8[%c0_3, %c0_4, %c0_5], %1 {strides = array<i32>} : memref<18x18x32xbf16, #tpu.memory_space<vmem>>, vector<16x18x32xbf16>,
    %c0_6 = arith.constant 0 : index
    %c0_7 = arith.constant 0 : index
    %c0_8 = arith.constant 0 : index
    %c0_9 = arith.constant 0 : index
    %3 = vector.load %arg3[%c0_6, %c0_7, %c0_8, %c0_9] : memref<1x2x18x32xbf16, #tpu.memory_space<vmem>>, vector<1x2x18x32xbf16>
    %4 = vector.shape_cast %3 : vector<1x2x18x32xbf16> to vector<2x18x32xbf16>
    %c16 = arith.constant 16 : index
    %c0_10 = arith.constant 0 : index
    %c0_11 = arith.constant 0 : index
    %5 = vector.load %arg8[%c16, %c0_10, %c0_11] : memref<18x18x32xbf16, #tpu.memory_space<vmem>>, vector<2x18x32xbf16>
    tpu.vector_store %arg8[%c16, %c0_10, %c0_11], %4 {strides = array<i32>} : memref<18x18x32xbf16, #tpu.memory_space<vmem>>, vector<2x18x32xbf16>,
    %cst = arith.constant 0.000000e+00 : f32
    %6 = vector.broadcast %cst : f32 to vector<256x16xf32>
    %c0_12 = arith.constant 0 : index
    %c0_13 = arith.constant 0 : index
    %c0_14 = arith.constant 0 : index
    %7 = vector.load %arg8[%c0_12, %c0_13, %c0_14] : memref<18x18x32xbf16, #tpu.memory_space<vmem>>, vector<16x16x32xbf16>
    %8 = vector.shape_cast %7 : vector<16x16x32xbf16> to vector<256x32xbf16>
    %c0_15 = arith.constant 0 : index
    %c0_16 = arith.constant 0 : index
    %c0_17 = arith.constant 0 : index
    %9 = vector.load %arg4[%c0_15, %c0_16, %c0_17] : memref<9x32x16xbf16, #tpu.memory_space<vmem>>, vector<1x32x16xbf16>
    %10 = vector.shape_cast %9 : vector<1x32x16xbf16> to vector<32x16xbf16>
    %cst_18 = arith.constant dense<0.000000e+00> : vector<256x16xf32>
    %11 = tpu.matmul %8, %10, %cst_18 {dimension_numbers = #tpu.dot_dimension_numbers<[1], [0], [0], [1], [0, 0, 1, 1], [], []>} : vector<256x32xbf16>, vector<32x16xbf16>, vector<256x16xf32> -> vector<256x16xf32>
    %12 = arith.addf %6, %11 : vector<256x16xf32>
    %c0_19 = arith.constant 0 : index
    %c1 = arith.constant 1 : index
    %c0_20 = arith.constant 0 : index
    %13 = vector.load %arg8[%c0_19, %c1, %c0_20] : memref<18x18x32xbf16, #tpu.memory_space<vmem>>, vector<16x16x32xbf16>
    %14 = vector.shape_cast %13 : vector<16x16x32xbf16> to vector<256x32xbf16>
    %c1_21 = arith.constant 1 : index
    %c0_22 = arith.constant 0 : index
    %c0_23 = arith.constant 0 : index
    %15 = vector.load %arg4[%c1_21, %c0_22, %c0_23] : memref<9x32x16xbf16, #tpu.memory_space<vmem>>, vector<1x32x16xbf16>
    %16 = vector.shape_cast %15 : vector<1x32x16xbf16> to vector<32x16xbf16>
    %cst_24 = arith.constant dense<0.000000e+00> : vector<256x16xf32>
    %17 = tpu.matmul %14, %16, %cst_24 {dimension_numbers = #tpu.dot_dimension_numbers<[1], [0], [0], [1], [0, 0, 1, 1], [], []>} : vector<256x32xbf16>, vector<32x16xbf16>, vector<256x16xf32> -> vector<256x16xf32>
    %18 = arith.addf %12, %17 : vector<256x16xf32>
    %c0_25 = arith.constant 0 : index
    %c2 = arith.constant 2 : index
    %c0_26 = arith.constant 0 : index
    %19 = vector.load %arg8[%c0_25, %c2, %c0_26] : memref<18x18x32xbf16, #tpu.memory_space<vmem>>, vector<16x16x32xbf16>
    %20 = vector.shape_cast %19 : vector<16x16x32xbf16> to vector<256x32xbf16>
    %c2_27 = arith.constant 2 : index
    %c0_28 = arith.constant 0 : index
    %c0_29 = arith.constant 0 : index
    %21 = vector.load %arg4[%c2_27, %c0_28, %c0_29] : memref<9x32x16xbf16, #tpu.memory_space<vmem>>, vector<1x32x16xbf16>
    %22 = vector.shape_cast %21 : vector<1x32x16xbf16> to vector<32x16xbf16>
    %cst_30 = arith.constant dense<0.000000e+00> : vector<256x16xf32>
    %23 = tpu.matmul %20, %22, %cst_30 {dimension_numbers = #tpu.dot_dimension_numbers<[1], [0], [0], [1], [0, 0, 1, 1], [], []>} : vector<256x32xbf16>, vector<32x16xbf16>, vector<256x16xf32> -> vector<256x16xf32>
    %24 = arith.addf %18, %23 : vector<256x16xf32>
    %c1_31 = arith.constant 1 : index
    %c0_32 = arith.constant 0 : index
    %c0_33 = arith.constant 0 : index
    %25 = vector.load %arg8[%c1_31, %c0_32, %c0_33] : memref<18x18x32xbf16, #tpu.memory_space<vmem>>, vector<16x16x32xbf16>
    %26 = vector.shape_cast %25 : vector<16x16x32xbf16> to vector<256x32xbf16>
    %c3 = arith.constant 3 : index
    %c0_34 = arith.constant 0 : index
    %c0_35 = arith.constant 0 : index
    %27 = vector.load %arg4[%c3, %c0_34, %c0_35] : memref<9x32x16xbf16, #tpu.memory_space<vmem>>, vector<1x32x16xbf16>
    %28 = vector.shape_cast %27 : vector<1x32x16xbf16> to vector<32x16xbf16>
    %cst_36 = arith.constant dense<0.000000e+00> : vector<256x16xf32>
    %29 = tpu.matmul %26, %28, %cst_36 {dimension_numbers = #tpu.dot_dimension_numbers<[1], [0], [0], [1], [0, 0, 1, 1], [], []>} : vector<256x32xbf16>, vector<32x16xbf16>, vector<256x16xf32> -> vector<256x16xf32>
    %30 = arith.addf %24, %29 : vector<256x16xf32>
    %c1_37 = arith.constant 1 : index
    %c1_38 = arith.constant 1 : index
    %c0_39 = arith.constant 0 : index
    %31 = vector.load %arg8[%c1_37, %c1_38, %c0_39] : memref<18x18x32xbf16, #tpu.memory_space<vmem>>, vector<16x16x32xbf16>
    %32 = vector.shape_cast %31 : vector<16x16x32xbf16> to vector<256x32xbf16>
    %c4 = arith.constant 4 : index
    %c0_40 = arith.constant 0 : index
    %c0_41 = arith.constant 0 : index
    %33 = vector.load %arg4[%c4, %c0_40, %c0_41] : memref<9x32x16xbf16, #tpu.memory_space<vmem>>, vector<1x32x16xbf16>
    %34 = vector.shape_cast %33 : vector<1x32x16xbf16> to vector<32x16xbf16>
    %cst_42 = arith.constant dense<0.000000e+00> : vector<256x16xf32>
    %35 = tpu.matmul %32, %34, %cst_42 {dimension_numbers = #tpu.dot_dimension_numbers<[1], [0], [0], [1], [0, 0, 1, 1], [], []>} : vector<256x32xbf16>, vector<32x16xbf16>, vector<256x16xf32> -> vector<256x16xf32>
    %36 = arith.addf %30, %35 : vector<256x16xf32>
    %c1_43 = arith.constant 1 : index
    %c2_44 = arith.constant 2 : index
    %c0_45 = arith.constant 0 : index
    %37 = vector.load %arg8[%c1_43, %c2_44, %c0_45] : memref<18x18x32xbf16, #tpu.memory_space<vmem>>, vector<16x16x32xbf16>
    %38 = vector.shape_cast %37 : vector<16x16x32xbf16> to vector<256x32xbf16>
    %c5 = arith.constant 5 : index
    %c0_46 = arith.constant 0 : index
    %c0_47 = arith.constant 0 : index
    %39 = vector.load %arg4[%c5, %c0_46, %c0_47] : memref<9x32x16xbf16, #tpu.memory_space<vmem>>, vector<1x32x16xbf16>
    %40 = vector.shape_cast %39 : vector<1x32x16xbf16> to vector<32x16xbf16>
    %cst_48 = arith.constant dense<0.000000e+00> : vector<256x16xf32>
    %41 = tpu.matmul %38, %40, %cst_48 {dimension_numbers = #tpu.dot_dimension_numbers<[1], [0], [0], [1], [0, 0, 1, 1], [], []>} : vector<256x32xbf16>, vector<32x16xbf16>, vector<256x16xf32> -> vector<256x16xf32>
    %42 = arith.addf %36, %41 : vector<256x16xf32>
    %c2_49 = arith.constant 2 : index
    %c0_50 = arith.constant 0 : index
    %c0_51 = arith.constant 0 : index
    %43 = vector.load %arg8[%c2_49, %c0_50, %c0_51] : memref<18x18x32xbf16, #tpu.memory_space<vmem>>, vector<16x16x32xbf16>
    %44 = vector.shape_cast %43 : vector<16x16x32xbf16> to vector<256x32xbf16>
    %c6 = arith.constant 6 : index
    %c0_52 = arith.constant 0 : index
    %c0_53 = arith.constant 0 : index
    %45 = vector.load %arg4[%c6, %c0_52, %c0_53] : memref<9x32x16xbf16, #tpu.memory_space<vmem>>, vector<1x32x16xbf16>
    %46 = vector.shape_cast %45 : vector<1x32x16xbf16> to vector<32x16xbf16>
    %cst_54 = arith.constant dense<0.000000e+00> : vector<256x16xf32>
    %47 = tpu.matmul %44, %46, %cst_54 {dimension_numbers = #tpu.dot_dimension_numbers<[1], [0], [0], [1], [0, 0, 1, 1], [], []>} : vector<256x32xbf16>, vector<32x16xbf16>, vector<256x16xf32> -> vector<256x16xf32>
    %48 = arith.addf %42, %47 : vector<256x16xf32>
    %c2_55 = arith.constant 2 : index
    %c1_56 = arith.constant 1 : index
    %c0_57 = arith.constant 0 : index
    %49 = vector.load %arg8[%c2_55, %c1_56, %c0_57] : memref<18x18x32xbf16, #tpu.memory_space<vmem>>, vector<16x16x32xbf16>
    %50 = vector.shape_cast %49 : vector<16x16x32xbf16> to vector<256x32xbf16>
    %c7 = arith.constant 7 : index
    %c0_58 = arith.constant 0 : index
    %c0_59 = arith.constant 0 : index
    %51 = vector.load %arg4[%c7, %c0_58, %c0_59] : memref<9x32x16xbf16, #tpu.memory_space<vmem>>, vector<1x32x16xbf16>
    %52 = vector.shape_cast %51 : vector<1x32x16xbf16> to vector<32x16xbf16>
    %cst_60 = arith.constant dense<0.000000e+00> : vector<256x16xf32>
    %53 = tpu.matmul %50, %52, %cst_60 {dimension_numbers = #tpu.dot_dimension_numbers<[1], [0], [0], [1], [0, 0, 1, 1], [], []>} : vector<256x32xbf16>, vector<32x16xbf16>, vector<256x16xf32> -> vector<256x16xf32>
    %54 = arith.addf %48, %53 : vector<256x16xf32>
    %c2_61 = arith.constant 2 : index
    %c2_62 = arith.constant 2 : index
    %c0_63 = arith.constant 0 : index
    %55 = vector.load %arg8[%c2_61, %c2_62, %c0_63] : memref<18x18x32xbf16, #tpu.memory_space<vmem>>, vector<16x16x32xbf16>
    %56 = vector.shape_cast %55 : vector<16x16x32xbf16> to vector<256x32xbf16>
    %c8 = arith.constant 8 : index
    %c0_64 = arith.constant 0 : index
    %c0_65 = arith.constant 0 : index
    %57 = vector.load %arg4[%c8, %c0_64, %c0_65] : memref<9x32x16xbf16, #tpu.memory_space<vmem>>, vector<1x32x16xbf16>
    %58 = vector.shape_cast %57 : vector<1x32x16xbf16> to vector<32x16xbf16>
    %cst_66 = arith.constant dense<0.000000e+00> : vector<256x16xf32>
    %59 = tpu.matmul %56, %58, %cst_66 {dimension_numbers = #tpu.dot_dimension_numbers<[1], [0], [0], [1], [0, 0, 1, 1], [], []>} : vector<256x32xbf16>, vector<32x16xbf16>, vector<256x16xf32> -> vector<256x16xf32>
    %60 = arith.addf %54, %59 : vector<256x16xf32>
    %61 = arith.truncf %60 : vector<256x16xf32> to vector<256x16xbf16>
    %c0_67 = arith.constant 0 : index
    %c0_68 = arith.constant 0 : index
    %c0_69 = arith.constant 0 : index
    %62 = vector.load %arg5[%c0_67, %c0_68, %c0_69] : memref<1x256x16xbf16, #tpu.memory_space<vmem>>, vector<1x256x16xbf16>
    %63 = vector.shape_cast %62 : vector<1x256x16xbf16> to vector<256x16xbf16>
    %64 = vector.shape_cast %61 : vector<256x16xbf16> to vector<1x256x16xbf16>
    tpu.vector_store %arg5[%c0_67, %c0_68, %c0_69], %64 {strides = array<i32>} : memref<1x256x16xbf16, #tpu.memory_space<vmem>>, vector<1x256x16xbf16>,
    %cst_70 = arith.constant dense<0.000000e+00> : vector<16xf32>
    %65 = vector.multi_reduction <add>, %60, %cst_70 [0] : vector<256x16xf32> to vector<16xf32>
    %66 = vector.shape_cast %65 : vector<16xf32> to vector<1x16xf32>
    %c0_71 = arith.constant 0 : index
    %c0_72 = arith.constant 0 : index
    %c0_73 = arith.constant 0 : index
    %c0_74 = arith.constant 0 : index
    %67 = vector.load %arg6[%c0_71, %c0_72, %c0_73, %c0_74] : memref<1x1x1x16xf32, #tpu.memory_space<vmem>>, vector<1x1x1x16xf32>
    %68 = vector.shape_cast %67 : vector<1x1x1x16xf32> to vector<1x16xf32>
    %69 = vector.shape_cast %66 : vector<1x16xf32> to vector<1x1x1x16xf32>
    tpu.vector_store %arg6[%c0_71, %c0_72, %c0_73, %c0_74], %69 {strides = array<i32>} : memref<1x1x1x16xf32, #tpu.memory_space<vmem>>, vector<1x1x1x16xf32>,
    %70 = arith.mulf %60, %60 : vector<256x16xf32>
    %cst_75 = arith.constant dense<0.000000e+00> : vector<16xf32>
    %71 = vector.multi_reduction <add>, %70, %cst_75 [0] : vector<256x16xf32> to vector<16xf32>
    %72 = vector.shape_cast %71 : vector<16xf32> to vector<1x16xf32>
    %c0_76 = arith.constant 0 : index
    %c0_77 = arith.constant 0 : index
    %c0_78 = arith.constant 0 : index
    %c0_79 = arith.constant 0 : index
    %73 = vector.load %arg7[%c0_76, %c0_77, %c0_78, %c0_79] : memref<1x1x1x16xf32, #tpu.memory_space<vmem>>, vector<1x1x1x16xf32>
    %74 = vector.shape_cast %73 : vector<1x1x1x16xf32> to vector<1x16xf32>
    %75 = vector.shape_cast %72 : vector<1x16xf32> to vector<1x1x1x16xf32>
    tpu.vector_store %arg7[%c0_76, %c0_77, %c0_78, %c0_79], %75 {strides = array<i32>} : memref<1x1x1x16xf32, #tpu.memory_space<vmem>>, vector<1x1x1x16xf32>,
    return
  }
  func.func @transform_0(%arg0: i32, %arg1: i32) -> (i32, i32, i32, i32) {
    %c0_i32 = arith.constant 0 : i32
    %c0_i32_0 = arith.constant 0 : i32
    %c0_i32_1 = arith.constant 0 : i32
    return %arg0, %arg1, %c0_i32, %c0_i32_0 : i32, i32, i32, i32
  }
  func.func @transform_1(%arg0: i32, %arg1: i32) -> (i32, i32, i32, i32) {
    %c1_i32 = arith.constant 1 : i32
    %0 = arith.addi %arg1, %c1_i32 : i32
    %c8_i32 = arith.constant 8 : i32
    %1 = arith.muli %0, %c8_i32 : i32
    %c0_i32 = arith.constant 0 : i32
    %c0_i32_0 = arith.constant 0 : i32
    %c0_i32_1 = arith.constant 0 : i32
    return %arg0, %1, %c0_i32, %c0_i32_0 : i32, i32, i32, i32
  }
  func.func @transform_2(%arg0: i32, %arg1: i32) -> (i32, i32, i32) {
    %c0_i32 = arith.constant 0 : i32
    %c0_i32_0 = arith.constant 0 : i32
    %c0_i32_1 = arith.constant 0 : i32
    %c0_i32_2 = arith.constant 0 : i32
    return %c0_i32, %c0_i32_0, %c0_i32_1 : i32, i32, i32
  }
  func.func @transform_3(%arg0: i32, %arg1: i32) -> (i32, i32, i32) {
    %c0_i32 = arith.constant 0 : i32
    %c0_i32_0 = arith.constant 0 : i32
    return %arg0, %arg1, %c0_i32 : i32, i32, i32
  }
  func.func @transform_4(%arg0: i32, %arg1: i32) -> (i32, i32, i32, i32) {
    %c0_i32 = arith.constant 0 : i32
    %c0_i32_0 = arith.constant 0 : i32
    %c0_i32_1 = arith.constant 0 : i32
    return %arg0, %arg1, %c0_i32, %c0_i32_0 : i32, i32, i32, i32
  }
  func.func @transform_5(%arg0: i32, %arg1: i32) -> (i32, i32, i32, i32) {
    %c0_i32 = arith.constant 0 : i32
    %c0_i32_0 = arith.constant 0 : i32
    %c0_i32_1 = arith.constant 0 : i32
    return %arg0, %arg1, %c0_i32, %c0_i32_0 : i32, i32, i32, i32
  }
}

module attributes {stable_mosaic.version = 11 : i64} {
  func.func @_bn_relu_kernel(%arg0: i32, %arg1: memref<512x16xbf16, #tpu.memory_space<vmem>>, %arg2: memref<1x16xf32, #tpu.memory_space<vmem>>, %arg3: memref<1x16xf32, #tpu.memory_space<vmem>>, %arg4: memref<512x16xf32, #tpu.memory_space<vmem>>) attributes {dimension_semantics = [#tpu.dimension_semantics<parallel>], iteration_bounds = array<i64: 1>, scalar_prefetch = 0 : i64, scratch_operands = 0 : i64, tpu.core_type = #tpu.core_type<tc>, window_params = [{transform_indices = @transform_0, window_bounds = array<i64: 512, 16>}, {pipeline_mode = #tpu.pipeline_mode<synchronous>, transform_indices = @transform_1, window_bounds = array<i64: 1, 16>}, {pipeline_mode = #tpu.pipeline_mode<synchronous>, transform_indices = @transform_2, window_bounds = array<i64: 1, 16>}, {transform_indices = @transform_3, window_bounds = array<i64: 512, 16>}]} {
    %c0 = arith.constant 0 : index
    %c0_0 = arith.constant 0 : index
    %0 = vector.load %arg1[%c0, %c0_0] : memref<512x16xbf16, #tpu.memory_space<vmem>>, vector<512x16xbf16>
    %1 = arith.extf %0 : vector<512x16xbf16> to vector<512x16xf32>
    %c0_1 = arith.constant 0 : index
    %c0_2 = arith.constant 0 : index
    %2 = vector.load %arg2[%c0_1, %c0_2] : memref<1x16xf32, #tpu.memory_space<vmem>>, vector<1x16xf32>
    %3 = vector.broadcast %2 : vector<1x16xf32> to vector<512x16xf32>
    %4 = arith.mulf %1, %3 : vector<512x16xf32>
    %c0_3 = arith.constant 0 : index
    %c0_4 = arith.constant 0 : index
    %5 = vector.load %arg3[%c0_3, %c0_4] : memref<1x16xf32, #tpu.memory_space<vmem>>, vector<1x16xf32>
    %6 = vector.broadcast %5 : vector<1x16xf32> to vector<512x16xf32>
    %7 = arith.addf %4, %6 : vector<512x16xf32>
    %cst = arith.constant 0.000000e+00 : f32
    %8 = vector.broadcast %cst : f32 to vector<512x16xf32>
    %9 = arith.maximumf %7, %8 : vector<512x16xf32>
    %c0_5 = arith.constant 0 : index
    %c0_6 = arith.constant 0 : index
    %10 = vector.load %arg4[%c0_5, %c0_6] : memref<512x16xf32, #tpu.memory_space<vmem>>, vector<512x16xf32>
    tpu.vector_store %arg4[%c0_5, %c0_6], %9 {strides = array<i32>} : memref<512x16xf32, #tpu.memory_space<vmem>>, vector<512x16xf32>,
    return
  }
  func.func @transform_0(%arg0: i32) -> (i32, i32) {
    %c0_i32 = arith.constant 0 : i32
    %c0_i32_0 = arith.constant 0 : i32
    return %arg0, %c0_i32 : i32, i32
  }
  func.func @transform_1(%arg0: i32) -> (i32, i32) {
    %c0_i32 = arith.constant 0 : i32
    %c0_i32_0 = arith.constant 0 : i32
    %c0_i32_1 = arith.constant 0 : i32
    return %c0_i32, %c0_i32_0 : i32, i32
  }
  func.func @transform_2(%arg0: i32) -> (i32, i32) {
    %c0_i32 = arith.constant 0 : i32
    %c0_i32_0 = arith.constant 0 : i32
    %c0_i32_1 = arith.constant 0 : i32
    return %c0_i32, %c0_i32_0 : i32, i32
  }
  func.func @transform_3(%arg0: i32) -> (i32, i32) {
    %c0_i32 = arith.constant 0 : i32
    %c0_i32_0 = arith.constant 0 : i32
    return %arg0, %c0_i32 : i32, i32
  }
}

</mosaic_0001>

<llo_original>
// kernel: vgg_block_forward.7
$region0: #{vgg_block_forward.7}
  #allocation0 [shape = 'u32[]', space=smem, size = 0x4, offset = 0x4, fixed_abs, tag = 'smem constant byte address 0x4 - core index']
  #allocation1 [shape = 'u32[144,128]{1,0:T(1,128)}', space=vmem, size = 0x12000, scoped, tag = 'internal scratch']
  %s0 = inlined_call_operand.vmem [shape: bf16[512,16], index: 0, kind: input, shape index: {}]
  %s1 = inlined_call_operand.vmem [shape: f32[1,16], index: 1, kind: input, shape index: {}]
  %s2 = inlined_call_operand.vmem [shape: f32[1,16], index: 2, kind: input, shape index: {}]
  %s3 = inlined_call_operand.vmem [shape: f32[512,16], index: 3, kind: output, shape index: {}]
  %s4 = sld [smem:[#allocation0]]
  $region22: #{vgg_block_forward.7} parent=0
    _
  %s6 = ssub.s32 1, %s4
  %s7 = scalar_select 0, %s6, %s4
  // Predicated region
  $region2: #{vgg_block_forward.7} parent=0 // pred_check
    _
  $region3: #{vgg_block_forward.7} parent=0 // pred_check_branch
    %9 = sbr.rel (0) target = $region5
  $region4: #{vgg_block_forward.7} parent=0 // pred_region
    _
  $region5: #{vgg_block_forward.7} parent=0 // pred_fallthru
    _
  // Predicated region
  $region6: #{vgg_block_forward.7} parent=0 // pred_check
    _
  $region7: #{vgg_block_forward.7} parent=0 // pred_check_branch
    %11 = sbr.rel (0) target = $region9
  $region8: #{vgg_block_forward.7} parent=0 // pred_region
    _
  $region9: #{vgg_block_forward.7} parent=0 // pred_fallthru
    _
  // Predicated region
  $region10: #{vgg_block_forward.7} parent=0 // pred_check
    _
  $region11: #{vgg_block_forward.7} parent=0 // pred_check_branch
    %13 = sbr.rel (0) target = $region13
  $region12: #{vgg_block_forward.7} parent=0 // pred_region
    _
  $region13: #{vgg_block_forward.7} parent=0 // pred_fallthru
    _
  %v14 = vld [vmem:[%s0] sm:$0xf]
  %v15 = vld [vmem:[%s0 + $0x4] sm:$0xf]
  %v16 = vld [vmem:[%s0 + $0x8] sm:$0xf]
  %v17 = vld [vmem:[%s0 + $0xc] sm:$0xf]
  %v18 = vld [vmem:[%s0 + $0x10] sm:$0xf]
  %v19 = vld [vmem:[%s0 + $0x14] sm:$0xf]
  %v20 = vld [vmem:[%s0 + $0x18] sm:$0xf]
  %v21 = vld [vmem:[%s0 + $0x1c] sm:$0xf]
  %v22 = vld [vmem:[%s0 + $0x20] sm:$0xf]
  %v23 = vld [vmem:[%s0 + $0x24] sm:$0xf]
  %v24 = vld [vmem:[%s0 + $0x28] sm:$0xf]
  %v25 = vld [vmem:[%s0 + $0x2c] sm:$0xf]
  %v26 = vld [vmem:[%s0 + $0x30] sm:$0xf]
  %v27 = vld [vmem:[%s0 + $0x34] sm:$0xf]
  %v28 = vld [vmem:[%s0 + $0x38] sm:$0xf]
  %v29 = vld [vmem:[%s0 + $0x3c] sm:$0xf]
  %v30 = vld [vmem:[%s0 + $0x40] sm:$0xf]
  %v31 = vld [vmem:[%s0 + $0x44] sm:$0xf]
  %v32 = vld [vmem:[%s0 + $0x48] sm:$0xf]
  %v33 = vld [vmem:[%s0 + $0x4c] sm:$0xf]
  %v34 = vld [vmem:[%s0 + $0x50] sm:$0xf]
  %v35 = vld [vmem:[%s0 + $0x54] sm:$0xf]
  %v36 = vld [vmem:[%s0 + $0x58] sm:$0xf]
  %v37 = vld [vmem:[%s0 + $0x5c] sm:$0xf]
  %v38 = vld [vmem:[%s0 + $0x60] sm:$0xf]
  %v39 = vld [vmem:[%s0 + $0x64] sm:$0xf]
  %v40 = vld [vmem:[%s0 + $0x68] sm:$0xf]
  %v41 = vld [vmem:[%s0 + $0x6c] sm:$0xf]
  %v42 = vld [vmem:[%s0 + $0x70] sm:$0xf]
  %v43 = vld [vmem:[%s0 + $0x74] sm:$0xf]
  %v44 = vld [vmem:[%s0 + $0x78] sm:$0xf]
  %v45 = vld [vmem:[%s0 + $0x7c] sm:$0xf]
  %v46 = vld [vmem:[%s0 + $0x80] sm:$0xf]
  %v47 = vld [vmem:[%s0 + $0x84] sm:$0xf]
  %v48 = vld [vmem:[%s0 + $0x88] sm:$0xf]
  %v49 = vld [vmem:[%s0 + $0x8c] sm:$0xf]
  %v50 = vld [vmem:[%s0 + $0x90] sm:$0xf]
  %v51 = vld [vmem:[%s0 + $0x94] sm:$0xf]
  %v52 = vld [vmem:[%s0 + $0x98] sm:$0xf]
  %v53 = vld [vmem:[%s0 + $0x9c] sm:$0xf]
  %v54 = vld [vmem:[%s0 + $0xa0] sm:$0xf]
  %v55 = vld [vmem:[%s0 + $0xa4] sm:$0xf]
  %v56 = vld [vmem:[%s0 + $0xa8] sm:$0xf]
  %v57 = vld [vmem:[%s0 + $0xac] sm:$0xf]
  %v58 = vld [vmem:[%s0 + $0xb0] sm:$0xf]
  %v59 = vld [vmem:[%s0 + $0xb4] sm:$0xf]
  %v60 = vld [vmem:[%s0 + $0xb8] sm:$0xf]
  %v61 = vld [vmem:[%s0 + $0xbc] sm:$0xf]
  %v62 = vld [vmem:[%s0 + $0xc0] sm:$0xf]
  %v63 = vld [vmem:[%s0 + $0xc4] sm:$0xf]
  %v64 = vld [vmem:[%s0 + $0xc8] sm:$0xf]
  %v65 = vld [vmem:[%s0 + $0xcc] sm:$0xf]
  %v66 = vld [vmem:[%s0 + $0xd0] sm:$0xf]
  %v67 = vld [vmem:[%s0 + $0xd4] sm:$0xf]
  %v68 = vld [vmem:[%s0 + $0xd8] sm:$0xf]
  %v69 = vld [vmem:[%s0 + $0xdc] sm:$0xf]
  %v70 = vld [vmem:[%s0 + $0xe0] sm:$0xf]
  %v71 = vld [vmem:[%s0 + $0xe4] sm:$0xf]
  %v72 = vld [vmem:[%s0 + $0xe8] sm:$0xf]
  %v73 = vld [vmem:[%s0 + $0xec] sm:$0xf]
  %v74 = vld [vmem:[%s0 + $0xf0] sm:$0xf]
  %v75 = vld [vmem:[%s0 + $0xf4] sm:$0xf]
  %v76 = vld [vmem:[%s0 + $0xf8] sm:$0xf]
  %v77 = vld [vmem:[%s0 + $0xfc] sm:$0xf]
  %v78 = vunpack.c.l.bf16 %v14
  %v79 = vunpack.c.l.bf16 %v15
  %v80 = vunpack.c.l.bf16 %v16
  %v81 = vunpack.c.l.bf16 %v17
  %v82 = vunpack.c.l.bf16 %v18
  %v83 = vunpack.c.l.bf16 %v19
  %v84 = vunpack.c.l.bf16 %v20
  %v85 = vunpack.c.l.bf16 %v21
  %v86 = vunpack.c.l.bf16 %v22
  %v87 = vunpack.c.l.bf16 %v23
  %v88 = vunpack.c.l.bf16 %v24
  %v89 = vunpack.c.l.bf16 %v25
  %v90 = vunpack.c.l.bf16 %v26
  %v91 = vunpack.c.l.bf16 %v27
  %v92 = vunpack.c.l.bf16 %v28
  %v93 = vunpack.c.l.bf16 %v29
  %v94 = vunpack.c.l.bf16 %v30
  %v95 = vunpack.c.l.bf16 %v31
  %v96 = vunpack.c.l.bf16 %v32
  %v97 = vunpack.c.l.bf16 %v33
  %v98 = vunpack.c.l.bf16 %v34
  %v99 = vunpack.c.l.bf16 %v35
  %v100 = vunpack.c.l.bf16 %v36
  %v101 = vunpack.c.l.bf16 %v37
  %v102 = vunpack.c.l.bf16 %v38
  %v103 = vunpack.c.l.bf16 %v39
  %v104 = vunpack.c.l.bf16 %v40
  %v105 = vunpack.c.l.bf16 %v41
  %v106 = vunpack.c.l.bf16 %v42
  %v107 = vunpack.c.l.bf16 %v43
  %v108 = vunpack.c.l.bf16 %v44
  %v109 = vunpack.c.l.bf16 %v45
  %v110 = vunpack.c.l.bf16 %v46
  %v111 = vunpack.c.l.bf16 %v47
  %v112 = vunpack.c.l.bf16 %v48
  %v113 = vunpack.c.l.bf16 %v49
  %v114 = vunpack.c.l.bf16 %v50
  %v115 = vunpack.c.l.bf16 %v51
  %v116 = vunpack.c.l.bf16 %v52
  %v117 = vunpack.c.l.bf16 %v53
  %v118 = vunpack.c.l.bf16 %v54
  %v119 = vunpack.c.l.bf16 %v55
  %v120 = vunpack.c.l.bf16 %v56
  %v121 = vunpack.c.l.bf16 %v57
  %v122 = vunpack.c.l.bf16 %v58
  %v123 = vunpack.c.l.bf16 %v59
  %v124 = vunpack.c.l.bf16 %v60
  %v125 = vunpack.c.l.bf16 %v61
  %v126 = vunpack.c.l.bf16 %v62
  %v127 = vunpack.c.l.bf16 %v63
  %v128 = vunpack.c.l.bf16 %v64
  %v129 = vunpack.c.l.bf16 %v65
  %v130 = vunpack.c.l.bf16 %v66
  %v131 = vunpack.c.l.bf16 %v67
  %v132 = vunpack.c.l.bf16 %v68
  %v133 = vunpack.c.l.bf16 %v69
  %v134 = vunpack.c.l.bf16 %v70
  %v135 = vunpack.c.l.bf16 %v71
  %v136 = vunpack.c.l.bf16 %v72
  %v137 = vunpack.c.l.bf16 %v73
  %v138 = vunpack.c.l.bf16 %v74
  %v139 = vunpack.c.l.bf16 %v75
  %v140 = vunpack.c.l.bf16 %v76
  %v141 = vunpack.c.l.bf16 %v77
  %v142 = vld [vmem:[%s1] sm:$0x1]
  %v144 = vlaneseq
  %v145 = vshrl.u32 %v144, 7
  %v146 = vsub.s32 0, %v145
  %v147 = vrot.slane %v142, %v146
  %v149 = vmul.f32 %v78, %v147
  %v150 = vmul.f32 %v79, %v147
  %v151 = vmul.f32 %v80, %v147
  %v152 = vmul.f32 %v81, %v147
  %v153 = vmul.f32 %v82, %v147
  %v154 = vmul.f32 %v83, %v147
  %v155 = vmul.f32 %v84, %v147
  %v156 = vmul.f32 %v85, %v147
  %v157 = vmul.f32 %v86, %v147
  %v158 = vmul.f32 %v87, %v147
  %v159 = vmul.f32 %v88, %v147
  %v160 = vmul.f32 %v89, %v147
  %v161 = vmul.f32 %v90, %v147
  %v162 = vmul.f32 %v91, %v147
  %v163 = vmul.f32 %v92, %v147
  %v164 = vmul.f32 %v93, %v147
  %v165 = vmul.f32 %v94, %v147
  %v166 = vmul.f32 %v95, %v147
  %v167 = vmul.f32 %v96, %v147
  %v168 = vmul.f32 %v97, %v147
  %v169 = vmul.f32 %v98, %v147
  %v170 = vmul.f32 %v99, %v147
  %v171 = vmul.f32 %v100, %v147
  %v172 = vmul.f32 %v101, %v147
  %v173 = vmul.f32 %v102, %v147
  %v174 = vmul.f32 %v103, %v147
  %v175 = vmul.f32 %v104, %v147
  %v176 = vmul.f32 %v105, %v147
  %v177 = vmul.f32 %v106, %v147
  %v178 = vmul.f32 %v107, %v147
  %v179 = vmul.f32 %v108, %v147
  %v180 = vmul.f32 %v109, %v147
  %v181 = vmul.f32 %v110, %v147
  %v182 = vmul.f32 %v111, %v147
  %v183 = vmul.f32 %v112, %v147
  %v184 = vmul.f32 %v113, %v147
  %v185 = vmul.f32 %v114, %v147
  %v186 = vmul.f32 %v115, %v147
  %v187 = vmul.f32 %v116, %v147
  %v188 = vmul.f32 %v117, %v147
  %v189 = vmul.f32 %v118, %v147
  %v190 = vmul.f32 %v119, %v147
  %v191 = vmul.f32 %v120, %v147
  %v192 = vmul.f32 %v121, %v147
  %v193 = vmul.f32 %v122, %v147
  %v194 = vmul.f32 %v123, %v147
  %v195 = vmul.f32 %v124, %v147
  %v196 = vmul.f32 %v125, %v147
  %v197 = vmul.f32 %v126, %v147
  %v198 = vmul.f32 %v127, %v147
  %v199 = vmul.f32 %v128, %v147
  %v200 = vmul.f32 %v129, %v147
  %v201 = vmul.f32 %v130, %v147
  %v202 = vmul.f32 %v131, %v147
  %v203 = vmul.f32 %v132, %v147
  %v204 = vmul.f32 %v133, %v147
  %v205 = vmul.f32 %v134, %v147
  %v206 = vmul.f32 %v135, %v147
  %v207 = vmul.f32 %v136, %v147
  %v208 = vmul.f32 %v137, %v147
  %v209 = vmul.f32 %v138, %v147
  %v210 = vmul.f32 %v139, %v147
  %v211 = vmul.f32 %v140, %v147
  %v212 = vmul.f32 %v141, %v147
  %v213 = vld [vmem:[%s2] sm:$0x1]
  %v215 = vlaneseq
  %v216 = vshrl.u32 %v215, 7
  %v217 = vsub.s32 0, %v216
  %v218 = vrot.slane %v213, %v217
  %v220 = vadd.f32 %v149, %v218
  %v221 = vadd.f32 %v150, %v218
  %v222 = vadd.f32 %v151, %v218
  %v223 = vadd.f32 %v152, %v218
  %v224 = vadd.f32 %v153, %v218
  %v225 = vadd.f32 %v154, %v218
  %v226 = vadd.f32 %v155, %v218
  %v227 = vadd.f32 %v156, %v218
  %v228 = vadd.f32 %v157, %v218
  %v229 = vadd.f32 %v158, %v218
  %v230 = vadd.f32 %v159, %v218
  %v231 = vadd.f32 %v160, %v218
  %v232 = vadd.f32 %v161, %v218
  %v233 = vadd.f32 %v162, %v218
  %v234 = vadd.f32 %v163, %v218
  %v235 = vadd.f32 %v164, %v218
  %v236 = vadd.f32 %v165, %v218
  %v237 = vadd.f32 %v166, %v218
  %v238 = vadd.f32 %v167, %v218
  %v239 = vadd.f32 %v168, %v218
  %v240 = vadd.f32 %v169, %v218
  %v241 = vadd.f32 %v170, %v218
  %v242 = vadd.f32 %v171, %v218
  %v243 = vadd.f32 %v172, %v218
  %v244 = vadd.f32 %v173, %v218
  %v245 = vadd.f32 %v174, %v218
  %v246 = vadd.f32 %v175, %v218
  %v247 = vadd.f32 %v176, %v218
  %v248 = vadd.f32 %v177, %v218
  %v249 = vadd.f32 %v178, %v218
  %v250 = vadd.f32 %v179, %v218
  %v251 = vadd.f32 %v180, %v218
  %v252 = vadd.f32 %v181, %v218
  %v253 = vadd.f32 %v182, %v218
  %v254 = vadd.f32 %v183, %v218
  %v255 = vadd.f32 %v184, %v218
  %v256 = vadd.f32 %v185, %v218
  %v257 = vadd.f32 %v186, %v218
  %v258 = vadd.f32 %v187, %v218
  %v259 = vadd.f32 %v188, %v218
  %v260 = vadd.f32 %v189, %v218
  %v261 = vadd.f32 %v190, %v218
  %v262 = vadd.f32 %v191, %v218
  %v263 = vadd.f32 %v192, %v218
  %v264 = vadd.f32 %v193, %v218
  %v265 = vadd.f32 %v194, %v218
  %v266 = vadd.f32 %v195, %v218
  %v267 = vadd.f32 %v196, %v218
  %v268 = vadd.f32 %v197, %v218
  %v269 = vadd.f32 %v198, %v218
  %v270 = vadd.f32 %v199, %v218
  %v271 = vadd.f32 %v200, %v218
  %v272 = vadd.f32 %v201, %v218
  %v273 = vadd.f32 %v202, %v218
  %v274 = vadd.f32 %v203, %v218
  %v275 = vadd.f32 %v204, %v218
  %v276 = vadd.f32 %v205, %v218
  %v277 = vadd.f32 %v206, %v218
  %v278 = vadd.f32 %v207, %v218
  %v279 = vadd.f32 %v208, %v218
  %v280 = vadd.f32 %v209, %v218
  %v281 = vadd.f32 %v210, %v218
  %v282 = vadd.f32 %v211, %v218
  %v283 = vadd.f32 %v212, %v218
  %v284 = vmax.f32 %v220, 0.0
  %v285 = vmax.f32 %v221, 0.0
  %v286 = vmax.f32 %v222, 0.0
  %v287 = vmax.f32 %v223, 0.0
  %v288 = vmax.f32 %v224, 0.0
  %v289 = vmax.f32 %v225, 0.0
  %v290 = vmax.f32 %v226, 0.0
  %v291 = vmax.f32 %v227, 0.0
  %v292 = vmax.f32 %v228, 0.0
  %v293 = vmax.f32 %v229, 0.0
  %v294 = vmax.f32 %v230, 0.0
  %v295 = vmax.f32 %v231, 0.0
  %v296 = vmax.f32 %v232, 0.0
  %v297 = vmax.f32 %v233, 0.0
  %v298 = vmax.f32 %v234, 0.0
  %v299 = vmax.f32 %v235, 0.0
  %v300 = vmax.f32 %v236, 0.0
  %v301 = vmax.f32 %v237, 0.0
  %v302 = vmax.f32 %v238, 0.0
  %v303 = vmax.f32 %v239, 0.0
  %v304 = vmax.f32 %v240, 0.0
  %v305 = vmax.f32 %v241, 0.0
  %v306 = vmax.f32 %v242, 0.0
  %v307 = vmax.f32 %v243, 0.0
  %v308 = vmax.f32 %v244, 0.0
  %v309 = vmax.f32 %v245, 0.0
  %v310 = vmax.f32 %v246, 0.0
  %v311 = vmax.f32 %v247, 0.0
  %v312 = vmax.f32 %v248, 0.0
  %v313 = vmax.f32 %v249, 0.0
  %v314 = vmax.f32 %v250, 0.0
  %v315 = vmax.f32 %v251, 0.0
  %v316 = vmax.f32 %v252, 0.0
  %v317 = vmax.f32 %v253, 0.0
  %v318 = vmax.f32 %v254, 0.0
  %v319 = vmax.f32 %v255, 0.0
  %v320 = vmax.f32 %v256, 0.0
  %v321 = vmax.f32 %v257, 0.0
  %v322 = vmax.f32 %v258, 0.0
  %v323 = vmax.f32 %v259, 0.0
  %v324 = vmax.f32 %v260, 0.0
  %v325 = vmax.f32 %v261, 0.0
  %v326 = vmax.f32 %v262, 0.0
  %v327 = vmax.f32 %v263, 0.0
  %v328 = vmax.f32 %v264, 0.0
  %v329 = vmax.f32 %v265, 0.0
  %v330 = vmax.f32 %v266, 0.0
  %v331 = vmax.f32 %v267, 0.0
  %v332 = vmax.f32 %v268, 0.0
  %v333 = vmax.f32 %v269, 0.0
  %v334 = vmax.f32 %v270, 0.0
  %v335 = vmax.f32 %v271, 0.0
  %v336 = vmax.f32 %v272, 0.0
  %v337 = vmax.f32 %v273, 0.0
  %v338 = vmax.f32 %v274, 0.0
  %v339 = vmax.f32 %v275, 0.0
  %v340 = vmax.f32 %v276, 0.0
  %v341 = vmax.f32 %v277, 0.0
  %v342 = vmax.f32 %v278, 0.0
  %v343 = vmax.f32 %v279, 0.0
  %v344 = vmax.f32 %v280, 0.0
  %v345 = vmax.f32 %v281, 0.0
  %v346 = vmax.f32 %v282, 0.0
  %v347 = vmax.f32 %v283, 0.0
  %vm348 = vcmask 130048
  %349 = vst.msk [vmem:[%s3] sm:$0xff] %vm348, %v284
  %350 = vst.msk [vmem:[%s3 + $0x8] sm:$0xff] %vm348, %v285
  %351 = vst.msk [vmem:[%s3 + $0x10] sm:$0xff] %vm348, %v286
  %352 = vst.msk [vmem:[%s3 + $0x18] sm:$0xff] %vm348, %v287
  %353 = vst.msk [vmem:[%s3 + $0x20] sm:$0xff] %vm348, %v288
  %354 = vst.msk [vmem:[%s3 + $0x28] sm:$0xff] %vm348, %v289
  %355 = vst.msk [vmem:[%s3 + $0x30] sm:$0xff] %vm348, %v290
  %356 = vst.msk [vmem:[%s3 + $0x38] sm:$0xff] %vm348, %v291
  %357 = vst.msk [vmem:[%s3 + $0x40] sm:$0xff] %vm348, %v292
  %358 = vst.msk [vmem:[%s3 + $0x48] sm:$0xff] %vm348, %v293
  %359 = vst.msk [vmem:[%s3 + $0x50] sm:$0xff] %vm348, %v294
  %360 = vst.msk [vmem:[%s3 + $0x58] sm:$0xff] %vm348, %v295
  %361 = vst.msk [vmem:[%s3 + $0x60] sm:$0xff] %vm348, %v296
  %362 = vst.msk [vmem:[%s3 + $0x68] sm:$0xff] %vm348, %v297
  %363 = vst.msk [vmem:[%s3 + $0x70] sm:$0xff] %vm348, %v298
  %364 = vst.msk [vmem:[%s3 + $0x78] sm:$0xff] %vm348, %v299
  %365 = vst.msk [vmem:[%s3 + $0x80] sm:$0xff] %vm348, %v300
  %366 = vst.msk [vmem:[%s3 + $0x88] sm:$0xff] %vm348, %v301
  %367 = vst.msk [vmem:[%s3 + $0x90] sm:$0xff] %vm348, %v302
  %368 = vst.msk [vmem:[%s3 + $0x98] sm:$0xff] %vm348, %v303
  %369 = vst.msk [vmem:[%s3 + $0xa0] sm:$0xff] %vm348, %v304
  %370 = vst.msk [vmem:[%s3 + $0xa8] sm:$0xff] %vm348, %v305
  %371 = vst.msk [vmem:[%s3 + $0xb0] sm:$0xff] %vm348, %v306
  %372 = vst.msk [vmem:[%s3 + $0xb8] sm:$0xff] %vm348, %v307
  %373 = vst.msk [vmem:[%s3 + $0xc0] sm:$0xff] %vm348, %v308
  %374 = vst.msk [vmem:[%s3 + $0xc8] sm:$0xff] %vm348, %v309
  %375 = vst.msk [vmem:[%s3 + $0xd0] sm:$0xff] %vm348, %v310
  %376 = vst.msk [vmem:[%s3 + $0xd8] sm:$0xff] %vm348, %v311
  %377 = vst.msk [vmem:[%s3 + $0xe0] sm:$0xff] %vm348, %v312
  %378 = vst.msk [vmem:[%s3 + $0xe8] sm:$0xff] %vm348, %v313
  %379 = vst.msk [vmem:[%s3 + $0xf0] sm:$0xff] %vm348, %v314
  %380 = vst.msk [vmem:[%s3 + $0xf8] sm:$0xff] %vm348, %v315
  %381 = vst.msk [vmem:[%s3 + $0x100] sm:$0xff] %vm348, %v316
  %382 = vst.msk [vmem:[%s3 + $0x108] sm:$0xff] %vm348, %v317
  %383 = vst.msk [vmem:[%s3 + $0x110] sm:$0xff] %vm348, %v318
  %384 = vst.msk [vmem:[%s3 + $0x118] sm:$0xff] %vm348, %v319
  %385 = vst.msk [vmem:[%s3 + $0x120] sm:$0xff] %vm348, %v320
  %386 = vst.msk [vmem:[%s3 + $0x128] sm:$0xff] %vm348, %v321
  %387 = vst.msk [vmem:[%s3 + $0x130] sm:$0xff] %vm348, %v322
  %388 = vst.msk [vmem:[%s3 + $0x138] sm:$0xff] %vm348, %v323
  %389 = vst.msk [vmem:[%s3 + $0x140] sm:$0xff] %vm348, %v324
  %390 = vst.msk [vmem:[%s3 + $0x148] sm:$0xff] %vm348, %v325
  %391 = vst.msk [vmem:[%s3 + $0x150] sm:$0xff] %vm348, %v326
  %392 = vst.msk [vmem:[%s3 + $0x158] sm:$0xff] %vm348, %v327
  %393 = vst.msk [vmem:[%s3 + $0x160] sm:$0xff] %vm348, %v328
  %394 = vst.msk [vmem:[%s3 + $0x168] sm:$0xff] %vm348, %v329
  %395 = vst.msk [vmem:[%s3 + $0x170] sm:$0xff] %vm348, %v330
  %396 = vst.msk [vmem:[%s3 + $0x178] sm:$0xff] %vm348, %v331
  %397 = vst.msk [vmem:[%s3 + $0x180] sm:$0xff] %vm348, %v332
  %398 = vst.msk [vmem:[%s3 + $0x188] sm:$0xff] %vm348, %v333
  %399 = vst.msk [vmem:[%s3 + $0x190] sm:$0xff] %vm348, %v334
  %400 = vst.msk [vmem:[%s3 + $0x198] sm:$0xff] %vm348, %v335
  %401 = vst.msk [vmem:[%s3 + $0x1a0] sm:$0xff] %vm348, %v336
  %402 = vst.msk [vmem:[%s3 + $0x1a8] sm:$0xff] %vm348, %v337
  %403 = vst.msk [vmem:[%s3 + $0x1b0] sm:$0xff] %vm348, %v338
  %404 = vst.msk [vmem:[%s3 + $0x1b8] sm:$0xff] %vm348, %v339
  %405 = vst.msk [vmem:[%s3 + $0x1c0] sm:$0xff] %vm348, %v340
  %406 = vst.msk [vmem:[%s3 + $0x1c8] sm:$0xff] %vm348, %v341
  %407 = vst.msk [vmem:[%s3 + $0x1d0] sm:$0xff] %vm348, %v342
  %408 = vst.msk [vmem:[%s3 + $0x1d8] sm:$0xff] %vm348, %v343
  %409 = vst.msk [vmem:[%s3 + $0x1e0] sm:$0xff] %vm348, %v344
  %410 = vst.msk [vmem:[%s3 + $0x1e8] sm:$0xff] %vm348, %v345
  %411 = vst.msk [vmem:[%s3 + $0x1f0] sm:$0xff] %vm348, %v346
  %412 = vst.msk [vmem:[%s3 + $0x1f8] sm:$0xff] %vm348, %v347
  // Predicated region
  $region14: #{vgg_block_forward.7} parent=0 // pred_check
    _
  $region15: #{vgg_block_forward.7} parent=0 // pred_check_branch
    %414 = sbr.rel (0) target = $region17
  $region16: #{vgg_block_forward.7} parent=0 // pred_region
    _
  $region17: #{vgg_block_forward.7} parent=0 // pred_fallthru
    _
  // Predicated region
  $region18: #{vgg_block_forward.7} parent=0 // pred_check
    _
  $region19: #{vgg_block_forward.7} parent=0 // pred_check_branch
    %416 = sbr.rel (0) target = $region21
  $region20: #{vgg_block_forward.7} parent=0 // pred_region
    _
  $region21: #{vgg_block_forward.7} parent=0 // pred_fallthru
    _

// kernel: vgg_block_forward.5
$region0: #{vgg_block_forward.5}
  #allocation0 [shape = 'u32[]', space=smem, size = 0x4, offset = 0x4, fixed_abs, tag = 'smem constant byte address 0x4 - core index']
  #allocation1 [shape = 'u32[144,128]{1,0:T(1,128)}', space=vmem, size = 0x12000, scoped, tag = 'internal scratch']
  %s0 = inlined_call_operand.vmem [shape: bf16[512,32], index: 0, kind: input, shape index: {}]
  %s1 = inlined_call_operand.vmem [shape: f32[1,32], index: 1, kind: input, shape index: {}]
  %s2 = inlined_call_operand.vmem [shape: f32[1,32], index: 2, kind: input, shape index: {}]
  %s3 = inlined_call_operand.vmem [shape: bf16[512,32], index: 3, kind: output, shape index: {}]
  %s4 = sld [smem:[#allocation0]]
  $region22: #{vgg_block_forward.5} parent=0
    _
  %s6 = ssub.s32 1, %s4
  %s7 = scalar_select 0, %s6, %s4
  // Predicated region
  $region2: #{vgg_block_forward.5} parent=0 // pred_check
    _
  $region3: #{vgg_block_forward.5} parent=0 // pred_check_branch
    %9 = sbr.rel (0) target = $region5
  $region4: #{vgg_block_forward.5} parent=0 // pred_region
    _
  $region5: #{vgg_block_forward.5} parent=0 // pred_fallthru
    _
  // Predicated region
  $region6: #{vgg_block_forward.5} parent=0 // pred_check
    _
  $region7: #{vgg_block_forward.5} parent=0 // pred_check_branch
    %11 = sbr.rel (0) target = $region9
  $region8: #{vgg_block_forward.5} parent=0 // pred_region
    _
  $region9: #{vgg_block_forward.5} parent=0 // pred_fallthru
    _
  // Predicated region
  $region10: #{vgg_block_forward.5} parent=0 // pred_check
    _
  $region11: #{vgg_block_forward.5} parent=0 // pred_check_branch
    %13 = sbr.rel (0) target = $region13
  $region12: #{vgg_block_forward.5} parent=0 // pred_region
    _
  $region13: #{vgg_block_forward.5} parent=0 // pred_fallthru
    _
  %v14 = vld [vmem:[%s0] sm:$0xf]
  %v15 = vld [vmem:[%s0 + $0x4] sm:$0xf]
  %v16 = vld [vmem:[%s0 + $0x8] sm:$0xf]
  %v17 = vld [vmem:[%s0 + $0xc] sm:$0xf]
  %v18 = vld [vmem:[%s0 + $0x10] sm:$0xf]
  %v19 = vld [vmem:[%s0 + $0x14] sm:$0xf]
  %v20 = vld [vmem:[%s0 + $0x18] sm:$0xf]
  %v21 = vld [vmem:[%s0 + $0x1c] sm:$0xf]
  %v22 = vld [vmem:[%s0 + $0x20] sm:$0xf]
  %v23 = vld [vmem:[%s0 + $0x24] sm:$0xf]
  %v24 = vld [vmem:[%s0 + $0x28] sm:$0xf]
  %v25 = vld [vmem:[%s0 + $0x2c] sm:$0xf]
  %v26 = vld [vmem:[%s0 + $0x30] sm:$0xf]
  %v27 = vld [vmem:[%s0 + $0x34] sm:$0xf]
  %v28 = vld [vmem:[%s0 + $0x38] sm:$0xf]
  %v29 = vld [vmem:[%s0 + $0x3c] sm:$0xf]
  %v30 = vld [vmem:[%s0 + $0x40] sm:$0xf]
  %v31 = vld [vmem:[%s0 + $0x44] sm:$0xf]
  %v32 = vld [vmem:[%s0 + $0x48] sm:$0xf]
  %v33 = vld [vmem:[%s0 + $0x4c] sm:$0xf]
  %v34 = vld [vmem:[%s0 + $0x50] sm:$0xf]
  %v35 = vld [vmem:[%s0 + $0x54] sm:$0xf]
  %v36 = vld [vmem:[%s0 + $0x58] sm:$0xf]
  %v37 = vld [vmem:[%s0 + $0x5c] sm:$0xf]
  %v38 = vld [vmem:[%s0 + $0x60] sm:$0xf]
  %v39 = vld [vmem:[%s0 + $0x64] sm:$0xf]
  %v40 = vld [vmem:[%s0 + $0x68] sm:$0xf]
  %v41 = vld [vmem:[%s0 + $0x6c] sm:$0xf]
  %v42 = vld [vmem:[%s0 + $0x70] sm:$0xf]
  %v43 = vld [vmem:[%s0 + $0x74] sm:$0xf]
  %v44 = vld [vmem:[%s0 + $0x78] sm:$0xf]
  %v45 = vld [vmem:[%s0 + $0x7c] sm:$0xf]
  %v46 = vld [vmem:[%s0 + $0x80] sm:$0xf]
  %v47 = vld [vmem:[%s0 + $0x84] sm:$0xf]
  %v48 = vld [vmem:[%s0 + $0x88] sm:$0xf]
  %v49 = vld [vmem:[%s0 + $0x8c] sm:$0xf]
  %v50 = vld [vmem:[%s0 + $0x90] sm:$0xf]
  %v51 = vld [vmem:[%s0 + $0x94] sm:$0xf]
  %v52 = vld [vmem:[%s0 + $0x98] sm:$0xf]
  %v53 = vld [vmem:[%s0 + $0x9c] sm:$0xf]
  %v54 = vld [vmem:[%s0 + $0xa0] sm:$0xf]
  %v55 = vld [vmem:[%s0 + $0xa4] sm:$0xf]
  %v56 = vld [vmem:[%s0 + $0xa8] sm:$0xf]
  %v57 = vld [vmem:[%s0 + $0xac] sm:$0xf]
  %v58 = vld [vmem:[%s0 + $0xb0] sm:$0xf]
  %v59 = vld [vmem:[%s0 + $0xb4] sm:$0xf]
  %v60 = vld [vmem:[%s0 + $0xb8] sm:$0xf]
  %v61 = vld [vmem:[%s0 + $0xbc] sm:$0xf]
  %v62 = vld [vmem:[%s0 + $0xc0] sm:$0xf]
  %v63 = vld [vmem:[%s0 + $0xc4] sm:$0xf]
  %v64 = vld [vmem:[%s0 + $0xc8] sm:$0xf]
  %v65 = vld [vmem:[%s0 + $0xcc] sm:$0xf]
  %v66 = vld [vmem:[%s0 + $0xd0] sm:$0xf]
  %v67 = vld [vmem:[%s0 + $0xd4] sm:$0xf]
  %v68 = vld [vmem:[%s0 + $0xd8] sm:$0xf]
  %v69 = vld [vmem:[%s0 + $0xdc] sm:$0xf]
  %v70 = vld [vmem:[%s0 + $0xe0] sm:$0xf]
  %v71 = vld [vmem:[%s0 + $0xe4] sm:$0xf]
  %v72 = vld [vmem:[%s0 + $0xe8] sm:$0xf]
  %v73 = vld [vmem:[%s0 + $0xec] sm:$0xf]
  %v74 = vld [vmem:[%s0 + $0xf0] sm:$0xf]
  %v75 = vld [vmem:[%s0 + $0xf4] sm:$0xf]
  %v76 = vld [vmem:[%s0 + $0xf8] sm:$0xf]
  %v77 = vld [vmem:[%s0 + $0xfc] sm:$0xf]
  %v78 = vunpack.c.l.bf16 %v14
  %v79 = vunpack.c.l.bf16 %v15
  %v80 = vunpack.c.l.bf16 %v16
  %v81 = vunpack.c.l.bf16 %v17
  %v82 = vunpack.c.l.bf16 %v18
  %v83 = vunpack.c.l.bf16 %v19
  %v84 = vunpack.c.l.bf16 %v20
  %v85 = vunpack.c.l.bf16 %v21
  %v86 = vunpack.c.l.bf16 %v22
  %v87 = vunpack.c.l.bf16 %v23
  %v88 = vunpack.c.l.bf16 %v24
  %v89 = vunpack.c.l.bf16 %v25
  %v90 = vunpack.c.l.bf16 %v26
  %v91 = vunpack.c.l.bf16 %v27
  %v92 = vunpack.c.l.bf16 %v28
  %v93 = vunpack.c.l.bf16 %v29
  %v94 = vunpack.c.l.bf16 %v30
  %v95 = vunpack.c.l.bf16 %v31
  %v96 = vunpack.c.l.bf16 %v32
  %v97 = vunpack.c.l.bf16 %v33
  %v98 = vunpack.c.l.bf16 %v34
  %v99 = vunpack.c.l.bf16 %v35
  %v100 = vunpack.c.l.bf16 %v36
  %v101 = vunpack.c.l.bf16 %v37
  %v102 = vunpack.c.l.bf16 %v38
  %v103 = vunpack.c.l.bf16 %v39
  %v104 = vunpack.c.l.bf16 %v40
  %v105 = vunpack.c.l.bf16 %v41
  %v106 = vunpack.c.l.bf16 %v42
  %v107 = vunpack.c.l.bf16 %v43
  %v108 = vunpack.c.l.bf16 %v44
  %v109 = vunpack.c.l.bf16 %v45
  %v110 = vunpack.c.l.bf16 %v46
  %v111 = vunpack.c.l.bf16 %v47
  %v112 = vunpack.c.l.bf16 %v48
  %v113 = vunpack.c.l.bf16 %v49
  %v114 = vunpack.c.l.bf16 %v50
  %v115 = vunpack.c.l.bf16 %v51
  %v116 = vunpack.c.l.bf16 %v52
  %v117 = vunpack.c.l.bf16 %v53
  %v118 = vunpack.c.l.bf16 %v54
  %v119 = vunpack.c.l.bf16 %v55
  %v120 = vunpack.c.l.bf16 %v56
  %v121 = vunpack.c.l.bf16 %v57
  %v122 = vunpack.c.l.bf16 %v58
  %v123 = vunpack.c.l.bf16 %v59
  %v124 = vunpack.c.l.bf16 %v60
  %v125 = vunpack.c.l.bf16 %v61
  %v126 = vunpack.c.l.bf16 %v62
  %v127 = vunpack.c.l.bf16 %v63
  %v128 = vunpack.c.l.bf16 %v64
  %v129 = vunpack.c.l.bf16 %v65
  %v130 = vunpack.c.l.bf16 %v66
  %v131 = vunpack.c.l.bf16 %v67
  %v132 = vunpack.c.l.bf16 %v68
  %v133 = vunpack.c.l.bf16 %v69
  %v134 = vunpack.c.l.bf16 %v70
  %v135 = vunpack.c.l.bf16 %v71
  %v136 = vunpack.c.l.bf16 %v72
  %v137 = vunpack.c.l.bf16 %v73
  %v138 = vunpack.c.l.bf16 %v74
  %v139 = vunpack.c.l.bf16 %v75
  %v140 = vunpack.c.l.bf16 %v76
  %v141 = vunpack.c.l.bf16 %v77
  %v142 = vld [vmem:[%s1] sm:$0x1]
  %v144 = vlaneseq
  %v145 = vshrl.u32 %v144, 7
  %v146 = vsub.s32 0, %v145
  %v147 = vrot.slane %v142, %v146
  %v149 = vmul.f32 %v78, %v147
  %v150 = vmul.f32 %v79, %v147
  %v151 = vmul.f32 %v80, %v147
  %v152 = vmul.f32 %v81, %v147
  %v153 = vmul.f32 %v82, %v147
  %v154 = vmul.f32 %v83, %v147
  %v155 = vmul.f32 %v84, %v147
  %v156 = vmul.f32 %v85, %v147
  %v157 = vmul.f32 %v86, %v147
  %v158 = vmul.f32 %v87, %v147
  %v159 = vmul.f32 %v88, %v147
  %v160 = vmul.f32 %v89, %v147
  %v161 = vmul.f32 %v90, %v147
  %v162 = vmul.f32 %v91, %v147
  %v163 = vmul.f32 %v92, %v147
  %v164 = vmul.f32 %v93, %v147
  %v165 = vmul.f32 %v94, %v147
  %v166 = vmul.f32 %v95, %v147
  %v167 = vmul.f32 %v96, %v147
  %v168 = vmul.f32 %v97, %v147
  %v169 = vmul.f32 %v98, %v147
  %v170 = vmul.f32 %v99, %v147
  %v171 = vmul.f32 %v100, %v147
  %v172 = vmul.f32 %v101, %v147
  %v173 = vmul.f32 %v102, %v147
  %v174 = vmul.f32 %v103, %v147
  %v175 = vmul.f32 %v104, %v147
  %v176 = vmul.f32 %v105, %v147
  %v177 = vmul.f32 %v106, %v147
  %v178 = vmul.f32 %v107, %v147
  %v179 = vmul.f32 %v108, %v147
  %v180 = vmul.f32 %v109, %v147
  %v181 = vmul.f32 %v110, %v147
  %v182 = vmul.f32 %v111, %v147
  %v183 = vmul.f32 %v112, %v147
  %v184 = vmul.f32 %v113, %v147
  %v185 = vmul.f32 %v114, %v147
  %v186 = vmul.f32 %v115, %v147
  %v187 = vmul.f32 %v116, %v147
  %v188 = vmul.f32 %v117, %v147
  %v189 = vmul.f32 %v118, %v147
  %v190 = vmul.f32 %v119, %v147
  %v191 = vmul.f32 %v120, %v147
  %v192 = vmul.f32 %v121, %v147
  %v193 = vmul.f32 %v122, %v147
  %v194 = vmul.f32 %v123, %v147
  %v195 = vmul.f32 %v124, %v147
  %v196 = vmul.f32 %v125, %v147
  %v197 = vmul.f32 %v126, %v147
  %v198 = vmul.f32 %v127, %v147
  %v199 = vmul.f32 %v128, %v147
  %v200 = vmul.f32 %v129, %v147
  %v201 = vmul.f32 %v130, %v147
  %v202 = vmul.f32 %v131, %v147
  %v203 = vmul.f32 %v132, %v147
  %v204 = vmul.f32 %v133, %v147
  %v205 = vmul.f32 %v134, %v147
  %v206 = vmul.f32 %v135, %v147
  %v207 = vmul.f32 %v136, %v147
  %v208 = vmul.f32 %v137, %v147
  %v209 = vmul.f32 %v138, %v147
  %v210 = vmul.f32 %v139, %v147
  %v211 = vmul.f32 %v140, %v147
  %v212 = vmul.f32 %v141, %v147
  %v213 = vld [vmem:[%s2] sm:$0x1]
  %v215 = vlaneseq
  %v216 = vshrl.u32 %v215, 7
  %v217 = vsub.s32 0, %v216
  %v218 = vrot.slane %v213, %v217
  %v220 = vadd.f32 %v149, %v218
  %v221 = vadd.f32 %v150, %v218
  %v222 = vadd.f32 %v151, %v218
  %v223 = vadd.f32 %v152, %v218
  %v224 = vadd.f32 %v153, %v218
  %v225 = vadd.f32 %v154, %v218
  %v226 = vadd.f32 %v155, %v218
  %v227 = vadd.f32 %v156, %v218
  %v228 = vadd.f32 %v157, %v218
  %v229 = vadd.f32 %v158, %v218
  %v230 = vadd.f32 %v159, %v218
  %v231 = vadd.f32 %v160, %v218
  %v232 = vadd.f32 %v161, %v218
  %v233 = vadd.f32 %v162, %v218
  %v234 = vadd.f32 %v163, %v218
  %v235 = vadd.f32 %v164, %v218
  %v236 = vadd.f32 %v165, %v218
  %v237 = vadd.f32 %v166, %v218
  %v238 = vadd.f32 %v167, %v218
  %v239 = vadd.f32 %v168, %v218
  %v240 = vadd.f32 %v169, %v218
  %v241 = vadd.f32 %v170, %v218
  %v242 = vadd.f32 %v171, %v218
  %v243 = vadd.f32 %v172, %v218
  %v244 = vadd.f32 %v173, %v218
  %v245 = vadd.f32 %v174, %v218
  %v246 = vadd.f32 %v175, %v218
  %v247 = vadd.f32 %v176, %v218
  %v248 = vadd.f32 %v177, %v218
  %v249 = vadd.f32 %v178, %v218
  %v250 = vadd.f32 %v179, %v218
  %v251 = vadd.f32 %v180, %v218
  %v252 = vadd.f32 %v181, %v218
  %v253 = vadd.f32 %v182, %v218
  %v254 = vadd.f32 %v183, %v218
  %v255 = vadd.f32 %v184, %v218
  %v256 = vadd.f32 %v185, %v218
  %v257 = vadd.f32 %v186, %v218
  %v258 = vadd.f32 %v187, %v218
  %v259 = vadd.f32 %v188, %v218
  %v260 = vadd.f32 %v189, %v218
  %v261 = vadd.f32 %v190, %v218
  %v262 = vadd.f32 %v191, %v218
  %v263 = vadd.f32 %v192, %v218
  %v264 = vadd.f32 %v193, %v218
  %v265 = vadd.f32 %v194, %v218
  %v266 = vadd.f32 %v195, %v218
  %v267 = vadd.f32 %v196, %v218
  %v268 = vadd.f32 %v197, %v218
  %v269 = vadd.f32 %v198, %v218
  %v270 = vadd.f32 %v199, %v218
  %v271 = vadd.f32 %v200, %v218
  %v272 = vadd.f32 %v201, %v218
  %v273 = vadd.f32 %v202, %v218
  %v274 = vadd.f32 %v203, %v218
  %v275 = vadd.f32 %v204, %v218
  %v276 = vadd.f32 %v205, %v218
  %v277 = vadd.f32 %v206, %v218
  %v278 = vadd.f32 %v207, %v218
  %v279 = vadd.f32 %v208, %v218
  %v280 = vadd.f32 %v209, %v218
  %v281 = vadd.f32 %v210, %v218
  %v282 = vadd.f32 %v211, %v218
  %v283 = vadd.f32 %v212, %v218
  %v284 = vmax.f32 %v220, 0.0
  %v285 = vmax.f32 %v221, 0.0
  %v286 = vmax.f32 %v222, 0.0
  %v287 = vmax.f32 %v223, 0.0
  %v288 = vmax.f32 %v224, 0.0
  %v289 = vmax.f32 %v225, 0.0
  %v290 = vmax.f32 %v226, 0.0
  %v291 = vmax.f32 %v227, 0.0
  %v292 = vmax.f32 %v228, 0.0
  %v293 = vmax.f32 %v229, 0.0
  %v294 = vmax.f32 %v230, 0.0
  %v295 = vmax.f32 %v231, 0.0
  %v296 = vmax.f32 %v232, 0.0
  %v297 = vmax.f32 %v233, 0.0
  %v298 = vmax.f32 %v234, 0.0
  %v299 = vmax.f32 %v235, 0.0
  %v300 = vmax.f32 %v236, 0.0
  %v301 = vmax.f32 %v237, 0.0
  %v302 = vmax.f32 %v238, 0.0
  %v303 = vmax.f32 %v239, 0.0
  %v304 = vmax.f32 %v240, 0.0
  %v305 = vmax.f32 %v241, 0.0
  %v306 = vmax.f32 %v242, 0.0
  %v307 = vmax.f32 %v243, 0.0
  %v308 = vmax.f32 %v244, 0.0
  %v309 = vmax.f32 %v245, 0.0
  %v310 = vmax.f32 %v246, 0.0
  %v311 = vmax.f32 %v247, 0.0
  %v312 = vmax.f32 %v248, 0.0
  %v313 = vmax.f32 %v249, 0.0
  %v314 = vmax.f32 %v250, 0.0
  %v315 = vmax.f32 %v251, 0.0
  %v316 = vmax.f32 %v252, 0.0
  %v317 = vmax.f32 %v253, 0.0
  %v318 = vmax.f32 %v254, 0.0
  %v319 = vmax.f32 %v255, 0.0
  %v320 = vmax.f32 %v256, 0.0
  %v321 = vmax.f32 %v257, 0.0
  %v322 = vmax.f32 %v258, 0.0
  %v323 = vmax.f32 %v259, 0.0
  %v324 = vmax.f32 %v260, 0.0
  %v325 = vmax.f32 %v261, 0.0
  %v326 = vmax.f32 %v262, 0.0
  %v327 = vmax.f32 %v263, 0.0
  %v328 = vmax.f32 %v264, 0.0
  %v329 = vmax.f32 %v265, 0.0
  %v330 = vmax.f32 %v266, 0.0
  %v331 = vmax.f32 %v267, 0.0
  %v332 = vmax.f32 %v268, 0.0
  %v333 = vmax.f32 %v269, 0.0
  %v334 = vmax.f32 %v270, 0.0
  %v335 = vmax.f32 %v271, 0.0
  %v336 = vmax.f32 %v272, 0.0
  %v337 = vmax.f32 %v273, 0.0
  %v338 = vmax.f32 %v274, 0.0
  %v339 = vmax.f32 %v275, 0.0
  %v340 = vmax.f32 %v276, 0.0
  %v341 = vmax.f32 %v277, 0.0
  %v342 = vmax.f32 %v278, 0.0
  %v343 = vmax.f32 %v279, 0.0
  %v344 = vmax.f32 %v280, 0.0
  %v345 = vmax.f32 %v281, 0.0
  %v346 = vmax.f32 %v282, 0.0
  %v347 = vmax.f32 %v283, 0.0
  %v348 = vpack.c.bf16 %v285, %v284
  %v349 = vpack.c.bf16 %v287, %v286
  %v350 = vpack.c.bf16 %v289, %v288
  %v351 = vpack.c.bf16 %v291, %v290
  %v352 = vpack.c.bf16 %v293, %v292
  %v353 = vpack.c.bf16 %v295, %v294
  %v354 = vpack.c.bf16 %v297, %v296
  %v355 = vpack.c.bf16 %v299, %v298
  %v356 = vpack.c.bf16 %v301, %v300
  %v357 = vpack.c.bf16 %v303, %v302
  %v358 = vpack.c.bf16 %v305, %v304
  %v359 = vpack.c.bf16 %v307, %v306
  %v360 = vpack.c.bf16 %v309, %v308
  %v361 = vpack.c.bf16 %v311, %v310
  %v362 = vpack.c.bf16 %v313, %v312
  %v363 = vpack.c.bf16 %v315, %v314
  %v364 = vpack.c.bf16 %v317, %v316
  %v365 = vpack.c.bf16 %v319, %v318
  %v366 = vpack.c.bf16 %v321, %v320
  %v367 = vpack.c.bf16 %v323, %v322
  %v368 = vpack.c.bf16 %v325, %v324
  %v369 = vpack.c.bf16 %v327, %v326
  %v370 = vpack.c.bf16 %v329, %v328
  %v371 = vpack.c.bf16 %v331, %v330
  %v372 = vpack.c.bf16 %v333, %v332
  %v373 = vpack.c.bf16 %v335, %v334
  %v374 = vpack.c.bf16 %v337, %v336
  %v375 = vpack.c.bf16 %v339, %v338
  %v376 = vpack.c.bf16 %v341, %v340
  %v377 = vpack.c.bf16 %v343, %v342
  %v378 = vpack.c.bf16 %v345, %v344
  %v379 = vpack.c.bf16 %v347, %v346
  %v412 = vunpack.c.l.b16 %v348
  %v413 = vunpack.c.h.b16 %v348
  %v414 = vunpack.c.l.b16 %v349
  %v415 = vunpack.c.h.b16 %v349
  %v416 = vunpack.c.l.b16 %v350
  %v417 = vunpack.c.h.b16 %v350
  %v418 = vunpack.c.l.b16 %v351
  %v419 = vunpack.c.h.b16 %v351
  %v420 = vunpack.c.l.b16 %v352
  %v421 = vunpack.c.h.b16 %v352
  %v422 = vunpack.c.l.b16 %v353
  %v423 = vunpack.c.h.b16 %v353
  %v424 = vunpack.c.l.b16 %v354
  %v425 = vunpack.c.h.b16 %v354
  %v426 = vunpack.c.l.b16 %v355
  %v427 = vunpack.c.h.b16 %v355
  %v428 = vunpack.c.l.b16 %v356
  %v429 = vunpack.c.h.b16 %v356
  %v430 = vunpack.c.l.b16 %v357
  %v431 = vunpack.c.h.b16 %v357
  %v432 = vunpack.c.l.b16 %v358
  %v433 = vunpack.c.h.b16 %v358
  %v434 = vunpack.c.l.b16 %v359
  %v435 = vunpack.c.h.b16 %v359
  %v436 = vunpack.c.l.b16 %v360
  %v437 = vunpack.c.h.b16 %v360
  %v438 = vunpack.c.l.b16 %v361
  %v439 = vunpack.c.h.b16 %v361
  %v440 = vunpack.c.l.b16 %v362
  %v441 = vunpack.c.h.b16 %v362
  %v442 = vunpack.c.l.b16 %v363
  %v443 = vunpack.c.h.b16 %v363
  %v444 = vunpack.c.l.b16 %v364
  %v445 = vunpack.c.h.b16 %v364
  %v446 = vunpack.c.l.b16 %v365
  %v447 = vunpack.c.h.b16 %v365
  %v448 = vunpack.c.l.b16 %v366
  %v449 = vunpack.c.h.b16 %v366
  %v450 = vunpack.c.l.b16 %v367
  %v451 = vunpack.c.h.b16 %v367
  %v452 = vunpack.c.l.b16 %v368
  %v453 = vunpack.c.h.b16 %v368
  %v454 = vunpack.c.l.b16 %v369
  %v455 = vunpack.c.h.b16 %v369
  %v456 = vunpack.c.l.b16 %v370
  %v457 = vunpack.c.h.b16 %v370
  %v458 = vunpack.c.l.b16 %v371
  %v459 = vunpack.c.h.b16 %v371
  %v460 = vunpack.c.l.b16 %v372
  %v461 = vunpack.c.h.b16 %v372
  %v462 = vunpack.c.l.b16 %v373
  %v463 = vunpack.c.h.b16 %v373
  %v464 = vunpack.c.l.b16 %v374
  %v465 = vunpack.c.h.b16 %v374
  %v466 = vunpack.c.l.b16 %v375
  %v467 = vunpack.c.h.b16 %v375
  %v468 = vunpack.c.l.b16 %v376
  %v469 = vunpack.c.h.b16 %v376
  %v470 = vunpack.c.l.b16 %v377
  %v471 = vunpack.c.h.b16 %v377
  %v472 = vunpack.c.l.b16 %v378
  %v473 = vunpack.c.h.b16 %v378
  %v474 = vunpack.c.l.b16 %v379
  %v475 = vunpack.c.h.b16 %v379
  %v476 = vpack.c.b16 %v412, %v412
  %v477 = vpack.c.b16 %v413, %v413
  %v478 = vpack.c.b16 %v414, %v414
  %v479 = vpack.c.b16 %v415, %v415
  %v480 = vpack.c.b16 %v416, %v416
  %v481 = vpack.c.b16 %v417, %v417
  %v482 = vpack.c.b16 %v418, %v418
  %v483 = vpack.c.b16 %v419, %v419
  %v484 = vpack.c.b16 %v420, %v420
  %v485 = vpack.c.b16 %v421, %v421
  %v486 = vpack.c.b16 %v422, %v422
  %v487 = vpack.c.b16 %v423, %v423
  %v488 = vpack.c.b16 %v424, %v424
  %v489 = vpack.c.b16 %v425, %v425
  %v490 = vpack.c.b16 %v426, %v426
  %v491 = vpack.c.b16 %v427, %v427
  %v492 = vpack.c.b16 %v428, %v428
  %v493 = vpack.c.b16 %v429, %v429
  %v494 = vpack.c.b16 %v430, %v430
  %v495 = vpack.c.b16 %v431, %v431
  %v496 = vpack.c.b16 %v432, %v432
  %v497 = vpack.c.b16 %v433, %v433
  %v498 = vpack.c.b16 %v434, %v434
  %v499 = vpack.c.b16 %v435, %v435
  %v500 = vpack.c.b16 %v436, %v436
  %v501 = vpack.c.b16 %v437, %v437
  %v502 = vpack.c.b16 %v438, %v438
  %v503 = vpack.c.b16 %v439, %v439
  %v504 = vpack.c.b16 %v440, %v440
  %v505 = vpack.c.b16 %v441, %v441
  %v506 = vpack.c.b16 %v442, %v442
  %v507 = vpack.c.b16 %v443, %v443
  %v508 = vpack.c.b16 %v444, %v444
  %v509 = vpack.c.b16 %v445, %v445
  %v510 = vpack.c.b16 %v446, %v446
  %v511 = vpack.c.b16 %v447, %v447
  %v512 = vpack.c.b16 %v448, %v448
  %v513 = vpack.c.b16 %v449, %v449
  %v514 = vpack.c.b16 %v450, %v450
  %v515 = vpack.c.b16 %v451, %v451
  %v516 = vpack.c.b16 %v452, %v452
  %v517 = vpack.c.b16 %v453, %v453
  %v518 = vpack.c.b16 %v454, %v454
  %v519 = vpack.c.b16 %v455, %v455
  %v520 = vpack.c.b16 %v456, %v456
  %v521 = vpack.c.b16 %v457, %v457
  %v522 = vpack.c.b16 %v458, %v458
  %v523 = vpack.c.b16 %v459, %v459
  %v524 = vpack.c.b16 %v460, %v460
  %v525 = vpack.c.b16 %v461, %v461
  %v526 = vpack.c.b16 %v462, %v462
  %v527 = vpack.c.b16 %v463, %v463
  %v528 = vpack.c.b16 %v464, %v464
  %v529 = vpack.c.b16 %v465, %v465
  %v530 = vpack.c.b16 %v466, %v466
  %v531 = vpack.c.b16 %v467, %v467
  %v532 = vpack.c.b16 %v468, %v468
  %v533 = vpack.c.b16 %v469, %v469
  %v534 = vpack.c.b16 %v470, %v470
  %v535 = vpack.c.b16 %v471, %v471
  %v536 = vpack.c.b16 %v472, %v472
  %v537 = vpack.c.b16 %v473, %v473
  %v538 = vpack.c.b16 %v474, %v474
  %v539 = vpack.c.b16 %v475, %v475
  %vm604 = vcmask 257024
  %605 = vst.msk [vmem:[%s3] sm:$0xf] %vm604, %v476
  %606 = vst.msk [vmem:[%s3 + $0x4] sm:$0xf] %vm604, %v477
  %607 = vst.msk [vmem:[%s3 + $0x8] sm:$0xf] %vm604, %v478
  %608 = vst.msk [vmem:[%s3 + $0xc] sm:$0xf] %vm604, %v479
  %609 = vst.msk [vmem:[%s3 + $0x10] sm:$0xf] %vm604, %v480
  %610 = vst.msk [vmem:[%s3 + $0x14] sm:$0xf] %vm604, %v481
  %611 = vst.msk [vmem:[%s3 + $0x18] sm:$0xf] %vm604, %v482
  %612 = vst.msk [vmem:[%s3 + $0x1c] sm:$0xf] %vm604, %v483
  %613 = vst.msk [vmem:[%s3 + $0x20] sm:$0xf] %vm604, %v484
  %614 = vst.msk [vmem:[%s3 + $0x24] sm:$0xf] %vm604, %v485
  %615 = vst.msk [vmem:[%s3 + $0x28] sm:$0xf] %vm604, %v486
  %616 = vst.msk [vmem:[%s3 + $0x2c] sm:$0xf] %vm604, %v487
  %617 = vst.msk [vmem:[%s3 + $0x30] sm:$0xf] %vm604, %v488
  %618 = vst.msk [vmem:[%s3 + $0x34] sm:$0xf] %vm604, %v489
  %619 = vst.msk [vmem:[%s3 + $0x38] sm:$0xf] %vm604, %v490
  %620 = vst.msk [vmem:[%s3 + $0x3c] sm:$0xf] %vm604, %v491
  %621 = vst.msk [vmem:[%s3 + $0x40] sm:$0xf] %vm604, %v492
  %622 = vst.msk [vmem:[%s3 + $0x44] sm:$0xf] %vm604, %v493
  %623 = vst.msk [vmem:[%s3 + $0x48] sm:$0xf] %vm604, %v494
  %624 = vst.msk [vmem:[%s3 + $0x4c] sm:$0xf] %vm604, %v495
  %625 = vst.msk [vmem:[%s3 + $0x50] sm:$0xf] %vm604, %v496
  %626 = vst.msk [vmem:[%s3 + $0x54] sm:$0xf] %vm604, %v497
  %627 = vst.msk [vmem:[%s3 + $0x58] sm:$0xf] %vm604, %v498
  %628 = vst.msk [vmem:[%s3 + $0x5c] sm:$0xf] %vm604, %v499
  %629 = vst.msk [vmem:[%s3 + $0x60] sm:$0xf] %vm604, %v500
  %630 = vst.msk [vmem:[%s3 + $0x64] sm:$0xf] %vm604, %v501
  %631 = vst.msk [vmem:[%s3 + $0x68] sm:$0xf] %vm604, %v502
  %632 = vst.msk [vmem:[%s3 + $0x6c] sm:$0xf] %vm604, %v503
  %633 = vst.msk [vmem:[%s3 + $0x70] sm:$0xf] %vm604, %v504
  %634 = vst.msk [vmem:[%s3 + $0x74] sm:$0xf] %vm604, %v505
  %635 = vst.msk [vmem:[%s3 + $0x78] sm:$0xf] %vm604, %v506
  %636 = vst.msk [vmem:[%s3 + $0x7c] sm:$0xf] %vm604, %v507
  %637 = vst.msk [vmem:[%s3 + $0x80] sm:$0xf] %vm604, %v508
  %638 = vst.msk [vmem:[%s3 + $0x84] sm:$0xf] %vm604, %v509
  %639 = vst.msk [vmem:[%s3 + $0x88] sm:$0xf] %vm604, %v510
  %640 = vst.msk [vmem:[%s3 + $0x8c] sm:$0xf] %vm604, %v511
  %641 = vst.msk [vmem:[%s3 + $0x90] sm:$0xf] %vm604, %v512
  %642 = vst.msk [vmem:[%s3 + $0x94] sm:$0xf] %vm604, %v513
  %643 = vst.msk [vmem:[%s3 + $0x98] sm:$0xf] %vm604, %v514
  %644 = vst.msk [vmem:[%s3 + $0x9c] sm:$0xf] %vm604, %v515
  %645 = vst.msk [vmem:[%s3 + $0xa0] sm:$0xf] %vm604, %v516
  %646 = vst.msk [vmem:[%s3 + $0xa4] sm:$0xf] %vm604, %v517
  %647 = vst.msk [vmem:[%s3 + $0xa8] sm:$0xf] %vm604, %v518
  %648 = vst.msk [vmem:[%s3 + $0xac] sm:$0xf] %vm604, %v519
  %649 = vst.msk [vmem:[%s3 + $0xb0] sm:$0xf] %vm604, %v520
  %650 = vst.msk [vmem:[%s3 + $0xb4] sm:$0xf] %vm604, %v521
  %651 = vst.msk [vmem:[%s3 + $0xb8] sm:$0xf] %vm604, %v522
  %652 = vst.msk [vmem:[%s3 + $0xbc] sm:$0xf] %vm604, %v523
  %653 = vst.msk [vmem:[%s3 + $0xc0] sm:$0xf] %vm604, %v524
  %654 = vst.msk [vmem:[%s3 + $0xc4] sm:$0xf] %vm604, %v525
  %655 = vst.msk [vmem:[%s3 + $0xc8] sm:$0xf] %vm604, %v526
  %656 = vst.msk [vmem:[%s3 + $0xcc] sm:$0xf] %vm604, %v527
  %657 = vst.msk [vmem:[%s3 + $0xd0] sm:$0xf] %vm604, %v528
  %658 = vst.msk [vmem:[%s3 + $0xd4] sm:$0xf] %vm604, %v529
  %659 = vst.msk [vmem:[%s3 + $0xd8] sm:$0xf] %vm604, %v530
  %660 = vst.msk [vmem:[%s3 + $0xdc] sm:$0xf] %vm604, %v531
  %661 = vst.msk [vmem:[%s3 + $0xe0] sm:$0xf] %vm604, %v532
  %662 = vst.msk [vmem:[%s3 + $0xe4] sm:$0xf] %vm604, %v533
  %663 = vst.msk [vmem:[%s3 + $0xe8] sm:$0xf] %vm604, %v534
  %664 = vst.msk [vmem:[%s3 + $0xec] sm:$0xf] %vm604, %v535
  %665 = vst.msk [vmem:[%s3 + $0xf0] sm:$0xf] %vm604, %v536
  %666 = vst.msk [vmem:[%s3 + $0xf4] sm:$0xf] %vm604, %v537
  %667 = vst.msk [vmem:[%s3 + $0xf8] sm:$0xf] %vm604, %v538
  %668 = vst.msk [vmem:[%s3 + $0xfc] sm:$0xf] %vm604, %v539
  // Predicated region
  $region14: #{vgg_block_forward.5} parent=0 // pred_check
    _
  $region15: #{vgg_block_forward.5} parent=0 // pred_check_branch
    %670 = sbr.rel (0) target = $region17
  $region16: #{vgg_block_forward.5} parent=0 // pred_region
    _
  $region17: #{vgg_block_forward.5} parent=0 // pred_fallthru
    _
  // Predicated region
  $region18: #{vgg_block_forward.5} parent=0 // pred_check
    _
  $region19: #{vgg_block_forward.5} parent=0 // pred_check_branch
    %672 = sbr.rel (0) target = $region21
  $region20: #{vgg_block_forward.5} parent=0 // pred_region
    _
  $region21: #{vgg_block_forward.5} parent=0 // pred_fallthru
    _

// kernel: vgg_block_forward.4
$region0: #{vgg_block_forward.4}
  #allocation0 [shape = 'u32[]', space=smem, size = 0x4, offset = 0x4, fixed_abs, tag = 'smem constant byte address 0x4 - core index']
  #allocation1 [shape = 'u32[144,128]{1,0:T(1,128)}', space=vmem, size = 0x12000, scoped, tag = 'internal scratch']
  #allocation2 [shape = 'bf16[18,18,4]{2,1,0:T(8,128)(2,1)}', space=vmem, size = 0x1b000, scoped, tag = 'scratch operand']
  %s0 = inlined_call_operand.vmem [shape: bf16[2,18,18,4], index: 0, kind: input, shape index: {}, may-alias: {0,1}]
  %s1 = inlined_call_operand.vmem [shape: bf16[2,18,18,4], index: 1, kind: input, shape index: {}, may-alias: {0,1}]
  %s2 = inlined_call_operand.vmem [shape: bf16[9,4,32], index: 2, kind: input, shape index: {}]
  %s3 = inlined_call_operand.vmem [shape: bf16[2,256,32], index: 3, kind: output, shape index: {0}]
  %s4 = inlined_call_operand.vmem [shape: f32[2,1,1,32], index: 4, kind: output, shape index: {1}]
  %s5 = inlined_call_operand.vmem [shape: f32[2,1,1,32], index: 5, kind: output, shape index: {2}]
  %6 = xla_tuple %s3, %s4, %s5
  %s7 = sld [smem:[#allocation0]]
  $region61: #{vgg_block_forward.4} parent=0
    _
  %s9 = ssub.s32 1, %s7
  %s10 = scalar_select 0, %s9, %s7
  loop: start=0, step=1, limit=4
  $region2: #{vgg_block_forward.4} parent=0 // loop_pre_header
    _
  $region3: #{vgg_block_forward.4} parent=0 // loop_header
    %s12 = sphi 0, %s16
    %p13 = scmp.ge.s32.totalorder %s12, 4
    %s19 = sphi 0, %s31
    %s20 = sphi 0, %s27
    %s21 = sphi 0, %s19
    %s22 = sphi 0, %s20
    %s23 = sphi 0, %s21
    %s24 = sphi 0, %s22
    %s36 = sphi 0, %s38
    %s39 = sphi 0, %s36
    %s40 = sphi 0, %s39
    %s56 = sphi 0, %s40
    %s68 = sphi 0, %s70
    %s71 = sphi 0, %s68
    %s72 = sphi 0, %s71
    %s88 = sphi 0, %s72
    %s92 = sphi 0, %s92
    %s94 = sphi 0, %s92
    %s95 = sphi 0, %s94
    %s109 = sphi 0, %s95
    %s117 = sphi 0, %s119
    %s120 = sphi 0, %s117
    %s121 = sphi 0, %s120
    %s137 = sphi 0, %s121
    %s145 = sphi 0, %s147
    %s148 = sphi 0, %s145
    %s149 = sphi 0, %s148
    %s165 = sphi 0, %s149
    %s173 = sphi 0, %s175
    %s176 = sphi 0, %s173
    %s177 = sphi 0, %s176
    %s193 = sphi 0, %s177
  $region4: #{vgg_block_forward.4} parent=0 // loop_header_branch
    %15 = sbr.rel (%p13) target = $region8
  $region5: #{vgg_block_forward.4} parent=0 // loop_body
    %s17 = ssub.s32 %s12, 1
    %s18 = ssub.s32 %s12, 2
    %s25 = sadd.s32 1, %s20
    %p26 = scmp.ge.s32.totalorder %s25, 1
    %s27 = scalar_select %p26, 0, %s25
    %s28 = sadd.s32 1, %s19
    %s29 = scalar_select %p26, %s28, %s19
    %p30 = scmp.ge.s32.totalorder %s29, 2
    %s31 = scalar_select %p30, 0, %s29
    %s32 = ssub.s32 %s19, %s31
    %s33 = ssub.s32 %s20, %s27
    %s34 = sor.u32 %s32, %s33
    %p35 = scmp.eq.s32.totalorder %s34, 0
    %s37 = sadd.s32 %s36, 1
    %s38 = scalar_select %p35, %s36, %s37
    %p41 = pneg %p35
    %p42 = scmp.eq.s32.totalorder %s12, 1
    %p43 = por %p41, %p42
    %p44 = scmp.ne.s32.totalorder %s36, %s39
    %p45 = scmp.eq.s32.totalorder %s12, 0
    %p46 = por %p44, %p45
    %p47 = scmp.ne.s32.totalorder %s36, %s39
    %p48 = scmp.eq.s32.totalorder %s17, 1
    %p49 = por %p47, %p48
    %p50 = scmp.ne.s32.totalorder %s39, %s40
    %p51 = scmp.eq.s32.totalorder %s17, 0
    %p52 = por %p50, %p51
    %p53 = scmp.ne.s32.totalorder %s39, %s40
    %p54 = scmp.eq.s32.totalorder %s18, 1
    %p55 = por %p53, %p54
    %p57 = scmp.ne.s32.totalorder %s40, %s56
    %p58 = scmp.eq.s32.totalorder %s18, 0
    %p59 = por %p57, %p58
    %s60 = sadd.s32 %s20, 1
    %s61 = smul.u32 %s60, 8
    %s62 = sadd.s32 %s27, 1
    %s63 = smul.u32 %s62, 8
    %s64 = ssub.s32 %s19, %s31
    %s65 = ssub.s32 %s61, %s63
    %s66 = sor.u32 %s64, %s65
    %p67 = scmp.eq.s32.totalorder %s66, 0
    %s69 = sadd.s32 %s68, 1
    %s70 = scalar_select %p67, %s68, %s69
    %p73 = pneg %p67
    %p74 = scmp.eq.s32.totalorder %s12, 1
    %p75 = por %p73, %p74
    %p76 = scmp.ne.s32.totalorder %s68, %s71
    %p77 = scmp.eq.s32.totalorder %s12, 0
    %p78 = por %p76, %p77
    %p79 = scmp.ne.s32.totalorder %s68, %s71
    %p80 = scmp.eq.s32.totalorder %s17, 1
    %p81 = por %p79, %p80
    %p82 = scmp.ne.s32.totalorder %s71, %s72
    %p83 = scmp.eq.s32.totalorder %s17, 0
    %p84 = por %p82, %p83
    %p85 = scmp.ne.s32.totalorder %s71, %s72
    %p86 = scmp.eq.s32.totalorder %s18, 1
    %p87 = por %p85, %p86
    %p89 = scmp.ne.s32.totalorder %s72, %s88
    %p90 = scmp.eq.s32.totalorder %s18, 0
    %p91 = por %p89, %p90
    %s93 = sadd.s32 %s92, 1
    %p96 = scmp.eq.s32.totalorder %s12, 1
    %p97 = scmp.ne.s32.totalorder %s92, %s94
    %p98 = scmp.eq.s32.totalorder %s12, 0
    %p99 = por %p97, %p98
    %p100 = scmp.ne.s32.totalorder %s92, %s94
    %p101 = scmp.eq.s32.totalorder %s17, 1
    %p102 = por %p100, %p101
    %p103 = scmp.ne.s32.totalorder %s94, %s95
    %p104 = scmp.eq.s32.totalorder %s17, 0
    %p105 = por %p103, %p104
    %p106 = scmp.ne.s32.totalorder %s94, %s95
    %p107 = scmp.eq.s32.totalorder %s18, 1
    %p108 = por %p106, %p107
    %p110 = scmp.ne.s32.totalorder %s95, %s109
    %p111 = scmp.eq.s32.totalorder %s18, 0
    %p112 = por %p110, %p111
    %s113 = ssub.s32 %s19, %s31
    %s114 = ssub.s32 %s20, %s27
    %s115 = sor.u32 %s113, %s114
    %p116 = scmp.eq.s32.totalorder %s115, 0
    %s118 = sadd.s32 %s117, 1
    %s119 = scalar_select %p116, %s117, %s118
    %p122 = pneg %p116
    %p123 = scmp.eq.s32.totalorder %s12, 1
    %p124 = por %p122, %p123
    %p125 = scmp.ne.s32.totalorder %s117, %s120
    %p126 = scmp.eq.s32.totalorder %s12, 0
    %p127 = por %p125, %p126
    %p128 = scmp.ne.s32.totalorder %s117, %s120
    %p129 = scmp.eq.s32.totalorder %s17, 1
    %p130 = por %p128, %p129
    %p131 = scmp.ne.s32.totalorder %s120, %s121
    %p132 = scmp.eq.s32.totalorder %s17, 0
    %p133 = por %p131, %p132
    %p134 = scmp.ne.s32.totalorder %s120, %s121
    %p135 = scmp.eq.s32.totalorder %s18, 1
    %p136 = por %p134, %p135
    %p138 = scmp.ne.s32.totalorder %s121, %s137
    %p139 = scmp.eq.s32.totalorder %s18, 0
    %p140 = por %p138, %p139
    %s141 = ssub.s32 %s19, %s31
    %s142 = ssub.s32 %s20, %s27
    %s143 = sor.u32 %s141, %s142
    %p144 = scmp.eq.s32.totalorder %s143, 0
    %s146 = sadd.s32 %s145, 1
    %s147 = scalar_select %p144, %s145, %s146
    %p150 = pneg %p144
    %p151 = scmp.eq.s32.totalorder %s12, 1
    %p152 = por %p150, %p151
    %p153 = scmp.ne.s32.totalorder %s145, %s148
    %p154 = scmp.eq.s32.totalorder %s12, 0
    %p155 = por %p153, %p154
    %p156 = scmp.ne.s32.totalorder %s145, %s148
    %p157 = scmp.eq.s32.totalorder %s17, 1
    %p158 = por %p156, %p157
    %p159 = scmp.ne.s32.totalorder %s148, %s149
    %p160 = scmp.eq.s32.totalorder %s17, 0
    %p161 = por %p159, %p160
    %p162 = scmp.ne.s32.totalorder %s148, %s149
    %p163 = scmp.eq.s32.totalorder %s18, 1
    %p164 = por %p162, %p163
    %p166 = scmp.ne.s32.totalorder %s149, %s165
    %p167 = scmp.eq.s32.totalorder %s18, 0
    %p168 = por %p166, %p167
    %s169 = ssub.s32 %s19, %s31
    %s170 = ssub.s32 %s20, %s27
    %s171 = sor.u32 %s169, %s170
    %p172 = scmp.eq.s32.totalorder %s171, 0
    %s174 = sadd.s32 %s173, 1
    %s175 = scalar_select %p172, %s173, %s174
    %p178 = pneg %p172
    %p179 = scmp.eq.s32.totalorder %s12, 1
    %p180 = por %p178, %p179
    %p181 = scmp.ne.s32.totalorder %s173, %s176
    %p182 = scmp.eq.s32.totalorder %s12, 0
    %p183 = por %p181, %p182
    %p184 = scmp.ne.s32.totalorder %s173, %s176
    %p185 = scmp.eq.s32.totalorder %s17, 1
    %p186 = por %p184, %p185
    %p187 = scmp.ne.s32.totalorder %s176, %s177
    %p188 = scmp.eq.s32.totalorder %s17, 0
    %p189 = por %p187, %p188
    %p190 = scmp.ne.s32.totalorder %s176, %s177
    %p191 = scmp.eq.s32.totalorder %s18, 1
    %p192 = por %p190, %p191
    %p194 = scmp.ne.s32.totalorder %s177, %s193
    %p195 = scmp.eq.s32.totalorder %s18, 0
    %p196 = por %p194, %p195
    %p197 = scmp.le.s32.totalorder 1, %s12
    %p198 = scmp.lt.s32.totalorder %s12, 3
    %p199 = pnand %p197, %p198
    %p200 = pneg %p199
    // Predicated region
    $region9: #{vgg_block_forward.4} parent=5 // pred_check
      _
    $region10: #{vgg_block_forward.4} parent=5 // pred_check_branch
      %202 = sbr.rel (%p199) target = $region12
    $region11: #{vgg_block_forward.4} parent=5 // pred_region
      %s203 = ssub.s32 %s12, 1
      // Predicated region
      $region13: #{vgg_block_forward.4} parent=11 // pred_check
        %p204 = pneg %p105
      $region14: #{vgg_block_forward.4} parent=11 // pred_check_branch
        %206 = sbr.rel (%p204) target = $region16
      $region15: #{vgg_block_forward.4} parent=11 // pred_region
        _
      $region16: #{vgg_block_forward.4} parent=11 // pred_fallthru
        _
    $region12: #{vgg_block_forward.4} parent=5 // pred_fallthru
      _
    %p207 = scmp.lt.s32.totalorder %s12, 2
    // Predicated region
    $region17: #{vgg_block_forward.4} parent=5 // pred_check
      %p208 = pneg %p207
    $region18: #{vgg_block_forward.4} parent=5 // pred_check_branch
      %210 = sbr.rel (%p208) target = $region20
    $region19: #{vgg_block_forward.4} parent=5 // pred_region
      // Predicated region
      $region21: #{vgg_block_forward.4} parent=19 // pred_check
        %p211 = pneg %p46
      $region22: #{vgg_block_forward.4} parent=19 // pred_check_branch
        %213 = sbr.rel (%p211) target = $region24
      $region23: #{vgg_block_forward.4} parent=19 // pred_region
        %s214 = smul.u32 16, %s20
        %s215 = ssub.s32 18, %s214
        %p216 = scmp.lt.s32.totalorder %s215, 16
        %s217 = scalar_select %p216, %s215, 16
        %s218 = smul.u32 64, %s217
        %s219 = smul.u32 %s218, 3
        %p220 = scmp.lt.s32.totalorder %s19, 1
        %s221 = scalar_select %p220, %s19, 1
        %p222 = scmp.lt.s32.totalorder %s214, 17
        %s223 = scalar_select %p222, %s214, 17
        %s224 = smul.addr %s223, 3
        %s225 = smul.addr %s221, 54
        %s226 = sadd.s32 %s224, %s225
        %s227 = smul.addr %s226, 4
        %s228 = scalar_lea.vmem %s0, %s227
        %s229 = smul.u32 16, %s20
        %s230 = ssub.s32 18, %s229
        %p231 = scmp.lt.s32.totalorder %s230, 16
        %s232 = scalar_select %p231, %s230, 16
        %s233 = smul.u32 64, %s232
        %s234 = smul.u32 %s233, 3
      $region24: #{vgg_block_forward.4} parent=19 // pred_fallthru
        _
      // Predicated region
      $region25: #{vgg_block_forward.4} parent=19 // pred_check
        %p235 = pneg %p78
      $region26: #{vgg_block_forward.4} parent=19 // pred_check_branch
        %237 = sbr.rel (%p235) target = $region28
      $region27: #{vgg_block_forward.4} parent=19 // pred_region
        %s238 = sadd.s32 %s20, 1
        %s239 = smul.u32 %s238, 8
        %s240 = smul.u32 2, %s239
        %p241 = scmp.lt.s32.totalorder %s19, 1
        %s242 = scalar_select %p241, %s19, 1
        %p243 = scmp.lt.s32.totalorder %s240, 17
        %s244 = scalar_select %p243, %s240, 17
        %s245 = smul.addr %s244, 3
        %s246 = smul.addr %s242, 54
        %s247 = sadd.s32 %s245, %s246
        %s248 = smul.addr %s247, 4
        %s249 = scalar_lea.vmem %s1, %s248
        %s250 = sadd.s32 %s20, 1
        %s251 = smul.u32 %s250, 8
        %s252 = smul.u32 2, %s251
      $region28: #{vgg_block_forward.4} parent=19 // pred_fallthru
        _
    $region20: #{vgg_block_forward.4} parent=5 // pred_fallthru
      _
    %p253 = scmp.le.s32.totalorder 1, %s12
    %p254 = scmp.lt.s32.totalorder %s12, 3
    %p255 = pnand %p253, %p254
    %p256 = pneg %p255
    // Predicated region
    $region29: #{vgg_block_forward.4} parent=5 // pred_check
      _
    $region30: #{vgg_block_forward.4} parent=5 // pred_check_branch
      %258 = sbr.rel (%p255) target = $region32
    $region31: #{vgg_block_forward.4} parent=5 // pred_region
      %s259 = ssub.s32 %s12, 1
      %s260 = smul.u32 16, %s22
      %s261 = ssub.s32 18, %s260
      %p262 = scmp.lt.s32.totalorder %s261, 16
      %s263 = scalar_select %p262, %s261, 16
      %s264 = smul.u32 64, %s263
      %s265 = smul.u32 %s264, 3
      %p266 = scmp.lt.s32.totalorder %s21, 1
      %s267 = scalar_select %p266, %s21, 1
      %p268 = scmp.lt.s32.totalorder %s260, 17
      %s269 = scalar_select %p268, %s260, 17
      %s270 = smul.addr %s269, 3
      %s271 = smul.addr %s267, 54
      %s272 = sadd.s32 %s270, %s271
      %s273 = smul.addr %s272, 4
      %s274 = scalar_lea.vmem %s0, %s273
      %p275 = pneg %p52
      %p276 = pneg %p49
      %s277 = sadd.s32 %s22, 1
      %s278 = smul.u32 %s277, 8
      %s279 = smul.u32 2, %s278
      %p280 = scmp.lt.s32.totalorder %s21, 1
      %s281 = scalar_select %p280, %s21, 1
      %p282 = scmp.lt.s32.totalorder %s279, 17
      %s283 = scalar_select %p282, %s279, 17
      %s284 = smul.addr %s283, 3
      %s285 = smul.addr %s281, 54
      %s286 = sadd.s32 %s284, %s285
      %s287 = smul.addr %s286, 4
      %s288 = scalar_lea.vmem %s1, %s287
      %p289 = pneg %p84
      %p290 = pneg %p81
      %p291 = pneg %p105
      %p292 = pneg %p102
      %p293 = pneg %p133
      %p294 = pneg %p130
      %s295 = smul.u32 32, %s22
      %p296 = scmp.lt.s32.totalorder %s21, 1
      %s297 = scalar_select %p296, %s21, 1
      %p298 = scmp.lt.s32.totalorder %s295, 31
      %s299 = scalar_select %p298, %s295, 31
      %s300 = smul.addr %s297, 32
      %s301 = sadd.s32 %s299, %s300
      %s302 = smul.addr %s301, 4
      %s303 = scalar_lea.vmem %s3, %s302
      %p304 = pneg %p161
      %p305 = pneg %p158
      %p306 = scmp.lt.s32.totalorder %s21, 1
      %s307 = scalar_select %p306, %s21, 1
      %p308 = scmp.lt.s32.totalorder %s22, 0
      %s309 = scalar_select %p308, %s22, 0
      %s310 = sadd.s32 %s309, %s307
      %s311 = scalar_lea.vmem %s4, %s310
      %p312 = pneg %p189
      %p313 = pneg %p186
      %p314 = scmp.lt.s32.totalorder %s21, 1
      %s315 = scalar_select %p314, %s21, 1
      %p316 = scmp.lt.s32.totalorder %s22, 0
      %s317 = scalar_select %p316, %s22, 0
      %s318 = sadd.s32 %s317, %s315
      %s319 = scalar_lea.vmem %s5, %s318
      %s320 = smul.u32 16, %s22
      %s321 = ssub.s32 18, %s320
      %p322 = scmp.lt.s32.totalorder %s321, 16
      %s323 = scalar_select %p322, %s321, 16
      %s324 = smul.u32 64, %s323
      %s325 = smul.u32 %s324, 3
      %p326 = scmp.lt.s32.totalorder %s21, 1
      %s327 = scalar_select %p326, %s21, 1
      %p328 = scmp.lt.s32.totalorder %s320, 17
      %s329 = scalar_select %p328, %s320, 17
      %s330 = smul.addr %s329, 3
      %s331 = smul.addr %s327, 54
      %s332 = sadd.s32 %s330, %s331
      %s333 = smul.addr %s332, 4
      %s334 = scalar_lea.vmem %s0, %s333
      %s335 = smul.u32 16, %s22
      %s336 = ssub.s32 18, %s335
      %p337 = scmp.lt.s32.totalorder %s336, 16
      %s338 = scalar_select %p337, %s336, 16
      %s339 = smul.u32 64, %s338
      %s340 = smul.u32 %s339, 3
      %s341 = sadd.s32 %s22, 1
      %s342 = smul.u32 %s341, 8
      %s343 = smul.u32 2, %s342
      %p344 = scmp.lt.s32.totalorder %s21, 1
      %s345 = scalar_select %p344, %s21, 1
      %p346 = scmp.lt.s32.totalorder %s343, 17
      %s347 = scalar_select %p346, %s343, 17
      %s348 = smul.addr %s347, 3
      %s349 = smul.addr %s345, 54
      %s350 = sadd.s32 %s348, %s349
      %s351 = smul.addr %s350, 4
      %s352 = scalar_lea.vmem %s1, %s351
      %s353 = sadd.s32 %s22, 1
      %s354 = smul.u32 %s353, 8
      %s355 = smul.u32 2, %s354
      %s356 = smul.u32 32, %s22
      %p357 = scmp.lt.s32.totalorder %s21, 1
      %s358 = scalar_select %p357, %s21, 1
      %p359 = scmp.lt.s32.totalorder %s356, 31
      %s360 = scalar_select %p359, %s356, 31
      %s361 = smul.addr %s358, 32
      %s362 = sadd.s32 %s360, %s361
      %s363 = smul.addr %s362, 4
      %s364 = scalar_lea.vmem %s3, %s363
      %s365 = smul.u32 32, %s22
      %p366 = scmp.lt.s32.totalorder %s21, 1
      %s367 = scalar_select %p366, %s21, 1
      %p368 = scmp.lt.s32.totalorder %s22, 0
      %s369 = scalar_select %p368, %s22, 0
      %s370 = sadd.s32 %s369, %s367
      %s371 = scalar_lea.vmem %s4, %s370
      %p372 = scmp.lt.s32.totalorder %s21, 1
      %s373 = scalar_select %p372, %s21, 1
      %p374 = scmp.lt.s32.totalorder %s22, 0
      %s375 = scalar_select %p374, %s22, 0
      %s376 = sadd.s32 %s375, %s373
      %s377 = scalar_lea.vmem %s5, %s376
      %v379 = vld [vmem:[%s334] sm:$0xf]
      %v380 = vld [vmem:[%s334 + $0x4] sm:$0xf]
      %v381 = vld [vmem:[%s334 + $0x8] sm:$0x1]
      %v382 = vld [vmem:[%s334 + $0xc] sm:$0xf]
      %v383 = vld [vmem:[%s334 + $0x10] sm:$0xf]
      %v384 = vld [vmem:[%s334 + $0x14] sm:$0x1]
      %v385 = vld [vmem:[%s334 + $0x18] sm:$0xf]
      %v386 = vld [vmem:[%s334 + $0x1c] sm:$0xf]
      %v387 = vld [vmem:[%s334 + $0x20] sm:$0x1]
      %v388 = vld [vmem:[%s334 + $0x24] sm:$0xf]
      %v389 = vld [vmem:[%s334 + $0x28] sm:$0xf]
      %v390 = vld [vmem:[%s334 + $0x2c] sm:$0x1]
      %v391 = vld [vmem:[%s334 + $0x30] sm:$0xf]
      %v392 = vld [vmem:[%s334 + $0x34] sm:$0xf]
      %v393 = vld [vmem:[%s334 + $0x38] sm:$0x1]
      %v394 = vld [vmem:[%s334 + $0x3c] sm:$0xf]
      %v395 = vld [vmem:[%s334 + $0x40] sm:$0xf]
      %v396 = vld [vmem:[%s334 + $0x44] sm:$0x1]
      %v397 = vld [vmem:[%s334 + $0x48] sm:$0xf]
      %v398 = vld [vmem:[%s334 + $0x4c] sm:$0xf]
      %v399 = vld [vmem:[%s334 + $0x50] sm:$0x1]
      %v400 = vld [vmem:[%s334 + $0x54] sm:$0xf]
      %v401 = vld [vmem:[%s334 + $0x58] sm:$0xf]
      %v402 = vld [vmem:[%s334 + $0x5c] sm:$0x1]
      %v403 = vld [vmem:[%s334 + $0x60] sm:$0xf]
      %v404 = vld [vmem:[%s334 + $0x64] sm:$0xf]
      %v405 = vld [vmem:[%s334 + $0x68] sm:$0x1]
      %v406 = vld [vmem:[%s334 + $0x6c] sm:$0xf]
      %v407 = vld [vmem:[%s334 + $0x70] sm:$0xf]
      %v408 = vld [vmem:[%s334 + $0x74] sm:$0x1]
      %v409 = vld [vmem:[%s334 + $0x78] sm:$0xf]
      %v410 = vld [vmem:[%s334 + $0x7c] sm:$0xf]
      %v411 = vld [vmem:[%s334 + $0x80] sm:$0x1]
      %v412 = vld [vmem:[%s334 + $0x84] sm:$0xf]
      %v413 = vld [vmem:[%s334 + $0x88] sm:$0xf]
      %v414 = vld [vmem:[%s334 + $0x8c] sm:$0x1]
      %v415 = vld [vmem:[%s334 + $0x90] sm:$0xf]
      %v416 = vld [vmem:[%s334 + $0x94] sm:$0xf]
      %v417 = vld [vmem:[%s334 + $0x98] sm:$0x1]
      %v418 = vld [vmem:[%s334 + $0x9c] sm:$0xf]
      %v419 = vld [vmem:[%s334 + $0xa0] sm:$0xf]
      %v420 = vld [vmem:[%s334 + $0xa4] sm:$0x1]
      %v421 = vld [vmem:[%s334 + $0xa8] sm:$0xf]
      %v422 = vld [vmem:[%s334 + $0xac] sm:$0xf]
      %v423 = vld [vmem:[%s334 + $0xb0] sm:$0x1]
      %v424 = vld [vmem:[%s334 + $0xb4] sm:$0xf]
      %v425 = vld [vmem:[%s334 + $0xb8] sm:$0xf]
      %v426 = vld [vmem:[%s334 + $0xbc] sm:$0x1]
      %vm427 = vcmask 27648
      %428 = vst.msk [vmem:[#allocation2] sm:$0xf] %vm427, %v379
      %429 = vst.msk [vmem:[#allocation2 + $0x4] sm:$0xf] %vm427, %v380
      %vm430 = vcmask 24576
      %431 = vst.msk [vmem:[#allocation2 + $0x8] sm:$0x1] %vm430, %v381
      %432 = vst.msk [vmem:[#allocation2 + $0xc] sm:$0xf] %vm427, %v382
      %433 = vst.msk [vmem:[#allocation2 + $0x10] sm:$0xf] %vm427, %v383
      %434 = vst.msk [vmem:[#allocation2 + $0x14] sm:$0x1] %vm430, %v384
      %435 = vst.msk [vmem:[#allocation2 + $0x18] sm:$0xf] %vm427, %v385
      %436 = vst.msk [vmem:[#allocation2 + $0x1c] sm:$0xf] %vm427, %v386
      %437 = vst.msk [vmem:[#allocation2 + $0x20] sm:$0x1] %vm430, %v387
      %438 = vst.msk [vmem:[#allocation2 + $0x24] sm:$0xf] %vm427, %v388
      %439 = vst.msk [vmem:[#allocation2 + $0x28] sm:$0xf] %vm427, %v389
      %440 = vst.msk [vmem:[#allocation2 + $0x2c] sm:$0x1] %vm430, %v390
      %441 = vst.msk [vmem:[#allocation2 + $0x30] sm:$0xf] %vm427, %v391
      %442 = vst.msk [vmem:[#allocation2 + $0x34] sm:$0xf] %vm427, %v392
      %443 = vst.msk [vmem:[#allocation2 + $0x38] sm:$0x1] %vm430, %v393
      %444 = vst.msk [vmem:[#allocation2 + $0x3c] sm:$0xf] %vm427, %v394
      %445 = vst.msk [vmem:[#allocation2 + $0x40] sm:$0xf] %vm427, %v395
      %446 = vst.msk [vmem:[#allocation2 + $0x44] sm:$0x1] %vm430, %v396
      %447 = vst.msk [vmem:[#allocation2 + $0x48] sm:$0xf] %vm427, %v397
      %448 = vst.msk [vmem:[#allocation2 + $0x4c] sm:$0xf] %vm427, %v398
      %449 = vst.msk [vmem:[#allocation2 + $0x50] sm:$0x1] %vm430, %v399
      %450 = vst.msk [vmem:[#allocation2 + $0x54] sm:$0xf] %vm427, %v400
      %451 = vst.msk [vmem:[#allocation2 + $0x58] sm:$0xf] %vm427, %v401
      %452 = vst.msk [vmem:[#allocation2 + $0x5c] sm:$0x1] %vm430, %v402
      %453 = vst.msk [vmem:[#allocation2 + $0x60] sm:$0xf] %vm427, %v403
      %454 = vst.msk [vmem:[#allocation2 + $0x64] sm:$0xf] %vm427, %v404
      %455 = vst.msk [vmem:[#allocation2 + $0x68] sm:$0x1] %vm430, %v405
      %456 = vst.msk [vmem:[#allocation2 + $0x6c] sm:$0xf] %vm427, %v406
      %457 = vst.msk [vmem:[#allocation2 + $0x70] sm:$0xf] %vm427, %v407
      %458 = vst.msk [vmem:[#allocation2 + $0x74] sm:$0x1] %vm430, %v408
      %459 = vst.msk [vmem:[#allocation2 + $0x78] sm:$0xf] %vm427, %v409
      %460 = vst.msk [vmem:[#allocation2 + $0x7c] sm:$0xf] %vm427, %v410
      %461 = vst.msk [vmem:[#allocation2 + $0x80] sm:$0x1] %vm430, %v411
      %462 = vst.msk [vmem:[#allocation2 + $0x84] sm:$0xf] %vm427, %v412
      %463 = vst.msk [vmem:[#allocation2 + $0x88] sm:$0xf] %vm427, %v413
      %464 = vst.msk [vmem:[#allocation2 + $0x8c] sm:$0x1] %vm430, %v414
      %465 = vst.msk [vmem:[#allocation2 + $0x90] sm:$0xf] %vm427, %v415
      %466 = vst.msk [vmem:[#allocation2 + $0x94] sm:$0xf] %vm427, %v416
      %467 = vst.msk [vmem:[#allocation2 + $0x98] sm:$0x1] %vm430, %v417
      %468 = vst.msk [vmem:[#allocation2 + $0x9c] sm:$0xf] %vm427, %v418
      %469 = vst.msk [vmem:[#allocation2 + $0xa0] sm:$0xf] %vm427, %v419
      %470 = vst.msk [vmem:[#allocation2 + $0xa4] sm:$0x1] %vm430, %v420
      %471 = vst.msk [vmem:[#allocation2 + $0xa8] sm:$0xf] %vm427, %v421
      %472 = vst.msk [vmem:[#allocation2 + $0xac] sm:$0xf] %vm427, %v422
      %473 = vst.msk [vmem:[#allocation2 + $0xb0] sm:$0x1] %vm430, %v423
      %474 = vst.msk [vmem:[#allocation2 + $0xb4] sm:$0xf] %vm427, %v424
      %475 = vst.msk [vmem:[#allocation2 + $0xb8] sm:$0xf] %vm427, %v425
      %476 = vst.msk [vmem:[#allocation2 + $0xbc] sm:$0x1] %vm430, %v426
      %v477 = vld [vmem:[%s352] sm:$0xf]
      %v478 = vld [vmem:[%s352 + $0x4] sm:$0xf]
      %v479 = vld [vmem:[%s352 + $0x8] sm:$0x1]
      %v480 = vld [vmem:[%s352 + $0xc] sm:$0xf]
      %v481 = vld [vmem:[%s352 + $0x10] sm:$0xf]
      %v482 = vld [vmem:[%s352 + $0x14] sm:$0x1]
      %s483 = scalar_lea.vmem [#allocation2], 192
      %484 = vst.msk [vmem:[%s483] sm:$0xf] %vm427, %v477
      %485 = vst.msk [vmem:[%s483 + $0x4] sm:$0xf] %vm427, %v478
      %486 = vst.msk [vmem:[%s483 + $0x8] sm:$0x1] %vm430, %v479
      %487 = vst.msk [vmem:[%s483 + $0xc] sm:$0xf] %vm427, %v480
      %488 = vst.msk [vmem:[%s483 + $0x10] sm:$0xf] %vm427, %v481
      %489 = vst.msk [vmem:[%s483 + $0x14] sm:$0x1] %vm430, %v482
      %v490 = vld [vmem:[#allocation2] sm:$0xf]
      %v491 = vld [vmem:[#allocation2 + $0x4] sm:$0xf]
      %v492 = vld [vmem:[#allocation2 + $0xc] sm:$0xf]
      %v493 = vld [vmem:[#allocation2 + $0x10] sm:$0xf]
      %v494 = vld [vmem:[#allocation2 + $0x18] sm:$0xf]
      %v495 = vld [vmem:[#allocation2 + $0x1c] sm:$0xf]
      %v496 = vld [vmem:[#allocation2 + $0x24] sm:$0xf]
      %v497 = vld [vmem:[#allocation2 + $0x28] sm:$0xf]
      %v498 = vld [vmem:[#allocation2 + $0x30] sm:$0xf]
      %v499 = vld [vmem:[#allocation2 + $0x34] sm:$0xf]
      %v500 = vld [vmem:[#allocation2 + $0x3c] sm:$0xf]
      %v501 = vld [vmem:[#allocation2 + $0x40] sm:$0xf]
      %v502 = vld [vmem:[#allocation2 + $0x48] sm:$0xf]
      %v503 = vld [vmem:[#allocation2 + $0x4c] sm:$0xf]
      %v504 = vld [vmem:[#allocation2 + $0x54] sm:$0xf]
      %v505 = vld [vmem:[#allocation2 + $0x58] sm:$0xf]
      %v506 = vld [vmem:[#allocation2 + $0x60] sm:$0xf]
      %v507 = vld [vmem:[#allocation2 + $0x64] sm:$0xf]
      %v508 = vld [vmem:[#allocation2 + $0x6c] sm:$0xf]
      %v509 = vld [vmem:[#allocation2 + $0x70] sm:$0xf]
      %v510 = vld [vmem:[#allocation2 + $0x78] sm:$0xf]
      %v511 = vld [vmem:[#allocation2 + $0x7c] sm:$0xf]
      %v512 = vld [vmem:[#allocation2 + $0x84] sm:$0xf]
      %v513 = vld [vmem:[#allocation2 + $0x88] sm:$0xf]
      %v514 = vld [vmem:[#allocation2 + $0x90] sm:$0xf]
      %v515 = vld [vmem:[#allocation2 + $0x94] sm:$0xf]
      %v516 = vld [vmem:[#allocation2 + $0x9c] sm:$0xf]
      %v517 = vld [vmem:[#allocation2 + $0xa0] sm:$0xf]
      %v518 = vld [vmem:[#allocation2 + $0xa8] sm:$0xf]
      %v519 = vld [vmem:[#allocation2 + $0xac] sm:$0xf]
      %v520 = vld [vmem:[#allocation2 + $0xb4] sm:$0xf]
      %v521 = vld [vmem:[#allocation2 + $0xb8] sm:$0xf]
      %v522 = vld [vmem:[%s2] sm:$0x3]
      %v523 = vld [vmem:[#allocation2 + $0x8] sm:$0x1]
      %v524 = vld [vmem:[#allocation2 + $0x14] sm:$0x1]
      %v525 = vld [vmem:[#allocation2 + $0x20] sm:$0x1]
      %v526 = vld [vmem:[#allocation2 + $0x2c] sm:$0x1]
      %v527 = vld [vmem:[#allocation2 + $0x38] sm:$0x1]
      %v528 = vld [vmem:[#allocation2 + $0x44] sm:$0x1]
      %v529 = vld [vmem:[#allocation2 + $0x50] sm:$0x1]
      %v530 = vld [vmem:[#allocation2 + $0x5c] sm:$0x1]
      %v531 = vld [vmem:[#allocation2 + $0x68] sm:$0x1]
      %v532 = vld [vmem:[#allocation2 + $0x74] sm:$0x1]
      %v533 = vld [vmem:[#allocation2 + $0x80] sm:$0x1]
      %v534 = vld [vmem:[#allocation2 + $0x8c] sm:$0x1]
      %v535 = vld [vmem:[#allocation2 + $0x98] sm:$0x1]
      %v536 = vld [vmem:[#allocation2 + $0xa4] sm:$0x1]
      %v537 = vld [vmem:[#allocation2 + $0xb0] sm:$0x1]
      %v538 = vld [vmem:[#allocation2 + $0xbc] sm:$0x1]
      %vm539 = vsmask.f32 3328
      %vm540 = vsmask.f32 7440
      %vm541 = vmor %vm539, %vm540
      %v543 = vshrl.u32 %v490, 16
      %v545 = vrot.slane %v543, 4
      %v546 = vshll.u32 %v490, 16
      %v548 = vrot.slane %v546, 5
      %v549 = vor.u32 %v545, %v548
      %v550 = vrot.slane %v549, 4
      %v552 = vshll.u32 %v491, 16
      %v554 = vrot.slane %v552, 5
      %v555 = vsel %vm541, %v550, %v554
      %v556 = vshrl.u32 %v491, 16
      %v558 = vrot.slane %v556, 4
      %v559 = vor.u32 %v558, %v554
      %v560 = vrot.slane %v559, 4
      %v562 = vshll.u32 %v523, 16
      %v564 = vrot.slane %v562, 5
      %v565 = vsel %vm541, %v560, %v564
      %v567 = vshrl.u32 %v492, 16
      %v569 = vrot.slane %v567, 4
      %v570 = vshll.u32 %v492, 16
      %v572 = vrot.slane %v570, 5
      %v573 = vor.u32 %v569, %v572
      %v574 = vrot.slane %v573, 4
      %v576 = vshll.u32 %v493, 16
      %v578 = vrot.slane %v576, 5
      %v579 = vsel %vm541, %v574, %v578
      %v580 = vshrl.u32 %v493, 16
      %v582 = vrot.slane %v580, 4
      %v583 = vor.u32 %v582, %v578
      %v584 = vrot.slane %v583, 4
      %v586 = vshll.u32 %v524, 16
      %v588 = vrot.slane %v586, 5
      %v589 = vsel %vm541, %v584, %v588
      %v591 = vshrl.u32 %v494, 16
      %v593 = vrot.slane %v591, 4
      %v594 = vshll.u32 %v494, 16
      %v596 = vrot.slane %v594, 5
      %v597 = vor.u32 %v593, %v596
      %v598 = vrot.slane %v597, 4
      %v600 = vshll.u32 %v495, 16
      %v602 = vrot.slane %v600, 5
      %v603 = vsel %vm541, %v598, %v602
      %v604 = vshrl.u32 %v495, 16
      %v606 = vrot.slane %v604, 4
      %v607 = vor.u32 %v606, %v602
      %v608 = vrot.slane %v607, 4
      %v610 = vshll.u32 %v525, 16
      %v612 = vrot.slane %v610, 5
      %v613 = vsel %vm541, %v608, %v612
      %v615 = vshrl.u32 %v496, 16
      %v617 = vrot.slane %v615, 4
      %v618 = vshll.u32 %v496, 16
      %v620 = vrot.slane %v618, 5
      %v621 = vor.u32 %v617, %v620
      %v622 = vrot.slane %v621, 4
      %v624 = vshll.u32 %v497, 16
      %v626 = vrot.slane %v624, 5
      %v627 = vsel %vm541, %v622, %v626
      %v628 = vshrl.u32 %v497, 16
      %v630 = vrot.slane %v628, 4
      %v631 = vor.u32 %v630, %v626
      %v632 = vrot.slane %v631, 4
      %v634 = vshll.u32 %v526, 16
      %v636 = vrot.slane %v634, 5
      %v637 = vsel %vm541, %v632, %v636
      %v639 = vshrl.u32 %v498, 16
      %v641 = vrot.slane %v639, 4
      %v642 = vshll.u32 %v498, 16
      %v644 = vrot.slane %v642, 5
      %v645 = vor.u32 %v641, %v644
      %v646 = vrot.slane %v645, 4
      %v648 = vshll.u32 %v499, 16
      %v650 = vrot.slane %v648, 5
      %v651 = vsel %vm541, %v646, %v650
      %v652 = vshrl.u32 %v499, 16
      %v654 = vrot.slane %v652, 4
      %v655 = vor.u32 %v654, %v650
      %v656 = vrot.slane %v655, 4
      %v658 = vshll.u32 %v527, 16
      %v660 = vrot.slane %v658, 5
      %v661 = vsel %vm541, %v656, %v660
      %v663 = vshrl.u32 %v500, 16
      %v665 = vrot.slane %v663, 4
      %v666 = vshll.u32 %v500, 16
      %v668 = vrot.slane %v666, 5
      %v669 = vor.u32 %v665, %v668
      %v670 = vrot.slane %v669, 4
      %v672 = vshll.u32 %v501, 16
      %v674 = vrot.slane %v672, 5
      %v675 = vsel %vm541, %v670, %v674
      %v676 = vshrl.u32 %v501, 16
      %v678 = vrot.slane %v676, 4
      %v679 = vor.u32 %v678, %v674
      %v680 = vrot.slane %v679, 4
      %v682 = vshll.u32 %v528, 16
      %v684 = vrot.slane %v682, 5
      %v685 = vsel %vm541, %v680, %v684
      %v687 = vshrl.u32 %v502, 16
      %v689 = vrot.slane %v687, 4
      %v690 = vshll.u32 %v502, 16
      %v692 = vrot.slane %v690, 5
      %v693 = vor.u32 %v689, %v692
      %v694 = vrot.slane %v693, 4
      %v696 = vshll.u32 %v503, 16
      %v698 = vrot.slane %v696, 5
      %v699 = vsel %vm541, %v694, %v698
      %v700 = vshrl.u32 %v503, 16
      %v702 = vrot.slane %v700, 4
      %v703 = vor.u32 %v702, %v698
      %v704 = vrot.slane %v703, 4
      %v706 = vshll.u32 %v529, 16
      %v708 = vrot.slane %v706, 5
      %v709 = vsel %vm541, %v704, %v708
      %v711 = vshrl.u32 %v504, 16
      %v713 = vrot.slane %v711, 4
      %v714 = vshll.u32 %v504, 16
      %v716 = vrot.slane %v714, 5
      %v717 = vor.u32 %v713, %v716
      %v718 = vrot.slane %v717, 4
      %v720 = vshll.u32 %v505, 16
      %v722 = vrot.slane %v720, 5
      %v723 = vsel %vm541, %v718, %v722
      %v724 = vshrl.u32 %v505, 16
      %v726 = vrot.slane %v724, 4
      %v727 = vor.u32 %v726, %v722
      %v728 = vrot.slane %v727, 4
      %v730 = vshll.u32 %v530, 16
      %v732 = vrot.slane %v730, 5
      %v733 = vsel %vm541, %v728, %v732
      %v735 = vshrl.u32 %v506, 16
      %v737 = vrot.slane %v735, 4
      %v738 = vshll.u32 %v506, 16
      %v740 = vrot.slane %v738, 5
      %v741 = vor.u32 %v737, %v740
      %v742 = vrot.slane %v741, 4
      %v744 = vshll.u32 %v507, 16
      %v746 = vrot.slane %v744, 5
      %v747 = vsel %vm541, %v742, %v746
      %v748 = vshrl.u32 %v507, 16
      %v750 = vrot.slane %v748, 4
      %v751 = vor.u32 %v750, %v746
      %v752 = vrot.slane %v751, 4
      %v754 = vshll.u32 %v531, 16
      %v756 = vrot.slane %v754, 5
      %v757 = vsel %vm541, %v752, %v756
      %v759 = vshrl.u32 %v508, 16
      %v761 = vrot.slane %v759, 4
      %v762 = vshll.u32 %v508, 16
      %v764 = vrot.slane %v762, 5
      %v765 = vor.u32 %v761, %v764
      %v766 = vrot.slane %v765, 4
      %v768 = vshll.u32 %v509, 16
      %v770 = vrot.slane %v768, 5
      %v771 = vsel %vm541, %v766, %v770
      %v772 = vshrl.u32 %v509, 16
      %v774 = vrot.slane %v772, 4
      %v775 = vor.u32 %v774, %v770
      %v776 = vrot.slane %v775, 4
      %v778 = vshll.u32 %v532, 16
      %v780 = vrot.slane %v778, 5
      %v781 = vsel %vm541, %v776, %v780
      %v783 = vshrl.u32 %v510, 16
      %v785 = vrot.slane %v783, 4
      %v786 = vshll.u32 %v510, 16
      %v788 = vrot.slane %v786, 5
      %v789 = vor.u32 %v785, %v788
      %v790 = vrot.slane %v789, 4
      %v792 = vshll.u32 %v511, 16
      %v794 = vrot.slane %v792, 5
      %v795 = vsel %vm541, %v790, %v794
      %v796 = vshrl.u32 %v511, 16
      %v798 = vrot.slane %v796, 4
      %v799 = vor.u32 %v798, %v794
      %v800 = vrot.slane %v799, 4
      %v802 = vshll.u32 %v533, 16
      %v804 = vrot.slane %v802, 5
      %v805 = vsel %vm541, %v800, %v804
      %v807 = vshrl.u32 %v512, 16
      %v809 = vrot.slane %v807, 4
      %v810 = vshll.u32 %v512, 16
      %v812 = vrot.slane %v810, 5
      %v813 = vor.u32 %v809, %v812
      %v814 = vrot.slane %v813, 4
      %v816 = vshll.u32 %v513, 16
      %v818 = vrot.slane %v816, 5
      %v819 = vsel %vm541, %v814, %v818
      %v820 = vshrl.u32 %v513, 16
      %v822 = vrot.slane %v820, 4
      %v823 = vor.u32 %v822, %v818
      %v824 = vrot.slane %v823, 4
      %v826 = vshll.u32 %v534, 16
      %v828 = vrot.slane %v826, 5
      %v829 = vsel %vm541, %v824, %v828
      %v831 = vshrl.u32 %v514, 16
      %v833 = vrot.slane %v831, 4
      %v834 = vshll.u32 %v514, 16
      %v836 = vrot.slane %v834, 5
      %v837 = vor.u32 %v833, %v836
      %v838 = vrot.slane %v837, 4
      %v840 = vshll.u32 %v515, 16
      %v842 = vrot.slane %v840, 5
      %v843 = vsel %vm541, %v838, %v842
      %v844 = vshrl.u32 %v515, 16
      %v846 = vrot.slane %v844, 4
      %v847 = vor.u32 %v846, %v842
      %v848 = vrot.slane %v847, 4
      %v850 = vshll.u32 %v535, 16
      %v852 = vrot.slane %v850, 5
      %v853 = vsel %vm541, %v848, %v852
      %v855 = vshrl.u32 %v516, 16
      %v857 = vrot.slane %v855, 4
      %v858 = vshll.u32 %v516, 16
      %v860 = vrot.slane %v858, 5
      %v861 = vor.u32 %v857, %v860
      %v862 = vrot.slane %v861, 4
      %v864 = vshll.u32 %v517, 16
      %v866 = vrot.slane %v864, 5
      %v867 = vsel %vm541, %v862, %v866
      %v868 = vshrl.u32 %v517, 16
      %v870 = vrot.slane %v868, 4
      %v871 = vor.u32 %v870, %v866
      %v872 = vrot.slane %v871, 4
      %v874 = vshll.u32 %v536, 16
      %v876 = vrot.slane %v874, 5
      %v877 = vsel %vm541, %v872, %v876
      %v879 = vshrl.u32 %v518, 16
      %v881 = vrot.slane %v879, 4
      %v882 = vshll.u32 %v518, 16
      %v884 = vrot.slane %v882, 5
      %v885 = vor.u32 %v881, %v884
      %v886 = vrot.slane %v885, 4
      %v888 = vshll.u32 %v519, 16
      %v890 = vrot.slane %v888, 5
      %v891 = vsel %vm541, %v886, %v890
      %v892 = vshrl.u32 %v519, 16
      %v894 = vrot.slane %v892, 4
      %v895 = vor.u32 %v894, %v890
      %v896 = vrot.slane %v895, 4
      %v898 = vshll.u32 %v537, 16
      %v900 = vrot.slane %v898, 5
      %v901 = vsel %vm541, %v896, %v900
      %v903 = vshrl.u32 %v520, 16
      %v905 = vrot.slane %v903, 4
      %v906 = vshll.u32 %v520, 16
      %v908 = vrot.slane %v906, 5
      %v909 = vor.u32 %v905, %v908
      %v910 = vrot.slane %v909, 4
      %v912 = vshll.u32 %v521, 16
      %v914 = vrot.slane %v912, 5
      %v915 = vsel %vm541, %v910, %v914
      %v916 = vshrl.u32 %v521, 16
      %v918 = vrot.slane %v916, 4
      %v919 = vor.u32 %v918, %v914
      %v920 = vrot.slane %v919, 4
      %v922 = vshll.u32 %v538, 16
      %v924 = vrot.slane %v922, 5
      %v925 = vsel %vm541, %v920, %v924
      %s926 = scalar_lea.vmem %s2, 2
      %v927 = vld [vmem:[%s926] sm:$0x3]
      %v928 = vunpack.c.l.b16 %v555
      %v929 = vunpack.c.l.b16 %v565
      %v930 = vunpack.c.l.b16 %v579
      %v931 = vunpack.c.l.b16 %v589
      %v932 = vunpack.c.l.b16 %v603
      %v933 = vunpack.c.l.b16 %v613
      %v934 = vunpack.c.l.b16 %v627
      %v935 = vunpack.c.l.b16 %v637
      %v936 = vunpack.c.l.b16 %v651
      %v937 = vunpack.c.l.b16 %v661
      %v938 = vunpack.c.l.b16 %v675
      %v939 = vunpack.c.l.b16 %v685
      %v940 = vunpack.c.l.b16 %v699
      %v941 = vunpack.c.l.b16 %v709
      %v942 = vunpack.c.l.b16 %v723
      %v943 = vunpack.c.l.b16 %v733
      %v944 = vunpack.c.l.b16 %v747
      %v945 = vunpack.c.l.b16 %v757
      %v946 = vunpack.c.l.b16 %v771
      %v947 = vunpack.c.l.b16 %v781
      %v948 = vunpack.c.l.b16 %v795
      %v949 = vunpack.c.l.b16 %v805
      %v950 = vunpack.c.l.b16 %v819
      %v951 = vunpack.c.l.b16 %v829
      %v952 = vunpack.c.l.b16 %v843
      %v953 = vunpack.c.l.b16 %v853
      %v954 = vunpack.c.l.b16 %v867
      %v955 = vunpack.c.l.b16 %v877
      %v956 = vunpack.c.l.b16 %v891
      %v957 = vunpack.c.l.b16 %v901
      %v958 = vunpack.c.l.b16 %v915
      %v959 = vunpack.c.l.b16 %v925
      %v960 = vpack.c.b16 %v929, %v928
      %v961 = vpack.c.b16 %v931, %v930
      %v962 = vpack.c.b16 %v933, %v932
      %v963 = vpack.c.b16 %v935, %v934
      %v964 = vpack.c.b16 %v937, %v936
      %v965 = vpack.c.b16 %v939, %v938
      %v966 = vpack.c.b16 %v941, %v940
      %v967 = vpack.c.b16 %v943, %v942
      %v968 = vpack.c.b16 %v945, %v944
      %v969 = vpack.c.b16 %v947, %v946
      %v970 = vpack.c.b16 %v949, %v948
      %v971 = vpack.c.b16 %v951, %v950
      %v972 = vpack.c.b16 %v953, %v952
      %v973 = vpack.c.b16 %v955, %v954
      %v974 = vpack.c.b16 %v957, %v956
      %v975 = vpack.c.b16 %v959, %v958
      %vm976 = vcmask 31744
      %v978 = vsel %vm976, %v960, 0
      %v981 = vsel %vm976, %v961, 0
      %v984 = vsel %vm976, %v962, 0
      %v987 = vsel %vm976, %v963, 0
      %v990 = vsel %vm976, %v964, 0
      %v993 = vsel %vm976, %v965, 0
      %v996 = vsel %vm976, %v966, 0
      %v999 = vsel %vm976, %v967, 0
      %v1002 = vsel %vm976, %v968, 0
      %v1005 = vsel %vm976, %v969, 0
      %v1008 = vsel %vm976, %v970, 0
      %v1011 = vsel %vm976, %v971, 0
      %v1014 = vsel %vm976, %v972, 0
      %v1017 = vsel %vm976, %v973, 0
      %v1020 = vsel %vm976, %v974, 0
      %v1023 = vsel %vm976, %v975, 0
      %vm1025 = vcmask 1041408
      %v1027 = vsel %vm1025, %v927, 0
      %1029 = vmatprep.subr.bf16.mxu0 0
      %1030 = vmatpush1.bf16.msra.mxu0 %v1027
      %1031 = vmatprep.subr.bf16.mxu0 0
      %1032 = vmatpush1.bf16.msra.mxu0 0
      %1033 = vmatprep.subr.bf16.mxu0 0
      %1034 = vmatpush1.bf16.msra.mxu0 0
      %1035 = vmatprep.subr.bf16.mxu0 0
      %1036 = vmatpush1.bf16.msra.mxu0 0
      %1037 = vmatprep.subr.bf16.mxu0 0
      %1038 = vmatpush1.bf16.msra.mxu0 0
      %1039 = vmatprep.subr.bf16.mxu0 0
      %1040 = vmatpush1.bf16.msra.mxu0 0
      %1041 = vmatprep.subr.bf16.mxu0 0
      %1042 = vmatpush1.bf16.msra.mxu0 0
      %1043 = vmatprep.subr.bf16.mxu0 0
      %1044 = vmatpush1.bf16.msra.mxu0 0
      %1045 = vmatprep.subr.bf16.mxu0 0
      %1046 = vmatpush1.bf16.msra.mxu0 0
      %1047 = vmatprep.subr.bf16.mxu0 0
      %1048 = vmatpush1.bf16.msra.mxu0 0
      %1049 = vmatprep.subr.bf16.mxu0 0
      %1050 = vmatpush1.bf16.msra.mxu0 0
      %1051 = vmatprep.subr.bf16.mxu0 0
      %1052 = vmatpush1.bf16.msra.mxu0 0
      %1053 = vmatprep.subr.bf16.mxu0 0
      %1054 = vmatpush1.bf16.msra.mxu0 0
      %1055 = vmatprep.subr.bf16.mxu0 0
      %1056 = vmatpush1.bf16.msra.mxu0 0
      %1057 = vmatprep.subr.bf16.mxu0 0
      %1058 = vmatpush1.bf16.msra.mxu0 0
      %1059 = vmatprep.subr.bf16.mxu0 0
      %1060 = vmatpush1.bf16.msra.mxu0 0
      %1061 = vmatprep.mubr.bf16.mxu0 0
      %1062 = vmatmul.mubr.bf16.gmra.mrb[0].mxu0 %v978
      %v1063 = vpop.f32.mrb[0].mxu0
      %v1064 = vadd.f32 0.0, %v1063
      %v1065 = vpop.f32.mrb[0].mxu0
      %v1066 = vpop.f32.mrb[0].mxu0
      %v1067 = vadd.f32 0.0, %v1066
      %v1068 = vpop.f32.mrb[0].mxu0
      %1069 = vmatprep.mubr.bf16.mxu0 0
      %1070 = vmatmul.mubr.bf16.gmra.mrb[0].mxu0 %v981
      %v1071 = vpop.f32.mrb[0].mxu0
      %v1072 = vadd.f32 0.0, %v1071
      %v1073 = vpop.f32.mrb[0].mxu0
      %v1074 = vpop.f32.mrb[0].mxu0
      %v1075 = vadd.f32 0.0, %v1074
      %v1076 = vpop.f32.mrb[0].mxu0
      %1077 = vmatprep.mubr.bf16.mxu0 0
      %1078 = vmatmul.mubr.bf16.gmra.mrb[0].mxu0 %v984
      %v1079 = vpop.f32.mrb[0].mxu0
      %v1080 = vadd.f32 0.0, %v1079
      %v1081 = vpop.f32.mrb[0].mxu0
      %v1082 = vpop.f32.mrb[0].mxu0
      %v1083 = vadd.f32 0.0, %v1082
      %v1084 = vpop.f32.mrb[0].mxu0
      %1085 = vmatprep.mubr.bf16.mxu0 0
      %1086 = vmatmul.mubr.bf16.gmra.mrb[0].mxu0 %v987
      %v1087 = vpop.f32.mrb[0].mxu0
      %v1088 = vadd.f32 0.0, %v1087
      %v1089 = vpop.f32.mrb[0].mxu0
      %v1090 = vpop.f32.mrb[0].mxu0
      %v1091 = vadd.f32 0.0, %v1090
      %v1092 = vpop.f32.mrb[0].mxu0
      %1093 = vmatprep.mubr.bf16.mxu0 0
      %1094 = vmatmul.mubr.bf16.gmra.mrb[0].mxu0 %v990
      %v1095 = vpop.f32.mrb[0].mxu0
      %v1096 = vadd.f32 0.0, %v1095
      %v1097 = vpop.f32.mrb[0].mxu0
      %v1098 = vpop.f32.mrb[0].mxu0
      %v1099 = vadd.f32 0.0, %v1098
      %v1100 = vpop.f32.mrb[0].mxu0
      %1101 = vmatprep.mubr.bf16.mxu0 0
      %1102 = vmatmul.mubr.bf16.gmra.mrb[0].mxu0 %v993
      %v1103 = vpop.f32.mrb[0].mxu0
      %v1104 = vadd.f32 0.0, %v1103
      %v1105 = vpop.f32.mrb[0].mxu0
      %v1106 = vpop.f32.mrb[0].mxu0
      %v1107 = vadd.f32 0.0, %v1106
      %v1108 = vpop.f32.mrb[0].mxu0
      %1109 = vmatprep.mubr.bf16.mxu0 0
      %1110 = vmatmul.mubr.bf16.gmra.mrb[0].mxu0 %v996
      %v1111 = vpop.f32.mrb[0].mxu0
      %v1112 = vadd.f32 0.0, %v1111
      %v1113 = vpop.f32.mrb[0].mxu0
      %v1114 = vpop.f32.mrb[0].mxu0
      %v1115 = vadd.f32 0.0, %v1114
      %v1116 = vpop.f32.mrb[0].mxu0
      %1117 = vmatprep.mubr.bf16.mxu0 0
      %1118 = vmatmul.mubr.bf16.gmra.mrb[0].mxu0 %v999
      %v1119 = vpop.f32.mrb[0].mxu0
      %v1120 = vadd.f32 0.0, %v1119
      %v1121 = vpop.f32.mrb[0].mxu0
      %v1122 = vpop.f32.mrb[0].mxu0
      %v1123 = vadd.f32 0.0, %v1122
      %v1124 = vpop.f32.mrb[0].mxu0
      %1125 = vmatprep.mubr.bf16.mxu0 0
      %1126 = vmatmul.mubr.bf16.gmra.mrb[0].mxu0 %v1002
      %v1127 = vpop.f32.mrb[0].mxu0
      %v1128 = vadd.f32 0.0, %v1127
      %v1129 = vpop.f32.mrb[0].mxu0
      %v1130 = vpop.f32.mrb[0].mxu0
      %v1131 = vadd.f32 0.0, %v1130
      %v1132 = vpop.f32.mrb[0].mxu0
      %1133 = vmatprep.mubr.bf16.mxu0 0
      %1134 = vmatmul.mubr.bf16.gmra.mrb[0].mxu0 %v1005
      %v1135 = vpop.f32.mrb[0].mxu0
      %v1136 = vadd.f32 0.0, %v1135
      %v1137 = vpop.f32.mrb[0].mxu0
      %v1138 = vpop.f32.mrb[0].mxu0
      %v1139 = vadd.f32 0.0, %v1138
      %v1140 = vpop.f32.mrb[0].mxu0
      %1141 = vmatprep.mubr.bf16.mxu0 0
      %1142 = vmatmul.mubr.bf16.gmra.mrb[0].mxu0 %v1008
      %v1143 = vpop.f32.mrb[0].mxu0
      %v1144 = vadd.f32 0.0, %v1143
      %v1145 = vpop.f32.mrb[0].mxu0
      %v1146 = vpop.f32.mrb[0].mxu0
      %v1147 = vadd.f32 0.0, %v1146
      %v1148 = vpop.f32.mrb[0].mxu0
      %1149 = vmatprep.mubr.bf16.mxu0 0
      %1150 = vmatmul.mubr.bf16.gmra.mrb[0].mxu0 %v1011
      %v1151 = vpop.f32.mrb[0].mxu0
      %v1152 = vadd.f32 0.0, %v1151
      %v1153 = vpop.f32.mrb[0].mxu0
      %v1154 = vpop.f32.mrb[0].mxu0
      %v1155 = vadd.f32 0.0, %v1154
      %v1156 = vpop.f32.mrb[0].mxu0
      %1157 = vmatprep.mubr.bf16.mxu0 0
      %1158 = vmatmul.mubr.bf16.gmra.mrb[0].mxu0 %v1014
      %v1159 = vpop.f32.mrb[0].mxu0
      %v1160 = vadd.f32 0.0, %v1159
      %v1161 = vpop.f32.mrb[0].mxu0
      %v1162 = vpop.f32.mrb[0].mxu0
      %v1163 = vadd.f32 0.0, %v1162
      %v1164 = vpop.f32.mrb[0].mxu0
      %1165 = vmatprep.mubr.bf16.mxu0 0
      %1166 = vmatmul.mubr.bf16.gmra.mrb[0].mxu0 %v1017
      %v1167 = vpop.f32.mrb[0].mxu0
      %v1168 = vadd.f32 0.0, %v1167
      %v1169 = vpop.f32.mrb[0].mxu0
      %v1170 = vpop.f32.mrb[0].mxu0
      %v1171 = vadd.f32 0.0, %v1170
      %v1172 = vpop.f32.mrb[0].mxu0
      %1173 = vmatprep.mubr.bf16.mxu0 0
      %1174 = vmatmul.mubr.bf16.gmra.mrb[0].mxu0 %v1020
      %v1175 = vpop.f32.mrb[0].mxu0
      %v1176 = vadd.f32 0.0, %v1175
      %v1177 = vpop.f32.mrb[0].mxu0
      %v1178 = vpop.f32.mrb[0].mxu0
      %v1179 = vadd.f32 0.0, %v1178
      %v1180 = vpop.f32.mrb[0].mxu0
      %1181 = vmatprep.mubr.bf16.mxu0 0
      %1182 = vmatmul.mubr.bf16.gmra.mrb[0].mxu0 %v1023
      %v1183 = vpop.f32.mrb[0].mxu0
      %v1184 = vadd.f32 0.0, %v1183
      %v1185 = vpop.f32.mrb[0].mxu0
      %v1186 = vpop.f32.mrb[0].mxu0
      %v1187 = vadd.f32 0.0, %v1186
      %v1188 = vpop.f32.mrb[0].mxu0
      %1189 = vdwg.mxu0
      %v1222 = vunpack.c.l.b16 %v490
      %v1223 = vunpack.c.l.b16 %v491
      %v1224 = vunpack.c.l.b16 %v492
      %v1225 = vunpack.c.l.b16 %v493
      %v1226 = vunpack.c.l.b16 %v494
      %v1227 = vunpack.c.l.b16 %v495
      %v1228 = vunpack.c.l.b16 %v496
      %v1229 = vunpack.c.l.b16 %v497
      %v1230 = vunpack.c.l.b16 %v498
      %v1231 = vunpack.c.l.b16 %v499
      %v1232 = vunpack.c.l.b16 %v500
      %v1233 = vunpack.c.l.b16 %v501
      %v1234 = vunpack.c.l.b16 %v502
      %v1235 = vunpack.c.l.b16 %v503
      %v1236 = vunpack.c.l.b16 %v504
      %v1237 = vunpack.c.l.b16 %v505
      %v1238 = vunpack.c.l.b16 %v506
      %v1239 = vunpack.c.l.b16 %v507
      %v1240 = vunpack.c.l.b16 %v508
      %v1241 = vunpack.c.l.b16 %v509
      %v1242 = vunpack.c.l.b16 %v510
      %v1243 = vunpack.c.l.b16 %v511
      %v1244 = vunpack.c.l.b16 %v512
      %v1245 = vunpack.c.l.b16 %v513
      %v1246 = vunpack.c.l.b16 %v514
      %v1247 = vunpack.c.l.b16 %v515
      %v1248 = vunpack.c.l.b16 %v516
      %v1249 = vunpack.c.l.b16 %v517
      %v1250 = vunpack.c.l.b16 %v518
      %v1251 = vunpack.c.l.b16 %v519
      %v1252 = vunpack.c.l.b16 %v520
      %v1253 = vunpack.c.l.b16 %v521
      %v1254 = vpack.c.b16 %v1223, %v1222
      %v1255 = vpack.c.b16 %v1225, %v1224
      %v1256 = vpack.c.b16 %v1227, %v1226
      %v1257 = vpack.c.b16 %v1229, %v1228
      %v1258 = vpack.c.b16 %v1231, %v1230
      %v1259 = vpack.c.b16 %v1233, %v1232
      %v1260 = vpack.c.b16 %v1235, %v1234
      %v1261 = vpack.c.b16 %v1237, %v1236
      %v1262 = vpack.c.b16 %v1239, %v1238
      %v1263 = vpack.c.b16 %v1241, %v1240
      %v1264 = vpack.c.b16 %v1243, %v1242
      %v1265 = vpack.c.b16 %v1245, %v1244
      %v1266 = vpack.c.b16 %v1247, %v1246
      %v1267 = vpack.c.b16 %v1249, %v1248
      %v1268 = vpack.c.b16 %v1251, %v1250
      %v1269 = vpack.c.b16 %v1253, %v1252
      %v1271 = vsel %vm976, %v1254, 0
      %v1274 = vsel %vm976, %v1255, 0
      %v1277 = vsel %vm976, %v1256, 0
      %v1280 = vsel %vm976, %v1257, 0
      %v1283 = vsel %vm976, %v1258, 0
      %v1286 = vsel %vm976, %v1259, 0
      %v1289 = vsel %vm976, %v1260, 0
      %v1292 = vsel %vm976, %v1261, 0
      %v1295 = vsel %vm976, %v1262, 0
      %v1298 = vsel %vm976, %v1263, 0
      %v1301 = vsel %vm976, %v1264, 0
      %v1304 = vsel %vm976, %v1265, 0
      %v1307 = vsel %vm976, %v1266, 0
      %v1310 = vsel %vm976, %v1267, 0
      %v1313 = vsel %vm976, %v1268, 0
      %v1316 = vsel %vm976, %v1269, 0
      %v1319 = vsel %vm1025, %v522, 0
      %1321 = vmatprep.subr.bf16.mxu0 0
      %1322 = vmatpush1.bf16.msra.mxu0 %v1319
      %1323 = vmatprep.subr.bf16.mxu0 0
      %1324 = vmatpush1.bf16.msra.mxu0 0
      %1325 = vmatprep.subr.bf16.mxu0 0
      %1326 = vmatpush1.bf16.msra.mxu0 0
      %1327 = vmatprep.subr.bf16.mxu0 0
      %1328 = vmatpush1.bf16.msra.mxu0 0
      %1329 = vmatprep.subr.bf16.mxu0 0
      %1330 = vmatpush1.bf16.msra.mxu0 0
      %1331 = vmatprep.subr.bf16.mxu0 0
      %1332 = vmatpush1.bf16.msra.mxu0 0
      %1333 = vmatprep.subr.bf16.mxu0 0
      %1334 = vmatpush1.bf16.msra.mxu0 0
      %1335 = vmatprep.subr.bf16.mxu0 0
      %1336 = vmatpush1.bf16.msra.mxu0 0
      %1337 = vmatprep.subr.bf16.mxu0 0
      %1338 = vmatpush1.bf16.msra.mxu0 0
      %1339 = vmatprep.subr.bf16.mxu0 0
      %1340 = vmatpush1.bf16.msra.mxu0 0
      %1341 = vmatprep.subr.bf16.mxu0 0
      %1342 = vmatpush1.bf16.msra.mxu0 0
      %1343 = vmatprep.subr.bf16.mxu0 0
      %1344 = vmatpush1.bf16.msra.mxu0 0
      %1345 = vmatprep.subr.bf16.mxu0 0
      %1346 = vmatpush1.bf16.msra.mxu0 0
      %1347 = vmatprep.subr.bf16.mxu0 0
      %1348 = vmatpush1.bf16.msra.mxu0 0
      %1349 = vmatprep.subr.bf16.mxu0 0
      %1350 = vmatpush1.bf16.msra.mxu0 0
      %1351 = vmatprep.subr.bf16.mxu0 0
      %1352 = vmatpush1.bf16.msra.mxu0 0
      %1353 = vmatprep.mubr.bf16.mxu0 0
      %1354 = vmatmul.mubr.bf16.gmra.mrb[0].mxu0 %v1271
      %v1355 = vpop.f32.mrb[0].mxu0
      %v1356 = vadd.f32 %v1064, %v1355
      %v1357 = vpop.f32.mrb[0].mxu0
      %v1358 = vpop.f32.mrb[0].mxu0
      %v1359 = vadd.f32 %v1067, %v1358
      %v1360 = vpop.f32.mrb[0].mxu0
      %1361 = vmatprep.mubr.bf16.mxu0 0
      %1362 = vmatmul.mubr.bf16.gmra.mrb[0].mxu0 %v1274
      %v1363 = vpop.f32.mrb[0].mxu0
      %v1364 = vadd.f32 %v1072, %v1363
      %v1365 = vpop.f32.mrb[0].mxu0
      %v1366 = vpop.f32.mrb[0].mxu0
      %v1367 = vadd.f32 %v1075, %v1366
      %v1368 = vpop.f32.mrb[0].mxu0
      %1369 = vmatprep.mubr.bf16.mxu0 0
      %1370 = vmatmul.mubr.bf16.gmra.mrb[0].mxu0 %v1277
      %v1371 = vpop.f32.mrb[0].mxu0
      %v1372 = vadd.f32 %v1080, %v1371
      %v1373 = vpop.f32.mrb[0].mxu0
      %v1374 = vpop.f32.mrb[0].mxu0
      %v1375 = vadd.f32 %v1083, %v1374
      %v1376 = vpop.f32.mrb[0].mxu0
      %1377 = vmatprep.mubr.bf16.mxu0 0
      %1378 = vmatmul.mubr.bf16.gmra.mrb[0].mxu0 %v1280
      %v1379 = vpop.f32.mrb[0].mxu0
      %v1380 = vadd.f32 %v1088, %v1379
      %v1381 = vpop.f32.mrb[0].mxu0
      %v1382 = vpop.f32.mrb[0].mxu0
      %v1383 = vadd.f32 %v1091, %v1382
      %v1384 = vpop.f32.mrb[0].mxu0
      %1385 = vmatprep.mubr.bf16.mxu0 0
      %1386 = vmatmul.mubr.bf16.gmra.mrb[0].mxu0 %v1283
      %v1387 = vpop.f32.mrb[0].mxu0
      %v1388 = vadd.f32 %v1096, %v1387
      %v1389 = vpop.f32.mrb[0].mxu0
      %v1390 = vpop.f32.mrb[0].mxu0
      %v1391 = vadd.f32 %v1099, %v1390
      %v1392 = vpop.f32.mrb[0].mxu0
      %1393 = vmatprep.mubr.bf16.mxu0 0
      %1394 = vmatmul.mubr.bf16.gmra.mrb[0].mxu0 %v1286
      %v1395 = vpop.f32.mrb[0].mxu0
      %v1396 = vadd.f32 %v1104, %v1395
      %v1397 = vpop.f32.mrb[0].mxu0
      %v1398 = vpop.f32.mrb[0].mxu0
      %v1399 = vadd.f32 %v1107, %v1398
      %v1400 = vpop.f32.mrb[0].mxu0
      %1401 = vmatprep.mubr.bf16.mxu0 0
      %1402 = vmatmul.mubr.bf16.gmra.mrb[0].mxu0 %v1289
      %v1403 = vpop.f32.mrb[0].mxu0
      %v1404 = vadd.f32 %v1112, %v1403
      %v1405 = vpop.f32.mrb[0].mxu0
      %v1406 = vpop.f32.mrb[0].mxu0
      %v1407 = vadd.f32 %v1115, %v1406
      %v1408 = vpop.f32.mrb[0].mxu0
      %1409 = vmatprep.mubr.bf16.mxu0 0
      %1410 = vmatmul.mubr.bf16.gmra.mrb[0].mxu0 %v1292
      %v1411 = vpop.f32.mrb[0].mxu0
      %v1412 = vadd.f32 %v1120, %v1411
      %v1413 = vpop.f32.mrb[0].mxu0
      %v1414 = vpop.f32.mrb[0].mxu0
      %v1415 = vadd.f32 %v1123, %v1414
      %v1416 = vpop.f32.mrb[0].mxu0
      %1417 = vmatprep.mubr.bf16.mxu0 0
      %1418 = vmatmul.mubr.bf16.gmra.mrb[0].mxu0 %v1295
      %v1419 = vpop.f32.mrb[0].mxu0
      %v1420 = vadd.f32 %v1128, %v1419
      %v1421 = vpop.f32.mrb[0].mxu0
      %v1422 = vpop.f32.mrb[0].mxu0
      %v1423 = vadd.f32 %v1131, %v1422
      %v1424 = vpop.f32.mrb[0].mxu0
      %1425 = vmatprep.mubr.bf16.mxu0 0
      %1426 = vmatmul.mubr.bf16.gmra.mrb[0].mxu0 %v1298
      %v1427 = vpop.f32.mrb[0].mxu0
      %v1428 = vadd.f32 %v1136, %v1427
      %v1429 = vpop.f32.mrb[0].mxu0
      %v1430 = vpop.f32.mrb[0].mxu0
      %v1431 = vadd.f32 %v1139, %v1430
      %v1432 = vpop.f32.mrb[0].mxu0
      %1433 = vmatprep.mubr.bf16.mxu0 0
      %1434 = vmatmul.mubr.bf16.gmra.mrb[0].mxu0 %v1301
      %v1435 = vpop.f32.mrb[0].mxu0
      %v1436 = vadd.f32 %v1144, %v1435
      %v1437 = vpop.f32.mrb[0].mxu0
      %v1438 = vpop.f32.mrb[0].mxu0
      %v1439 = vadd.f32 %v1147, %v1438
      %v1440 = vpop.f32.mrb[0].mxu0
      %1441 = vmatprep.mubr.bf16.mxu0 0
      %1442 = vmatmul.mubr.bf16.gmra.mrb[0].mxu0 %v1304
      %v1443 = vpop.f32.mrb[0].mxu0
      %v1444 = vadd.f32 %v1152, %v1443
      %v1445 = vpop.f32.mrb[0].mxu0
      %v1446 = vpop.f32.mrb[0].mxu0
      %v1447 = vadd.f32 %v1155, %v1446
      %v1448 = vpop.f32.mrb[0].mxu0
      %1449 = vmatprep.mubr.bf16.mxu0 0
      %1450 = vmatmul.mubr.bf16.gmra.mrb[0].mxu0 %v1307
      %v1451 = vpop.f32.mrb[0].mxu0
      %v1452 = vadd.f32 %v1160, %v1451
      %v1453 = vpop.f32.mrb[0].mxu0
      %v1454 = vpop.f32.mrb[0].mxu0
      %v1455 = vadd.f32 %v1163, %v1454
      %v1456 = vpop.f32.mrb[0].mxu0
      %1457 = vmatprep.mubr.bf16.mxu0 0
      %1458 = vmatmul.mubr.bf16.gmra.mrb[0].mxu0 %v1310
      %v1459 = vpop.f32.mrb[0].mxu0
      %v1460 = vadd.f32 %v1168, %v1459
      %v1461 = vpop.f32.mrb[0].mxu0
      %v1462 = vpop.f32.mrb[0].mxu0
      %v1463 = vadd.f32 %v1171, %v1462
      %v1464 = vpop.f32.mrb[0].mxu0
      %1465 = vmatprep.mubr.bf16.mxu0 0
      %1466 = vmatmul.mubr.bf16.gmra.mrb[0].mxu0 %v1313
      %v1467 = vpop.f32.mrb[0].mxu0
      %v1468 = vadd.f32 %v1176, %v1467
      %v1469 = vpop.f32.mrb[0].mxu0
      %v1470 = vpop.f32.mrb[0].mxu0
      %v1471 = vadd.f32 %v1179, %v1470
      %v1472 = vpop.f32.mrb[0].mxu0
      %1473 = vmatprep.mubr.bf16.mxu0 0
      %1474 = vmatmul.mubr.bf16.gmra.mrb[0].mxu0 %v1316
      %v1475 = vpop.f32.mrb[0].mxu0
      %v1476 = vadd.f32 %v1184, %v1475
      %v1477 = vpop.f32.mrb[0].mxu0
      %v1478 = vpop.f32.mrb[0].mxu0
      %v1479 = vadd.f32 %v1187, %v1478
      %v1480 = vpop.f32.mrb[0].mxu0
      %1481 = vdwg.mxu0
      %v1482 = vld [vmem:[#allocation2] sm:$0xe]
      %v1483 = vld [vmem:[#allocation2 + $0xc] sm:$0xe]
      %v1484 = vld [vmem:[#allocation2 + $0x18] sm:$0xe]
      %v1485 = vld [vmem:[#allocation2 + $0x24] sm:$0xe]
      %v1486 = vld [vmem:[#allocation2 + $0x30] sm:$0xe]
      %v1487 = vld [vmem:[#allocation2 + $0x3c] sm:$0xe]
      %v1488 = vld [vmem:[#allocation2 + $0x48] sm:$0xe]
      %v1489 = vld [vmem:[#allocation2 + $0x54] sm:$0xe]
      %v1490 = vld [vmem:[#allocation2 + $0x60] sm:$0xe]
      %v1491 = vld [vmem:[#allocation2 + $0x6c] sm:$0xe]
      %v1492 = vld [vmem:[#allocation2 + $0x78] sm:$0xe]
      %v1493 = vld [vmem:[#allocation2 + $0x84] sm:$0xe]
      %v1494 = vld [vmem:[#allocation2 + $0x90] sm:$0xe]
      %v1495 = vld [vmem:[#allocation2 + $0x9c] sm:$0xe]
      %v1496 = vld [vmem:[#allocation2 + $0xa8] sm:$0xe]
      %v1497 = vld [vmem:[#allocation2 + $0xb4] sm:$0xe]
      %vm1530 = vcmask 1042432
      %vm1531 = vcmask 1046532
      %vm1532 = vmor %vm1530, %vm1531
      %v1533 = vrot.slane %v1482, 5
      %v1534 = vrot.slane %v1533, 4
      %v1535 = vrot.slane %v491, 5
      %v1536 = vsel %vm1532, %v1534, %v1535
      %v1537 = vrot.slane %v1535, 4
      %v1538 = vrot.slane %v523, 5
      %v1539 = vsel %vm1532, %v1537, %v1538
      %v1540 = vrot.slane %v1483, 5
      %v1541 = vrot.slane %v1540, 4
      %v1542 = vrot.slane %v493, 5
      %v1543 = vsel %vm1532, %v1541, %v1542
      %v1544 = vrot.slane %v1542, 4
      %v1545 = vrot.slane %v524, 5
      %v1546 = vsel %vm1532, %v1544, %v1545
      %v1547 = vrot.slane %v1484, 5
      %v1548 = vrot.slane %v1547, 4
      %v1549 = vrot.slane %v495, 5
      %v1550 = vsel %vm1532, %v1548, %v1549
      %v1551 = vrot.slane %v1549, 4
      %v1552 = vrot.slane %v525, 5
      %v1553 = vsel %vm1532, %v1551, %v1552
      %v1554 = vrot.slane %v1485, 5
      %v1555 = vrot.slane %v1554, 4
      %v1556 = vrot.slane %v497, 5
      %v1557 = vsel %vm1532, %v1555, %v1556
      %v1558 = vrot.slane %v1556, 4
      %v1559 = vrot.slane %v526, 5
      %v1560 = vsel %vm1532, %v1558, %v1559
      %v1561 = vrot.slane %v1486, 5
      %v1562 = vrot.slane %v1561, 4
      %v1563 = vrot.slane %v499, 5
      %v1564 = vsel %vm1532, %v1562, %v1563
      %v1565 = vrot.slane %v1563, 4
      %v1566 = vrot.slane %v527, 5
      %v1567 = vsel %vm1532, %v1565, %v1566
      %v1568 = vrot.slane %v1487, 5
      %v1569 = vrot.slane %v1568, 4
      %v1570 = vrot.slane %v501, 5
      %v1571 = vsel %vm1532, %v1569, %v1570
      %v1572 = vrot.slane %v1570, 4
      %v1573 = vrot.slane %v528, 5
      %v1574 = vsel %vm1532, %v1572, %v1573
      %v1575 = vrot.slane %v1488, 5
      %v1576 = vrot.slane %v1575, 4
      %v1577 = vrot.slane %v503, 5
      %v1578 = vsel %vm1532, %v1576, %v1577
      %v1579 = vrot.slane %v1577, 4
      %v1580 = vrot.slane %v529, 5
      %v1581 = vsel %vm1532, %v1579, %v1580
      %v1582 = vrot.slane %v1489, 5
      %v1583 = vrot.slane %v1582, 4
      %v1584 = vrot.slane %v505, 5
      %v1585 = vsel %vm1532, %v1583, %v1584
      %v1586 = vrot.slane %v1584, 4
      %v1587 = vrot.slane %v530, 5
      %v1588 = vsel %vm1532, %v1586, %v1587
      %v1589 = vrot.slane %v1490, 5
      %v1590 = vrot.slane %v1589, 4
      %v1591 = vrot.slane %v507, 5
      %v1592 = vsel %vm1532, %v1590, %v1591
      %v1593 = vrot.slane %v1591, 4
      %v1594 = vrot.slane %v531, 5
      %v1595 = vsel %vm1532, %v1593, %v1594
      %v1596 = vrot.slane %v1491, 5
      %v1597 = vrot.slane %v1596, 4
      %v1598 = vrot.slane %v509, 5
      %v1599 = vsel %vm1532, %v1597, %v1598
      %v1600 = vrot.slane %v1598, 4
      %v1601 = vrot.slane %v532, 5
      %v1602 = vsel %vm1532, %v1600, %v1601
      %v1603 = vrot.slane %v1492, 5
      %v1604 = vrot.slane %v1603, 4
      %v1605 = vrot.slane %v511, 5
      %v1606 = vsel %vm1532, %v1604, %v1605
      %v1607 = vrot.slane %v1605, 4
      %v1608 = vrot.slane %v533, 5
      %v1609 = vsel %vm1532, %v1607, %v1608
      %v1610 = vrot.slane %v1493, 5
      %v1611 = vrot.slane %v1610, 4
      %v1612 = vrot.slane %v513, 5
      %v1613 = vsel %vm1532, %v1611, %v1612
      %v1614 = vrot.slane %v1612, 4
      %v1615 = vrot.slane %v534, 5
      %v1616 = vsel %vm1532, %v1614, %v1615
      %v1617 = vrot.slane %v1494, 5
      %v1618 = vrot.slane %v1617, 4
      %v1619 = vrot.slane %v515, 5
      %v1620 = vsel %vm1532, %v1618, %v1619
      %v1621 = vrot.slane %v1619, 4
      %v1622 = vrot.slane %v535, 5
      %v1623 = vsel %vm1532, %v1621, %v1622
      %v1624 = vrot.slane %v1495, 5
      %v1625 = vrot.slane %v1624, 4
      %v1626 = vrot.slane %v517, 5
      %v1627 = vsel %vm1532, %v1625, %v1626
      %v1628 = vrot.slane %v1626, 4
      %v1629 = vrot.slane %v536, 5
      %v1630 = vsel %vm1532, %v1628, %v1629
      %v1631 = vrot.slane %v1496, 5
      %v1632 = vrot.slane %v1631, 4
      %v1633 = vrot.slane %v519, 5
      %v1634 = vsel %vm1532, %v1632, %v1633
      %v1635 = vrot.slane %v1633, 4
      %v1636 = vrot.slane %v537, 5
      %v1637 = vsel %vm1532, %v1635, %v1636
      %v1638 = vrot.slane %v1497, 5
      %v1639 = vrot.slane %v1638, 4
      %v1640 = vrot.slane %v521, 5
      %v1641 = vsel %vm1532, %v1639, %v1640
      %v1642 = vrot.slane %v1640, 4
      %v1643 = vrot.slane %v538, 5
      %v1644 = vsel %vm1532, %v1642, %v1643
      %s1645 = scalar_lea.vmem %s2, 4
      %v1646 = vld [vmem:[%s1645] sm:$0x3]
      %v1647 = vunpack.c.l.b16 %v1536
      %v1648 = vunpack.c.l.b16 %v1539
      %v1649 = vunpack.c.l.b16 %v1543
      %v1650 = vunpack.c.l.b16 %v1546
      %v1651 = vunpack.c.l.b16 %v1550
      %v1652 = vunpack.c.l.b16 %v1553
      %v1653 = vunpack.c.l.b16 %v1557
      %v1654 = vunpack.c.l.b16 %v1560
      %v1655 = vunpack.c.l.b16 %v1564
      %v1656 = vunpack.c.l.b16 %v1567
      %v1657 = vunpack.c.l.b16 %v1571
      %v1658 = vunpack.c.l.b16 %v1574
      %v1659 = vunpack.c.l.b16 %v1578
      %v1660 = vunpack.c.l.b16 %v1581
      %v1661 = vunpack.c.l.b16 %v1585
      %v1662 = vunpack.c.l.b16 %v1588
      %v1663 = vunpack.c.l.b16 %v1592
      %v1664 = vunpack.c.l.b16 %v1595
      %v1665 = vunpack.c.l.b16 %v1599
      %v1666 = vunpack.c.l.b16 %v1602
      %v1667 = vunpack.c.l.b16 %v1606
      %v1668 = vunpack.c.l.b16 %v1609
      %v1669 = vunpack.c.l.b16 %v1613
      %v1670 = vunpack.c.l.b16 %v1616
      %v1671 = vunpack.c.l.b16 %v1620
      %v1672 = vunpack.c.l.b16 %v1623
      %v1673 = vunpack.c.l.b16 %v1627
      %v1674 = vunpack.c.l.b16 %v1630
      %v1675 = vunpack.c.l.b16 %v1634
      %v1676 = vunpack.c.l.b16 %v1637
      %v1677 = vunpack.c.l.b16 %v1641
      %v1678 = vunpack.c.l.b16 %v1644
      %v1679 = vpack.c.b16 %v1648, %v1647
      %v1680 = vpack.c.b16 %v1650, %v1649
      %v1681 = vpack.c.b16 %v1652, %v1651
      %v1682 = vpack.c.b16 %v1654, %v1653
      %v1683 = vpack.c.b16 %v1656, %v1655
      %v1684 = vpack.c.b16 %v1658, %v1657
      %v1685 = vpack.c.b16 %v1660, %v1659
      %v1686 = vpack.c.b16 %v1662, %v1661
      %v1687 = vpack.c.b16 %v1664, %v1663
      %v1688 = vpack.c.b16 %v1666, %v1665
      %v1689 = vpack.c.b16 %v1668, %v1667
      %v1690 = vpack.c.b16 %v1670, %v1669
      %v1691 = vpack.c.b16 %v1672, %v1671
      %v1692 = vpack.c.b16 %v1674, %v1673
      %v1693 = vpack.c.b16 %v1676, %v1675
      %v1694 = vpack.c.b16 %v1678, %v1677
      %v1696 = vsel %vm976, %v1679, 0
      %v1699 = vsel %vm976, %v1680, 0
      %v1702 = vsel %vm976, %v1681, 0
      %v1705 = vsel %vm976, %v1682, 0
      %v1708 = vsel %vm976, %v1683, 0
      %v1711 = vsel %vm976, %v1684, 0
      %v1714 = vsel %vm976, %v1685, 0
      %v1717 = vsel %vm976, %v1686, 0
      %v1720 = vsel %vm976, %v1687, 0
      %v1723 = vsel %vm976, %v1688, 0
      %v1726 = vsel %vm976, %v1689, 0
      %v1729 = vsel %vm976, %v1690, 0
      %v1732 = vsel %vm976, %v1691, 0
      %v1735 = vsel %vm976, %v1692, 0
      %v1738 = vsel %vm976, %v1693, 0
      %v1741 = vsel %vm976, %v1694, 0
      %v1744 = vsel %vm1025, %v1646, 0
      %1746 = vmatprep.subr.bf16.mxu0 0
      %1747 = vmatpush1.bf16.msra.mxu0 %v1744
      %1748 = vmatprep.subr.bf16.mxu0 0
      %1749 = vmatpush1.bf16.msra.mxu0 0
      %1750 = vmatprep.subr.bf16.mxu0 0
      %1751 = vmatpush1.bf16.msra.mxu0 0
      %1752 = vmatprep.subr.bf16.mxu0 0
      %1753 = vmatpush1.bf16.msra.mxu0 0
      %1754 = vmatprep.subr.bf16.mxu0 0
      %1755 = vmatpush1.bf16.msra.mxu0 0
      %1756 = vmatprep.subr.bf16.mxu0 0
      %1757 = vmatpush1.bf16.msra.mxu0 0
      %1758 = vmatprep.subr.bf16.mxu0 0
      %1759 = vmatpush1.bf16.msra.mxu0 0
      %1760 = vmatprep.subr.bf16.mxu0 0
      %1761 = vmatpush1.bf16.msra.mxu0 0
      %1762 = vmatprep.subr.bf16.mxu0 0
      %1763 = vmatpush1.bf16.msra.mxu0 0
      %1764 = vmatprep.subr.bf16.mxu0 0
      %1765 = vmatpush1.bf16.msra.mxu0 0
      %1766 = vmatprep.subr.bf16.mxu0 0
      %1767 = vmatpush1.bf16.msra.mxu0 0
      %1768 = vmatprep.subr.bf16.mxu0 0
      %1769 = vmatpush1.bf16.msra.mxu0 0
      %1770 = vmatprep.subr.bf16.mxu0 0
      %1771 = vmatpush1.bf16.msra.mxu0 0
      %1772 = vmatprep.subr.bf16.mxu0 0
      %1773 = vmatpush1.bf16.msra.mxu0 0
      %1774 = vmatprep.subr.bf16.mxu0 0
      %1775 = vmatpush1.bf16.msra.mxu0 0
      %1776 = vmatprep.subr.bf16.mxu0 0
      %1777 = vmatpush1.bf16.msra.mxu0 0
      %1778 = vmatprep.mubr.bf16.mxu0 0
      %1779 = vmatmul.mubr.bf16.gmra.mrb[0].mxu0 %v1696
      %v1780 = vpop.f32.mrb[0].mxu0
      %v1781 = vadd.f32 0.0, %v1780
      %v1782 = vpop.f32.mrb[0].mxu0
      %v1783 = vpop.f32.mrb[0].mxu0
      %v1784 = vadd.f32 0.0, %v1783
      %v1785 = vpop.f32.mrb[0].mxu0
      %1786 = vmatprep.mubr.bf16.mxu0 0
      %1787 = vmatmul.mubr.bf16.gmra.mrb[0].mxu0 %v1699
      %v1788 = vpop.f32.mrb[0].mxu0
      %v1789 = vadd.f32 0.0, %v1788
      %v1790 = vpop.f32.mrb[0].mxu0
      %v1791 = vpop.f32.mrb[0].mxu0
      %v1792 = vadd.f32 0.0, %v1791
      %v1793 = vpop.f32.mrb[0].mxu0
      %1794 = vmatprep.mubr.bf16.mxu0 0
      %1795 = vmatmul.mubr.bf16.gmra.mrb[0].mxu0 %v1702
      %v1796 = vpop.f32.mrb[0].mxu0
      %v1797 = vadd.f32 0.0, %v1796
      %v1798 = vpop.f32.mrb[0].mxu0
      %v1799 = vpop.f32.mrb[0].mxu0
      %v1800 = vadd.f32 0.0, %v1799
      %v1801 = vpop.f32.mrb[0].mxu0
      %1802 = vmatprep.mubr.bf16.mxu0 0
      %1803 = vmatmul.mubr.bf16.gmra.mrb[0].mxu0 %v1705
      %v1804 = vpop.f32.mrb[0].mxu0
      %v1805 = vadd.f32 0.0, %v1804
      %v1806 = vpop.f32.mrb[0].mxu0
      %v1807 = vpop.f32.mrb[0].mxu0
      %v1808 = vadd.f32 0.0, %v1807
      %v1809 = vpop.f32.mrb[0].mxu0
      %1810 = vmatprep.mubr.bf16.mxu0 0
      %1811 = vmatmul.mubr.bf16.gmra.mrb[0].mxu0 %v1708
      %v1812 = vpop.f32.mrb[0].mxu0
      %v1813 = vadd.f32 0.0, %v1812
      %v1814 = vpop.f32.mrb[0].mxu0
      %v1815 = vpop.f32.mrb[0].mxu0
      %v1816 = vadd.f32 0.0, %v1815
      %v1817 = vpop.f32.mrb[0].mxu0
      %1818 = vmatprep.mubr.bf16.mxu0 0
      %1819 = vmatmul.mubr.bf16.gmra.mrb[0].mxu0 %v1711
      %v1820 = vpop.f32.mrb[0].mxu0
      %v1821 = vadd.f32 0.0, %v1820
      %v1822 = vpop.f32.mrb[0].mxu0
      %v1823 = vpop.f32.mrb[0].mxu0
      %v1824 = vadd.f32 0.0, %v1823
      %v1825 = vpop.f32.mrb[0].mxu0
      %1826 = vmatprep.mubr.bf16.mxu0 0
      %1827 = vmatmul.mubr.bf16.gmra.mrb[0].mxu0 %v1714
      %v1828 = vpop.f32.mrb[0].mxu0
      %v1829 = vadd.f32 0.0, %v1828
      %v1830 = vpop.f32.mrb[0].mxu0
      %v1831 = vpop.f32.mrb[0].mxu0
      %v1832 = vadd.f32 0.0, %v1831
      %v1833 = vpop.f32.mrb[0].mxu0
      %1834 = vmatprep.mubr.bf16.mxu0 0
      %1835 = vmatmul.mubr.bf16.gmra.mrb[0].mxu0 %v1717
      %v1836 = vpop.f32.mrb[0].mxu0
      %v1837 = vadd.f32 0.0, %v1836
      %v1838 = vpop.f32.mrb[0].mxu0
      %v1839 = vpop.f32.mrb[0].mxu0
      %v1840 = vadd.f32 0.0, %v1839
      %v1841 = vpop.f32.mrb[0].mxu0
      %1842 = vmatprep.mubr.bf16.mxu0 0
      %1843 = vmatmul.mubr.bf16.gmra.mrb[0].mxu0 %v1720
      %v1844 = vpop.f32.mrb[0].mxu0
      %v1845 = vadd.f32 0.0, %v1844
      %v1846 = vpop.f32.mrb[0].mxu0
      %v1847 = vpop.f32.mrb[0].mxu0
      %v1848 = vadd.f32 0.0, %v1847
      %v1849 = vpop.f32.mrb[0].mxu0
      %1850 = vmatprep.mubr.bf16.mxu0 0
      %1851 = vmatmul.mubr.bf16.gmra.mrb[0].mxu0 %v1723
      %v1852 = vpop.f32.mrb[0].mxu0
      %v1853 = vadd.f32 0.0, %v1852
      %v1854 = vpop.f32.mrb[0].mxu0
      %v1855 = vpop.f32.mrb[0].mxu0
      %v1856 = vadd.f32 0.0, %v1855
      %v1857 = vpop.f32.mrb[0].mxu0
      %1858 = vmatprep.mubr.bf16.mxu0 0
      %1859 = vmatmul.mubr.bf16.gmra.mrb[0].mxu0 %v1726
      %v1860 = vpop.f32.mrb[0].mxu0
      %v1861 = vadd.f32 0.0, %v1860
      %v1862 = vpop.f32.mrb[0].mxu0
      %v1863 = vpop.f32.mrb[0].mxu0
      %v1864 = vadd.f32 0.0, %v1863
      %v1865 = vpop.f32.mrb[0].mxu0
      %1866 = vmatprep.mubr.bf16.mxu0 0
      %1867 = vmatmul.mubr.bf16.gmra.mrb[0].mxu0 %v1729
      %v1868 = vpop.f32.mrb[0].mxu0
      %v1869 = vadd.f32 0.0, %v1868
      %v1870 = vpop.f32.mrb[0].mxu0
      %v1871 = vpop.f32.mrb[0].mxu0
      %v1872 = vadd.f32 0.0, %v1871
      %v1873 = vpop.f32.mrb[0].mxu0
      %1874 = vmatprep.mubr.bf16.mxu0 0
      %1875 = vmatmul.mubr.bf16.gmra.mrb[0].mxu0 %v1732
      %v1876 = vpop.f32.mrb[0].mxu0
      %v1877 = vadd.f32 0.0, %v1876
      %v1878 = vpop.f32.mrb[0].mxu0
      %v1879 = vpop.f32.mrb[0].mxu0
      %v1880 = vadd.f32 0.0, %v1879
      %v1881 = vpop.f32.mrb[0].mxu0
      %1882 = vmatprep.mubr.bf16.mxu0 0
      %1883 = vmatmul.mubr.bf16.gmra.mrb[0].mxu0 %v1735
      %v1884 = vpop.f32.mrb[0].mxu0
      %v1885 = vadd.f32 0.0, %v1884
      %v1886 = vpop.f32.mrb[0].mxu0
      %v1887 = vpop.f32.mrb[0].mxu0
      %v1888 = vadd.f32 0.0, %v1887
      %v1889 = vpop.f32.mrb[0].mxu0
      %1890 = vmatprep.mubr.bf16.mxu0 0
      %1891 = vmatmul.mubr.bf16.gmra.mrb[0].mxu0 %v1738
      %v1892 = vpop.f32.mrb[0].mxu0
      %v1893 = vadd.f32 0.0, %v1892
      %v1894 = vpop.f32.mrb[0].mxu0
      %v1895 = vpop.f32.mrb[0].mxu0
      %v1896 = vadd.f32 0.0, %v1895
      %v1897 = vpop.f32.mrb[0].mxu0
      %1898 = vmatprep.mubr.bf16.mxu0 0
      %1899 = vmatmul.mubr.bf16.gmra.mrb[0].mxu0 %v1741
      %v1900 = vpop.f32.mrb[0].mxu0
      %v1901 = vadd.f32 0.0, %v1900
      %v1902 = vpop.f32.mrb[0].mxu0
      %v1903 = vpop.f32.mrb[0].mxu0
      %v1904 = vadd.f32 0.0, %v1903
      %v1905 = vpop.f32.mrb[0].mxu0
      %1906 = vdwg.mxu0
      %v1907 = vadd.f32 %v1356, %v1781
      %v1908 = vadd.f32 %v1359, %v1784
      %v1909 = vadd.f32 %v1364, %v1789
      %v1910 = vadd.f32 %v1367, %v1792
      %v1911 = vadd.f32 %v1372, %v1797
      %v1912 = vadd.f32 %v1375, %v1800
      %v1913 = vadd.f32 %v1380, %v1805
      %v1914 = vadd.f32 %v1383, %v1808
      %v1915 = vadd.f32 %v1388, %v1813
      %v1916 = vadd.f32 %v1391, %v1816
      %v1917 = vadd.f32 %v1396, %v1821
      %v1918 = vadd.f32 %v1399, %v1824
      %v1919 = vadd.f32 %v1404, %v1829
      %v1920 = vadd.f32 %v1407, %v1832
      %v1921 = vadd.f32 %v1412, %v1837
      %v1922 = vadd.f32 %v1415, %v1840
      %v1923 = vadd.f32 %v1420, %v1845
      %v1924 = vadd.f32 %v1423, %v1848
      %v1925 = vadd.f32 %v1428, %v1853
      %v1926 = vadd.f32 %v1431, %v1856
      %v1927 = vadd.f32 %v1436, %v1861
      %v1928 = vadd.f32 %v1439, %v1864
      %v1929 = vadd.f32 %v1444, %v1869
      %v1930 = vadd.f32 %v1447, %v1872
      %v1931 = vadd.f32 %v1452, %v1877
      %v1932 = vadd.f32 %v1455, %v1880
      %v1933 = vadd.f32 %v1460, %v1885
      %v1934 = vadd.f32 %v1463, %v1888
      %v1935 = vadd.f32 %v1468, %v1893
      %v1936 = vadd.f32 %v1471, %v1896
      %v1937 = vadd.f32 %v1476, %v1901
      %v1938 = vadd.f32 %v1479, %v1904
      %s1939 = scalar_lea.vmem [#allocation2], 12
      %v1940 = vld [vmem:[%s1939] sm:$0xf]
      %v1941 = vld [vmem:[%s1939 + $0x4] sm:$0xf]
      %v1942 = vld [vmem:[%s1939 + $0xc] sm:$0xf]
      %v1943 = vld [vmem:[%s1939 + $0x10] sm:$0xf]
      %v1944 = vld [vmem:[%s1939 + $0x18] sm:$0xf]
      %v1945 = vld [vmem:[%s1939 + $0x1c] sm:$0xf]
      %v1946 = vld [vmem:[%s1939 + $0x24] sm:$0xf]
      %v1947 = vld [vmem:[%s1939 + $0x28] sm:$0xf]
      %v1948 = vld [vmem:[%s1939 + $0x30] sm:$0xf]
      %v1949 = vld [vmem:[%s1939 + $0x34] sm:$0xf]
      %v1950 = vld [vmem:[%s1939 + $0x3c] sm:$0xf]
      %v1951 = vld [vmem:[%s1939 + $0x40] sm:$0xf]
      %v1952 = vld [vmem:[%s1939 + $0x48] sm:$0xf]
      %v1953 = vld [vmem:[%s1939 + $0x4c] sm:$0xf]
      %v1954 = vld [vmem:[%s1939 + $0x54] sm:$0xf]
      %v1955 = vld [vmem:[%s1939 + $0x58] sm:$0xf]
      %v1956 = vld [vmem:[%s1939 + $0x60] sm:$0xf]
      %v1957 = vld [vmem:[%s1939 + $0x64] sm:$0xf]
      %v1958 = vld [vmem:[%s1939 + $0x6c] sm:$0xf]
      %v1959 = vld [vmem:[%s1939 + $0x70] sm:$0xf]
      %v1960 = vld [vmem:[%s1939 + $0x78] sm:$0xf]
      %v1961 = vld [vmem:[%s1939 + $0x7c] sm:$0xf]
      %v1962 = vld [vmem:[%s1939 + $0x84] sm:$0xf]
      %v1963 = vld [vmem:[%s1939 + $0x88] sm:$0xf]
      %v1964 = vld [vmem:[%s1939 + $0x90] sm:$0xf]
      %v1965 = vld [vmem:[%s1939 + $0x94] sm:$0xf]
      %v1966 = vld [vmem:[%s1939 + $0x9c] sm:$0xf]
      %v1967 = vld [vmem:[%s1939 + $0xa0] sm:$0xf]
      %v1968 = vld [vmem:[%s1939 + $0xa8] sm:$0xf]
      %v1969 = vld [vmem:[%s1939 + $0xac] sm:$0xf]
      %v1970 = vld [vmem:[%s1939 + $0xb4] sm:$0xf]
      %v1971 = vld [vmem:[%s1939 + $0xb8] sm:$0xf]
      %s1972 = scalar_lea.vmem %s2, 6
      %v1973 = vld [vmem:[%s1972] sm:$0x3]
      %v2006 = vunpack.c.l.b16 %v1940
      %v2007 = vunpack.c.l.b16 %v1941
      %v2008 = vunpack.c.l.b16 %v1942
      %v2009 = vunpack.c.l.b16 %v1943
      %v2010 = vunpack.c.l.b16 %v1944
      %v2011 = vunpack.c.l.b16 %v1945
      %v2012 = vunpack.c.l.b16 %v1946
      %v2013 = vunpack.c.l.b16 %v1947
      %v2014 = vunpack.c.l.b16 %v1948
      %v2015 = vunpack.c.l.b16 %v1949
      %v2016 = vunpack.c.l.b16 %v1950
      %v2017 = vunpack.c.l.b16 %v1951
      %v2018 = vunpack.c.l.b16 %v1952
      %v2019 = vunpack.c.l.b16 %v1953
      %v2020 = vunpack.c.l.b16 %v1954
      %v2021 = vunpack.c.l.b16 %v1955
      %v2022 = vunpack.c.l.b16 %v1956
      %v2023 = vunpack.c.l.b16 %v1957
      %v2024 = vunpack.c.l.b16 %v1958
      %v2025 = vunpack.c.l.b16 %v1959
      %v2026 = vunpack.c.l.b16 %v1960
      %v2027 = vunpack.c.l.b16 %v1961
      %v2028 = vunpack.c.l.b16 %v1962
      %v2029 = vunpack.c.l.b16 %v1963
      %v2030 = vunpack.c.l.b16 %v1964
      %v2031 = vunpack.c.l.b16 %v1965
      %v2032 = vunpack.c.l.b16 %v1966
      %v2033 = vunpack.c.l.b16 %v1967
      %v2034 = vunpack.c.l.b16 %v1968
      %v2035 = vunpack.c.l.b16 %v1969
      %v2036 = vunpack.c.l.b16 %v1970
      %v2037 = vunpack.c.l.b16 %v1971
      %v2038 = vpack.c.b16 %v2007, %v2006
      %v2039 = vpack.c.b16 %v2009, %v2008
      %v2040 = vpack.c.b16 %v2011, %v2010
      %v2041 = vpack.c.b16 %v2013, %v2012
      %v2042 = vpack.c.b16 %v2015, %v2014
      %v2043 = vpack.c.b16 %v2017, %v2016
      %v2044 = vpack.c.b16 %v2019, %v2018
      %v2045 = vpack.c.b16 %v2021, %v2020
      %v2046 = vpack.c.b16 %v2023, %v2022
      %v2047 = vpack.c.b16 %v2025, %v2024
      %v2048 = vpack.c.b16 %v2027, %v2026
      %v2049 = vpack.c.b16 %v2029, %v2028
      %v2050 = vpack.c.b16 %v2031, %v2030
      %v2051 = vpack.c.b16 %v2033, %v2032
      %v2052 = vpack.c.b16 %v2035, %v2034
      %v2053 = vpack.c.b16 %v2037, %v2036
      %v2055 = vsel %vm976, %v2038, 0
      %v2058 = vsel %vm976, %v2039, 0
      %v2061 = vsel %vm976, %v2040, 0
      %v2064 = vsel %vm976, %v2041, 0
      %v2067 = vsel %vm976, %v2042, 0
      %v2070 = vsel %vm976, %v2043, 0
      %v2073 = vsel %vm976, %v2044, 0
      %v2076 = vsel %vm976, %v2045, 0
      %v2079 = vsel %vm976, %v2046, 0
      %v2082 = vsel %vm976, %v2047, 0
      %v2085 = vsel %vm976, %v2048, 0
      %v2088 = vsel %vm976, %v2049, 0
      %v2091 = vsel %vm976, %v2050, 0
      %v2094 = vsel %vm976, %v2051, 0
      %v2097 = vsel %vm976, %v2052, 0
      %v2100 = vsel %vm976, %v2053, 0
      %v2103 = vsel %vm1025, %v1973, 0
      %2105 = vmatprep.subr.bf16.mxu0 0
      %2106 = vmatpush1.bf16.msra.mxu0 %v2103
      %2107 = vmatprep.subr.bf16.mxu0 0
      %2108 = vmatpush1.bf16.msra.mxu0 0
      %2109 = vmatprep.subr.bf16.mxu0 0
      %2110 = vmatpush1.bf16.msra.mxu0 0
      %2111 = vmatprep.subr.bf16.mxu0 0
      %2112 = vmatpush1.bf16.msra.mxu0 0
      %2113 = vmatprep.subr.bf16.mxu0 0
      %2114 = vmatpush1.bf16.msra.mxu0 0
      %2115 = vmatprep.subr.bf16.mxu0 0
      %2116 = vmatpush1.bf16.msra.mxu0 0
      %2117 = vmatprep.subr.bf16.mxu0 0
      %2118 = vmatpush1.bf16.msra.mxu0 0
      %2119 = vmatprep.subr.bf16.mxu0 0
      %2120 = vmatpush1.bf16.msra.mxu0 0
      %2121 = vmatprep.subr.bf16.mxu0 0
      %2122 = vmatpush1.bf16.msra.mxu0 0
      %2123 = vmatprep.subr.bf16.mxu0 0
      %2124 = vmatpush1.bf16.msra.mxu0 0
      %2125 = vmatprep.subr.bf16.mxu0 0
      %2126 = vmatpush1.bf16.msra.mxu0 0
      %2127 = vmatprep.subr.bf16.mxu0 0
      %2128 = vmatpush1.bf16.msra.mxu0 0
      %2129 = vmatprep.subr.bf16.mxu0 0
      %2130 = vmatpush1.bf16.msra.mxu0 0
      %2131 = vmatprep.subr.bf16.mxu0 0
      %2132 = vmatpush1.bf16.msra.mxu0 0
      %2133 = vmatprep.subr.bf16.mxu0 0
      %2134 = vmatpush1.bf16.msra.mxu0 0
      %2135 = vmatprep.subr.bf16.mxu0 0
      %2136 = vmatpush1.bf16.msra.mxu0 0
      %2137 = vmatprep.mubr.bf16.mxu0 0
      %2138 = vmatmul.mubr.bf16.gmra.mrb[0].mxu0 %v2055
      %v2139 = vpop.f32.mrb[0].mxu0
      %v2140 = vadd.f32 0.0, %v2139
      %v2141 = vpop.f32.mrb[0].mxu0
      %v2142 = vpop.f32.mrb[0].mxu0
      %v2143 = vadd.f32 0.0, %v2142
      %v2144 = vpop.f32.mrb[0].mxu0
      %2145 = vmatprep.mubr.bf16.mxu0 0
      %2146 = vmatmul.mubr.bf16.gmra.mrb[0].mxu0 %v2058
      %v2147 = vpop.f32.mrb[0].mxu0
      %v2148 = vadd.f32 0.0, %v2147
      %v2149 = vpop.f32.mrb[0].mxu0
      %v2150 = vpop.f32.mrb[0].mxu0
      %v2151 = vadd.f32 0.0, %v2150
      %v2152 = vpop.f32.mrb[0].mxu0
      %2153 = vmatprep.mubr.bf16.mxu0 0
      %2154 = vmatmul.mubr.bf16.gmra.mrb[0].mxu0 %v2061
      %v2155 = vpop.f32.mrb[0].mxu0
      %v2156 = vadd.f32 0.0, %v2155
      %v2157 = vpop.f32.mrb[0].mxu0
      %v2158 = vpop.f32.mrb[0].mxu0
      %v2159 = vadd.f32 0.0, %v2158
      %v2160 = vpop.f32.mrb[0].mxu0
      %2161 = vmatprep.mubr.bf16.mxu0 0
      %2162 = vmatmul.mubr.bf16.gmra.mrb[0].mxu0 %v2064
      %v2163 = vpop.f32.mrb[0].mxu0
      %v2164 = vadd.f32 0.0, %v2163
      %v2165 = vpop.f32.mrb[0].mxu0
      %v2166 = vpop.f32.mrb[0].mxu0
      %v2167 = vadd.f32 0.0, %v2166
      %v2168 = vpop.f32.mrb[0].mxu0
      %2169 = vmatprep.mubr.bf16.mxu0 0
      %2170 = vmatmul.mubr.bf16.gmra.mrb[0].mxu0 %v2067
      %v2171 = vpop.f32.mrb[0].mxu0
      %v2172 = vadd.f32 0.0, %v2171
      %v2173 = vpop.f32.mrb[0].mxu0
      %v2174 = vpop.f32.mrb[0].mxu0
      %v2175 = vadd.f32 0.0, %v2174
      %v2176 = vpop.f32.mrb[0].mxu0
      %2177 = vmatprep.mubr.bf16.mxu0 0
      %2178 = vmatmul.mubr.bf16.gmra.mrb[0].mxu0 %v2070
      %v2179 = vpop.f32.mrb[0].mxu0
      %v2180 = vadd.f32 0.0, %v2179
      %v2181 = vpop.f32.mrb[0].mxu0
      %v2182 = vpop.f32.mrb[0].mxu0
      %v2183 = vadd.f32 0.0, %v2182
      %v2184 = vpop.f32.mrb[0].mxu0
      %2185 = vmatprep.mubr.bf16.mxu0 0
      %2186 = vmatmul.mubr.bf16.gmra.mrb[0].mxu0 %v2073
      %v2187 = vpop.f32.mrb[0].mxu0
      %v2188 = vadd.f32 0.0, %v2187
      %v2189 = vpop.f32.mrb[0].mxu0
      %v2190 = vpop.f32.mrb[0].mxu0
      %v2191 = vadd.f32 0.0, %v2190
      %v2192 = vpop.f32.mrb[0].mxu0
      %2193 = vmatprep.mubr.bf16.mxu0 0
      %2194 = vmatmul.mubr.bf16.gmra.mrb[0].mxu0 %v2076
      %v2195 = vpop.f32.mrb[0].mxu0
      %v2196 = vadd.f32 0.0, %v2195
      %v2197 = vpop.f32.mrb[0].mxu0
      %v2198 = vpop.f32.mrb[0].mxu0
      %v2199 = vadd.f32 0.0, %v2198
      %v2200 = vpop.f32.mrb[0].mxu0
      %2201 = vmatprep.mubr.bf16.mxu0 0
      %2202 = vmatmul.mubr.bf16.gmra.mrb[0].mxu0 %v2079
      %v2203 = vpop.f32.mrb[0].mxu0
      %v2204 = vadd.f32 0.0, %v2203
      %v2205 = vpop.f32.mrb[0].mxu0
      %v2206 = vpop.f32.mrb[0].mxu0
      %v2207 = vadd.f32 0.0, %v2206
      %v2208 = vpop.f32.mrb[0].mxu0
      %2209 = vmatprep.mubr.bf16.mxu0 0
      %2210 = vmatmul.mubr.bf16.gmra.mrb[0].mxu0 %v2082
      %v2211 = vpop.f32.mrb[0].mxu0
      %v2212 = vadd.f32 0.0, %v2211
      %v2213 = vpop.f32.mrb[0].mxu0
      %v2214 = vpop.f32.mrb[0].mxu0
      %v2215 = vadd.f32 0.0, %v2214
      %v2216 = vpop.f32.mrb[0].mxu0
      %2217 = vmatprep.mubr.bf16.mxu0 0
      %2218 = vmatmul.mubr.bf16.gmra.mrb[0].mxu0 %v2085
      %v2219 = vpop.f32.mrb[0].mxu0
      %v2220 = vadd.f32 0.0, %v2219
      %v2221 = vpop.f32.mrb[0].mxu0
      %v2222 = vpop.f32.mrb[0].mxu0
      %v2223 = vadd.f32 0.0, %v2222
      %v2224 = vpop.f32.mrb[0].mxu0
      %2225 = vmatprep.mubr.bf16.mxu0 0
      %2226 = vmatmul.mubr.bf16.gmra.mrb[0].mxu0 %v2088
      %v2227 = vpop.f32.mrb[0].mxu0
      %v2228 = vadd.f32 0.0, %v2227
      %v2229 = vpop.f32.mrb[0].mxu0
      %v2230 = vpop.f32.mrb[0].mxu0
      %v2231 = vadd.f32 0.0, %v2230
      %v2232 = vpop.f32.mrb[0].mxu0
      %2233 = vmatprep.mubr.bf16.mxu0 0
      %2234 = vmatmul.mubr.bf16.gmra.mrb[0].mxu0 %v2091
      %v2235 = vpop.f32.mrb[0].mxu0
      %v2236 = vadd.f32 0.0, %v2235
      %v2237 = vpop.f32.mrb[0].mxu0
      %v2238 = vpop.f32.mrb[0].mxu0
      %v2239 = vadd.f32 0.0, %v2238
      %v2240 = vpop.f32.mrb[0].mxu0
      %2241 = vmatprep.mubr.bf16.mxu0 0
      %2242 = vmatmul.mubr.bf16.gmra.mrb[0].mxu0 %v2094
      %v2243 = vpop.f32.mrb[0].mxu0
      %v2244 = vadd.f32 0.0, %v2243
      %v2245 = vpop.f32.mrb[0].mxu0
      %v2246 = vpop.f32.mrb[0].mxu0
      %v2247 = vadd.f32 0.0, %v2246
      %v2248 = vpop.f32.mrb[0].mxu0
      %2249 = vmatprep.mubr.bf16.mxu0 0
      %2250 = vmatmul.mubr.bf16.gmra.mrb[0].mxu0 %v2097
      %v2251 = vpop.f32.mrb[0].mxu0
      %v2252 = vadd.f32 0.0, %v2251
      %v2253 = vpop.f32.mrb[0].mxu0
      %v2254 = vpop.f32.mrb[0].mxu0
      %v2255 = vadd.f32 0.0, %v2254
      %v2256 = vpop.f32.mrb[0].mxu0
      %2257 = vmatprep.mubr.bf16.mxu0 0
      %2258 = vmatmul.mubr.bf16.gmra.mrb[0].mxu0 %v2100
      %v2259 = vpop.f32.mrb[0].mxu0
      %v2260 = vadd.f32 0.0, %v2259
      %v2261 = vpop.f32.mrb[0].mxu0
      %v2262 = vpop.f32.mrb[0].mxu0
      %v2263 = vadd.f32 0.0, %v2262
      %v2264 = vpop.f32.mrb[0].mxu0
      %2265 = vdwg.mxu0
      %v2266 = vadd.f32 %v1907, %v2140
      %v2267 = vadd.f32 %v1908, %v2143
      %v2268 = vadd.f32 %v1909, %v2148
      %v2269 = vadd.f32 %v1910, %v2151
      %v2270 = vadd.f32 %v1911, %v2156
      %v2271 = vadd.f32 %v1912, %v2159
      %v2272 = vadd.f32 %v1913, %v2164
      %v2273 = vadd.f32 %v1914, %v2167
      %v2274 = vadd.f32 %v1915, %v2172
      %v2275 = vadd.f32 %v1916, %v2175
      %v2276 = vadd.f32 %v1917, %v2180
      %v2277 = vadd.f32 %v1918, %v2183
      %v2278 = vadd.f32 %v1919, %v2188
      %v2279 = vadd.f32 %v1920, %v2191
      %v2280 = vadd.f32 %v1921, %v2196
      %v2281 = vadd.f32 %v1922, %v2199
      %v2282 = vadd.f32 %v1923, %v2204
      %v2283 = vadd.f32 %v1924, %v2207
      %v2284 = vadd.f32 %v1925, %v2212
      %v2285 = vadd.f32 %v1926, %v2215
      %v2286 = vadd.f32 %v1927, %v2220
      %v2287 = vadd.f32 %v1928, %v2223
      %v2288 = vadd.f32 %v1929, %v2228
      %v2289 = vadd.f32 %v1930, %v2231
      %v2290 = vadd.f32 %v1931, %v2236
      %v2291 = vadd.f32 %v1932, %v2239
      %v2292 = vadd.f32 %v1933, %v2244
      %v2293 = vadd.f32 %v1934, %v2247
      %v2294 = vadd.f32 %v1935, %v2252
      %v2295 = vadd.f32 %v1936, %v2255
      %v2296 = vadd.f32 %v1937, %v2260
      %v2297 = vadd.f32 %v1938, %v2263
      %v2298 = vld [vmem:[%s1939] sm:$0xf]
      %v2299 = vld [vmem:[%s1939 + $0x4] sm:$0xf]
      %v2300 = vld [vmem:[%s1939 + $0x8] sm:$0x1]
      %v2301 = vld [vmem:[%s1939 + $0xc] sm:$0xf]
      %v2302 = vld [vmem:[%s1939 + $0x10] sm:$0xf]
      %v2303 = vld [vmem:[%s1939 + $0x14] sm:$0x1]
      %v2304 = vld [vmem:[%s1939 + $0x18] sm:$0xf]
      %v2305 = vld [vmem:[%s1939 + $0x1c] sm:$0xf]
      %v2306 = vld [vmem:[%s1939 + $0x20] sm:$0x1]
      %v2307 = vld [vmem:[%s1939 + $0x24] sm:$0xf]
      %v2308 = vld [vmem:[%s1939 + $0x28] sm:$0xf]
      %v2309 = vld [vmem:[%s1939 + $0x2c] sm:$0x1]
      %v2310 = vld [vmem:[%s1939 + $0x30] sm:$0xf]
      %v2311 = vld [vmem:[%s1939 + $0x34] sm:$0xf]
      %v2312 = vld [vmem:[%s1939 + $0x38] sm:$0x1]
      %v2313 = vld [vmem:[%s1939 + $0x3c] sm:$0xf]
      %v2314 = vld [vmem:[%s1939 + $0x40] sm:$0xf]
      %v2315 = vld [vmem:[%s1939 + $0x44] sm:$0x1]
      %v2316 = vld [vmem:[%s1939 + $0x48] sm:$0xf]
      %v2317 = vld [vmem:[%s1939 + $0x4c] sm:$0xf]
      %v2318 = vld [vmem:[%s1939 + $0x50] sm:$0x1]
      %v2319 = vld [vmem:[%s1939 + $0x54] sm:$0xf]
      %v2320 = vld [vmem:[%s1939 + $0x58] sm:$0xf]
      %v2321 = vld [vmem:[%s1939 + $0x5c] sm:$0x1]
      %v2322 = vld [vmem:[%s1939 + $0x60] sm:$0xf]
      %v2323 = vld [vmem:[%s1939 + $0x64] sm:$0xf]
      %v2324 = vld [vmem:[%s1939 + $0x68] sm:$0x1]
      %v2325 = vld [vmem:[%s1939 + $0x6c] sm:$0xf]
      %v2326 = vld [vmem:[%s1939 + $0x70] sm:$0xf]
      %v2327 = vld [vmem:[%s1939 + $0x74] sm:$0x1]
      %v2328 = vld [vmem:[%s1939 + $0x78] sm:$0xf]
      %v2329 = vld [vmem:[%s1939 + $0x7c] sm:$0xf]
      %v2330 = vld [vmem:[%s1939 + $0x80] sm:$0x1]
      %v2331 = vld [vmem:[%s1939 + $0x84] sm:$0xf]
      %v2332 = vld [vmem:[%s1939 + $0x88] sm:$0xf]
      %v2333 = vld [vmem:[%s1939 + $0x8c] sm:$0x1]
      %v2334 = vld [vmem:[%s1939 + $0x90] sm:$0xf]
      %v2335 = vld [vmem:[%s1939 + $0x94] sm:$0xf]
      %v2336 = vld [vmem:[%s1939 + $0x98] sm:$0x1]
      %v2337 = vld [vmem:[%s1939 + $0x9c] sm:$0xf]
      %v2338 = vld [vmem:[%s1939 + $0xa0] sm:$0xf]
      %v2339 = vld [vmem:[%s1939 + $0xa4] sm:$0x1]
      %v2340 = vld [vmem:[%s1939 + $0xa8] sm:$0xf]
      %v2341 = vld [vmem:[%s1939 + $0xac] sm:$0xf]
      %v2342 = vld [vmem:[%s1939 + $0xb0] sm:$0x1]
      %v2343 = vld [vmem:[%s1939 + $0xb4] sm:$0xf]
      %v2344 = vld [vmem:[%s1939 + $0xb8] sm:$0xf]
      %v2345 = vld [vmem:[%s1939 + $0xbc] sm:$0x1]
      %v2347 = vshrl.u32 %v2298, 16
      %v2349 = vrot.slane %v2347, 4
      %v2350 = vshll.u32 %v2298, 16
      %v2352 = vrot.slane %v2350, 5
      %v2353 = vor.u32 %v2349, %v2352
      %v2354 = vrot.slane %v2353, 4
      %v2356 = vshll.u32 %v2299, 16
      %v2358 = vrot.slane %v2356, 5
      %v2359 = vsel %vm541, %v2354, %v2358
      %v2360 = vshrl.u32 %v2299, 16
      %v2362 = vrot.slane %v2360, 4
      %v2363 = vor.u32 %v2362, %v2358
      %v2364 = vrot.slane %v2363, 4
      %v2366 = vshll.u32 %v2300, 16
      %v2368 = vrot.slane %v2366, 5
      %v2369 = vsel %vm541, %v2364, %v2368
      %v2371 = vshrl.u32 %v2301, 16
      %v2373 = vrot.slane %v2371, 4
      %v2374 = vshll.u32 %v2301, 16
      %v2376 = vrot.slane %v2374, 5
      %v2377 = vor.u32 %v2373, %v2376
      %v2378 = vrot.slane %v2377, 4
      %v2380 = vshll.u32 %v2302, 16
      %v2382 = vrot.slane %v2380, 5
      %v2383 = vsel %vm541, %v2378, %v2382
      %v2384 = vshrl.u32 %v2302, 16
      %v2386 = vrot.slane %v2384, 4
      %v2387 = vor.u32 %v2386, %v2382
      %v2388 = vrot.slane %v2387, 4
      %v2390 = vshll.u32 %v2303, 16
      %v2392 = vrot.slane %v2390, 5
      %v2393 = vsel %vm541, %v2388, %v2392
      %v2395 = vshrl.u32 %v2304, 16
      %v2397 = vrot.slane %v2395, 4
      %v2398 = vshll.u32 %v2304, 16
      %v2400 = vrot.slane %v2398, 5
      %v2401 = vor.u32 %v2397, %v2400
      %v2402 = vrot.slane %v2401, 4
      %v2404 = vshll.u32 %v2305, 16
      %v2406 = vrot.slane %v2404, 5
      %v2407 = vsel %vm541, %v2402, %v2406
      %v2408 = vshrl.u32 %v2305, 16
      %v2410 = vrot.slane %v2408, 4
      %v2411 = vor.u32 %v2410, %v2406
      %v2412 = vrot.slane %v2411, 4
      %v2414 = vshll.u32 %v2306, 16
      %v2416 = vrot.slane %v2414, 5
      %v2417 = vsel %vm541, %v2412, %v2416
      %v2419 = vshrl.u32 %v2307, 16
      %v2421 = vrot.slane %v2419, 4
      %v2422 = vshll.u32 %v2307, 16
      %v2424 = vrot.slane %v2422, 5
      %v2425 = vor.u32 %v2421, %v2424
      %v2426 = vrot.slane %v2425, 4
      %v2428 = vshll.u32 %v2308, 16
      %v2430 = vrot.slane %v2428, 5
      %v2431 = vsel %vm541, %v2426, %v2430
      %v2432 = vshrl.u32 %v2308, 16
      %v2434 = vrot.slane %v2432, 4
      %v2435 = vor.u32 %v2434, %v2430
      %v2436 = vrot.slane %v2435, 4
      %v2438 = vshll.u32 %v2309, 16
      %v2440 = vrot.slane %v2438, 5
      %v2441 = vsel %vm541, %v2436, %v2440
      %v2443 = vshrl.u32 %v2310, 16
      %v2445 = vrot.slane %v2443, 4
      %v2446 = vshll.u32 %v2310, 16
      %v2448 = vrot.slane %v2446, 5
      %v2449 = vor.u32 %v2445, %v2448
      %v2450 = vrot.slane %v2449, 4
      %v2452 = vshll.u32 %v2311, 16
      %v2454 = vrot.slane %v2452, 5
      %v2455 = vsel %vm541, %v2450, %v2454
      %v2456 = vshrl.u32 %v2311, 16
      %v2458 = vrot.slane %v2456, 4
      %v2459 = vor.u32 %v2458, %v2454
      %v2460 = vrot.slane %v2459, 4
      %v2462 = vshll.u32 %v2312, 16
      %v2464 = vrot.slane %v2462, 5
      %v2465 = vsel %vm541, %v2460, %v2464
      %v2467 = vshrl.u32 %v2313, 16
      %v2469 = vrot.slane %v2467, 4
      %v2470 = vshll.u32 %v2313, 16
      %v2472 = vrot.slane %v2470, 5
      %v2473 = vor.u32 %v2469, %v2472
      %v2474 = vrot.slane %v2473, 4
      %v2476 = vshll.u32 %v2314, 16
      %v2478 = vrot.slane %v2476, 5
      %v2479 = vsel %vm541, %v2474, %v2478
      %v2480 = vshrl.u32 %v2314, 16
      %v2482 = vrot.slane %v2480, 4
      %v2483 = vor.u32 %v2482, %v2478
      %v2484 = vrot.slane %v2483, 4
      %v2486 = vshll.u32 %v2315, 16
      %v2488 = vrot.slane %v2486, 5
      %v2489 = vsel %vm541, %v2484, %v2488
      %v2491 = vshrl.u32 %v2316, 16
      %v2493 = vrot.slane %v2491, 4
      %v2494 = vshll.u32 %v2316, 16
      %v2496 = vrot.slane %v2494, 5
      %v2497 = vor.u32 %v2493, %v2496
      %v2498 = vrot.slane %v2497, 4
      %v2500 = vshll.u32 %v2317, 16
      %v2502 = vrot.slane %v2500, 5
      %v2503 = vsel %vm541, %v2498, %v2502
      %v2504 = vshrl.u32 %v2317, 16
      %v2506 = vrot.slane %v2504, 4
      %v2507 = vor.u32 %v2506, %v2502
      %v2508 = vrot.slane %v2507, 4
      %v2510 = vshll.u32 %v2318, 16
      %v2512 = vrot.slane %v2510, 5
      %v2513 = vsel %vm541, %v2508, %v2512
      %v2515 = vshrl.u32 %v2319, 16
      %v2517 = vrot.slane %v2515, 4
      %v2518 = vshll.u32 %v2319, 16
      %v2520 = vrot.slane %v2518, 5
      %v2521 = vor.u32 %v2517, %v2520
      %v2522 = vrot.slane %v2521, 4
      %v2524 = vshll.u32 %v2320, 16
      %v2526 = vrot.slane %v2524, 5
      %v2527 = vsel %vm541, %v2522, %v2526
      %v2528 = vshrl.u32 %v2320, 16
      %v2530 = vrot.slane %v2528, 4
      %v2531 = vor.u32 %v2530, %v2526
      %v2532 = vrot.slane %v2531, 4
      %v2534 = vshll.u32 %v2321, 16
      %v2536 = vrot.slane %v2534, 5
      %v2537 = vsel %vm541, %v2532, %v2536
      %v2539 = vshrl.u32 %v2322, 16
      %v2541 = vrot.slane %v2539, 4
      %v2542 = vshll.u32 %v2322, 16
      %v2544 = vrot.slane %v2542, 5
      %v2545 = vor.u32 %v2541, %v2544
      %v2546 = vrot.slane %v2545, 4
      %v2548 = vshll.u32 %v2323, 16
      %v2550 = vrot.slane %v2548, 5
      %v2551 = vsel %vm541, %v2546, %v2550
      %v2552 = vshrl.u32 %v2323, 16
      %v2554 = vrot.slane %v2552, 4
      %v2555 = vor.u32 %v2554, %v2550
      %v2556 = vrot.slane %v2555, 4
      %v2558 = vshll.u32 %v2324, 16
      %v2560 = vrot.slane %v2558, 5
      %v2561 = vsel %vm541, %v2556, %v2560
      %v2563 = vshrl.u32 %v2325, 16
      %v2565 = vrot.slane %v2563, 4
      %v2566 = vshll.u32 %v2325, 16
      %v2568 = vrot.slane %v2566, 5
      %v2569 = vor.u32 %v2565, %v2568
      %v2570 = vrot.slane %v2569, 4
      %v2572 = vshll.u32 %v2326, 16
      %v2574 = vrot.slane %v2572, 5
      %v2575 = vsel %vm541, %v2570, %v2574
      %v2576 = vshrl.u32 %v2326, 16
      %v2578 = vrot.slane %v2576, 4
      %v2579 = vor.u32 %v2578, %v2574
      %v2580 = vrot.slane %v2579, 4
      %v2582 = vshll.u32 %v2327, 16
      %v2584 = vrot.slane %v2582, 5
      %v2585 = vsel %vm541, %v2580, %v2584
      %v2587 = vshrl.u32 %v2328, 16
      %v2589 = vrot.slane %v2587, 4
      %v2590 = vshll.u32 %v2328, 16
      %v2592 = vrot.slane %v2590, 5
      %v2593 = vor.u32 %v2589, %v2592
      %v2594 = vrot.slane %v2593, 4
      %v2596 = vshll.u32 %v2329, 16
      %v2598 = vrot.slane %v2596, 5
      %v2599 = vsel %vm541, %v2594, %v2598
      %v2600 = vshrl.u32 %v2329, 16
      %v2602 = vrot.slane %v2600, 4
      %v2603 = vor.u32 %v2602, %v2598
      %v2604 = vrot.slane %v2603, 4
      %v2606 = vshll.u32 %v2330, 16
      %v2608 = vrot.slane %v2606, 5
      %v2609 = vsel %vm541, %v2604, %v2608
      %v2611 = vshrl.u32 %v2331, 16
      %v2613 = vrot.slane %v2611, 4
      %v2614 = vshll.u32 %v2331, 16
      %v2616 = vrot.slane %v2614, 5
      %v2617 = vor.u32 %v2613, %v2616
      %v2618 = vrot.slane %v2617, 4
      %v2620 = vshll.u32 %v2332, 16
      %v2622 = vrot.slane %v2620, 5
      %v2623 = vsel %vm541, %v2618, %v2622
      %v2624 = vshrl.u32 %v2332, 16
      %v2626 = vrot.slane %v2624, 4
      %v2627 = vor.u32 %v2626, %v2622
      %v2628 = vrot.slane %v2627, 4
      %v2630 = vshll.u32 %v2333, 16
      %v2632 = vrot.slane %v2630, 5
      %v2633 = vsel %vm541, %v2628, %v2632
      %v2635 = vshrl.u32 %v2334, 16
      %v2637 = vrot.slane %v2635, 4
      %v2638 = vshll.u32 %v2334, 16
      %v2640 = vrot.slane %v2638, 5
      %v2641 = vor.u32 %v2637, %v2640
      %v2642 = vrot.slane %v2641, 4
      %v2644 = vshll.u32 %v2335, 16
      %v2646 = vrot.slane %v2644, 5
      %v2647 = vsel %vm541, %v2642, %v2646
      %v2648 = vshrl.u32 %v2335, 16
      %v2650 = vrot.slane %v2648, 4
      %v2651 = vor.u32 %v2650, %v2646
      %v2652 = vrot.slane %v2651, 4
      %v2654 = vshll.u32 %v2336, 16
      %v2656 = vrot.slane %v2654, 5
      %v2657 = vsel %vm541, %v2652, %v2656
      %v2659 = vshrl.u32 %v2337, 16
      %v2661 = vrot.slane %v2659, 4
      %v2662 = vshll.u32 %v2337, 16
      %v2664 = vrot.slane %v2662, 5
      %v2665 = vor.u32 %v2661, %v2664
      %v2666 = vrot.slane %v2665, 4
      %v2668 = vshll.u32 %v2338, 16
      %v2670 = vrot.slane %v2668, 5
      %v2671 = vsel %vm541, %v2666, %v2670
      %v2672 = vshrl.u32 %v2338, 16
      %v2674 = vrot.slane %v2672, 4
      %v2675 = vor.u32 %v2674, %v2670
      %v2676 = vrot.slane %v2675, 4
      %v2678 = vshll.u32 %v2339, 16
      %v2680 = vrot.slane %v2678, 5
      %v2681 = vsel %vm541, %v2676, %v2680
      %v2683 = vshrl.u32 %v2340, 16
      %v2685 = vrot.slane %v2683, 4
      %v2686 = vshll.u32 %v2340, 16
      %v2688 = vrot.slane %v2686, 5
      %v2689 = vor.u32 %v2685, %v2688
      %v2690 = vrot.slane %v2689, 4
      %v2692 = vshll.u32 %v2341, 16
      %v2694 = vrot.slane %v2692, 5
      %v2695 = vsel %vm541, %v2690, %v2694
      %v2696 = vshrl.u32 %v2341, 16
      %v2698 = vrot.slane %v2696, 4
      %v2699 = vor.u32 %v2698, %v2694
      %v2700 = vrot.slane %v2699, 4
      %v2702 = vshll.u32 %v2342, 16
      %v2704 = vrot.slane %v2702, 5
      %v2705 = vsel %vm541, %v2700, %v2704
      %v2707 = vshrl.u32 %v2343, 16
      %v2709 = vrot.slane %v2707, 4
      %v2710 = vshll.u32 %v2343, 16
      %v2712 = vrot.slane %v2710, 5
      %v2713 = vor.u32 %v2709, %v2712
      %v2714 = vrot.slane %v2713, 4
      %v2716 = vshll.u32 %v2344, 16
      %v2718 = vrot.slane %v2716, 5
      %v2719 = vsel %vm541, %v2714, %v2718
      %v2720 = vshrl.u32 %v2344, 16
      %v2722 = vrot.slane %v2720, 4
      %v2723 = vor.u32 %v2722, %v2718
      %v2724 = vrot.slane %v2723, 4
      %v2726 = vshll.u32 %v2345, 16
      %v2728 = vrot.slane %v2726, 5
      %v2729 = vsel %vm541, %v2724, %v2728
      %s2730 = scalar_lea.vmem %s2, 8
      %v2731 = vld [vmem:[%s2730] sm:$0x3]
      %v2732 = vunpack.c.l.b16 %v2359
      %v2733 = vunpack.c.l.b16 %v2369
      %v2734 = vunpack.c.l.b16 %v2383
      %v2735 = vunpack.c.l.b16 %v2393
      %v2736 = vunpack.c.l.b16 %v2407
      %v2737 = vunpack.c.l.b16 %v2417
      %v2738 = vunpack.c.l.b16 %v2431
      %v2739 = vunpack.c.l.b16 %v2441
      %v2740 = vunpack.c.l.b16 %v2455
      %v2741 = vunpack.c.l.b16 %v2465
      %v2742 = vunpack.c.l.b16 %v2479
      %v2743 = vunpack.c.l.b16 %v2489
      %v2744 = vunpack.c.l.b16 %v2503
      %v2745 = vunpack.c.l.b16 %v2513
      %v2746 = vunpack.c.l.b16 %v2527
      %v2747 = vunpack.c.l.b16 %v2537
      %v2748 = vunpack.c.l.b16 %v2551
      %v2749 = vunpack.c.l.b16 %v2561
      %v2750 = vunpack.c.l.b16 %v2575
      %v2751 = vunpack.c.l.b16 %v2585
      %v2752 = vunpack.c.l.b16 %v2599
      %v2753 = vunpack.c.l.b16 %v2609
      %v2754 = vunpack.c.l.b16 %v2623
      %v2755 = vunpack.c.l.b16 %v2633
      %v2756 = vunpack.c.l.b16 %v2647
      %v2757 = vunpack.c.l.b16 %v2657
      %v2758 = vunpack.c.l.b16 %v2671
      %v2759 = vunpack.c.l.b16 %v2681
      %v2760 = vunpack.c.l.b16 %v2695
      %v2761 = vunpack.c.l.b16 %v2705
      %v2762 = vunpack.c.l.b16 %v2719
      %v2763 = vunpack.c.l.b16 %v2729
      %v2764 = vpack.c.b16 %v2733, %v2732
      %v2765 = vpack.c.b16 %v2735, %v2734
      %v2766 = vpack.c.b16 %v2737, %v2736
      %v2767 = vpack.c.b16 %v2739, %v2738
      %v2768 = vpack.c.b16 %v2741, %v2740
      %v2769 = vpack.c.b16 %v2743, %v2742
      %v2770 = vpack.c.b16 %v2745, %v2744
      %v2771 = vpack.c.b16 %v2747, %v2746
      %v2772 = vpack.c.b16 %v2749, %v2748
      %v2773 = vpack.c.b16 %v2751, %v2750
      %v2774 = vpack.c.b16 %v2753, %v2752
      %v2775 = vpack.c.b16 %v2755, %v2754
      %v2776 = vpack.c.b16 %v2757, %v2756
      %v2777 = vpack.c.b16 %v2759, %v2758
      %v2778 = vpack.c.b16 %v2761, %v2760
      %v2779 = vpack.c.b16 %v2763, %v2762
      %v2781 = vsel %vm976, %v2764, 0
      %v2784 = vsel %vm976, %v2765, 0
      %v2787 = vsel %vm976, %v2766, 0
      %v2790 = vsel %vm976, %v2767, 0
      %v2793 = vsel %vm976, %v2768, 0
      %v2796 = vsel %vm976, %v2769, 0
      %v2799 = vsel %vm976, %v2770, 0
      %v2802 = vsel %vm976, %v2771, 0
      %v2805 = vsel %vm976, %v2772, 0
      %v2808 = vsel %vm976, %v2773, 0
      %v2811 = vsel %vm976, %v2774, 0
      %v2814 = vsel %vm976, %v2775, 0
      %v2817 = vsel %vm976, %v2776, 0
      %v2820 = vsel %vm976, %v2777, 0
      %v2823 = vsel %vm976, %v2778, 0
      %v2826 = vsel %vm976, %v2779, 0
      %v2829 = vsel %vm1025, %v2731, 0
      %2831 = vmatprep.subr.bf16.mxu0 0
      %2832 = vmatpush1.bf16.msra.mxu0 %v2829
      %2833 = vmatprep.subr.bf16.mxu0 0
      %2834 = vmatpush1.bf16.msra.mxu0 0
      %2835 = vmatprep.subr.bf16.mxu0 0
      %2836 = vmatpush1.bf16.msra.mxu0 0
      %2837 = vmatprep.subr.bf16.mxu0 0
      %2838 = vmatpush1.bf16.msra.mxu0 0
      %2839 = vmatprep.subr.bf16.mxu0 0
      %2840 = vmatpush1.bf16.msra.mxu0 0
      %2841 = vmatprep.subr.bf16.mxu0 0
      %2842 = vmatpush1.bf16.msra.mxu0 0
      %2843 = vmatprep.subr.bf16.mxu0 0
      %2844 = vmatpush1.bf16.msra.mxu0 0
      %2845 = vmatprep.subr.bf16.mxu0 0
      %2846 = vmatpush1.bf16.msra.mxu0 0
      %2847 = vmatprep.subr.bf16.mxu0 0
      %2848 = vmatpush1.bf16.msra.mxu0 0
      %2849 = vmatprep.subr.bf16.mxu0 0
      %2850 = vmatpush1.bf16.msra.mxu0 0
      %2851 = vmatprep.subr.bf16.mxu0 0
      %2852 = vmatpush1.bf16.msra.mxu0 0
      %2853 = vmatprep.subr.bf16.mxu0 0
      %2854 = vmatpush1.bf16.msra.mxu0 0
      %2855 = vmatprep.subr.bf16.mxu0 0
      %2856 = vmatpush1.bf16.msra.mxu0 0
      %2857 = vmatprep.subr.bf16.mxu0 0
      %2858 = vmatpush1.bf16.msra.mxu0 0
      %2859 = vmatprep.subr.bf16.mxu0 0
      %2860 = vmatpush1.bf16.msra.mxu0 0
      %2861 = vmatprep.subr.bf16.mxu0 0
      %2862 = vmatpush1.bf16.msra.mxu0 0
      %2863 = vmatprep.mubr.bf16.mxu0 0
      %2864 = vmatmul.mubr.bf16.gmra.mrb[0].mxu0 %v2781
      %v2865 = vpop.f32.mrb[0].mxu0
      %v2866 = vadd.f32 0.0, %v2865
      %v2867 = vpop.f32.mrb[0].mxu0
      %v2868 = vpop.f32.mrb[0].mxu0
      %v2869 = vadd.f32 0.0, %v2868
      %v2870 = vpop.f32.mrb[0].mxu0
      %2871 = vmatprep.mubr.bf16.mxu0 0
      %2872 = vmatmul.mubr.bf16.gmra.mrb[0].mxu0 %v2784
      %v2873 = vpop.f32.mrb[0].mxu0
      %v2874 = vadd.f32 0.0, %v2873
      %v2875 = vpop.f32.mrb[0].mxu0
      %v2876 = vpop.f32.mrb[0].mxu0
      %v2877 = vadd.f32 0.0, %v2876
      %v2878 = vpop.f32.mrb[0].mxu0
      %2879 = vmatprep.mubr.bf16.mxu0 0
      %2880 = vmatmul.mubr.bf16.gmra.mrb[0].mxu0 %v2787
      %v2881 = vpop.f32.mrb[0].mxu0
      %v2882 = vadd.f32 0.0, %v2881
      %v2883 = vpop.f32.mrb[0].mxu0
      %v2884 = vpop.f32.mrb[0].mxu0
      %v2885 = vadd.f32 0.0, %v2884
      %v2886 = vpop.f32.mrb[0].mxu0
      %2887 = vmatprep.mubr.bf16.mxu0 0
      %2888 = vmatmul.mubr.bf16.gmra.mrb[0].mxu0 %v2790
      %v2889 = vpop.f32.mrb[0].mxu0
      %v2890 = vadd.f32 0.0, %v2889
      %v2891 = vpop.f32.mrb[0].mxu0
      %v2892 = vpop.f32.mrb[0].mxu0
      %v2893 = vadd.f32 0.0, %v2892
      %v2894 = vpop.f32.mrb[0].mxu0
      %2895 = vmatprep.mubr.bf16.mxu0 0
      %2896 = vmatmul.mubr.bf16.gmra.mrb[0].mxu0 %v2793
      %v2897 = vpop.f32.mrb[0].mxu0
      %v2898 = vadd.f32 0.0, %v2897
      %v2899 = vpop.f32.mrb[0].mxu0
      %v2900 = vpop.f32.mrb[0].mxu0
      %v2901 = vadd.f32 0.0, %v2900
      %v2902 = vpop.f32.mrb[0].mxu0
      %2903 = vmatprep.mubr.bf16.mxu0 0
      %2904 = vmatmul.mubr.bf16.gmra.mrb[0].mxu0 %v2796
      %v2905 = vpop.f32.mrb[0].mxu0
      %v2906 = vadd.f32 0.0, %v2905
      %v2907 = vpop.f32.mrb[0].mxu0
      %v2908 = vpop.f32.mrb[0].mxu0
      %v2909 = vadd.f32 0.0, %v2908
      %v2910 = vpop.f32.mrb[0].mxu0
      %2911 = vmatprep.mubr.bf16.mxu0 0
      %2912 = vmatmul.mubr.bf16.gmra.mrb[0].mxu0 %v2799
      %v2913 = vpop.f32.mrb[0].mxu0
      %v2914 = vadd.f32 0.0, %v2913
      %v2915 = vpop.f32.mrb[0].mxu0
      %v2916 = vpop.f32.mrb[0].mxu0
      %v2917 = vadd.f32 0.0, %v2916
      %v2918 = vpop.f32.mrb[0].mxu0
      %2919 = vmatprep.mubr.bf16.mxu0 0
      %2920 = vmatmul.mubr.bf16.gmra.mrb[0].mxu0 %v2802
      %v2921 = vpop.f32.mrb[0].mxu0
      %v2922 = vadd.f32 0.0, %v2921
      %v2923 = vpop.f32.mrb[0].mxu0
      %v2924 = vpop.f32.mrb[0].mxu0
      %v2925 = vadd.f32 0.0, %v2924
      %v2926 = vpop.f32.mrb[0].mxu0
      %2927 = vmatprep.mubr.bf16.mxu0 0
      %2928 = vmatmul.mubr.bf16.gmra.mrb[0].mxu0 %v2805
      %v2929 = vpop.f32.mrb[0].mxu0
      %v2930 = vadd.f32 0.0, %v2929
      %v2931 = vpop.f32.mrb[0].mxu0
      %v2932 = vpop.f32.mrb[0].mxu0
      %v2933 = vadd.f32 0.0, %v2932
      %v2934 = vpop.f32.mrb[0].mxu0
      %2935 = vmatprep.mubr.bf16.mxu0 0
      %2936 = vmatmul.mubr.bf16.gmra.mrb[0].mxu0 %v2808
      %v2937 = vpop.f32.mrb[0].mxu0
      %v2938 = vadd.f32 0.0, %v2937
      %v2939 = vpop.f32.mrb[0].mxu0
      %v2940 = vpop.f32.mrb[0].mxu0
      %v2941 = vadd.f32 0.0, %v2940
      %v2942 = vpop.f32.mrb[0].mxu0
      %2943 = vmatprep.mubr.bf16.mxu0 0
      %2944 = vmatmul.mubr.bf16.gmra.mrb[0].mxu0 %v2811
      %v2945 = vpop.f32.mrb[0].mxu0
      %v2946 = vadd.f32 0.0, %v2945
      %v2947 = vpop.f32.mrb[0].mxu0
      %v2948 = vpop.f32.mrb[0].mxu0
      %v2949 = vadd.f32 0.0, %v2948
      %v2950 = vpop.f32.mrb[0].mxu0
      %2951 = vmatprep.mubr.bf16.mxu0 0
      %2952 = vmatmul.mubr.bf16.gmra.mrb[0].mxu0 %v2814
      %v2953 = vpop.f32.mrb[0].mxu0
      %v2954 = vadd.f32 0.0, %v2953
      %v2955 = vpop.f32.mrb[0].mxu0
      %v2956 = vpop.f32.mrb[0].mxu0
      %v2957 = vadd.f32 0.0, %v2956
      %v2958 = vpop.f32.mrb[0].mxu0
      %2959 = vmatprep.mubr.bf16.mxu0 0
      %2960 = vmatmul.mubr.bf16.gmra.mrb[0].mxu0 %v2817
      %v2961 = vpop.f32.mrb[0].mxu0
      %v2962 = vadd.f32 0.0, %v2961
      %v2963 = vpop.f32.mrb[0].mxu0
      %v2964 = vpop.f32.mrb[0].mxu0
      %v2965 = vadd.f32 0.0, %v2964
      %v2966 = vpop.f32.mrb[0].mxu0
      %2967 = vmatprep.mubr.bf16.mxu0 0
      %2968 = vmatmul.mubr.bf16.gmra.mrb[0].mxu0 %v2820
      %v2969 = vpop.f32.mrb[0].mxu0
      %v2970 = vadd.f32 0.0, %v2969
      %v2971 = vpop.f32.mrb[0].mxu0
      %v2972 = vpop.f32.mrb[0].mxu0
      %v2973 = vadd.f32 0.0, %v2972
      %v2974 = vpop.f32.mrb[0].mxu0
      %2975 = vmatprep.mubr.bf16.mxu0 0
      %2976 = vmatmul.mubr.bf16.gmra.mrb[0].mxu0 %v2823
      %v2977 = vpop.f32.mrb[0].mxu0
      %v2978 = vadd.f32 0.0, %v2977
      %v2979 = vpop.f32.mrb[0].mxu0
      %v2980 = vpop.f32.mrb[0].mxu0
      %v2981 = vadd.f32 0.0, %v2980
      %v2982 = vpop.f32.mrb[0].mxu0
      %2983 = vmatprep.mubr.bf16.mxu0 0
      %2984 = vmatmul.mubr.bf16.gmra.mrb[0].mxu0 %v2826
      %v2985 = vpop.f32.mrb[0].mxu0
      %v2986 = vadd.f32 0.0, %v2985
      %v2987 = vpop.f32.mrb[0].mxu0
      %v2988 = vpop.f32.mrb[0].mxu0
      %v2989 = vadd.f32 0.0, %v2988
      %v2990 = vpop.f32.mrb[0].mxu0
      %2991 = vdwg.mxu0
      %v2992 = vadd.f32 %v2266, %v2866
      %v2993 = vadd.f32 %v2267, %v2869
      %v2994 = vadd.f32 %v2268, %v2874
      %v2995 = vadd.f32 %v2269, %v2877
      %v2996 = vadd.f32 %v2270, %v2882
      %v2997 = vadd.f32 %v2271, %v2885
      %v2998 = vadd.f32 %v2272, %v2890
      %v2999 = vadd.f32 %v2273, %v2893
      %v3000 = vadd.f32 %v2274, %v2898
      %v3001 = vadd.f32 %v2275, %v2901
      %v3002 = vadd.f32 %v2276, %v2906
      %v3003 = vadd.f32 %v2277, %v2909
      %v3004 = vadd.f32 %v2278, %v2914
      %v3005 = vadd.f32 %v2279, %v2917
      %v3006 = vadd.f32 %v2280, %v2922
      %v3007 = vadd.f32 %v2281, %v2925
      %v3008 = vadd.f32 %v2282, %v2930
      %v3009 = vadd.f32 %v2283, %v2933
      %v3010 = vadd.f32 %v2284, %v2938
      %v3011 = vadd.f32 %v2285, %v2941
      %v3012 = vadd.f32 %v2286, %v2946
      %v3013 = vadd.f32 %v2287, %v2949
      %v3014 = vadd.f32 %v2288, %v2954
      %v3015 = vadd.f32 %v2289, %v2957
      %v3016 = vadd.f32 %v2290, %v2962
      %v3017 = vadd.f32 %v2291, %v2965
      %v3018 = vadd.f32 %v2292, %v2970
      %v3019 = vadd.f32 %v2293, %v2973
      %v3020 = vadd.f32 %v2294, %v2978
      %v3021 = vadd.f32 %v2295, %v2981
      %v3022 = vadd.f32 %v2296, %v2986
      %v3023 = vadd.f32 %v2297, %v2989
      %v3024 = vld [vmem:[%s1939] sm:$0xe]
      %v3025 = vld [vmem:[%s1939 + $0xc] sm:$0xe]
      %v3026 = vld [vmem:[%s1939 + $0x18] sm:$0xe]
      %v3027 = vld [vmem:[%s1939 + $0x24] sm:$0xe]
      %v3028 = vld [vmem:[%s1939 + $0x30] sm:$0xe]
      %v3029 = vld [vmem:[%s1939 + $0x3c] sm:$0xe]
      %v3030 = vld [vmem:[%s1939 + $0x48] sm:$0xe]
      %v3031 = vld [vmem:[%s1939 + $0x54] sm:$0xe]
      %v3032 = vld [vmem:[%s1939 + $0x60] sm:$0xe]
      %v3033 = vld [vmem:[%s1939 + $0x6c] sm:$0xe]
      %v3034 = vld [vmem:[%s1939 + $0x78] sm:$0xe]
      %v3035 = vld [vmem:[%s1939 + $0x84] sm:$0xe]
      %v3036 = vld [vmem:[%s1939 + $0x90] sm:$0xe]
      %v3037 = vld [vmem:[%s1939 + $0x9c] sm:$0xe]
      %v3038 = vld [vmem:[%s1939 + $0xa8] sm:$0xe]
      %v3039 = vld [vmem:[%s1939 + $0xb4] sm:$0xe]
      %v3088 = vrot.slane %v3024, 5
      %v3089 = vrot.slane %v3088, 4
      %v3090 = vrot.slane %v2299, 5
      %v3091 = vsel %vm1532, %v3089, %v3090
      %v3092 = vrot.slane %v3090, 4
      %v3093 = vrot.slane %v2300, 5
      %v3094 = vsel %vm1532, %v3092, %v3093
      %v3095 = vrot.slane %v3025, 5
      %v3096 = vrot.slane %v3095, 4
      %v3097 = vrot.slane %v2302, 5
      %v3098 = vsel %vm1532, %v3096, %v3097
      %v3099 = vrot.slane %v3097, 4
      %v3100 = vrot.slane %v2303, 5
      %v3101 = vsel %vm1532, %v3099, %v3100
      %v3102 = vrot.slane %v3026, 5
      %v3103 = vrot.slane %v3102, 4
      %v3104 = vrot.slane %v2305, 5
      %v3105 = vsel %vm1532, %v3103, %v3104
      %v3106 = vrot.slane %v3104, 4
      %v3107 = vrot.slane %v2306, 5
      %v3108 = vsel %vm1532, %v3106, %v3107
      %v3109 = vrot.slane %v3027, 5
      %v3110 = vrot.slane %v3109, 4
      %v3111 = vrot.slane %v2308, 5
      %v3112 = vsel %vm1532, %v3110, %v3111
      %v3113 = vrot.slane %v3111, 4
      %v3114 = vrot.slane %v2309, 5
      %v3115 = vsel %vm1532, %v3113, %v3114
      %v3116 = vrot.slane %v3028, 5
      %v3117 = vrot.slane %v3116, 4
      %v3118 = vrot.slane %v2311, 5
      %v3119 = vsel %vm1532, %v3117, %v3118
      %v3120 = vrot.slane %v3118, 4
      %v3121 = vrot.slane %v2312, 5
      %v3122 = vsel %vm1532, %v3120, %v3121
      %v3123 = vrot.slane %v3029, 5
      %v3124 = vrot.slane %v3123, 4
      %v3125 = vrot.slane %v2314, 5
      %v3126 = vsel %vm1532, %v3124, %v3125
      %v3127 = vrot.slane %v3125, 4
      %v3128 = vrot.slane %v2315, 5
      %v3129 = vsel %vm1532, %v3127, %v3128
      %v3130 = vrot.slane %v3030, 5
      %v3131 = vrot.slane %v3130, 4
      %v3132 = vrot.slane %v2317, 5
      %v3133 = vsel %vm1532, %v3131, %v3132
      %v3134 = vrot.slane %v3132, 4
      %v3135 = vrot.slane %v2318, 5
      %v3136 = vsel %vm1532, %v3134, %v3135
      %v3137 = vrot.slane %v3031, 5
      %v3138 = vrot.slane %v3137, 4
      %v3139 = vrot.slane %v2320, 5
      %v3140 = vsel %vm1532, %v3138, %v3139
      %v3141 = vrot.slane %v3139, 4
      %v3142 = vrot.slane %v2321, 5
      %v3143 = vsel %vm1532, %v3141, %v3142
      %v3144 = vrot.slane %v3032, 5
      %v3145 = vrot.slane %v3144, 4
      %v3146 = vrot.slane %v2323, 5
      %v3147 = vsel %vm1532, %v3145, %v3146
      %v3148 = vrot.slane %v3146, 4
      %v3149 = vrot.slane %v2324, 5
      %v3150 = vsel %vm1532, %v3148, %v3149
      %v3151 = vrot.slane %v3033, 5
      %v3152 = vrot.slane %v3151, 4
      %v3153 = vrot.slane %v2326, 5
      %v3154 = vsel %vm1532, %v3152, %v3153
      %v3155 = vrot.slane %v3153, 4
      %v3156 = vrot.slane %v2327, 5
      %v3157 = vsel %vm1532, %v3155, %v3156
      %v3158 = vrot.slane %v3034, 5
      %v3159 = vrot.slane %v3158, 4
      %v3160 = vrot.slane %v2329, 5
      %v3161 = vsel %vm1532, %v3159, %v3160
      %v3162 = vrot.slane %v3160, 4
      %v3163 = vrot.slane %v2330, 5
      %v3164 = vsel %vm1532, %v3162, %v3163
      %v3165 = vrot.slane %v3035, 5
      %v3166 = vrot.slane %v3165, 4
      %v3167 = vrot.slane %v2332, 5
      %v3168 = vsel %vm1532, %v3166, %v3167
      %v3169 = vrot.slane %v3167, 4
      %v3170 = vrot.slane %v2333, 5
      %v3171 = vsel %vm1532, %v3169, %v3170
      %v3172 = vrot.slane %v3036, 5
      %v3173 = vrot.slane %v3172, 4
      %v3174 = vrot.slane %v2335, 5
      %v3175 = vsel %vm1532, %v3173, %v3174
      %v3176 = vrot.slane %v3174, 4
      %v3177 = vrot.slane %v2336, 5
      %v3178 = vsel %vm1532, %v3176, %v3177
      %v3179 = vrot.slane %v3037, 5
      %v3180 = vrot.slane %v3179, 4
      %v3181 = vrot.slane %v2338, 5
      %v3182 = vsel %vm1532, %v3180, %v3181
      %v3183 = vrot.slane %v3181, 4
      %v3184 = vrot.slane %v2339, 5
      %v3185 = vsel %vm1532, %v3183, %v3184
      %v3186 = vrot.slane %v3038, 5
      %v3187 = vrot.slane %v3186, 4
      %v3188 = vrot.slane %v2341, 5
      %v3189 = vsel %vm1532, %v3187, %v3188
      %v3190 = vrot.slane %v3188, 4
      %v3191 = vrot.slane %v2342, 5
      %v3192 = vsel %vm1532, %v3190, %v3191
      %v3193 = vrot.slane %v3039, 5
      %v3194 = vrot.slane %v3193, 4
      %v3195 = vrot.slane %v2344, 5
      %v3196 = vsel %vm1532, %v3194, %v3195
      %v3197 = vrot.slane %v3195, 4
      %v3198 = vrot.slane %v2345, 5
      %v3199 = vsel %vm1532, %v3197, %v3198
      %s3200 = scalar_lea.vmem %s2, 10
      %v3201 = vld [vmem:[%s3200] sm:$0x3]
      %v3202 = vunpack.c.l.b16 %v3091
      %v3203 = vunpack.c.l.b16 %v3094
      %v3204 = vunpack.c.l.b16 %v3098
      %v3205 = vunpack.c.l.b16 %v3101
      %v3206 = vunpack.c.l.b16 %v3105
      %v3207 = vunpack.c.l.b16 %v3108
      %v3208 = vunpack.c.l.b16 %v3112
      %v3209 = vunpack.c.l.b16 %v3115
      %v3210 = vunpack.c.l.b16 %v3119
      %v3211 = vunpack.c.l.b16 %v3122
      %v3212 = vunpack.c.l.b16 %v3126
      %v3213 = vunpack.c.l.b16 %v3129
      %v3214 = vunpack.c.l.b16 %v3133
      %v3215 = vunpack.c.l.b16 %v3136
      %v3216 = vunpack.c.l.b16 %v3140
      %v3217 = vunpack.c.l.b16 %v3143
      %v3218 = vunpack.c.l.b16 %v3147
      %v3219 = vunpack.c.l.b16 %v3150
      %v3220 = vunpack.c.l.b16 %v3154
      %v3221 = vunpack.c.l.b16 %v3157
      %v3222 = vunpack.c.l.b16 %v3161
      %v3223 = vunpack.c.l.b16 %v3164
      %v3224 = vunpack.c.l.b16 %v3168
      %v3225 = vunpack.c.l.b16 %v3171
      %v3226 = vunpack.c.l.b16 %v3175
      %v3227 = vunpack.c.l.b16 %v3178
      %v3228 = vunpack.c.l.b16 %v3182
      %v3229 = vunpack.c.l.b16 %v3185
      %v3230 = vunpack.c.l.b16 %v3189
      %v3231 = vunpack.c.l.b16 %v3192
      %v3232 = vunpack.c.l.b16 %v3196
      %v3233 = vunpack.c.l.b16 %v3199
      %v3234 = vpack.c.b16 %v3203, %v3202
      %v3235 = vpack.c.b16 %v3205, %v3204
      %v3236 = vpack.c.b16 %v3207, %v3206
      %v3237 = vpack.c.b16 %v3209, %v3208
      %v3238 = vpack.c.b16 %v3211, %v3210
      %v3239 = vpack.c.b16 %v3213, %v3212
      %v3240 = vpack.c.b16 %v3215, %v3214
      %v3241 = vpack.c.b16 %v3217, %v3216
      %v3242 = vpack.c.b16 %v3219, %v3218
      %v3243 = vpack.c.b16 %v3221, %v3220
      %v3244 = vpack.c.b16 %v3223, %v3222
      %v3245 = vpack.c.b16 %v3225, %v3224
      %v3246 = vpack.c.b16 %v3227, %v3226
      %v3247 = vpack.c.b16 %v3229, %v3228
      %v3248 = vpack.c.b16 %v3231, %v3230
      %v3249 = vpack.c.b16 %v3233, %v3232
      %v3251 = vsel %vm976, %v3234, 0
      %v3254 = vsel %vm976, %v3235, 0
      %v3257 = vsel %vm976, %v3236, 0
      %v3260 = vsel %vm976, %v3237, 0
      %v3263 = vsel %vm976, %v3238, 0
      %v3266 = vsel %vm976, %v3239, 0
      %v3269 = vsel %vm976, %v3240, 0
      %v3272 = vsel %vm976, %v3241, 0
      %v3275 = vsel %vm976, %v3242, 0
      %v3278 = vsel %vm976, %v3243, 0
      %v3281 = vsel %vm976, %v3244, 0
      %v3284 = vsel %vm976, %v3245, 0
      %v3287 = vsel %vm976, %v3246, 0
      %v3290 = vsel %vm976, %v3247, 0
      %v3293 = vsel %vm976, %v3248, 0
      %v3296 = vsel %vm976, %v3249, 0
      %v3299 = vsel %vm1025, %v3201, 0
      %3301 = vmatprep.subr.bf16.mxu0 0
      %3302 = vmatpush1.bf16.msra.mxu0 %v3299
      %3303 = vmatprep.subr.bf16.mxu0 0
      %3304 = vmatpush1.bf16.msra.mxu0 0
      %3305 = vmatprep.subr.bf16.mxu0 0
      %3306 = vmatpush1.bf16.msra.mxu0 0
      %3307 = vmatprep.subr.bf16.mxu0 0
      %3308 = vmatpush1.bf16.msra.mxu0 0
      %3309 = vmatprep.subr.bf16.mxu0 0
      %3310 = vmatpush1.bf16.msra.mxu0 0
      %3311 = vmatprep.subr.bf16.mxu0 0
      %3312 = vmatpush1.bf16.msra.mxu0 0
      %3313 = vmatprep.subr.bf16.mxu0 0
      %3314 = vmatpush1.bf16.msra.mxu0 0
      %3315 = vmatprep.subr.bf16.mxu0 0
      %3316 = vmatpush1.bf16.msra.mxu0 0
      %3317 = vmatprep.subr.bf16.mxu0 0
      %3318 = vmatpush1.bf16.msra.mxu0 0
      %3319 = vmatprep.subr.bf16.mxu0 0
      %3320 = vmatpush1.bf16.msra.mxu0 0
      %3321 = vmatprep.subr.bf16.mxu0 0
      %3322 = vmatpush1.bf16.msra.mxu0 0
      %3323 = vmatprep.subr.bf16.mxu0 0
      %3324 = vmatpush1.bf16.msra.mxu0 0
      %3325 = vmatprep.subr.bf16.mxu0 0
      %3326 = vmatpush1.bf16.msra.mxu0 0
      %3327 = vmatprep.subr.bf16.mxu0 0
      %3328 = vmatpush1.bf16.msra.mxu0 0
      %3329 = vmatprep.subr.bf16.mxu0 0
      %3330 = vmatpush1.bf16.msra.mxu0 0
      %3331 = vmatprep.subr.bf16.mxu0 0
      %3332 = vmatpush1.bf16.msra.mxu0 0
      %3333 = vmatprep.mubr.bf16.mxu0 0
      %3334 = vmatmul.mubr.bf16.gmra.mrb[0].mxu0 %v3251
      %v3335 = vpop.f32.mrb[0].mxu0
      %v3336 = vadd.f32 0.0, %v3335
      %v3337 = vpop.f32.mrb[0].mxu0
      %v3338 = vpop.f32.mrb[0].mxu0
      %v3339 = vadd.f32 0.0, %v3338
      %v3340 = vpop.f32.mrb[0].mxu0
      %3341 = vmatprep.mubr.bf16.mxu0 0
      %3342 = vmatmul.mubr.bf16.gmra.mrb[0].mxu0 %v3254
      %v3343 = vpop.f32.mrb[0].mxu0
      %v3344 = vadd.f32 0.0, %v3343
      %v3345 = vpop.f32.mrb[0].mxu0
      %v3346 = vpop.f32.mrb[0].mxu0
      %v3347 = vadd.f32 0.0, %v3346
      %v3348 = vpop.f32.mrb[0].mxu0
      %3349 = vmatprep.mubr.bf16.mxu0 0
      %3350 = vmatmul.mubr.bf16.gmra.mrb[0].mxu0 %v3257
      %v3351 = vpop.f32.mrb[0].mxu0
      %v3352 = vadd.f32 0.0, %v3351
      %v3353 = vpop.f32.mrb[0].mxu0
      %v3354 = vpop.f32.mrb[0].mxu0
      %v3355 = vadd.f32 0.0, %v3354
      %v3356 = vpop.f32.mrb[0].mxu0
      %3357 = vmatprep.mubr.bf16.mxu0 0
      %3358 = vmatmul.mubr.bf16.gmra.mrb[0].mxu0 %v3260
      %v3359 = vpop.f32.mrb[0].mxu0
      %v3360 = vadd.f32 0.0, %v3359
      %v3361 = vpop.f32.mrb[0].mxu0
      %v3362 = vpop.f32.mrb[0].mxu0
      %v3363 = vadd.f32 0.0, %v3362
      %v3364 = vpop.f32.mrb[0].mxu0
      %3365 = vmatprep.mubr.bf16.mxu0 0
      %3366 = vmatmul.mubr.bf16.gmra.mrb[0].mxu0 %v3263
      %v3367 = vpop.f32.mrb[0].mxu0
      %v3368 = vadd.f32 0.0, %v3367
      %v3369 = vpop.f32.mrb[0].mxu0
      %v3370 = vpop.f32.mrb[0].mxu0
      %v3371 = vadd.f32 0.0, %v3370
      %v3372 = vpop.f32.mrb[0].mxu0
      %3373 = vmatprep.mubr.bf16.mxu0 0
      %3374 = vmatmul.mubr.bf16.gmra.mrb[0].mxu0 %v3266
      %v3375 = vpop.f32.mrb[0].mxu0
      %v3376 = vadd.f32 0.0, %v3375
      %v3377 = vpop.f32.mrb[0].mxu0
      %v3378 = vpop.f32.mrb[0].mxu0
      %v3379 = vadd.f32 0.0, %v3378
      %v3380 = vpop.f32.mrb[0].mxu0
      %3381 = vmatprep.mubr.bf16.mxu0 0
      %3382 = vmatmul.mubr.bf16.gmra.mrb[0].mxu0 %v3269
      %v3383 = vpop.f32.mrb[0].mxu0
      %v3384 = vadd.f32 0.0, %v3383
      %v3385 = vpop.f32.mrb[0].mxu0
      %v3386 = vpop.f32.mrb[0].mxu0
      %v3387 = vadd.f32 0.0, %v3386
      %v3388 = vpop.f32.mrb[0].mxu0
      %3389 = vmatprep.mubr.bf16.mxu0 0
      %3390 = vmatmul.mubr.bf16.gmra.mrb[0].mxu0 %v3272
      %v3391 = vpop.f32.mrb[0].mxu0
      %v3392 = vadd.f32 0.0, %v3391
      %v3393 = vpop.f32.mrb[0].mxu0
      %v3394 = vpop.f32.mrb[0].mxu0
      %v3395 = vadd.f32 0.0, %v3394
      %v3396 = vpop.f32.mrb[0].mxu0
      %3397 = vmatprep.mubr.bf16.mxu0 0
      %3398 = vmatmul.mubr.bf16.gmra.mrb[0].mxu0 %v3275
      %v3399 = vpop.f32.mrb[0].mxu0
      %v3400 = vadd.f32 0.0, %v3399
      %v3401 = vpop.f32.mrb[0].mxu0
      %v3402 = vpop.f32.mrb[0].mxu0
      %v3403 = vadd.f32 0.0, %v3402
      %v3404 = vpop.f32.mrb[0].mxu0
      %3405 = vmatprep.mubr.bf16.mxu0 0
      %3406 = vmatmul.mubr.bf16.gmra.mrb[0].mxu0 %v3278
      %v3407 = vpop.f32.mrb[0].mxu0
      %v3408 = vadd.f32 0.0, %v3407
      %v3409 = vpop.f32.mrb[0].mxu0
      %v3410 = vpop.f32.mrb[0].mxu0
      %v3411 = vadd.f32 0.0, %v3410
      %v3412 = vpop.f32.mrb[0].mxu0
      %3413 = vmatprep.mubr.bf16.mxu0 0
      %3414 = vmatmul.mubr.bf16.gmra.mrb[0].mxu0 %v3281
      %v3415 = vpop.f32.mrb[0].mxu0
      %v3416 = vadd.f32 0.0, %v3415
      %v3417 = vpop.f32.mrb[0].mxu0
      %v3418 = vpop.f32.mrb[0].mxu0
      %v3419 = vadd.f32 0.0, %v3418
      %v3420 = vpop.f32.mrb[0].mxu0
      %3421 = vmatprep.mubr.bf16.mxu0 0
      %3422 = vmatmul.mubr.bf16.gmra.mrb[0].mxu0 %v3284
      %v3423 = vpop.f32.mrb[0].mxu0
      %v3424 = vadd.f32 0.0, %v3423
      %v3425 = vpop.f32.mrb[0].mxu0
      %v3426 = vpop.f32.mrb[0].mxu0
      %v3427 = vadd.f32 0.0, %v3426
      %v3428 = vpop.f32.mrb[0].mxu0
      %3429 = vmatprep.mubr.bf16.mxu0 0
      %3430 = vmatmul.mubr.bf16.gmra.mrb[0].mxu0 %v3287
      %v3431 = vpop.f32.mrb[0].mxu0
      %v3432 = vadd.f32 0.0, %v3431
      %v3433 = vpop.f32.mrb[0].mxu0
      %v3434 = vpop.f32.mrb[0].mxu0
      %v3435 = vadd.f32 0.0, %v3434
      %v3436 = vpop.f32.mrb[0].mxu0
      %3437 = vmatprep.mubr.bf16.mxu0 0
      %3438 = vmatmul.mubr.bf16.gmra.mrb[0].mxu0 %v3290
      %v3439 = vpop.f32.mrb[0].mxu0
      %v3440 = vadd.f32 0.0, %v3439
      %v3441 = vpop.f32.mrb[0].mxu0
      %v3442 = vpop.f32.mrb[0].mxu0
      %v3443 = vadd.f32 0.0, %v3442
      %v3444 = vpop.f32.mrb[0].mxu0
      %3445 = vmatprep.mubr.bf16.mxu0 0
      %3446 = vmatmul.mubr.bf16.gmra.mrb[0].mxu0 %v3293
      %v3447 = vpop.f32.mrb[0].mxu0
      %v3448 = vadd.f32 0.0, %v3447
      %v3449 = vpop.f32.mrb[0].mxu0
      %v3450 = vpop.f32.mrb[0].mxu0
      %v3451 = vadd.f32 0.0, %v3450
      %v3452 = vpop.f32.mrb[0].mxu0
      %3453 = vmatprep.mubr.bf16.mxu0 0
      %3454 = vmatmul.mubr.bf16.gmra.mrb[0].mxu0 %v3296
      %v3455 = vpop.f32.mrb[0].mxu0
      %v3456 = vadd.f32 0.0, %v3455
      %v3457 = vpop.f32.mrb[0].mxu0
      %v3458 = vpop.f32.mrb[0].mxu0
      %v3459 = vadd.f32 0.0, %v3458
      %v3460 = vpop.f32.mrb[0].mxu0
      %3461 = vdwg.mxu0
      %v3462 = vadd.f32 %v2992, %v3336
      %v3463 = vadd.f32 %v2993, %v3339
      %v3464 = vadd.f32 %v2994, %v3344
      %v3465 = vadd.f32 %v2995, %v3347
      %v3466 = vadd.f32 %v2996, %v3352
      %v3467 = vadd.f32 %v2997, %v3355
      %v3468 = vadd.f32 %v2998, %v3360
      %v3469 = vadd.f32 %v2999, %v3363
      %v3470 = vadd.f32 %v3000, %v3368
      %v3471 = vadd.f32 %v3001, %v3371
      %v3472 = vadd.f32 %v3002, %v3376
      %v3473 = vadd.f32 %v3003, %v3379
      %v3474 = vadd.f32 %v3004, %v3384
      %v3475 = vadd.f32 %v3005, %v3387
      %v3476 = vadd.f32 %v3006, %v3392
      %v3477 = vadd.f32 %v3007, %v3395
      %v3478 = vadd.f32 %v3008, %v3400
      %v3479 = vadd.f32 %v3009, %v3403
      %v3480 = vadd.f32 %v3010, %v3408
      %v3481 = vadd.f32 %v3011, %v3411
      %v3482 = vadd.f32 %v3012, %v3416
      %v3483 = vadd.f32 %v3013, %v3419
      %v3484 = vadd.f32 %v3014, %v3424
      %v3485 = vadd.f32 %v3015, %v3427
      %v3486 = vadd.f32 %v3016, %v3432
      %v3487 = vadd.f32 %v3017, %v3435
      %v3488 = vadd.f32 %v3018, %v3440
      %v3489 = vadd.f32 %v3019, %v3443
      %v3490 = vadd.f32 %v3020, %v3448
      %v3491 = vadd.f32 %v3021, %v3451
      %v3492 = vadd.f32 %v3022, %v3456
      %v3493 = vadd.f32 %v3023, %v3459
      %s3494 = scalar_lea.vmem [#allocation2], 24
      %v3495 = vld [vmem:[%s3494] sm:$0xf]
      %v3496 = vld [vmem:[%s3494 + $0x4] sm:$0xf]
      %v3497 = vld [vmem:[%s3494 + $0xc] sm:$0xf]
      %v3498 = vld [vmem:[%s3494 + $0x10] sm:$0xf]
      %v3499 = vld [vmem:[%s3494 + $0x18] sm:$0xf]
      %v3500 = vld [vmem:[%s3494 + $0x1c] sm:$0xf]
      %v3501 = vld [vmem:[%s3494 + $0x24] sm:$0xf]
      %v3502 = vld [vmem:[%s3494 + $0x28] sm:$0xf]
      %v3503 = vld [vmem:[%s3494 + $0x30] sm:$0xf]
      %v3504 = vld [vmem:[%s3494 + $0x34] sm:$0xf]
      %v3505 = vld [vmem:[%s3494 + $0x3c] sm:$0xf]
      %v3506 = vld [vmem:[%s3494 + $0x40] sm:$0xf]
      %v3507 = vld [vmem:[%s3494 + $0x48] sm:$0xf]
      %v3508 = vld [vmem:[%s3494 + $0x4c] sm:$0xf]
      %v3509 = vld [vmem:[%s3494 + $0x54] sm:$0xf]
      %v3510 = vld [vmem:[%s3494 + $0x58] sm:$0xf]
      %v3511 = vld [vmem:[%s3494 + $0x60] sm:$0xf]
      %v3512 = vld [vmem:[%s3494 + $0x64] sm:$0xf]
      %v3513 = vld [vmem:[%s3494 + $0x6c] sm:$0xf]
      %v3514 = vld [vmem:[%s3494 + $0x70] sm:$0xf]
      %v3515 = vld [vmem:[%s3494 + $0x78] sm:$0xf]
      %v3516 = vld [vmem:[%s3494 + $0x7c] sm:$0xf]
      %v3517 = vld [vmem:[%s3494 + $0x84] sm:$0xf]
      %v3518 = vld [vmem:[%s3494 + $0x88] sm:$0xf]
      %v3519 = vld [vmem:[%s3494 + $0x90] sm:$0xf]
      %v3520 = vld [vmem:[%s3494 + $0x94] sm:$0xf]
      %v3521 = vld [vmem:[%s3494 + $0x9c] sm:$0xf]
      %v3522 = vld [vmem:[%s3494 + $0xa0] sm:$0xf]
      %v3523 = vld [vmem:[%s3494 + $0xa8] sm:$0xf]
      %v3524 = vld [vmem:[%s3494 + $0xac] sm:$0xf]
      %v3525 = vld [vmem:[%s3494 + $0xb4] sm:$0xf]
      %v3526 = vld [vmem:[%s3494 + $0xb8] sm:$0xf]
      %s3527 = scalar_lea.vmem %s2, 12
      %v3528 = vld [vmem:[%s3527] sm:$0x3]
      %v3561 = vunpack.c.l.b16 %v3495
      %v3562 = vunpack.c.l.b16 %v3496
      %v3563 = vunpack.c.l.b16 %v3497
      %v3564 = vunpack.c.l.b16 %v3498
      %v3565 = vunpack.c.l.b16 %v3499
      %v3566 = vunpack.c.l.b16 %v3500
      %v3567 = vunpack.c.l.b16 %v3501
      %v3568 = vunpack.c.l.b16 %v3502
      %v3569 = vunpack.c.l.b16 %v3503
      %v3570 = vunpack.c.l.b16 %v3504
      %v3571 = vunpack.c.l.b16 %v3505
      %v3572 = vunpack.c.l.b16 %v3506
      %v3573 = vunpack.c.l.b16 %v3507
      %v3574 = vunpack.c.l.b16 %v3508
      %v3575 = vunpack.c.l.b16 %v3509
      %v3576 = vunpack.c.l.b16 %v3510
      %v3577 = vunpack.c.l.b16 %v3511
      %v3578 = vunpack.c.l.b16 %v3512
      %v3579 = vunpack.c.l.b16 %v3513
      %v3580 = vunpack.c.l.b16 %v3514
      %v3581 = vunpack.c.l.b16 %v3515
      %v3582 = vunpack.c.l.b16 %v3516
      %v3583 = vunpack.c.l.b16 %v3517
      %v3584 = vunpack.c.l.b16 %v3518
      %v3585 = vunpack.c.l.b16 %v3519
      %v3586 = vunpack.c.l.b16 %v3520
      %v3587 = vunpack.c.l.b16 %v3521
      %v3588 = vunpack.c.l.b16 %v3522
      %v3589 = vunpack.c.l.b16 %v3523
      %v3590 = vunpack.c.l.b16 %v3524
      %v3591 = vunpack.c.l.b16 %v3525
      %v3592 = vunpack.c.l.b16 %v3526
      %v3593 = vpack.c.b16 %v3562, %v3561
      %v3594 = vpack.c.b16 %v3564, %v3563
      %v3595 = vpack.c.b16 %v3566, %v3565
      %v3596 = vpack.c.b16 %v3568, %v3567
      %v3597 = vpack.c.b16 %v3570, %v3569
      %v3598 = vpack.c.b16 %v3572, %v3571
      %v3599 = vpack.c.b16 %v3574, %v3573
      %v3600 = vpack.c.b16 %v3576, %v3575
      %v3601 = vpack.c.b16 %v3578, %v3577
      %v3602 = vpack.c.b16 %v3580, %v3579
      %v3603 = vpack.c.b16 %v3582, %v3581
      %v3604 = vpack.c.b16 %v3584, %v3583
      %v3605 = vpack.c.b16 %v3586, %v3585
      %v3606 = vpack.c.b16 %v3588, %v3587
      %v3607 = vpack.c.b16 %v3590, %v3589
      %v3608 = vpack.c.b16 %v3592, %v3591
      %v3610 = vsel %vm976, %v3593, 0
      %v3613 = vsel %vm976, %v3594, 0
      %v3616 = vsel %vm976, %v3595, 0
      %v3619 = vsel %vm976, %v3596, 0
      %v3622 = vsel %vm976, %v3597, 0
      %v3625 = vsel %vm976, %v3598, 0
      %v3628 = vsel %vm976, %v3599, 0
      %v3631 = vsel %vm976, %v3600, 0
      %v3634 = vsel %vm976, %v3601, 0
      %v3637 = vsel %vm976, %v3602, 0
      %v3640 = vsel %vm976, %v3603, 0
      %v3643 = vsel %vm976, %v3604, 0
      %v3646 = vsel %vm976, %v3605, 0
      %v3649 = vsel %vm976, %v3606, 0
      %v3652 = vsel %vm976, %v3607, 0
      %v3655 = vsel %vm976, %v3608, 0
      %v3658 = vsel %vm1025, %v3528, 0
      %3660 = vmatprep.subr.bf16.mxu0 0
      %3661 = vmatpush1.bf16.msra.mxu0 %v3658
      %3662 = vmatprep.subr.bf16.mxu0 0
      %3663 = vmatpush1.bf16.msra.mxu0 0
      %3664 = vmatprep.subr.bf16.mxu0 0
      %3665 = vmatpush1.bf16.msra.mxu0 0
      %3666 = vmatprep.subr.bf16.mxu0 0
      %3667 = vmatpush1.bf16.msra.mxu0 0
      %3668 = vmatprep.subr.bf16.mxu0 0
      %3669 = vmatpush1.bf16.msra.mxu0 0
      %3670 = vmatprep.subr.bf16.mxu0 0
      %3671 = vmatpush1.bf16.msra.mxu0 0
      %3672 = vmatprep.subr.bf16.mxu0 0
      %3673 = vmatpush1.bf16.msra.mxu0 0
      %3674 = vmatprep.subr.bf16.mxu0 0
      %3675 = vmatpush1.bf16.msra.mxu0 0
      %3676 = vmatprep.subr.bf16.mxu0 0
      %3677 = vmatpush1.bf16.msra.mxu0 0
      %3678 = vmatprep.subr.bf16.mxu0 0
      %3679 = vmatpush1.bf16.msra.mxu0 0
      %3680 = vmatprep.subr.bf16.mxu0 0
      %3681 = vmatpush1.bf16.msra.mxu0 0
      %3682 = vmatprep.subr.bf16.mxu0 0
      %3683 = vmatpush1.bf16.msra.mxu0 0
      %3684 = vmatprep.subr.bf16.mxu0 0
      %3685 = vmatpush1.bf16.msra.mxu0 0
      %3686 = vmatprep.subr.bf16.mxu0 0
      %3687 = vmatpush1.bf16.msra.mxu0 0
      %3688 = vmatprep.subr.bf16.mxu0 0
      %3689 = vmatpush1.bf16.msra.mxu0 0
      %3690 = vmatprep.subr.bf16.mxu0 0
      %3691 = vmatpush1.bf16.msra.mxu0 0
      %3692 = vmatprep.mubr.bf16.mxu0 0
      %3693 = vmatmul.mubr.bf16.gmra.mrb[0].mxu0 %v3610
      %v3694 = vpop.f32.mrb[0].mxu0
      %v3695 = vadd.f32 0.0, %v3694
      %v3696 = vpop.f32.mrb[0].mxu0
      %v3697 = vpop.f32.mrb[0].mxu0
      %v3698 = vadd.f32 0.0, %v3697
      %v3699 = vpop.f32.mrb[0].mxu0
      %3700 = vmatprep.mubr.bf16.mxu0 0
      %3701 = vmatmul.mubr.bf16.gmra.mrb[0].mxu0 %v3613
      %v3702 = vpop.f32.mrb[0].mxu0
      %v3703 = vadd.f32 0.0, %v3702
      %v3704 = vpop.f32.mrb[0].mxu0
      %v3705 = vpop.f32.mrb[0].mxu0
      %v3706 = vadd.f32 0.0, %v3705
      %v3707 = vpop.f32.mrb[0].mxu0
      %3708 = vmatprep.mubr.bf16.mxu0 0
      %3709 = vmatmul.mubr.bf16.gmra.mrb[0].mxu0 %v3616
      %v3710 = vpop.f32.mrb[0].mxu0
      %v3711 = vadd.f32 0.0, %v3710
      %v3712 = vpop.f32.mrb[0].mxu0
      %v3713 = vpop.f32.mrb[0].mxu0
      %v3714 = vadd.f32 0.0, %v3713
      %v3715 = vpop.f32.mrb[0].mxu0
      %3716 = vmatprep.mubr.bf16.mxu0 0
      %3717 = vmatmul.mubr.bf16.gmra.mrb[0].mxu0 %v3619
      %v3718 = vpop.f32.mrb[0].mxu0
      %v3719 = vadd.f32 0.0, %v3718
      %v3720 = vpop.f32.mrb[0].mxu0
      %v3721 = vpop.f32.mrb[0].mxu0
      %v3722 = vadd.f32 0.0, %v3721
      %v3723 = vpop.f32.mrb[0].mxu0
      %3724 = vmatprep.mubr.bf16.mxu0 0
      %3725 = vmatmul.mubr.bf16.gmra.mrb[0].mxu0 %v3622
      %v3726 = vpop.f32.mrb[0].mxu0
      %v3727 = vadd.f32 0.0, %v3726
      %v3728 = vpop.f32.mrb[0].mxu0
      %v3729 = vpop.f32.mrb[0].mxu0
      %v3730 = vadd.f32 0.0, %v3729
      %v3731 = vpop.f32.mrb[0].mxu0
      %3732 = vmatprep.mubr.bf16.mxu0 0
      %3733 = vmatmul.mubr.bf16.gmra.mrb[0].mxu0 %v3625
      %v3734 = vpop.f32.mrb[0].mxu0
      %v3735 = vadd.f32 0.0, %v3734
      %v3736 = vpop.f32.mrb[0].mxu0
      %v3737 = vpop.f32.mrb[0].mxu0
      %v3738 = vadd.f32 0.0, %v3737
      %v3739 = vpop.f32.mrb[0].mxu0
      %3740 = vmatprep.mubr.bf16.mxu0 0
      %3741 = vmatmul.mubr.bf16.gmra.mrb[0].mxu0 %v3628
      %v3742 = vpop.f32.mrb[0].mxu0
      %v3743 = vadd.f32 0.0, %v3742
      %v3744 = vpop.f32.mrb[0].mxu0
      %v3745 = vpop.f32.mrb[0].mxu0
      %v3746 = vadd.f32 0.0, %v3745
      %v3747 = vpop.f32.mrb[0].mxu0
      %3748 = vmatprep.mubr.bf16.mxu0 0
      %3749 = vmatmul.mubr.bf16.gmra.mrb[0].mxu0 %v3631
      %v3750 = vpop.f32.mrb[0].mxu0
      %v3751 = vadd.f32 0.0, %v3750
      %v3752 = vpop.f32.mrb[0].mxu0
      %v3753 = vpop.f32.mrb[0].mxu0
      %v3754 = vadd.f32 0.0, %v3753
      %v3755 = vpop.f32.mrb[0].mxu0
      %3756 = vmatprep.mubr.bf16.mxu0 0
      %3757 = vmatmul.mubr.bf16.gmra.mrb[0].mxu0 %v3634
      %v3758 = vpop.f32.mrb[0].mxu0
      %v3759 = vadd.f32 0.0, %v3758
      %v3760 = vpop.f32.mrb[0].mxu0
      %v3761 = vpop.f32.mrb[0].mxu0
      %v3762 = vadd.f32 0.0, %v3761
      %v3763 = vpop.f32.mrb[0].mxu0
      %3764 = vmatprep.mubr.bf16.mxu0 0
      %3765 = vmatmul.mubr.bf16.gmra.mrb[0].mxu0 %v3637
      %v3766 = vpop.f32.mrb[0].mxu0
      %v3767 = vadd.f32 0.0, %v3766
      %v3768 = vpop.f32.mrb[0].mxu0
      %v3769 = vpop.f32.mrb[0].mxu0
      %v3770 = vadd.f32 0.0, %v3769
      %v3771 = vpop.f32.mrb[0].mxu0
      %3772 = vmatprep.mubr.bf16.mxu0 0
      %3773 = vmatmul.mubr.bf16.gmra.mrb[0].mxu0 %v3640
      %v3774 = vpop.f32.mrb[0].mxu0
      %v3775 = vadd.f32 0.0, %v3774
      %v3776 = vpop.f32.mrb[0].mxu0
      %v3777 = vpop.f32.mrb[0].mxu0
      %v3778 = vadd.f32 0.0, %v3777
      %v3779 = vpop.f32.mrb[0].mxu0
      %3780 = vmatprep.mubr.bf16.mxu0 0
      %3781 = vmatmul.mubr.bf16.gmra.mrb[0].mxu0 %v3643
      %v3782 = vpop.f32.mrb[0].mxu0
      %v3783 = vadd.f32 0.0, %v3782
      %v3784 = vpop.f32.mrb[0].mxu0
      %v3785 = vpop.f32.mrb[0].mxu0
      %v3786 = vadd.f32 0.0, %v3785
      %v3787 = vpop.f32.mrb[0].mxu0
      %3788 = vmatprep.mubr.bf16.mxu0 0
      %3789 = vmatmul.mubr.bf16.gmra.mrb[0].mxu0 %v3646
      %v3790 = vpop.f32.mrb[0].mxu0
      %v3791 = vadd.f32 0.0, %v3790
      %v3792 = vpop.f32.mrb[0].mxu0
      %v3793 = vpop.f32.mrb[0].mxu0
      %v3794 = vadd.f32 0.0, %v3793
      %v3795 = vpop.f32.mrb[0].mxu0
      %3796 = vmatprep.mubr.bf16.mxu0 0
      %3797 = vmatmul.mubr.bf16.gmra.mrb[0].mxu0 %v3649
      %v3798 = vpop.f32.mrb[0].mxu0
      %v3799 = vadd.f32 0.0, %v3798
      %v3800 = vpop.f32.mrb[0].mxu0
      %v3801 = vpop.f32.mrb[0].mxu0
      %v3802 = vadd.f32 0.0, %v3801
      %v3803 = vpop.f32.mrb[0].mxu0
      %3804 = vmatprep.mubr.bf16.mxu0 0
      %3805 = vmatmul.mubr.bf16.gmra.mrb[0].mxu0 %v3652
      %v3806 = vpop.f32.mrb[0].mxu0
      %v3807 = vadd.f32 0.0, %v3806
      %v3808 = vpop.f32.mrb[0].mxu0
      %v3809 = vpop.f32.mrb[0].mxu0
      %v3810 = vadd.f32 0.0, %v3809
      %v3811 = vpop.f32.mrb[0].mxu0
      %3812 = vmatprep.mubr.bf16.mxu0 0
      %3813 = vmatmul.mubr.bf16.gmra.mrb[0].mxu0 %v3655
      %v3814 = vpop.f32.mrb[0].mxu0
      %v3815 = vadd.f32 0.0, %v3814
      %v3816 = vpop.f32.mrb[0].mxu0
      %v3817 = vpop.f32.mrb[0].mxu0
      %v3818 = vadd.f32 0.0, %v3817
      %v3819 = vpop.f32.mrb[0].mxu0
      %3820 = vdwg.mxu0
      %v3821 = vadd.f32 %v3462, %v3695
      %v3822 = vadd.f32 %v3463, %v3698
      %v3823 = vadd.f32 %v3464, %v3703
      %v3824 = vadd.f32 %v3465, %v3706
      %v3825 = vadd.f32 %v3466, %v3711
      %v3826 = vadd.f32 %v3467, %v3714
      %v3827 = vadd.f32 %v3468, %v3719
      %v3828 = vadd.f32 %v3469, %v3722
      %v3829 = vadd.f32 %v3470, %v3727
      %v3830 = vadd.f32 %v3471, %v3730
      %v3831 = vadd.f32 %v3472, %v3735
      %v3832 = vadd.f32 %v3473, %v3738
      %v3833 = vadd.f32 %v3474, %v3743
      %v3834 = vadd.f32 %v3475, %v3746
      %v3835 = vadd.f32 %v3476, %v3751
      %v3836 = vadd.f32 %v3477, %v3754
      %v3837 = vadd.f32 %v3478, %v3759
      %v3838 = vadd.f32 %v3479, %v3762
      %v3839 = vadd.f32 %v3480, %v3767
      %v3840 = vadd.f32 %v3481, %v3770
      %v3841 = vadd.f32 %v3482, %v3775
      %v3842 = vadd.f32 %v3483, %v3778
      %v3843 = vadd.f32 %v3484, %v3783
      %v3844 = vadd.f32 %v3485, %v3786
      %v3845 = vadd.f32 %v3486, %v3791
      %v3846 = vadd.f32 %v3487, %v3794
      %v3847 = vadd.f32 %v3488, %v3799
      %v3848 = vadd.f32 %v3489, %v3802
      %v3849 = vadd.f32 %v3490, %v3807
      %v3850 = vadd.f32 %v3491, %v3810
      %v3851 = vadd.f32 %v3492, %v3815
      %v3852 = vadd.f32 %v3493, %v3818
      %v3853 = vld [vmem:[%s3494] sm:$0xf]
      %v3854 = vld [vmem:[%s3494 + $0x4] sm:$0xf]
      %v3855 = vld [vmem:[%s3494 + $0x8] sm:$0x1]
      %v3856 = vld [vmem:[%s3494 + $0xc] sm:$0xf]
      %v3857 = vld [vmem:[%s3494 + $0x10] sm:$0xf]
      %v3858 = vld [vmem:[%s3494 + $0x14] sm:$0x1]
      %v3859 = vld [vmem:[%s3494 + $0x18] sm:$0xf]
      %v3860 = vld [vmem:[%s3494 + $0x1c] sm:$0xf]
      %v3861 = vld [vmem:[%s3494 + $0x20] sm:$0x1]
      %v3862 = vld [vmem:[%s3494 + $0x24] sm:$0xf]
      %v3863 = vld [vmem:[%s3494 + $0x28] sm:$0xf]
      %v3864 = vld [vmem:[%s3494 + $0x2c] sm:$0x1]
      %v3865 = vld [vmem:[%s3494 + $0x30] sm:$0xf]
      %v3866 = vld [vmem:[%s3494 + $0x34] sm:$0xf]
      %v3867 = vld [vmem:[%s3494 + $0x38] sm:$0x1]
      %v3868 = vld [vmem:[%s3494 + $0x3c] sm:$0xf]
      %v3869 = vld [vmem:[%s3494 + $0x40] sm:$0xf]
      %v3870 = vld [vmem:[%s3494 + $0x44] sm:$0x1]
      %v3871 = vld [vmem:[%s3494 + $0x48] sm:$0xf]
      %v3872 = vld [vmem:[%s3494 + $0x4c] sm:$0xf]
      %v3873 = vld [vmem:[%s3494 + $0x50] sm:$0x1]
      %v3874 = vld [vmem:[%s3494 + $0x54] sm:$0xf]
      %v3875 = vld [vmem:[%s3494 + $0x58] sm:$0xf]
      %v3876 = vld [vmem:[%s3494 + $0x5c] sm:$0x1]
      %v3877 = vld [vmem:[%s3494 + $0x60] sm:$0xf]
      %v3878 = vld [vmem:[%s3494 + $0x64] sm:$0xf]
      %v3879 = vld [vmem:[%s3494 + $0x68] sm:$0x1]
      %v3880 = vld [vmem:[%s3494 + $0x6c] sm:$0xf]
      %v3881 = vld [vmem:[%s3494 + $0x70] sm:$0xf]
      %v3882 = vld [vmem:[%s3494 + $0x74] sm:$0x1]
      %v3883 = vld [vmem:[%s3494 + $0x78] sm:$0xf]
      %v3884 = vld [vmem:[%s3494 + $0x7c] sm:$0xf]
      %v3885 = vld [vmem:[%s3494 + $0x80] sm:$0x1]
      %v3886 = vld [vmem:[%s3494 + $0x84] sm:$0xf]
      %v3887 = vld [vmem:[%s3494 + $0x88] sm:$0xf]
      %v3888 = vld [vmem:[%s3494 + $0x8c] sm:$0x1]
      %v3889 = vld [vmem:[%s3494 + $0x90] sm:$0xf]
      %v3890 = vld [vmem:[%s3494 + $0x94] sm:$0xf]
      %v3891 = vld [vmem:[%s3494 + $0x98] sm:$0x1]
      %v3892 = vld [vmem:[%s3494 + $0x9c] sm:$0xf]
      %v3893 = vld [vmem:[%s3494 + $0xa0] sm:$0xf]
      %v3894 = vld [vmem:[%s3494 + $0xa4] sm:$0x1]
      %v3895 = vld [vmem:[%s3494 + $0xa8] sm:$0xf]
      %v3896 = vld [vmem:[%s3494 + $0xac] sm:$0xf]
      %v3897 = vld [vmem:[%s3494 + $0xb0] sm:$0x1]
      %v3898 = vld [vmem:[%s3494 + $0xb4] sm:$0xf]
      %v3899 = vld [vmem:[%s3494 + $0xb8] sm:$0xf]
      %v3900 = vld [vmem:[%s3494 + $0xbc] sm:$0x1]
      %v3902 = vshrl.u32 %v3853, 16
      %v3904 = vrot.slane %v3902, 4
      %v3905 = vshll.u32 %v3853, 16
      %v3907 = vrot.slane %v3905, 5
      %v3908 = vor.u32 %v3904, %v3907
      %v3909 = vrot.slane %v3908, 4
      %v3911 = vshll.u32 %v3854, 16
      %v3913 = vrot.slane %v3911, 5
      %v3914 = vsel %vm541, %v3909, %v3913
      %v3915 = vshrl.u32 %v3854, 16
      %v3917 = vrot.slane %v3915, 4
      %v3918 = vor.u32 %v3917, %v3913
      %v3919 = vrot.slane %v3918, 4
      %v3921 = vshll.u32 %v3855, 16
      %v3923 = vrot.slane %v3921, 5
      %v3924 = vsel %vm541, %v3919, %v3923
      %v3926 = vshrl.u32 %v3856, 16
      %v3928 = vrot.slane %v3926, 4
      %v3929 = vshll.u32 %v3856, 16
      %v3931 = vrot.slane %v3929, 5
      %v3932 = vor.u32 %v3928, %v3931
      %v3933 = vrot.slane %v3932, 4
      %v3935 = vshll.u32 %v3857, 16
      %v3937 = vrot.slane %v3935, 5
      %v3938 = vsel %vm541, %v3933, %v3937
      %v3939 = vshrl.u32 %v3857, 16
      %v3941 = vrot.slane %v3939, 4
      %v3942 = vor.u32 %v3941, %v3937
      %v3943 = vrot.slane %v3942, 4
      %v3945 = vshll.u32 %v3858, 16
      %v3947 = vrot.slane %v3945, 5
      %v3948 = vsel %vm541, %v3943, %v3947
      %v3950 = vshrl.u32 %v3859, 16
      %v3952 = vrot.slane %v3950, 4
      %v3953 = vshll.u32 %v3859, 16
      %v3955 = vrot.slane %v3953, 5
      %v3956 = vor.u32 %v3952, %v3955
      %v3957 = vrot.slane %v3956, 4
      %v3959 = vshll.u32 %v3860, 16
      %v3961 = vrot.slane %v3959, 5
      %v3962 = vsel %vm541, %v3957, %v3961
      %v3963 = vshrl.u32 %v3860, 16
      %v3965 = vrot.slane %v3963, 4
      %v3966 = vor.u32 %v3965, %v3961
      %v3967 = vrot.slane %v3966, 4
      %v3969 = vshll.u32 %v3861, 16
      %v3971 = vrot.slane %v3969, 5
      %v3972 = vsel %vm541, %v3967, %v3971
      %v3974 = vshrl.u32 %v3862, 16
      %v3976 = vrot.slane %v3974, 4
      %v3977 = vshll.u32 %v3862, 16
      %v3979 = vrot.slane %v3977, 5
      %v3980 = vor.u32 %v3976, %v3979
      %v3981 = vrot.slane %v3980, 4
      %v3983 = vshll.u32 %v3863, 16
      %v3985 = vrot.slane %v3983, 5
      %v3986 = vsel %vm541, %v3981, %v3985
      %v3987 = vshrl.u32 %v3863, 16
      %v3989 = vrot.slane %v3987, 4
      %v3990 = vor.u32 %v3989, %v3985
      %v3991 = vrot.slane %v3990, 4
      %v3993 = vshll.u32 %v3864, 16
      %v3995 = vrot.slane %v3993, 5
      %v3996 = vsel %vm541, %v3991, %v3995
      %v3998 = vshrl.u32 %v3865, 16
      %v4000 = vrot.slane %v3998, 4
      %v4001 = vshll.u32 %v3865, 16
      %v4003 = vrot.slane %v4001, 5
      %v4004 = vor.u32 %v4000, %v4003
      %v4005 = vrot.slane %v4004, 4
      %v4007 = vshll.u32 %v3866, 16
      %v4009 = vrot.slane %v4007, 5
      %v4010 = vsel %vm541, %v4005, %v4009
      %v4011 = vshrl.u32 %v3866, 16
      %v4013 = vrot.slane %v4011, 4
      %v4014 = vor.u32 %v4013, %v4009
      %v4015 = vrot.slane %v4014, 4
      %v4017 = vshll.u32 %v3867, 16
      %v4019 = vrot.slane %v4017, 5
      %v4020 = vsel %vm541, %v4015, %v4019
      %v4022 = vshrl.u32 %v3868, 16
      %v4024 = vrot.slane %v4022, 4
      %v4025 = vshll.u32 %v3868, 16
      %v4027 = vrot.slane %v4025, 5
      %v4028 = vor.u32 %v4024, %v4027
      %v4029 = vrot.slane %v4028, 4
      %v4031 = vshll.u32 %v3869, 16
      %v4033 = vrot.slane %v4031, 5
      %v4034 = vsel %vm541, %v4029, %v4033
      %v4035 = vshrl.u32 %v3869, 16
      %v4037 = vrot.slane %v4035, 4
      %v4038 = vor.u32 %v4037, %v4033
      %v4039 = vrot.slane %v4038, 4
      %v4041 = vshll.u32 %v3870, 16
      %v4043 = vrot.slane %v4041, 5
      %v4044 = vsel %vm541, %v4039, %v4043
      %v4046 = vshrl.u32 %v3871, 16
      %v4048 = vrot.slane %v4046, 4
      %v4049 = vshll.u32 %v3871, 16
      %v4051 = vrot.slane %v4049, 5
      %v4052 = vor.u32 %v4048, %v4051
      %v4053 = vrot.slane %v4052, 4
      %v4055 = vshll.u32 %v3872, 16
      %v4057 = vrot.slane %v4055, 5
      %v4058 = vsel %vm541, %v4053, %v4057
      %v4059 = vshrl.u32 %v3872, 16
      %v4061 = vrot.slane %v4059, 4
      %v4062 = vor.u32 %v4061, %v4057
      %v4063 = vrot.slane %v4062, 4
      %v4065 = vshll.u32 %v3873, 16
      %v4067 = vrot.slane %v4065, 5
      %v4068 = vsel %vm541, %v4063, %v4067
      %v4070 = vshrl.u32 %v3874, 16
      %v4072 = vrot.slane %v4070, 4
      %v4073 = vshll.u32 %v3874, 16
      %v4075 = vrot.slane %v4073, 5
      %v4076 = vor.u32 %v4072, %v4075
      %v4077 = vrot.slane %v4076, 4
      %v4079 = vshll.u32 %v3875, 16
      %v4081 = vrot.slane %v4079, 5
      %v4082 = vsel %vm541, %v4077, %v4081
      %v4083 = vshrl.u32 %v3875, 16
      %v4085 = vrot.slane %v4083, 4
      %v4086 = vor.u32 %v4085, %v4081
      %v4087 = vrot.slane %v4086, 4
      %v4089 = vshll.u32 %v3876, 16
      %v4091 = vrot.slane %v4089, 5
      %v4092 = vsel %vm541, %v4087, %v4091
      %v4094 = vshrl.u32 %v3877, 16
      %v4096 = vrot.slane %v4094, 4
      %v4097 = vshll.u32 %v3877, 16
      %v4099 = vrot.slane %v4097, 5
      %v4100 = vor.u32 %v4096, %v4099
      %v4101 = vrot.slane %v4100, 4
      %v4103 = vshll.u32 %v3878, 16
      %v4105 = vrot.slane %v4103, 5
      %v4106 = vsel %vm541, %v4101, %v4105
      %v4107 = vshrl.u32 %v3878, 16
      %v4109 = vrot.slane %v4107, 4
      %v4110 = vor.u32 %v4109, %v4105
      %v4111 = vrot.slane %v4110, 4
      %v4113 = vshll.u32 %v3879, 16
      %v4115 = vrot.slane %v4113, 5
      %v4116 = vsel %vm541, %v4111, %v4115
      %v4118 = vshrl.u32 %v3880, 16
      %v4120 = vrot.slane %v4118, 4
      %v4121 = vshll.u32 %v3880, 16
      %v4123 = vrot.slane %v4121, 5
      %v4124 = vor.u32 %v4120, %v4123
      %v4125 = vrot.slane %v4124, 4
      %v4127 = vshll.u32 %v3881, 16
      %v4129 = vrot.slane %v4127, 5
      %v4130 = vsel %vm541, %v4125, %v4129
      %v4131 = vshrl.u32 %v3881, 16
      %v4133 = vrot.slane %v4131, 4
      %v4134 = vor.u32 %v4133, %v4129
      %v4135 = vrot.slane %v4134, 4
      %v4137 = vshll.u32 %v3882, 16
      %v4139 = vrot.slane %v4137, 5
      %v4140 = vsel %vm541, %v4135, %v4139
      %v4142 = vshrl.u32 %v3883, 16
      %v4144 = vrot.slane %v4142, 4
      %v4145 = vshll.u32 %v3883, 16
      %v4147 = vrot.slane %v4145, 5
      %v4148 = vor.u32 %v4144, %v4147
      %v4149 = vrot.slane %v4148, 4
      %v4151 = vshll.u32 %v3884, 16
      %v4153 = vrot.slane %v4151, 5
      %v4154 = vsel %vm541, %v4149, %v4153
      %v4155 = vshrl.u32 %v3884, 16
      %v4157 = vrot.slane %v4155, 4
      %v4158 = vor.u32 %v4157, %v4153
      %v4159 = vrot.slane %v4158, 4
      %v4161 = vshll.u32 %v3885, 16
      %v4163 = vrot.slane %v4161, 5
      %v4164 = vsel %vm541, %v4159, %v4163
      %v4166 = vshrl.u32 %v3886, 16
      %v4168 = vrot.slane %v4166, 4
      %v4169 = vshll.u32 %v3886, 16
      %v4171 = vrot.slane %v4169, 5
      %v4172 = vor.u32 %v4168, %v4171
      %v4173 = vrot.slane %v4172, 4
      %v4175 = vshll.u32 %v3887, 16
      %v4177 = vrot.slane %v4175, 5
      %v4178 = vsel %vm541, %v4173, %v4177
      %v4179 = vshrl.u32 %v3887, 16
      %v4181 = vrot.slane %v4179, 4
      %v4182 = vor.u32 %v4181, %v4177
      %v4183 = vrot.slane %v4182, 4
      %v4185 = vshll.u32 %v3888, 16
      %v4187 = vrot.slane %v4185, 5
      %v4188 = vsel %vm541, %v4183, %v4187
      %v4190 = vshrl.u32 %v3889, 16
      %v4192 = vrot.slane %v4190, 4
      %v4193 = vshll.u32 %v3889, 16
      %v4195 = vrot.slane %v4193, 5
      %v4196 = vor.u32 %v4192, %v4195
      %v4197 = vrot.slane %v4196, 4
      %v4199 = vshll.u32 %v3890, 16
      %v4201 = vrot.slane %v4199, 5
      %v4202 = vsel %vm541, %v4197, %v4201
      %v4203 = vshrl.u32 %v3890, 16
      %v4205 = vrot.slane %v4203, 4
      %v4206 = vor.u32 %v4205, %v4201
      %v4207 = vrot.slane %v4206, 4
      %v4209 = vshll.u32 %v3891, 16
      %v4211 = vrot.slane %v4209, 5
      %v4212 = vsel %vm541, %v4207, %v4211
      %v4214 = vshrl.u32 %v3892, 16
      %v4216 = vrot.slane %v4214, 4
      %v4217 = vshll.u32 %v3892, 16
      %v4219 = vrot.slane %v4217, 5
      %v4220 = vor.u32 %v4216, %v4219
      %v4221 = vrot.slane %v4220, 4
      %v4223 = vshll.u32 %v3893, 16
      %v4225 = vrot.slane %v4223, 5
      %v4226 = vsel %vm541, %v4221, %v4225
      %v4227 = vshrl.u32 %v3893, 16
      %v4229 = vrot.slane %v4227, 4
      %v4230 = vor.u32 %v4229, %v4225
      %v4231 = vrot.slane %v4230, 4
      %v4233 = vshll.u32 %v3894, 16
      %v4235 = vrot.slane %v4233, 5
      %v4236 = vsel %vm541, %v4231, %v4235
      %v4238 = vshrl.u32 %v3895, 16
      %v4240 = vrot.slane %v4238, 4
      %v4241 = vshll.u32 %v3895, 16
      %v4243 = vrot.slane %v4241, 5
      %v4244 = vor.u32 %v4240, %v4243
      %v4245 = vrot.slane %v4244, 4
      %v4247 = vshll.u32 %v3896, 16
      %v4249 = vrot.slane %v4247, 5
      %v4250 = vsel %vm541, %v4245, %v4249
      %v4251 = vshrl.u32 %v3896, 16
      %v4253 = vrot.slane %v4251, 4
      %v4254 = vor.u32 %v4253, %v4249
      %v4255 = vrot.slane %v4254, 4
      %v4257 = vshll.u32 %v3897, 16
      %v4259 = vrot.slane %v4257, 5
      %v4260 = vsel %vm541, %v4255, %v4259
      %v4262 = vshrl.u32 %v3898, 16
      %v4264 = vrot.slane %v4262, 4
      %v4265 = vshll.u32 %v3898, 16
      %v4267 = vrot.slane %v4265, 5
      %v4268 = vor.u32 %v4264, %v4267
      %v4269 = vrot.slane %v4268, 4
      %v4271 = vshll.u32 %v3899, 16
      %v4273 = vrot.slane %v4271, 5
      %v4274 = vsel %vm541, %v4269, %v4273
      %v4275 = vshrl.u32 %v3899, 16
      %v4277 = vrot.slane %v4275, 4
      %v4278 = vor.u32 %v4277, %v4273
      %v4279 = vrot.slane %v4278, 4
      %v4281 = vshll.u32 %v3900, 16
      %v4283 = vrot.slane %v4281, 5
      %v4284 = vsel %vm541, %v4279, %v4283
      %s4285 = scalar_lea.vmem %s2, 14
      %v4286 = vld [vmem:[%s4285] sm:$0x3]
      %v4287 = vunpack.c.l.b16 %v3914
      %v4288 = vunpack.c.l.b16 %v3924
      %v4289 = vunpack.c.l.b16 %v3938
      %v4290 = vunpack.c.l.b16 %v3948
      %v4291 = vunpack.c.l.b16 %v3962
      %v4292 = vunpack.c.l.b16 %v3972
      %v4293 = vunpack.c.l.b16 %v3986
      %v4294 = vunpack.c.l.b16 %v3996
      %v4295 = vunpack.c.l.b16 %v4010
      %v4296 = vunpack.c.l.b16 %v4020
      %v4297 = vunpack.c.l.b16 %v4034
      %v4298 = vunpack.c.l.b16 %v4044
      %v4299 = vunpack.c.l.b16 %v4058
      %v4300 = vunpack.c.l.b16 %v4068
      %v4301 = vunpack.c.l.b16 %v4082
      %v4302 = vunpack.c.l.b16 %v4092
      %v4303 = vunpack.c.l.b16 %v4106
      %v4304 = vunpack.c.l.b16 %v4116
      %v4305 = vunpack.c.l.b16 %v4130
      %v4306 = vunpack.c.l.b16 %v4140
      %v4307 = vunpack.c.l.b16 %v4154
      %v4308 = vunpack.c.l.b16 %v4164
      %v4309 = vunpack.c.l.b16 %v4178
      %v4310 = vunpack.c.l.b16 %v4188
      %v4311 = vunpack.c.l.b16 %v4202
      %v4312 = vunpack.c.l.b16 %v4212
      %v4313 = vunpack.c.l.b16 %v4226
      %v4314 = vunpack.c.l.b16 %v4236
      %v4315 = vunpack.c.l.b16 %v4250
      %v4316 = vunpack.c.l.b16 %v4260
      %v4317 = vunpack.c.l.b16 %v4274
      %v4318 = vunpack.c.l.b16 %v4284
      %v4319 = vpack.c.b16 %v4288, %v4287
      %v4320 = vpack.c.b16 %v4290, %v4289
      %v4321 = vpack.c.b16 %v4292, %v4291
      %v4322 = vpack.c.b16 %v4294, %v4293
      %v4323 = vpack.c.b16 %v4296, %v4295
      %v4324 = vpack.c.b16 %v4298, %v4297
      %v4325 = vpack.c.b16 %v4300, %v4299
      %v4326 = vpack.c.b16 %v4302, %v4301
      %v4327 = vpack.c.b16 %v4304, %v4303
      %v4328 = vpack.c.b16 %v4306, %v4305
      %v4329 = vpack.c.b16 %v4308, %v4307
      %v4330 = vpack.c.b16 %v4310, %v4309
      %v4331 = vpack.c.b16 %v4312, %v4311
      %v4332 = vpack.c.b16 %v4314, %v4313
      %v4333 = vpack.c.b16 %v4316, %v4315
      %v4334 = vpack.c.b16 %v4318, %v4317
      %v4336 = vsel %vm976, %v4319, 0
      %v4339 = vsel %vm976, %v4320, 0
      %v4342 = vsel %vm976, %v4321, 0
      %v4345 = vsel %vm976, %v4322, 0
      %v4348 = vsel %vm976, %v4323, 0
      %v4351 = vsel %vm976, %v4324, 0
      %v4354 = vsel %vm976, %v4325, 0
      %v4357 = vsel %vm976, %v4326, 0
      %v4360 = vsel %vm976, %v4327, 0
      %v4363 = vsel %vm976, %v4328, 0
      %v4366 = vsel %vm976, %v4329, 0
      %v4369 = vsel %vm976, %v4330, 0
      %v4372 = vsel %vm976, %v4331, 0
      %v4375 = vsel %vm976, %v4332, 0
      %v4378 = vsel %vm976, %v4333, 0
      %v4381 = vsel %vm976, %v4334, 0
      %v4384 = vsel %vm1025, %v4286, 0
      %4386 = vmatprep.subr.bf16.mxu0 0
      %4387 = vmatpush1.bf16.msra.mxu0 %v4384
      %4388 = vmatprep.subr.bf16.mxu0 0
      %4389 = vmatpush1.bf16.msra.mxu0 0
      %4390 = vmatprep.subr.bf16.mxu0 0
      %4391 = vmatpush1.bf16.msra.mxu0 0
      %4392 = vmatprep.subr.bf16.mxu0 0
      %4393 = vmatpush1.bf16.msra.mxu0 0
      %4394 = vmatprep.subr.bf16.mxu0 0
      %4395 = vmatpush1.bf16.msra.mxu0 0
      %4396 = vmatprep.subr.bf16.mxu0 0
      %4397 = vmatpush1.bf16.msra.mxu0 0
      %4398 = vmatprep.subr.bf16.mxu0 0
      %4399 = vmatpush1.bf16.msra.mxu0 0
      %4400 = vmatprep.subr.bf16.mxu0 0
      %4401 = vmatpush1.bf16.msra.mxu0 0
      %4402 = vmatprep.subr.bf16.mxu0 0
      %4403 = vmatpush1.bf16.msra.mxu0 0
      %4404 = vmatprep.subr.bf16.mxu0 0
      %4405 = vmatpush1.bf16.msra.mxu0 0
      %4406 = vmatprep.subr.bf16.mxu0 0
      %4407 = vmatpush1.bf16.msra.mxu0 0
      %4408 = vmatprep.subr.bf16.mxu0 0
      %4409 = vmatpush1.bf16.msra.mxu0 0
      %4410 = vmatprep.subr.bf16.mxu0 0
      %4411 = vmatpush1.bf16.msra.mxu0 0
      %4412 = vmatprep.subr.bf16.mxu0 0
      %4413 = vmatpush1.bf16.msra.mxu0 0
      %4414 = vmatprep.subr.bf16.mxu0 0
      %4415 = vmatpush1.bf16.msra.mxu0 0
      %4416 = vmatprep.subr.bf16.mxu0 0
      %4417 = vmatpush1.bf16.msra.mxu0 0
      %4418 = vmatprep.mubr.bf16.mxu0 0
      %4419 = vmatmul.mubr.bf16.gmra.mrb[0].mxu0 %v4336
      %v4420 = vpop.f32.mrb[0].mxu0
      %v4421 = vadd.f32 0.0, %v4420
      %v4422 = vpop.f32.mrb[0].mxu0
      %v4423 = vpop.f32.mrb[0].mxu0
      %v4424 = vadd.f32 0.0, %v4423
      %v4425 = vpop.f32.mrb[0].mxu0
      %4426 = vmatprep.mubr.bf16.mxu0 0
      %4427 = vmatmul.mubr.bf16.gmra.mrb[0].mxu0 %v4339
      %v4428 = vpop.f32.mrb[0].mxu0
      %v4429 = vadd.f32 0.0, %v4428
      %v4430 = vpop.f32.mrb[0].mxu0
      %v4431 = vpop.f32.mrb[0].mxu0
      %v4432 = vadd.f32 0.0, %v4431
      %v4433 = vpop.f32.mrb[0].mxu0
      %4434 = vmatprep.mubr.bf16.mxu0 0
      %4435 = vmatmul.mubr.bf16.gmra.mrb[0].mxu0 %v4342
      %v4436 = vpop.f32.mrb[0].mxu0
      %v4437 = vadd.f32 0.0, %v4436
      %v4438 = vpop.f32.mrb[0].mxu0
      %v4439 = vpop.f32.mrb[0].mxu0
      %v4440 = vadd.f32 0.0, %v4439
      %v4441 = vpop.f32.mrb[0].mxu0
      %4442 = vmatprep.mubr.bf16.mxu0 0
      %4443 = vmatmul.mubr.bf16.gmra.mrb[0].mxu0 %v4345
      %v4444 = vpop.f32.mrb[0].mxu0
      %v4445 = vadd.f32 0.0, %v4444
      %v4446 = vpop.f32.mrb[0].mxu0
      %v4447 = vpop.f32.mrb[0].mxu0
      %v4448 = vadd.f32 0.0, %v4447
      %v4449 = vpop.f32.mrb[0].mxu0
      %4450 = vmatprep.mubr.bf16.mxu0 0
      %4451 = vmatmul.mubr.bf16.gmra.mrb[0].mxu0 %v4348
      %v4452 = vpop.f32.mrb[0].mxu0
      %v4453 = vadd.f32 0.0, %v4452
      %v4454 = vpop.f32.mrb[0].mxu0
      %v4455 = vpop.f32.mrb[0].mxu0
      %v4456 = vadd.f32 0.0, %v4455
      %v4457 = vpop.f32.mrb[0].mxu0
      %4458 = vmatprep.mubr.bf16.mxu0 0
      %4459 = vmatmul.mubr.bf16.gmra.mrb[0].mxu0 %v4351
      %v4460 = vpop.f32.mrb[0].mxu0
      %v4461 = vadd.f32 0.0, %v4460
      %v4462 = vpop.f32.mrb[0].mxu0
      %v4463 = vpop.f32.mrb[0].mxu0
      %v4464 = vadd.f32 0.0, %v4463
      %v4465 = vpop.f32.mrb[0].mxu0
      %4466 = vmatprep.mubr.bf16.mxu0 0
      %4467 = vmatmul.mubr.bf16.gmra.mrb[0].mxu0 %v4354
      %v4468 = vpop.f32.mrb[0].mxu0
      %v4469 = vadd.f32 0.0, %v4468
      %v4470 = vpop.f32.mrb[0].mxu0
      %v4471 = vpop.f32.mrb[0].mxu0
      %v4472 = vadd.f32 0.0, %v4471
      %v4473 = vpop.f32.mrb[0].mxu0
      %4474 = vmatprep.mubr.bf16.mxu0 0
      %4475 = vmatmul.mubr.bf16.gmra.mrb[0].mxu0 %v4357
      %v4476 = vpop.f32.mrb[0].mxu0
      %v4477 = vadd.f32 0.0, %v4476
      %v4478 = vpop.f32.mrb[0].mxu0
      %v4479 = vpop.f32.mrb[0].mxu0
      %v4480 = vadd.f32 0.0, %v4479
      %v4481 = vpop.f32.mrb[0].mxu0
      %4482 = vmatprep.mubr.bf16.mxu0 0
      %4483 = vmatmul.mubr.bf16.gmra.mrb[0].mxu0 %v4360
      %v4484 = vpop.f32.mrb[0].mxu0
      %v4485 = vadd.f32 0.0, %v4484
      %v4486 = vpop.f32.mrb[0].mxu0
      %v4487 = vpop.f32.mrb[0].mxu0
      %v4488 = vadd.f32 0.0, %v4487
      %v4489 = vpop.f32.mrb[0].mxu0
      %4490 = vmatprep.mubr.bf16.mxu0 0
      %4491 = vmatmul.mubr.bf16.gmra.mrb[0].mxu0 %v4363
      %v4492 = vpop.f32.mrb[0].mxu0
      %v4493 = vadd.f32 0.0, %v4492
      %v4494 = vpop.f32.mrb[0].mxu0
      %v4495 = vpop.f32.mrb[0].mxu0
      %v4496 = vadd.f32 0.0, %v4495
      %v4497 = vpop.f32.mrb[0].mxu0
      %4498 = vmatprep.mubr.bf16.mxu0 0
      %4499 = vmatmul.mubr.bf16.gmra.mrb[0].mxu0 %v4366
      %v4500 = vpop.f32.mrb[0].mxu0
      %v4501 = vadd.f32 0.0, %v4500
      %v4502 = vpop.f32.mrb[0].mxu0
      %v4503 = vpop.f32.mrb[0].mxu0
      %v4504 = vadd.f32 0.0, %v4503
      %v4505 = vpop.f32.mrb[0].mxu0
      %4506 = vmatprep.mubr.bf16.mxu0 0
      %4507 = vmatmul.mubr.bf16.gmra.mrb[0].mxu0 %v4369
      %v4508 = vpop.f32.mrb[0].mxu0
      %v4509 = vadd.f32 0.0, %v4508
      %v4510 = vpop.f32.mrb[0].mxu0
      %v4511 = vpop.f32.mrb[0].mxu0
      %v4512 = vadd.f32 0.0, %v4511
      %v4513 = vpop.f32.mrb[0].mxu0
      %4514 = vmatprep.mubr.bf16.mxu0 0
      %4515 = vmatmul.mubr.bf16.gmra.mrb[0].mxu0 %v4372
      %v4516 = vpop.f32.mrb[0].mxu0
      %v4517 = vadd.f32 0.0, %v4516
      %v4518 = vpop.f32.mrb[0].mxu0
      %v4519 = vpop.f32.mrb[0].mxu0
      %v4520 = vadd.f32 0.0, %v4519
      %v4521 = vpop.f32.mrb[0].mxu0
      %4522 = vmatprep.mubr.bf16.mxu0 0
      %4523 = vmatmul.mubr.bf16.gmra.mrb[0].mxu0 %v4375
      %v4524 = vpop.f32.mrb[0].mxu0
      %v4525 = vadd.f32 0.0, %v4524
      %v4526 = vpop.f32.mrb[0].mxu0
      %v4527 = vpop.f32.mrb[0].mxu0
      %v4528 = vadd.f32 0.0, %v4527
      %v4529 = vpop.f32.mrb[0].mxu0
      %4530 = vmatprep.mubr.bf16.mxu0 0
      %4531 = vmatmul.mubr.bf16.gmra.mrb[0].mxu0 %v4378
      %v4532 = vpop.f32.mrb[0].mxu0
      %v4533 = vadd.f32 0.0, %v4532
      %v4534 = vpop.f32.mrb[0].mxu0
      %v4535 = vpop.f32.mrb[0].mxu0
      %v4536 = vadd.f32 0.0, %v4535
      %v4537 = vpop.f32.mrb[0].mxu0
      %4538 = vmatprep.mubr.bf16.mxu0 0
      %4539 = vmatmul.mubr.bf16.gmra.mrb[0].mxu0 %v4381
      %v4540 = vpop.f32.mrb[0].mxu0
      %v4541 = vadd.f32 0.0, %v4540
      %v4542 = vpop.f32.mrb[0].mxu0
      %v4543 = vpop.f32.mrb[0].mxu0
      %v4544 = vadd.f32 0.0, %v4543
      %v4545 = vpop.f32.mrb[0].mxu0
      %4546 = vdwg.mxu0
      %v4547 = vadd.f32 %v3821, %v4421
      %v4548 = vadd.f32 %v3822, %v4424
      %v4549 = vadd.f32 %v3823, %v4429
      %v4550 = vadd.f32 %v3824, %v4432
      %v4551 = vadd.f32 %v3825, %v4437
      %v4552 = vadd.f32 %v3826, %v4440
      %v4553 = vadd.f32 %v3827, %v4445
      %v4554 = vadd.f32 %v3828, %v4448
      %v4555 = vadd.f32 %v3829, %v4453
      %v4556 = vadd.f32 %v3830, %v4456
      %v4557 = vadd.f32 %v3831, %v4461
      %v4558 = vadd.f32 %v3832, %v4464
      %v4559 = vadd.f32 %v3833, %v4469
      %v4560 = vadd.f32 %v3834, %v4472
      %v4561 = vadd.f32 %v3835, %v4477
      %v4562 = vadd.f32 %v3836, %v4480
      %v4563 = vadd.f32 %v3837, %v4485
      %v4564 = vadd.f32 %v3838, %v4488
      %v4565 = vadd.f32 %v3839, %v4493
      %v4566 = vadd.f32 %v3840, %v4496
      %v4567 = vadd.f32 %v3841, %v4501
      %v4568 = vadd.f32 %v3842, %v4504
      %v4569 = vadd.f32 %v3843, %v4509
      %v4570 = vadd.f32 %v3844, %v4512
      %v4571 = vadd.f32 %v3845, %v4517
      %v4572 = vadd.f32 %v3846, %v4520
      %v4573 = vadd.f32 %v3847, %v4525
      %v4574 = vadd.f32 %v3848, %v4528
      %v4575 = vadd.f32 %v3849, %v4533
      %v4576 = vadd.f32 %v3850, %v4536
      %v4577 = vadd.f32 %v3851, %v4541
      %v4578 = vadd.f32 %v3852, %v4544
      %v4579 = vld [vmem:[%s3494] sm:$0xe]
      %v4580 = vld [vmem:[%s3494 + $0xc] sm:$0xe]
      %v4581 = vld [vmem:[%s3494 + $0x18] sm:$0xe]
      %v4582 = vld [vmem:[%s3494 + $0x24] sm:$0xe]
      %v4583 = vld [vmem:[%s3494 + $0x30] sm:$0xe]
      %v4584 = vld [vmem:[%s3494 + $0x3c] sm:$0xe]
      %v4585 = vld [vmem:[%s3494 + $0x48] sm:$0xe]
      %v4586 = vld [vmem:[%s3494 + $0x54] sm:$0xe]
      %v4587 = vld [vmem:[%s3494 + $0x60] sm:$0xe]
      %v4588 = vld [vmem:[%s3494 + $0x6c] sm:$0xe]
      %v4589 = vld [vmem:[%s3494 + $0x78] sm:$0xe]
      %v4590 = vld [vmem:[%s3494 + $0x84] sm:$0xe]
      %v4591 = vld [vmem:[%s3494 + $0x90] sm:$0xe]
      %v4592 = vld [vmem:[%s3494 + $0x9c] sm:$0xe]
      %v4593 = vld [vmem:[%s3494 + $0xa8] sm:$0xe]
      %v4594 = vld [vmem:[%s3494 + $0xb4] sm:$0xe]
      %v4643 = vrot.slane %v4579, 5
      %v4644 = vrot.slane %v4643, 4
      %v4645 = vrot.slane %v3854, 5
      %v4646 = vsel %vm1532, %v4644, %v4645
      %v4647 = vrot.slane %v4645, 4
      %v4648 = vrot.slane %v3855, 5
      %v4649 = vsel %vm1532, %v4647, %v4648
      %v4650 = vrot.slane %v4580, 5
      %v4651 = vrot.slane %v4650, 4
      %v4652 = vrot.slane %v3857, 5
      %v4653 = vsel %vm1532, %v4651, %v4652
      %v4654 = vrot.slane %v4652, 4
      %v4655 = vrot.slane %v3858, 5
      %v4656 = vsel %vm1532, %v4654, %v4655
      %v4657 = vrot.slane %v4581, 5
      %v4658 = vrot.slane %v4657, 4
      %v4659 = vrot.slane %v3860, 5
      %v4660 = vsel %vm1532, %v4658, %v4659
      %v4661 = vrot.slane %v4659, 4
      %v4662 = vrot.slane %v3861, 5
      %v4663 = vsel %vm1532, %v4661, %v4662
      %v4664 = vrot.slane %v4582, 5
      %v4665 = vrot.slane %v4664, 4
      %v4666 = vrot.slane %v3863, 5
      %v4667 = vsel %vm1532, %v4665, %v4666
      %v4668 = vrot.slane %v4666, 4
      %v4669 = vrot.slane %v3864, 5
      %v4670 = vsel %vm1532, %v4668, %v4669
      %v4671 = vrot.slane %v4583, 5
      %v4672 = vrot.slane %v4671, 4
      %v4673 = vrot.slane %v3866, 5
      %v4674 = vsel %vm1532, %v4672, %v4673
      %v4675 = vrot.slane %v4673, 4
      %v4676 = vrot.slane %v3867, 5
      %v4677 = vsel %vm1532, %v4675, %v4676
      %v4678 = vrot.slane %v4584, 5
      %v4679 = vrot.slane %v4678, 4
      %v4680 = vrot.slane %v3869, 5
      %v4681 = vsel %vm1532, %v4679, %v4680
      %v4682 = vrot.slane %v4680, 4
      %v4683 = vrot.slane %v3870, 5
      %v4684 = vsel %vm1532, %v4682, %v4683
      %v4685 = vrot.slane %v4585, 5
      %v4686 = vrot.slane %v4685, 4
      %v4687 = vrot.slane %v3872, 5
      %v4688 = vsel %vm1532, %v4686, %v4687
      %v4689 = vrot.slane %v4687, 4
      %v4690 = vrot.slane %v3873, 5
      %v4691 = vsel %vm1532, %v4689, %v4690
      %v4692 = vrot.slane %v4586, 5
      %v4693 = vrot.slane %v4692, 4
      %v4694 = vrot.slane %v3875, 5
      %v4695 = vsel %vm1532, %v4693, %v4694
      %v4696 = vrot.slane %v4694, 4
      %v4697 = vrot.slane %v3876, 5
      %v4698 = vsel %vm1532, %v4696, %v4697
      %v4699 = vrot.slane %v4587, 5
      %v4700 = vrot.slane %v4699, 4
      %v4701 = vrot.slane %v3878, 5
      %v4702 = vsel %vm1532, %v4700, %v4701
      %v4703 = vrot.slane %v4701, 4
      %v4704 = vrot.slane %v3879, 5
      %v4705 = vsel %vm1532, %v4703, %v4704
      %v4706 = vrot.slane %v4588, 5
      %v4707 = vrot.slane %v4706, 4
      %v4708 = vrot.slane %v3881, 5
      %v4709 = vsel %vm1532, %v4707, %v4708
      %v4710 = vrot.slane %v4708, 4
      %v4711 = vrot.slane %v3882, 5
      %v4712 = vsel %vm1532, %v4710, %v4711
      %v4713 = vrot.slane %v4589, 5
      %v4714 = vrot.slane %v4713, 4
      %v4715 = vrot.slane %v3884, 5
      %v4716 = vsel %vm1532, %v4714, %v4715
      %v4717 = vrot.slane %v4715, 4
      %v4718 = vrot.slane %v3885, 5
      %v4719 = vsel %vm1532, %v4717, %v4718
      %v4720 = vrot.slane %v4590, 5
      %v4721 = vrot.slane %v4720, 4
      %v4722 = vrot.slane %v3887, 5
      %v4723 = vsel %vm1532, %v4721, %v4722
      %v4724 = vrot.slane %v4722, 4
      %v4725 = vrot.slane %v3888, 5
      %v4726 = vsel %vm1532, %v4724, %v4725
      %v4727 = vrot.slane %v4591, 5
      %v4728 = vrot.slane %v4727, 4
      %v4729 = vrot.slane %v3890, 5
      %v4730 = vsel %vm1532, %v4728, %v4729
      %v4731 = vrot.slane %v4729, 4
      %v4732 = vrot.slane %v3891, 5
      %v4733 = vsel %vm1532, %v4731, %v4732
      %v4734 = vrot.slane %v4592, 5
      %v4735 = vrot.slane %v4734, 4
      %v4736 = vrot.slane %v3893, 5
      %v4737 = vsel %vm1532, %v4735, %v4736
      %v4738 = vrot.slane %v4736, 4
      %v4739 = vrot.slane %v3894, 5
      %v4740 = vsel %vm1532, %v4738, %v4739
      %v4741 = vrot.slane %v4593, 5
      %v4742 = vrot.slane %v4741, 4
      %v4743 = vrot.slane %v3896, 5
      %v4744 = vsel %vm1532, %v4742, %v4743
      %v4745 = vrot.slane %v4743, 4
      %v4746 = vrot.slane %v3897, 5
      %v4747 = vsel %vm1532, %v4745, %v4746
      %v4748 = vrot.slane %v4594, 5
      %v4749 = vrot.slane %v4748, 4
      %v4750 = vrot.slane %v3899, 5
      %v4751 = vsel %vm1532, %v4749, %v4750
      %v4752 = vrot.slane %v4750, 4
      %v4753 = vrot.slane %v3900, 5
      %v4754 = vsel %vm1532, %v4752, %v4753
      %s4755 = scalar_lea.vmem %s2, 16
      %v4756 = vld [vmem:[%s4755] sm:$0x3]
      %v4757 = vunpack.c.l.b16 %v4646
      %v4758 = vunpack.c.l.b16 %v4649
      %v4759 = vunpack.c.l.b16 %v4653
      %v4760 = vunpack.c.l.b16 %v4656
      %v4761 = vunpack.c.l.b16 %v4660
      %v4762 = vunpack.c.l.b16 %v4663
      %v4763 = vunpack.c.l.b16 %v4667
      %v4764 = vunpack.c.l.b16 %v4670
      %v4765 = vunpack.c.l.b16 %v4674
      %v4766 = vunpack.c.l.b16 %v4677
      %v4767 = vunpack.c.l.b16 %v4681
      %v4768 = vunpack.c.l.b16 %v4684
      %v4769 = vunpack.c.l.b16 %v4688
      %v4770 = vunpack.c.l.b16 %v4691
      %v4771 = vunpack.c.l.b16 %v4695
      %v4772 = vunpack.c.l.b16 %v4698
      %v4773 = vunpack.c.l.b16 %v4702
      %v4774 = vunpack.c.l.b16 %v4705
      %v4775 = vunpack.c.l.b16 %v4709
      %v4776 = vunpack.c.l.b16 %v4712
      %v4777 = vunpack.c.l.b16 %v4716
      %v4778 = vunpack.c.l.b16 %v4719
      %v4779 = vunpack.c.l.b16 %v4723
      %v4780 = vunpack.c.l.b16 %v4726
      %v4781 = vunpack.c.l.b16 %v4730
      %v4782 = vunpack.c.l.b16 %v4733
      %v4783 = vunpack.c.l.b16 %v4737
      %v4784 = vunpack.c.l.b16 %v4740
      %v4785 = vunpack.c.l.b16 %v4744
      %v4786 = vunpack.c.l.b16 %v4747
      %v4787 = vunpack.c.l.b16 %v4751
      %v4788 = vunpack.c.l.b16 %v4754
      %v4789 = vpack.c.b16 %v4758, %v4757
      %v4790 = vpack.c.b16 %v4760, %v4759
      %v4791 = vpack.c.b16 %v4762, %v4761
      %v4792 = vpack.c.b16 %v4764, %v4763
      %v4793 = vpack.c.b16 %v4766, %v4765
      %v4794 = vpack.c.b16 %v4768, %v4767
      %v4795 = vpack.c.b16 %v4770, %v4769
      %v4796 = vpack.c.b16 %v4772, %v4771
      %v4797 = vpack.c.b16 %v4774, %v4773
      %v4798 = vpack.c.b16 %v4776, %v4775
      %v4799 = vpack.c.b16 %v4778, %v4777
      %v4800 = vpack.c.b16 %v4780, %v4779
      %v4801 = vpack.c.b16 %v4782, %v4781
      %v4802 = vpack.c.b16 %v4784, %v4783
      %v4803 = vpack.c.b16 %v4786, %v4785
      %v4804 = vpack.c.b16 %v4788, %v4787
      %v4806 = vsel %vm976, %v4789, 0
      %v4809 = vsel %vm976, %v4790, 0
      %v4812 = vsel %vm976, %v4791, 0
      %v4815 = vsel %vm976, %v4792, 0
      %v4818 = vsel %vm976, %v4793, 0
      %v4821 = vsel %vm976, %v4794, 0
      %v4824 = vsel %vm976, %v4795, 0
      %v4827 = vsel %vm976, %v4796, 0
      %v4830 = vsel %vm976, %v4797, 0
      %v4833 = vsel %vm976, %v4798, 0
      %v4836 = vsel %vm976, %v4799, 0
      %v4839 = vsel %vm976, %v4800, 0
      %v4842 = vsel %vm976, %v4801, 0
      %v4845 = vsel %vm976, %v4802, 0
      %v4848 = vsel %vm976, %v4803, 0
      %v4851 = vsel %vm976, %v4804, 0
      %v4854 = vsel %vm1025, %v4756, 0
      %4856 = vmatprep.subr.bf16.mxu0 0
      %4857 = vmatpush1.bf16.msra.mxu0 %v4854
      %4858 = vmatprep.subr.bf16.mxu0 0
      %4859 = vmatpush1.bf16.msra.mxu0 0
      %4860 = vmatprep.subr.bf16.mxu0 0
      %4861 = vmatpush1.bf16.msra.mxu0 0
      %4862 = vmatprep.subr.bf16.mxu0 0
      %4863 = vmatpush1.bf16.msra.mxu0 0
      %4864 = vmatprep.subr.bf16.mxu0 0
      %4865 = vmatpush1.bf16.msra.mxu0 0
      %4866 = vmatprep.subr.bf16.mxu0 0
      %4867 = vmatpush1.bf16.msra.mxu0 0
      %4868 = vmatprep.subr.bf16.mxu0 0
      %4869 = vmatpush1.bf16.msra.mxu0 0
      %4870 = vmatprep.subr.bf16.mxu0 0
      %4871 = vmatpush1.bf16.msra.mxu0 0
      %4872 = vmatprep.subr.bf16.mxu0 0
      %4873 = vmatpush1.bf16.msra.mxu0 0
      %4874 = vmatprep.subr.bf16.mxu0 0
      %4875 = vmatpush1.bf16.msra.mxu0 0
      %4876 = vmatprep.subr.bf16.mxu0 0
      %4877 = vmatpush1.bf16.msra.mxu0 0
      %4878 = vmatprep.subr.bf16.mxu0 0
      %4879 = vmatpush1.bf16.msra.mxu0 0
      %4880 = vmatprep.subr.bf16.mxu0 0
      %4881 = vmatpush1.bf16.msra.mxu0 0
      %4882 = vmatprep.subr.bf16.mxu0 0
      %4883 = vmatpush1.bf16.msra.mxu0 0
      %4884 = vmatprep.subr.bf16.mxu0 0
      %4885 = vmatpush1.bf16.msra.mxu0 0
      %4886 = vmatprep.subr.bf16.mxu0 0
      %4887 = vmatpush1.bf16.msra.mxu0 0
      %4888 = vmatprep.mubr.bf16.mxu0 0
      %4889 = vmatmul.mubr.bf16.gmra.mrb[0].mxu0 %v4806
      %v4890 = vpop.f32.mrb[0].mxu0
      %v4891 = vadd.f32 0.0, %v4890
      %v4892 = vpop.f32.mrb[0].mxu0
      %v4893 = vpop.f32.mrb[0].mxu0
      %v4894 = vadd.f32 0.0, %v4893
      %v4895 = vpop.f32.mrb[0].mxu0
      %4896 = vmatprep.mubr.bf16.mxu0 0
      %4897 = vmatmul.mubr.bf16.gmra.mrb[0].mxu0 %v4809
      %v4898 = vpop.f32.mrb[0].mxu0
      %v4899 = vadd.f32 0.0, %v4898
      %v4900 = vpop.f32.mrb[0].mxu0
      %v4901 = vpop.f32.mrb[0].mxu0
      %v4902 = vadd.f32 0.0, %v4901
      %v4903 = vpop.f32.mrb[0].mxu0
      %4904 = vmatprep.mubr.bf16.mxu0 0
      %4905 = vmatmul.mubr.bf16.gmra.mrb[0].mxu0 %v4812
      %v4906 = vpop.f32.mrb[0].mxu0
      %v4907 = vadd.f32 0.0, %v4906
      %v4908 = vpop.f32.mrb[0].mxu0
      %v4909 = vpop.f32.mrb[0].mxu0
      %v4910 = vadd.f32 0.0, %v4909
      %v4911 = vpop.f32.mrb[0].mxu0
      %4912 = vmatprep.mubr.bf16.mxu0 0
      %4913 = vmatmul.mubr.bf16.gmra.mrb[0].mxu0 %v4815
      %v4914 = vpop.f32.mrb[0].mxu0
      %v4915 = vadd.f32 0.0, %v4914
      %v4916 = vpop.f32.mrb[0].mxu0
      %v4917 = vpop.f32.mrb[0].mxu0
      %v4918 = vadd.f32 0.0, %v4917
      %v4919 = vpop.f32.mrb[0].mxu0
      %4920 = vmatprep.mubr.bf16.mxu0 0
      %4921 = vmatmul.mubr.bf16.gmra.mrb[0].mxu0 %v4818
      %v4922 = vpop.f32.mrb[0].mxu0
      %v4923 = vadd.f32 0.0, %v4922
      %v4924 = vpop.f32.mrb[0].mxu0
      %v4925 = vpop.f32.mrb[0].mxu0
      %v4926 = vadd.f32 0.0, %v4925
      %v4927 = vpop.f32.mrb[0].mxu0
      %4928 = vmatprep.mubr.bf16.mxu0 0
      %4929 = vmatmul.mubr.bf16.gmra.mrb[0].mxu0 %v4821
      %v4930 = vpop.f32.mrb[0].mxu0
      %v4931 = vadd.f32 0.0, %v4930
      %v4932 = vpop.f32.mrb[0].mxu0
      %v4933 = vpop.f32.mrb[0].mxu0
      %v4934 = vadd.f32 0.0, %v4933
      %v4935 = vpop.f32.mrb[0].mxu0
      %4936 = vmatprep.mubr.bf16.mxu0 0
      %4937 = vmatmul.mubr.bf16.gmra.mrb[0].mxu0 %v4824
      %v4938 = vpop.f32.mrb[0].mxu0
      %v4939 = vadd.f32 0.0, %v4938
      %v4940 = vpop.f32.mrb[0].mxu0
      %v4941 = vpop.f32.mrb[0].mxu0
      %v4942 = vadd.f32 0.0, %v4941
      %v4943 = vpop.f32.mrb[0].mxu0
      %4944 = vmatprep.mubr.bf16.mxu0 0
      %4945 = vmatmul.mubr.bf16.gmra.mrb[0].mxu0 %v4827
      %v4946 = vpop.f32.mrb[0].mxu0
      %v4947 = vadd.f32 0.0, %v4946
      %v4948 = vpop.f32.mrb[0].mxu0
      %v4949 = vpop.f32.mrb[0].mxu0
      %v4950 = vadd.f32 0.0, %v4949
      %v4951 = vpop.f32.mrb[0].mxu0
      %4952 = vmatprep.mubr.bf16.mxu0 0
      %4953 = vmatmul.mubr.bf16.gmra.mrb[0].mxu0 %v4830
      %v4954 = vpop.f32.mrb[0].mxu0
      %v4955 = vadd.f32 0.0, %v4954
      %v4956 = vpop.f32.mrb[0].mxu0
      %v4957 = vpop.f32.mrb[0].mxu0
      %v4958 = vadd.f32 0.0, %v4957
      %v4959 = vpop.f32.mrb[0].mxu0
      %4960 = vmatprep.mubr.bf16.mxu0 0
      %4961 = vmatmul.mubr.bf16.gmra.mrb[0].mxu0 %v4833
      %v4962 = vpop.f32.mrb[0].mxu0
      %v4963 = vadd.f32 0.0, %v4962
      %v4964 = vpop.f32.mrb[0].mxu0
      %v4965 = vpop.f32.mrb[0].mxu0
      %v4966 = vadd.f32 0.0, %v4965
      %v4967 = vpop.f32.mrb[0].mxu0
      %4968 = vmatprep.mubr.bf16.mxu0 0
      %4969 = vmatmul.mubr.bf16.gmra.mrb[0].mxu0 %v4836
      %v4970 = vpop.f32.mrb[0].mxu0
      %v4971 = vadd.f32 0.0, %v4970
      %v4972 = vpop.f32.mrb[0].mxu0
      %v4973 = vpop.f32.mrb[0].mxu0
      %v4974 = vadd.f32 0.0, %v4973
      %v4975 = vpop.f32.mrb[0].mxu0
      %4976 = vmatprep.mubr.bf16.mxu0 0
      %4977 = vmatmul.mubr.bf16.gmra.mrb[0].mxu0 %v4839
      %v4978 = vpop.f32.mrb[0].mxu0
      %v4979 = vadd.f32 0.0, %v4978
      %v4980 = vpop.f32.mrb[0].mxu0
      %v4981 = vpop.f32.mrb[0].mxu0
      %v4982 = vadd.f32 0.0, %v4981
      %v4983 = vpop.f32.mrb[0].mxu0
      %4984 = vmatprep.mubr.bf16.mxu0 0
      %4985 = vmatmul.mubr.bf16.gmra.mrb[0].mxu0 %v4842
      %v4986 = vpop.f32.mrb[0].mxu0
      %v4987 = vadd.f32 0.0, %v4986
      %v4988 = vpop.f32.mrb[0].mxu0
      %v4989 = vpop.f32.mrb[0].mxu0
      %v4990 = vadd.f32 0.0, %v4989
      %v4991 = vpop.f32.mrb[0].mxu0
      %4992 = vmatprep.mubr.bf16.mxu0 0
      %4993 = vmatmul.mubr.bf16.gmra.mrb[0].mxu0 %v4845
      %v4994 = vpop.f32.mrb[0].mxu0
      %v4995 = vadd.f32 0.0, %v4994
      %v4996 = vpop.f32.mrb[0].mxu0
      %v4997 = vpop.f32.mrb[0].mxu0
      %v4998 = vadd.f32 0.0, %v4997
      %v4999 = vpop.f32.mrb[0].mxu0
      %5000 = vmatprep.mubr.bf16.mxu0 0
      %5001 = vmatmul.mubr.bf16.gmra.mrb[0].mxu0 %v4848
      %v5002 = vpop.f32.mrb[0].mxu0
      %v5003 = vadd.f32 0.0, %v5002
      %v5004 = vpop.f32.mrb[0].mxu0
      %v5005 = vpop.f32.mrb[0].mxu0
      %v5006 = vadd.f32 0.0, %v5005
      %v5007 = vpop.f32.mrb[0].mxu0
      %5008 = vmatprep.mubr.bf16.mxu0 0
      %5009 = vmatmul.mubr.bf16.gmra.mrb[0].mxu0 %v4851
      %v5010 = vpop.f32.mrb[0].mxu0
      %v5011 = vadd.f32 0.0, %v5010
      %v5012 = vpop.f32.mrb[0].mxu0
      %v5013 = vpop.f32.mrb[0].mxu0
      %v5014 = vadd.f32 0.0, %v5013
      %v5015 = vpop.f32.mrb[0].mxu0
      %5016 = vdwg.mxu0
      %v5017 = vadd.f32 %v4547, %v4891
      %v5018 = vadd.f32 %v4548, %v4894
      %v5019 = vadd.f32 %v4549, %v4899
      %v5020 = vadd.f32 %v4550, %v4902
      %v5021 = vadd.f32 %v4551, %v4907
      %v5022 = vadd.f32 %v4552, %v4910
      %v5023 = vadd.f32 %v4553, %v4915
      %v5024 = vadd.f32 %v4554, %v4918
      %v5025 = vadd.f32 %v4555, %v4923
      %v5026 = vadd.f32 %v4556, %v4926
      %v5027 = vadd.f32 %v4557, %v4931
      %v5028 = vadd.f32 %v4558, %v4934
      %v5029 = vadd.f32 %v4559, %v4939
      %v5030 = vadd.f32 %v4560, %v4942
      %v5031 = vadd.f32 %v4561, %v4947
      %v5032 = vadd.f32 %v4562, %v4950
      %v5033 = vadd.f32 %v4563, %v4955
      %v5034 = vadd.f32 %v4564, %v4958
      %v5035 = vadd.f32 %v4565, %v4963
      %v5036 = vadd.f32 %v4566, %v4966
      %v5037 = vadd.f32 %v4567, %v4971
      %v5038 = vadd.f32 %v4568, %v4974
      %v5039 = vadd.f32 %v4569, %v4979
      %v5040 = vadd.f32 %v4570, %v4982
      %v5041 = vadd.f32 %v4571, %v4987
      %v5042 = vadd.f32 %v4572, %v4990
      %v5043 = vadd.f32 %v4573, %v4995
      %v5044 = vadd.f32 %v4574, %v4998
      %v5045 = vadd.f32 %v4575, %v5003
      %v5046 = vadd.f32 %v4576, %v5006
      %v5047 = vadd.f32 %v4577, %v5011
      %v5048 = vadd.f32 %v4578, %v5014
      %v5049 = vpack.c.bf16 %v5018, %v5017
      %v5050 = vpack.c.bf16 %v5020, %v5019
      %v5051 = vpack.c.bf16 %v5022, %v5021
      %v5052 = vpack.c.bf16 %v5024, %v5023
      %v5053 = vpack.c.bf16 %v5026, %v5025
      %v5054 = vpack.c.bf16 %v5028, %v5027
      %v5055 = vpack.c.bf16 %v5030, %v5029
      %v5056 = vpack.c.bf16 %v5032, %v5031
      %v5057 = vpack.c.bf16 %v5034, %v5033
      %v5058 = vpack.c.bf16 %v5036, %v5035
      %v5059 = vpack.c.bf16 %v5038, %v5037
      %v5060 = vpack.c.bf16 %v5040, %v5039
      %v5061 = vpack.c.bf16 %v5042, %v5041
      %v5062 = vpack.c.bf16 %v5044, %v5043
      %v5063 = vpack.c.bf16 %v5046, %v5045
      %v5064 = vpack.c.bf16 %v5048, %v5047
      %v5081 = vunpack.c.l.b16 %v5049
      %v5082 = vunpack.c.h.b16 %v5049
      %v5083 = vunpack.c.l.b16 %v5050
      %v5084 = vunpack.c.h.b16 %v5050
      %v5085 = vunpack.c.l.b16 %v5051
      %v5086 = vunpack.c.h.b16 %v5051
      %v5087 = vunpack.c.l.b16 %v5052
      %v5088 = vunpack.c.h.b16 %v5052
      %v5089 = vunpack.c.l.b16 %v5053
      %v5090 = vunpack.c.h.b16 %v5053
      %v5091 = vunpack.c.l.b16 %v5054
      %v5092 = vunpack.c.h.b16 %v5054
      %v5093 = vunpack.c.l.b16 %v5055
      %v5094 = vunpack.c.h.b16 %v5055
      %v5095 = vunpack.c.l.b16 %v5056
      %v5096 = vunpack.c.h.b16 %v5056
      %v5097 = vunpack.c.l.b16 %v5057
      %v5098 = vunpack.c.h.b16 %v5057
      %v5099 = vunpack.c.l.b16 %v5058
      %v5100 = vunpack.c.h.b16 %v5058
      %v5101 = vunpack.c.l.b16 %v5059
      %v5102 = vunpack.c.h.b16 %v5059
      %v5103 = vunpack.c.l.b16 %v5060
      %v5104 = vunpack.c.h.b16 %v5060
      %v5105 = vunpack.c.l.b16 %v5061
      %v5106 = vunpack.c.h.b16 %v5061
      %v5107 = vunpack.c.l.b16 %v5062
      %v5108 = vunpack.c.h.b16 %v5062
      %v5109 = vunpack.c.l.b16 %v5063
      %v5110 = vunpack.c.h.b16 %v5063
      %v5111 = vunpack.c.l.b16 %v5064
      %v5112 = vunpack.c.h.b16 %v5064
      %v5113 = vpack.c.b16 %v5081, %v5081
      %v5114 = vpack.c.b16 %v5082, %v5082
      %v5115 = vpack.c.b16 %v5083, %v5083
      %v5116 = vpack.c.b16 %v5084, %v5084
      %v5117 = vpack.c.b16 %v5085, %v5085
      %v5118 = vpack.c.b16 %v5086, %v5086
      %v5119 = vpack.c.b16 %v5087, %v5087
      %v5120 = vpack.c.b16 %v5088, %v5088
      %v5121 = vpack.c.b16 %v5089, %v5089
      %v5122 = vpack.c.b16 %v5090, %v5090
      %v5123 = vpack.c.b16 %v5091, %v5091
      %v5124 = vpack.c.b16 %v5092, %v5092
      %v5125 = vpack.c.b16 %v5093, %v5093
      %v5126 = vpack.c.b16 %v5094, %v5094
      %v5127 = vpack.c.b16 %v5095, %v5095
      %v5128 = vpack.c.b16 %v5096, %v5096
      %v5129 = vpack.c.b16 %v5097, %v5097
      %v5130 = vpack.c.b16 %v5098, %v5098
      %v5131 = vpack.c.b16 %v5099, %v5099
      %v5132 = vpack.c.b16 %v5100, %v5100
      %v5133 = vpack.c.b16 %v5101, %v5101
      %v5134 = vpack.c.b16 %v5102, %v5102
      %v5135 = vpack.c.b16 %v5103, %v5103
      %v5136 = vpack.c.b16 %v5104, %v5104
      %v5137 = vpack.c.b16 %v5105, %v5105
      %v5138 = vpack.c.b16 %v5106, %v5106
      %v5139 = vpack.c.b16 %v5107, %v5107
      %v5140 = vpack.c.b16 %v5108, %v5108
      %v5141 = vpack.c.b16 %v5109, %v5109
      %v5142 = vpack.c.b16 %v5110, %v5110
      %v5143 = vpack.c.b16 %v5111, %v5111
      %v5144 = vpack.c.b16 %v5112, %v5112
      %vm5177 = vcmask 257024
      %5178 = vst.msk [vmem:[%s364] sm:$0xf] %vm5177, %v5113
      %5179 = vst.msk [vmem:[%s364 + $0x4] sm:$0xf] %vm5177, %v5114
      %5180 = vst.msk [vmem:[%s364 + $0x8] sm:$0xf] %vm5177, %v5115
      %5181 = vst.msk [vmem:[%s364 + $0xc] sm:$0xf] %vm5177, %v5116
      %5182 = vst.msk [vmem:[%s364 + $0x10] sm:$0xf] %vm5177, %v5117
      %5183 = vst.msk [vmem:[%s364 + $0x14] sm:$0xf] %vm5177, %v5118
      %5184 = vst.msk [vmem:[%s364 + $0x18] sm:$0xf] %vm5177, %v5119
      %5185 = vst.msk [vmem:[%s364 + $0x1c] sm:$0xf] %vm5177, %v5120
      %5186 = vst.msk [vmem:[%s364 + $0x20] sm:$0xf] %vm5177, %v5121
      %5187 = vst.msk [vmem:[%s364 + $0x24] sm:$0xf] %vm5177, %v5122
      %5188 = vst.msk [vmem:[%s364 + $0x28] sm:$0xf] %vm5177, %v5123
      %5189 = vst.msk [vmem:[%s364 + $0x2c] sm:$0xf] %vm5177, %v5124
      %5190 = vst.msk [vmem:[%s364 + $0x30] sm:$0xf] %vm5177, %v5125
      %5191 = vst.msk [vmem:[%s364 + $0x34] sm:$0xf] %vm5177, %v5126
      %5192 = vst.msk [vmem:[%s364 + $0x38] sm:$0xf] %vm5177, %v5127
      %5193 = vst.msk [vmem:[%s364 + $0x3c] sm:$0xf] %vm5177, %v5128
      %5194 = vst.msk [vmem:[%s364 + $0x40] sm:$0xf] %vm5177, %v5129
      %5195 = vst.msk [vmem:[%s364 + $0x44] sm:$0xf] %vm5177, %v5130
      %5196 = vst.msk [vmem:[%s364 + $0x48] sm:$0xf] %vm5177, %v5131
      %5197 = vst.msk [vmem:[%s364 + $0x4c] sm:$0xf] %vm5177, %v5132
      %5198 = vst.msk [vmem:[%s364 + $0x50] sm:$0xf] %vm5177, %v5133
      %5199 = vst.msk [vmem:[%s364 + $0x54] sm:$0xf] %vm5177, %v5134
      %5200 = vst.msk [vmem:[%s364 + $0x58] sm:$0xf] %vm5177, %v5135
      %5201 = vst.msk [vmem:[%s364 + $0x5c] sm:$0xf] %vm5177, %v5136
      %5202 = vst.msk [vmem:[%s364 + $0x60] sm:$0xf] %vm5177, %v5137
      %5203 = vst.msk [vmem:[%s364 + $0x64] sm:$0xf] %vm5177, %v5138
      %5204 = vst.msk [vmem:[%s364 + $0x68] sm:$0xf] %vm5177, %v5139
      %5205 = vst.msk [vmem:[%s364 + $0x6c] sm:$0xf] %vm5177, %v5140
      %5206 = vst.msk [vmem:[%s364 + $0x70] sm:$0xf] %vm5177, %v5141
      %5207 = vst.msk [vmem:[%s364 + $0x74] sm:$0xf] %vm5177, %v5142
      %5208 = vst.msk [vmem:[%s364 + $0x78] sm:$0xf] %vm5177, %v5143
      %5209 = vst.msk [vmem:[%s364 + $0x7c] sm:$0xf] %vm5177, %v5144
      %vm5210 = vcmask 261120
      %v5211 = vsel %vm5210, %v5017, 0.0
      %v5212 = vsel %vm5210, %v5018, 0.0
      %v5213 = vadd.f32 %v5211, %v5212
      %v5214 = vsel %vm5210, %v5019, 0.0
      %v5215 = vadd.f32 %v5213, %v5214
      %v5216 = vsel %vm5210, %v5020, 0.0
      %v5217 = vadd.f32 %v5215, %v5216
      %v5218 = vsel %vm5210, %v5021, 0.0
      %v5219 = vadd.f32 %v5217, %v5218
      %v5220 = vsel %vm5210, %v5022, 0.0
      %v5221 = vadd.f32 %v5219, %v5220
      %v5222 = vsel %vm5210, %v5023, 0.0
      %v5223 = vadd.f32 %v5221, %v5222
      %v5224 = vsel %vm5210, %v5024, 0.0
      %v5225 = vadd.f32 %v5223, %v5224
      %v5226 = vsel %vm5210, %v5025, 0.0
      %v5227 = vadd.f32 %v5225, %v5226
      %v5228 = vsel %vm5210, %v5026, 0.0
      %v5229 = vadd.f32 %v5227, %v5228
      %v5230 = vsel %vm5210, %v5027, 0.0
      %v5231 = vadd.f32 %v5229, %v5230
      %v5232 = vsel %vm5210, %v5028, 0.0
      %v5233 = vadd.f32 %v5231, %v5232
      %v5234 = vsel %vm5210, %v5029, 0.0
      %v5235 = vadd.f32 %v5233, %v5234
      %v5236 = vsel %vm5210, %v5030, 0.0
      %v5237 = vadd.f32 %v5235, %v5236
      %v5238 = vsel %vm5210, %v5031, 0.0
      %v5239 = vadd.f32 %v5237, %v5238
      %v5240 = vsel %vm5210, %v5032, 0.0
      %v5241 = vadd.f32 %v5239, %v5240
      %v5242 = vsel %vm5210, %v5033, 0.0
      %v5243 = vadd.f32 %v5241, %v5242
      %v5244 = vsel %vm5210, %v5034, 0.0
      %v5245 = vadd.f32 %v5243, %v5244
      %v5246 = vsel %vm5210, %v5035, 0.0
      %v5247 = vadd.f32 %v5245, %v5246
      %v5248 = vsel %vm5210, %v5036, 0.0
      %v5249 = vadd.f32 %v5247, %v5248
      %v5250 = vsel %vm5210, %v5037, 0.0
      %v5251 = vadd.f32 %v5249, %v5250
      %v5252 = vsel %vm5210, %v5038, 0.0
      %v5253 = vadd.f32 %v5251, %v5252
      %v5254 = vsel %vm5210, %v5039, 0.0
      %v5255 = vadd.f32 %v5253, %v5254
      %v5256 = vsel %vm5210, %v5040, 0.0
      %v5257 = vadd.f32 %v5255, %v5256
      %v5258 = vsel %vm5210, %v5041, 0.0
      %v5259 = vadd.f32 %v5257, %v5258
      %v5260 = vsel %vm5210, %v5042, 0.0
      %v5261 = vadd.f32 %v5259, %v5260
      %v5262 = vsel %vm5210, %v5043, 0.0
      %v5263 = vadd.f32 %v5261, %v5262
      %v5264 = vsel %vm5210, %v5044, 0.0
      %v5265 = vadd.f32 %v5263, %v5264
      %v5266 = vsel %vm5210, %v5045, 0.0
      %v5267 = vadd.f32 %v5265, %v5266
      %v5268 = vsel %vm5210, %v5046, 0.0
      %v5269 = vadd.f32 %v5267, %v5268
      %v5270 = vsel %vm5210, %v5047, 0.0
      %v5271 = vadd.f32 %v5269, %v5270
      %v5272 = vsel %vm5210, %v5048, 0.0
      %v5273 = vadd.f32 %v5271, %v5272
      %v5274 = vrot.slane %v5273, 4
      %v5275 = vadd.f32 %v5273, %v5274
      %v5276 = vrot.slane %v5275, 2
      %v5277 = vadd.f32 %v5275, %v5276
      %v5278 = vrot.slane %v5277, 1
      %v5279 = vadd.f32 %v5277, %v5278
      %vm5280 = vcmask 253952
      %5281 = vst.msk [vmem:[%s371] sm:$0x1] %vm5280, %v5279
      %v5282 = vmul.f32 %v5017, %v5017
      %v5283 = vmul.f32 %v5018, %v5018
      %v5284 = vmul.f32 %v5019, %v5019
      %v5285 = vmul.f32 %v5020, %v5020
      %v5286 = vmul.f32 %v5021, %v5021
      %v5287 = vmul.f32 %v5022, %v5022
      %v5288 = vmul.f32 %v5023, %v5023
      %v5289 = vmul.f32 %v5024, %v5024
      %v5290 = vmul.f32 %v5025, %v5025
      %v5291 = vmul.f32 %v5026, %v5026
      %v5292 = vmul.f32 %v5027, %v5027
      %v5293 = vmul.f32 %v5028, %v5028
      %v5294 = vmul.f32 %v5029, %v5029
      %v5295 = vmul.f32 %v5030, %v5030
      %v5296 = vmul.f32 %v5031, %v5031
      %v5297 = vmul.f32 %v5032, %v5032
      %v5298 = vmul.f32 %v5033, %v5033
      %v5299 = vmul.f32 %v5034, %v5034
      %v5300 = vmul.f32 %v5035, %v5035
      %v5301 = vmul.f32 %v5036, %v5036
      %v5302 = vmul.f32 %v5037, %v5037
      %v5303 = vmul.f32 %v5038, %v5038
      %v5304 = vmul.f32 %v5039, %v5039
      %v5305 = vmul.f32 %v5040, %v5040
      %v5306 = vmul.f32 %v5041, %v5041
      %v5307 = vmul.f32 %v5042, %v5042
      %v5308 = vmul.f32 %v5043, %v5043
      %v5309 = vmul.f32 %v5044, %v5044
      %v5310 = vmul.f32 %v5045, %v5045
      %v5311 = vmul.f32 %v5046, %v5046
      %v5312 = vmul.f32 %v5047, %v5047
      %v5313 = vmul.f32 %v5048, %v5048
      %v5314 = vsel %vm5210, %v5282, 0.0
      %v5315 = vsel %vm5210, %v5283, 0.0
      %v5316 = vadd.f32 %v5314, %v5315
      %v5317 = vsel %vm5210, %v5284, 0.0
      %v5318 = vadd.f32 %v5316, %v5317
      %v5319 = vsel %vm5210, %v5285, 0.0
      %v5320 = vadd.f32 %v5318, %v5319
      %v5321 = vsel %vm5210, %v5286, 0.0
      %v5322 = vadd.f32 %v5320, %v5321
      %v5323 = vsel %vm5210, %v5287, 0.0
      %v5324 = vadd.f32 %v5322, %v5323
      %v5325 = vsel %vm5210, %v5288, 0.0
      %v5326 = vadd.f32 %v5324, %v5325
      %v5327 = vsel %vm5210, %v5289, 0.0
      %v5328 = vadd.f32 %v5326, %v5327
      %v5329 = vsel %vm5210, %v5290, 0.0
      %v5330 = vadd.f32 %v5328, %v5329
      %v5331 = vsel %vm5210, %v5291, 0.0
      %v5332 = vadd.f32 %v5330, %v5331
      %v5333 = vsel %vm5210, %v5292, 0.0
      %v5334 = vadd.f32 %v5332, %v5333
      %v5335 = vsel %vm5210, %v5293, 0.0
      %v5336 = vadd.f32 %v5334, %v5335
      %v5337 = vsel %vm5210, %v5294, 0.0
      %v5338 = vadd.f32 %v5336, %v5337
      %v5339 = vsel %vm5210, %v5295, 0.0
      %v5340 = vadd.f32 %v5338, %v5339
      %v5341 = vsel %vm5210, %v5296, 0.0
      %v5342 = vadd.f32 %v5340, %v5341
      %v5343 = vsel %vm5210, %v5297, 0.0
      %v5344 = vadd.f32 %v5342, %v5343
      %v5345 = vsel %vm5210, %v5298, 0.0
      %v5346 = vadd.f32 %v5344, %v5345
      %v5347 = vsel %vm5210, %v5299, 0.0
      %v5348 = vadd.f32 %v5346, %v5347
      %v5349 = vsel %vm5210, %v5300, 0.0
      %v5350 = vadd.f32 %v5348, %v5349
      %v5351 = vsel %vm5210, %v5301, 0.0
      %v5352 = vadd.f32 %v5350, %v5351
      %v5353 = vsel %vm5210, %v5302, 0.0
      %v5354 = vadd.f32 %v5352, %v5353
      %v5355 = vsel %vm5210, %v5303, 0.0
      %v5356 = vadd.f32 %v5354, %v5355
      %v5357 = vsel %vm5210, %v5304, 0.0
      %v5358 = vadd.f32 %v5356, %v5357
      %v5359 = vsel %vm5210, %v5305, 0.0
      %v5360 = vadd.f32 %v5358, %v5359
      %v5361 = vsel %vm5210, %v5306, 0.0
      %v5362 = vadd.f32 %v5360, %v5361
      %v5363 = vsel %vm5210, %v5307, 0.0
      %v5364 = vadd.f32 %v5362, %v5363
      %v5365 = vsel %vm5210, %v5308, 0.0
      %v5366 = vadd.f32 %v5364, %v5365
      %v5367 = vsel %vm5210, %v5309, 0.0
      %v5368 = vadd.f32 %v5366, %v5367
      %v5369 = vsel %vm5210, %v5310, 0.0
      %v5370 = vadd.f32 %v5368, %v5369
      %v5371 = vsel %vm5210, %v5311, 0.0
      %v5372 = vadd.f32 %v5370, %v5371
      %v5373 = vsel %vm5210, %v5312, 0.0
      %v5374 = vadd.f32 %v5372, %v5373
      %v5375 = vsel %vm5210, %v5313, 0.0
      %v5376 = vadd.f32 %v5374, %v5375
      %v5377 = vrot.slane %v5376, 4
      %v5378 = vadd.f32 %v5376, %v5377
      %v5379 = vrot.slane %v5378, 2
      %v5380 = vadd.f32 %v5378, %v5379
      %v5381 = vrot.slane %v5380, 1
      %v5382 = vadd.f32 %v5380, %v5381
      %5383 = vst.msk [vmem:[%s377] sm:$0x1] %vm5280, %v5382
      %s5384 = smul.u32 32, %s22
      %p5385 = scmp.lt.s32.totalorder %s21, 1
      %s5386 = scalar_select %p5385, %s21, 1
      %p5387 = scmp.lt.s32.totalorder %s5384, 31
      %s5388 = scalar_select %p5387, %s5384, 31
      %s5389 = smul.addr %s5386, 32
      %s5390 = sadd.s32 %s5388, %s5389
      %s5391 = smul.addr %s5390, 4
      %s5392 = scalar_lea.vmem %s3, %s5391
      %p5393 = scmp.lt.s32.totalorder %s21, 1
      %s5394 = scalar_select %p5393, %s21, 1
      %p5395 = scmp.lt.s32.totalorder %s22, 0
      %s5396 = scalar_select %p5395, %s22, 0
      %s5397 = sadd.s32 %s5396, %s5394
      %s5398 = scalar_lea.vmem %s4, %s5397
      %p5399 = scmp.lt.s32.totalorder %s21, 1
      %s5400 = scalar_select %p5399, %s21, 1
      %p5401 = scmp.lt.s32.totalorder %s22, 0
      %s5402 = scalar_select %p5401, %s22, 0
      %s5403 = sadd.s32 %s5402, %s5400
      %s5404 = scalar_lea.vmem %s5, %s5403
      // Predicated region
      $region33: #{vgg_block_forward.4} parent=31 // pred_check
        %p5405 = pneg %p130
      $region34: #{vgg_block_forward.4} parent=31 // pred_check_branch
        %5407 = sbr.rel (%p5405) target = $region36
      $region35: #{vgg_block_forward.4} parent=31 // pred_region
        %s5408 = smul.u32 32, %s22
      $region36: #{vgg_block_forward.4} parent=31 // pred_fallthru
        _
      // Predicated region
      $region37: #{vgg_block_forward.4} parent=31 // pred_check
        %p5409 = pneg %p158
      $region38: #{vgg_block_forward.4} parent=31 // pred_check_branch
        %5411 = sbr.rel (%p5409) target = $region40
      $region39: #{vgg_block_forward.4} parent=31 // pred_region
        _
      $region40: #{vgg_block_forward.4} parent=31 // pred_fallthru
        _
      // Predicated region
      $region41: #{vgg_block_forward.4} parent=31 // pred_check
        %p5412 = pneg %p186
      $region42: #{vgg_block_forward.4} parent=31 // pred_check_branch
        %5414 = sbr.rel (%p5412) target = $region44
      $region43: #{vgg_block_forward.4} parent=31 // pred_region
        _
      $region44: #{vgg_block_forward.4} parent=31 // pred_fallthru
        _
    $region32: #{vgg_block_forward.4} parent=5 // pred_fallthru
      _
    %p5415 = scmp.le.s32.totalorder 2, %s12
    // Predicated region
    $region45: #{vgg_block_forward.4} parent=5 // pred_check
      %p5416 = pneg %p5415
    $region46: #{vgg_block_forward.4} parent=5 // pred_check_branch
      %5418 = sbr.rel (%p5416) target = $region48
    $region47: #{vgg_block_forward.4} parent=5 // pred_region
      %s5419 = ssub.s32 %s12, 2
      // Predicated region
      $region49: #{vgg_block_forward.4} parent=47 // pred_check
        %p5420 = pneg %p136
      $region50: #{vgg_block_forward.4} parent=47 // pred_check_branch
        %5422 = sbr.rel (%p5420) target = $region52
      $region51: #{vgg_block_forward.4} parent=47 // pred_region
        %s5423 = smul.u32 32, %s24
        %p5424 = scmp.lt.s32.totalorder %s23, 1
        %s5425 = scalar_select %p5424, %s23, 1
        %p5426 = scmp.lt.s32.totalorder %s5423, 31
        %s5427 = scalar_select %p5426, %s5423, 31
        %s5428 = smul.addr %s5425, 32
        %s5429 = sadd.s32 %s5427, %s5428
        %s5430 = smul.addr %s5429, 4
        %s5431 = scalar_lea.vmem %s3, %s5430
      $region52: #{vgg_block_forward.4} parent=47 // pred_fallthru
        _
      // Predicated region
      $region53: #{vgg_block_forward.4} parent=47 // pred_check
        %p5432 = pneg %p164
      $region54: #{vgg_block_forward.4} parent=47 // pred_check_branch
        %5434 = sbr.rel (%p5432) target = $region56
      $region55: #{vgg_block_forward.4} parent=47 // pred_region
        %p5435 = scmp.lt.s32.totalorder %s23, 1
        %s5436 = scalar_select %p5435, %s23, 1
        %p5437 = scmp.lt.s32.totalorder %s24, 0
        %s5438 = scalar_select %p5437, %s24, 0
        %s5439 = sadd.s32 %s5438, %s5436
        %s5440 = scalar_lea.vmem %s4, %s5439
      $region56: #{vgg_block_forward.4} parent=47 // pred_fallthru
        _
      // Predicated region
      $region57: #{vgg_block_forward.4} parent=47 // pred_check
        %p5441 = pneg %p192
      $region58: #{vgg_block_forward.4} parent=47 // pred_check_branch
        %5443 = sbr.rel (%p5441) target = $region60
      $region59: #{vgg_block_forward.4} parent=47 // pred_region
        %p5444 = scmp.lt.s32.totalorder %s23, 1
        %s5445 = scalar_select %p5444, %s23, 1
        %p5446 = scmp.lt.s32.totalorder %s24, 0
        %s5447 = scalar_select %p5446, %s24, 0
        %s5448 = sadd.s32 %s5447, %s5445
        %s5449 = scalar_lea.vmem %s5, %s5448
      $region60: #{vgg_block_forward.4} parent=47 // pred_fallthru
        _
    $region48: #{vgg_block_forward.4} parent=5 // pred_fallthru
      _
  $region6: #{vgg_block_forward.4} parent=0 // loop_footer
    %s16 = sadd.s32 1, %s12
  $region7: #{vgg_block_forward.4} parent=0 // loop_footer_branch
    %11 = sbr.rel target = $region3
  $region8: #{vgg_block_forward.4} parent=0 // loop_exit
    _

// kernel: vgg_block_forward.6
$region0: #{vgg_block_forward.6}
  #allocation0 [shape = 'u32[]', space=smem, size = 0x4, offset = 0x4, fixed_abs, tag = 'smem constant byte address 0x4 - core index']
  #allocation1 [shape = 'u32[144,128]{1,0:T(1,128)}', space=vmem, size = 0x12000, scoped, tag = 'internal scratch']
  #allocation2 [shape = 'bf16[18,18,32]{2,1,0:T(8,128)(2,1)}', space=vmem, size = 0x1b000, scoped, tag = 'scratch operand']
  %s0 = inlined_call_operand.vmem [shape: bf16[2,18,18,32], index: 0, kind: input, shape index: {}, may-alias: {0,1}]
  %s1 = inlined_call_operand.vmem [shape: bf16[2,18,18,32], index: 1, kind: input, shape index: {}, may-alias: {0,1}]
  %s2 = inlined_call_operand.vmem [shape: bf16[9,32,16], index: 2, kind: input, shape index: {}]
  %s3 = inlined_call_operand.vmem [shape: bf16[2,256,16], index: 3, kind: output, shape index: {0}]
  %s4 = inlined_call_operand.vmem [shape: f32[2,1,1,16], index: 4, kind: output, shape index: {1}]
  %s5 = inlined_call_operand.vmem [shape: f32[2,1,1,16], index: 5, kind: output, shape index: {2}]
  %6 = xla_tuple %s3, %s4, %s5
  %s7 = sld [smem:[#allocation0]]
  $region61: #{vgg_block_forward.6} parent=0
    _
  %s9 = ssub.s32 1, %s7
  %s10 = scalar_select 0, %s9, %s7
  loop: start=0, step=1, limit=4
  $region2: #{vgg_block_forward.6} parent=0 // loop_pre_header
    _
  $region3: #{vgg_block_forward.6} parent=0 // loop_header
    %s12 = sphi 0, %s16
    %p13 = scmp.ge.s32.totalorder %s12, 4
    %s19 = sphi 0, %s31
    %s20 = sphi 0, %s27
    %s21 = sphi 0, %s19
    %s22 = sphi 0, %s20
    %s23 = sphi 0, %s21
    %s24 = sphi 0, %s22
    %s36 = sphi 0, %s38
    %s39 = sphi 0, %s36
    %s40 = sphi 0, %s39
    %s56 = sphi 0, %s40
    %s68 = sphi 0, %s70
    %s71 = sphi 0, %s68
    %s72 = sphi 0, %s71
    %s88 = sphi 0, %s72
    %s92 = sphi 0, %s92
    %s94 = sphi 0, %s92
    %s95 = sphi 0, %s94
    %s109 = sphi 0, %s95
    %s117 = sphi 0, %s119
    %s120 = sphi 0, %s117
    %s121 = sphi 0, %s120
    %s137 = sphi 0, %s121
    %s145 = sphi 0, %s147
    %s148 = sphi 0, %s145
    %s149 = sphi 0, %s148
    %s165 = sphi 0, %s149
    %s173 = sphi 0, %s175
    %s176 = sphi 0, %s173
    %s177 = sphi 0, %s176
    %s193 = sphi 0, %s177
  $region4: #{vgg_block_forward.6} parent=0 // loop_header_branch
    %15 = sbr.rel (%p13) target = $region8
  $region5: #{vgg_block_forward.6} parent=0 // loop_body
    %s17 = ssub.s32 %s12, 1
    %s18 = ssub.s32 %s12, 2
    %s25 = sadd.s32 1, %s20
    %p26 = scmp.ge.s32.totalorder %s25, 1
    %s27 = scalar_select %p26, 0, %s25
    %s28 = sadd.s32 1, %s19
    %s29 = scalar_select %p26, %s28, %s19
    %p30 = scmp.ge.s32.totalorder %s29, 2
    %s31 = scalar_select %p30, 0, %s29
    %s32 = ssub.s32 %s19, %s31
    %s33 = ssub.s32 %s20, %s27
    %s34 = sor.u32 %s32, %s33
    %p35 = scmp.eq.s32.totalorder %s34, 0
    %s37 = sadd.s32 %s36, 1
    %s38 = scalar_select %p35, %s36, %s37
    %p41 = pneg %p35
    %p42 = scmp.eq.s32.totalorder %s12, 1
    %p43 = por %p41, %p42
    %p44 = scmp.ne.s32.totalorder %s36, %s39
    %p45 = scmp.eq.s32.totalorder %s12, 0
    %p46 = por %p44, %p45
    %p47 = scmp.ne.s32.totalorder %s36, %s39
    %p48 = scmp.eq.s32.totalorder %s17, 1
    %p49 = por %p47, %p48
    %p50 = scmp.ne.s32.totalorder %s39, %s40
    %p51 = scmp.eq.s32.totalorder %s17, 0
    %p52 = por %p50, %p51
    %p53 = scmp.ne.s32.totalorder %s39, %s40
    %p54 = scmp.eq.s32.totalorder %s18, 1
    %p55 = por %p53, %p54
    %p57 = scmp.ne.s32.totalorder %s40, %s56
    %p58 = scmp.eq.s32.totalorder %s18, 0
    %p59 = por %p57, %p58
    %s60 = sadd.s32 %s20, 1
    %s61 = smul.u32 %s60, 8
    %s62 = sadd.s32 %s27, 1
    %s63 = smul.u32 %s62, 8
    %s64 = ssub.s32 %s19, %s31
    %s65 = ssub.s32 %s61, %s63
    %s66 = sor.u32 %s64, %s65
    %p67 = scmp.eq.s32.totalorder %s66, 0
    %s69 = sadd.s32 %s68, 1
    %s70 = scalar_select %p67, %s68, %s69
    %p73 = pneg %p67
    %p74 = scmp.eq.s32.totalorder %s12, 1
    %p75 = por %p73, %p74
    %p76 = scmp.ne.s32.totalorder %s68, %s71
    %p77 = scmp.eq.s32.totalorder %s12, 0
    %p78 = por %p76, %p77
    %p79 = scmp.ne.s32.totalorder %s68, %s71
    %p80 = scmp.eq.s32.totalorder %s17, 1
    %p81 = por %p79, %p80
    %p82 = scmp.ne.s32.totalorder %s71, %s72
    %p83 = scmp.eq.s32.totalorder %s17, 0
    %p84 = por %p82, %p83
    %p85 = scmp.ne.s32.totalorder %s71, %s72
    %p86 = scmp.eq.s32.totalorder %s18, 1
    %p87 = por %p85, %p86
    %p89 = scmp.ne.s32.totalorder %s72, %s88
    %p90 = scmp.eq.s32.totalorder %s18, 0
    %p91 = por %p89, %p90
    %s93 = sadd.s32 %s92, 1
    %p96 = scmp.eq.s32.totalorder %s12, 1
    %p97 = scmp.ne.s32.totalorder %s92, %s94
    %p98 = scmp.eq.s32.totalorder %s12, 0
    %p99 = por %p97, %p98
    %p100 = scmp.ne.s32.totalorder %s92, %s94
    %p101 = scmp.eq.s32.totalorder %s17, 1
    %p102 = por %p100, %p101
    %p103 = scmp.ne.s32.totalorder %s94, %s95
    %p104 = scmp.eq.s32.totalorder %s17, 0
    %p105 = por %p103, %p104
    %p106 = scmp.ne.s32.totalorder %s94, %s95
    %p107 = scmp.eq.s32.totalorder %s18, 1
    %p108 = por %p106, %p107
    %p110 = scmp.ne.s32.totalorder %s95, %s109
    %p111 = scmp.eq.s32.totalorder %s18, 0
    %p112 = por %p110, %p111
    %s113 = ssub.s32 %s19, %s31
    %s114 = ssub.s32 %s20, %s27
    %s115 = sor.u32 %s113, %s114
    %p116 = scmp.eq.s32.totalorder %s115, 0
    %s118 = sadd.s32 %s117, 1
    %s119 = scalar_select %p116, %s117, %s118
    %p122 = pneg %p116
    %p123 = scmp.eq.s32.totalorder %s12, 1
    %p124 = por %p122, %p123
    %p125 = scmp.ne.s32.totalorder %s117, %s120
    %p126 = scmp.eq.s32.totalorder %s12, 0
    %p127 = por %p125, %p126
    %p128 = scmp.ne.s32.totalorder %s117, %s120
    %p129 = scmp.eq.s32.totalorder %s17, 1
    %p130 = por %p128, %p129
    %p131 = scmp.ne.s32.totalorder %s120, %s121
    %p132 = scmp.eq.s32.totalorder %s17, 0
    %p133 = por %p131, %p132
    %p134 = scmp.ne.s32.totalorder %s120, %s121
    %p135 = scmp.eq.s32.totalorder %s18, 1
    %p136 = por %p134, %p135
    %p138 = scmp.ne.s32.totalorder %s121, %s137
    %p139 = scmp.eq.s32.totalorder %s18, 0
    %p140 = por %p138, %p139
    %s141 = ssub.s32 %s19, %s31
    %s142 = ssub.s32 %s20, %s27
    %s143 = sor.u32 %s141, %s142
    %p144 = scmp.eq.s32.totalorder %s143, 0
    %s146 = sadd.s32 %s145, 1
    %s147 = scalar_select %p144, %s145, %s146
    %p150 = pneg %p144
    %p151 = scmp.eq.s32.totalorder %s12, 1
    %p152 = por %p150, %p151
    %p153 = scmp.ne.s32.totalorder %s145, %s148
    %p154 = scmp.eq.s32.totalorder %s12, 0
    %p155 = por %p153, %p154
    %p156 = scmp.ne.s32.totalorder %s145, %s148
    %p157 = scmp.eq.s32.totalorder %s17, 1
    %p158 = por %p156, %p157
    %p159 = scmp.ne.s32.totalorder %s148, %s149
    %p160 = scmp.eq.s32.totalorder %s17, 0
    %p161 = por %p159, %p160
    %p162 = scmp.ne.s32.totalorder %s148, %s149
    %p163 = scmp.eq.s32.totalorder %s18, 1
    %p164 = por %p162, %p163
    %p166 = scmp.ne.s32.totalorder %s149, %s165
    %p167 = scmp.eq.s32.totalorder %s18, 0
    %p168 = por %p166, %p167
    %s169 = ssub.s32 %s19, %s31
    %s170 = ssub.s32 %s20, %s27
    %s171 = sor.u32 %s169, %s170
    %p172 = scmp.eq.s32.totalorder %s171, 0
    %s174 = sadd.s32 %s173, 1
    %s175 = scalar_select %p172, %s173, %s174
    %p178 = pneg %p172
    %p179 = scmp.eq.s32.totalorder %s12, 1
    %p180 = por %p178, %p179
    %p181 = scmp.ne.s32.totalorder %s173, %s176
    %p182 = scmp.eq.s32.totalorder %s12, 0
    %p183 = por %p181, %p182
    %p184 = scmp.ne.s32.totalorder %s173, %s176
    %p185 = scmp.eq.s32.totalorder %s17, 1
    %p186 = por %p184, %p185
    %p187 = scmp.ne.s32.totalorder %s176, %s177
    %p188 = scmp.eq.s32.totalorder %s17, 0
    %p189 = por %p187, %p188
    %p190 = scmp.ne.s32.totalorder %s176, %s177
    %p191 = scmp.eq.s32.totalorder %s18, 1
    %p192 = por %p190, %p191
    %p194 = scmp.ne.s32.totalorder %s177, %s193
    %p195 = scmp.eq.s32.totalorder %s18, 0
    %p196 = por %p194, %p195
    %p197 = scmp.le.s32.totalorder 1, %s12
    %p198 = scmp.lt.s32.totalorder %s12, 3
    %p199 = pnand %p197, %p198
    %p200 = pneg %p199
    // Predicated region
    $region9: #{vgg_block_forward.6} parent=5 // pred_check
      _
    $region10: #{vgg_block_forward.6} parent=5 // pred_check_branch
      %202 = sbr.rel (%p199) target = $region12
    $region11: #{vgg_block_forward.6} parent=5 // pred_region
      %s203 = ssub.s32 %s12, 1
      // Predicated region
      $region13: #{vgg_block_forward.6} parent=11 // pred_check
        %p204 = pneg %p105
      $region14: #{vgg_block_forward.6} parent=11 // pred_check_branch
        %206 = sbr.rel (%p204) target = $region16
      $region15: #{vgg_block_forward.6} parent=11 // pred_region
        _
      $region16: #{vgg_block_forward.6} parent=11 // pred_fallthru
        _
    $region12: #{vgg_block_forward.6} parent=5 // pred_fallthru
      _
    %p207 = scmp.lt.s32.totalorder %s12, 2
    // Predicated region
    $region17: #{vgg_block_forward.6} parent=5 // pred_check
      %p208 = pneg %p207
    $region18: #{vgg_block_forward.6} parent=5 // pred_check_branch
      %210 = sbr.rel (%p208) target = $region20
    $region19: #{vgg_block_forward.6} parent=5 // pred_region
      // Predicated region
      $region21: #{vgg_block_forward.6} parent=19 // pred_check
        %p211 = pneg %p46
      $region22: #{vgg_block_forward.6} parent=19 // pred_check_branch
        %213 = sbr.rel (%p211) target = $region24
      $region23: #{vgg_block_forward.6} parent=19 // pred_region
        %s214 = smul.u32 16, %s20
        %s215 = ssub.s32 18, %s214
        %p216 = scmp.lt.s32.totalorder %s215, 16
        %s217 = scalar_select %p216, %s215, 16
        %s218 = smul.u32 64, %s217
        %s219 = smul.u32 %s218, 3
        %p220 = scmp.lt.s32.totalorder %s19, 1
        %s221 = scalar_select %p220, %s19, 1
        %p222 = scmp.lt.s32.totalorder %s214, 17
        %s223 = scalar_select %p222, %s214, 17
        %s224 = smul.addr %s223, 3
        %s225 = smul.addr %s221, 54
        %s226 = sadd.s32 %s224, %s225
        %s227 = smul.addr %s226, 4
        %s228 = scalar_lea.vmem %s0, %s227
        %s229 = smul.u32 16, %s20
        %s230 = ssub.s32 18, %s229
        %p231 = scmp.lt.s32.totalorder %s230, 16
        %s232 = scalar_select %p231, %s230, 16
        %s233 = smul.u32 64, %s232
        %s234 = smul.u32 %s233, 3
      $region24: #{vgg_block_forward.6} parent=19 // pred_fallthru
        _
      // Predicated region
      $region25: #{vgg_block_forward.6} parent=19 // pred_check
        %p235 = pneg %p78
      $region26: #{vgg_block_forward.6} parent=19 // pred_check_branch
        %237 = sbr.rel (%p235) target = $region28
      $region27: #{vgg_block_forward.6} parent=19 // pred_region
        %s238 = sadd.s32 %s20, 1
        %s239 = smul.u32 %s238, 8
        %s240 = smul.u32 2, %s239
        %p241 = scmp.lt.s32.totalorder %s19, 1
        %s242 = scalar_select %p241, %s19, 1
        %p243 = scmp.lt.s32.totalorder %s240, 17
        %s244 = scalar_select %p243, %s240, 17
        %s245 = smul.addr %s244, 3
        %s246 = smul.addr %s242, 54
        %s247 = sadd.s32 %s245, %s246
        %s248 = smul.addr %s247, 4
        %s249 = scalar_lea.vmem %s1, %s248
        %s250 = sadd.s32 %s20, 1
        %s251 = smul.u32 %s250, 8
        %s252 = smul.u32 2, %s251
      $region28: #{vgg_block_forward.6} parent=19 // pred_fallthru
        _
    $region20: #{vgg_block_forward.6} parent=5 // pred_fallthru
      _
    %p253 = scmp.le.s32.totalorder 1, %s12
    %p254 = scmp.lt.s32.totalorder %s12, 3
    %p255 = pnand %p253, %p254
    %p256 = pneg %p255
    // Predicated region
    $region29: #{vgg_block_forward.6} parent=5 // pred_check
      _
    $region30: #{vgg_block_forward.6} parent=5 // pred_check_branch
      %258 = sbr.rel (%p255) target = $region32
    $region31: #{vgg_block_forward.6} parent=5 // pred_region
      %s259 = ssub.s32 %s12, 1
      %s260 = smul.u32 16, %s22
      %s261 = ssub.s32 18, %s260
      %p262 = scmp.lt.s32.totalorder %s261, 16
      %s263 = scalar_select %p262, %s261, 16
      %s264 = smul.u32 64, %s263
      %s265 = smul.u32 %s264, 3
      %p266 = scmp.lt.s32.totalorder %s21, 1
      %s267 = scalar_select %p266, %s21, 1
      %p268 = scmp.lt.s32.totalorder %s260, 17
      %s269 = scalar_select %p268, %s260, 17
      %s270 = smul.addr %s269, 3
      %s271 = smul.addr %s267, 54
      %s272 = sadd.s32 %s270, %s271
      %s273 = smul.addr %s272, 4
      %s274 = scalar_lea.vmem %s0, %s273
      %p275 = pneg %p52
      %p276 = pneg %p49
      %s277 = sadd.s32 %s22, 1
      %s278 = smul.u32 %s277, 8
      %s279 = smul.u32 2, %s278
      %p280 = scmp.lt.s32.totalorder %s21, 1
      %s281 = scalar_select %p280, %s21, 1
      %p282 = scmp.lt.s32.totalorder %s279, 17
      %s283 = scalar_select %p282, %s279, 17
      %s284 = smul.addr %s283, 3
      %s285 = smul.addr %s281, 54
      %s286 = sadd.s32 %s284, %s285
      %s287 = smul.addr %s286, 4
      %s288 = scalar_lea.vmem %s1, %s287
      %p289 = pneg %p84
      %p290 = pneg %p81
      %p291 = pneg %p105
      %p292 = pneg %p102
      %p293 = pneg %p133
      %p294 = pneg %p130
      %s295 = smul.u32 32, %s22
      %p296 = scmp.lt.s32.totalorder %s21, 1
      %s297 = scalar_select %p296, %s21, 1
      %p298 = scmp.lt.s32.totalorder %s295, 31
      %s299 = scalar_select %p298, %s295, 31
      %s300 = smul.addr %s297, 32
      %s301 = sadd.s32 %s299, %s300
      %s302 = smul.addr %s301, 4
      %s303 = scalar_lea.vmem %s3, %s302
      %p304 = pneg %p161
      %p305 = pneg %p158
      %p306 = scmp.lt.s32.totalorder %s21, 1
      %s307 = scalar_select %p306, %s21, 1
      %p308 = scmp.lt.s32.totalorder %s22, 0
      %s309 = scalar_select %p308, %s22, 0
      %s310 = sadd.s32 %s309, %s307
      %s311 = scalar_lea.vmem %s4, %s310
      %p312 = pneg %p189
      %p313 = pneg %p186
      %p314 = scmp.lt.s32.totalorder %s21, 1
      %s315 = scalar_select %p314, %s21, 1
      %p316 = scmp.lt.s32.totalorder %s22, 0
      %s317 = scalar_select %p316, %s22, 0
      %s318 = sadd.s32 %s317, %s315
      %s319 = scalar_lea.vmem %s5, %s318
      %s320 = smul.u32 16, %s22
      %s321 = ssub.s32 18, %s320
      %p322 = scmp.lt.s32.totalorder %s321, 16
      %s323 = scalar_select %p322, %s321, 16
      %s324 = smul.u32 64, %s323
      %s325 = smul.u32 %s324, 3
      %p326 = scmp.lt.s32.totalorder %s21, 1
      %s327 = scalar_select %p326, %s21, 1
      %p328 = scmp.lt.s32.totalorder %s320, 17
      %s329 = scalar_select %p328, %s320, 17
      %s330 = smul.addr %s329, 3
      %s331 = smul.addr %s327, 54
      %s332 = sadd.s32 %s330, %s331
      %s333 = smul.addr %s332, 4
      %s334 = scalar_lea.vmem %s0, %s333
      %s335 = smul.u32 16, %s22
      %s336 = ssub.s32 18, %s335
      %p337 = scmp.lt.s32.totalorder %s336, 16
      %s338 = scalar_select %p337, %s336, 16
      %s339 = smul.u32 64, %s338
      %s340 = smul.u32 %s339, 3
      %s341 = sadd.s32 %s22, 1
      %s342 = smul.u32 %s341, 8
      %s343 = smul.u32 2, %s342
      %p344 = scmp.lt.s32.totalorder %s21, 1
      %s345 = scalar_select %p344, %s21, 1
      %p346 = scmp.lt.s32.totalorder %s343, 17
      %s347 = scalar_select %p346, %s343, 17
      %s348 = smul.addr %s347, 3
      %s349 = smul.addr %s345, 54
      %s350 = sadd.s32 %s348, %s349
      %s351 = smul.addr %s350, 4
      %s352 = scalar_lea.vmem %s1, %s351
      %s353 = sadd.s32 %s22, 1
      %s354 = smul.u32 %s353, 8
      %s355 = smul.u32 2, %s354
      %s356 = smul.u32 32, %s22
      %p357 = scmp.lt.s32.totalorder %s21, 1
      %s358 = scalar_select %p357, %s21, 1
      %p359 = scmp.lt.s32.totalorder %s356, 31
      %s360 = scalar_select %p359, %s356, 31
      %s361 = smul.addr %s358, 32
      %s362 = sadd.s32 %s360, %s361
      %s363 = smul.addr %s362, 4
      %s364 = scalar_lea.vmem %s3, %s363
      %s365 = smul.u32 32, %s22
      %p366 = scmp.lt.s32.totalorder %s21, 1
      %s367 = scalar_select %p366, %s21, 1
      %p368 = scmp.lt.s32.totalorder %s22, 0
      %s369 = scalar_select %p368, %s22, 0
      %s370 = sadd.s32 %s369, %s367
      %s371 = scalar_lea.vmem %s4, %s370
      %p372 = scmp.lt.s32.totalorder %s21, 1
      %s373 = scalar_select %p372, %s21, 1
      %p374 = scmp.lt.s32.totalorder %s22, 0
      %s375 = scalar_select %p374, %s22, 0
      %s376 = sadd.s32 %s375, %s373
      %s377 = scalar_lea.vmem %s5, %s376
      %v379 = vld [vmem:[%s334] sm:$0xf]
      %v380 = vld [vmem:[%s334 + $0x4] sm:$0xf]
      %v381 = vld [vmem:[%s334 + $0x8] sm:$0x1]
      %v382 = vld [vmem:[%s334 + $0xc] sm:$0xf]
      %v383 = vld [vmem:[%s334 + $0x10] sm:$0xf]
      %v384 = vld [vmem:[%s334 + $0x14] sm:$0x1]
      %v385 = vld [vmem:[%s334 + $0x18] sm:$0xf]
      %v386 = vld [vmem:[%s334 + $0x1c] sm:$0xf]
      %v387 = vld [vmem:[%s334 + $0x20] sm:$0x1]
      %v388 = vld [vmem:[%s334 + $0x24] sm:$0xf]
      %v389 = vld [vmem:[%s334 + $0x28] sm:$0xf]
      %v390 = vld [vmem:[%s334 + $0x2c] sm:$0x1]
      %v391 = vld [vmem:[%s334 + $0x30] sm:$0xf]
      %v392 = vld [vmem:[%s334 + $0x34] sm:$0xf]
      %v393 = vld [vmem:[%s334 + $0x38] sm:$0x1]
      %v394 = vld [vmem:[%s334 + $0x3c] sm:$0xf]
      %v395 = vld [vmem:[%s334 + $0x40] sm:$0xf]
      %v396 = vld [vmem:[%s334 + $0x44] sm:$0x1]
      %v397 = vld [vmem:[%s334 + $0x48] sm:$0xf]
      %v398 = vld [vmem:[%s334 + $0x4c] sm:$0xf]
      %v399 = vld [vmem:[%s334 + $0x50] sm:$0x1]
      %v400 = vld [vmem:[%s334 + $0x54] sm:$0xf]
      %v401 = vld [vmem:[%s334 + $0x58] sm:$0xf]
      %v402 = vld [vmem:[%s334 + $0x5c] sm:$0x1]
      %v403 = vld [vmem:[%s334 + $0x60] sm:$0xf]
      %v404 = vld [vmem:[%s334 + $0x64] sm:$0xf]
      %v405 = vld [vmem:[%s334 + $0x68] sm:$0x1]
      %v406 = vld [vmem:[%s334 + $0x6c] sm:$0xf]
      %v407 = vld [vmem:[%s334 + $0x70] sm:$0xf]
      %v408 = vld [vmem:[%s334 + $0x74] sm:$0x1]
      %v409 = vld [vmem:[%s334 + $0x78] sm:$0xf]
      %v410 = vld [vmem:[%s334 + $0x7c] sm:$0xf]
      %v411 = vld [vmem:[%s334 + $0x80] sm:$0x1]
      %v412 = vld [vmem:[%s334 + $0x84] sm:$0xf]
      %v413 = vld [vmem:[%s334 + $0x88] sm:$0xf]
      %v414 = vld [vmem:[%s334 + $0x8c] sm:$0x1]
      %v415 = vld [vmem:[%s334 + $0x90] sm:$0xf]
      %v416 = vld [vmem:[%s334 + $0x94] sm:$0xf]
      %v417 = vld [vmem:[%s334 + $0x98] sm:$0x1]
      %v418 = vld [vmem:[%s334 + $0x9c] sm:$0xf]
      %v419 = vld [vmem:[%s334 + $0xa0] sm:$0xf]
      %v420 = vld [vmem:[%s334 + $0xa4] sm:$0x1]
      %v421 = vld [vmem:[%s334 + $0xa8] sm:$0xf]
      %v422 = vld [vmem:[%s334 + $0xac] sm:$0xf]
      %v423 = vld [vmem:[%s334 + $0xb0] sm:$0x1]
      %v424 = vld [vmem:[%s334 + $0xb4] sm:$0xf]
      %v425 = vld [vmem:[%s334 + $0xb8] sm:$0xf]
      %v426 = vld [vmem:[%s334 + $0xbc] sm:$0x1]
      %vm427 = vcmask 257024
      %428 = vst.msk [vmem:[#allocation2] sm:$0xf] %vm427, %v379
      %429 = vst.msk [vmem:[#allocation2 + $0x4] sm:$0xf] %vm427, %v380
      %vm430 = vcmask 253952
      %431 = vst.msk [vmem:[#allocation2 + $0x8] sm:$0x1] %vm430, %v381
      %432 = vst.msk [vmem:[#allocation2 + $0xc] sm:$0xf] %vm427, %v382
      %433 = vst.msk [vmem:[#allocation2 + $0x10] sm:$0xf] %vm427, %v383
      %434 = vst.msk [vmem:[#allocation2 + $0x14] sm:$0x1] %vm430, %v384
      %435 = vst.msk [vmem:[#allocation2 + $0x18] sm:$0xf] %vm427, %v385
      %436 = vst.msk [vmem:[#allocation2 + $0x1c] sm:$0xf] %vm427, %v386
      %437 = vst.msk [vmem:[#allocation2 + $0x20] sm:$0x1] %vm430, %v387
      %438 = vst.msk [vmem:[#allocation2 + $0x24] sm:$0xf] %vm427, %v388
      %439 = vst.msk [vmem:[#allocation2 + $0x28] sm:$0xf] %vm427, %v389
      %440 = vst.msk [vmem:[#allocation2 + $0x2c] sm:$0x1] %vm430, %v390
      %441 = vst.msk [vmem:[#allocation2 + $0x30] sm:$0xf] %vm427, %v391
      %442 = vst.msk [vmem:[#allocation2 + $0x34] sm:$0xf] %vm427, %v392
      %443 = vst.msk [vmem:[#allocation2 + $0x38] sm:$0x1] %vm430, %v393
      %444 = vst.msk [vmem:[#allocation2 + $0x3c] sm:$0xf] %vm427, %v394
      %445 = vst.msk [vmem:[#allocation2 + $0x40] sm:$0xf] %vm427, %v395
      %446 = vst.msk [vmem:[#allocation2 + $0x44] sm:$0x1] %vm430, %v396
      %447 = vst.msk [vmem:[#allocation2 + $0x48] sm:$0xf] %vm427, %v397
      %448 = vst.msk [vmem:[#allocation2 + $0x4c] sm:$0xf] %vm427, %v398
      %449 = vst.msk [vmem:[#allocation2 + $0x50] sm:$0x1] %vm430, %v399
      %450 = vst.msk [vmem:[#allocation2 + $0x54] sm:$0xf] %vm427, %v400
      %451 = vst.msk [vmem:[#allocation2 + $0x58] sm:$0xf] %vm427, %v401
      %452 = vst.msk [vmem:[#allocation2 + $0x5c] sm:$0x1] %vm430, %v402
      %453 = vst.msk [vmem:[#allocation2 + $0x60] sm:$0xf] %vm427, %v403
      %454 = vst.msk [vmem:[#allocation2 + $0x64] sm:$0xf] %vm427, %v404
      %455 = vst.msk [vmem:[#allocation2 + $0x68] sm:$0x1] %vm430, %v405
      %456 = vst.msk [vmem:[#allocation2 + $0x6c] sm:$0xf] %vm427, %v406
      %457 = vst.msk [vmem:[#allocation2 + $0x70] sm:$0xf] %vm427, %v407
      %458 = vst.msk [vmem:[#allocation2 + $0x74] sm:$0x1] %vm430, %v408
      %459 = vst.msk [vmem:[#allocation2 + $0x78] sm:$0xf] %vm427, %v409
      %460 = vst.msk [vmem:[#allocation2 + $0x7c] sm:$0xf] %vm427, %v410
      %461 = vst.msk [vmem:[#allocation2 + $0x80] sm:$0x1] %vm430, %v411
      %462 = vst.msk [vmem:[#allocation2 + $0x84] sm:$0xf] %vm427, %v412
      %463 = vst.msk [vmem:[#allocation2 + $0x88] sm:$0xf] %vm427, %v413
      %464 = vst.msk [vmem:[#allocation2 + $0x8c] sm:$0x1] %vm430, %v414
      %465 = vst.msk [vmem:[#allocation2 + $0x90] sm:$0xf] %vm427, %v415
      %466 = vst.msk [vmem:[#allocation2 + $0x94] sm:$0xf] %vm427, %v416
      %467 = vst.msk [vmem:[#allocation2 + $0x98] sm:$0x1] %vm430, %v417
      %468 = vst.msk [vmem:[#allocation2 + $0x9c] sm:$0xf] %vm427, %v418
      %469 = vst.msk [vmem:[#allocation2 + $0xa0] sm:$0xf] %vm427, %v419
      %470 = vst.msk [vmem:[#allocation2 + $0xa4] sm:$0x1] %vm430, %v420
      %471 = vst.msk [vmem:[#allocation2 + $0xa8] sm:$0xf] %vm427, %v421
      %472 = vst.msk [vmem:[#allocation2 + $0xac] sm:$0xf] %vm427, %v422
      %473 = vst.msk [vmem:[#allocation2 + $0xb0] sm:$0x1] %vm430, %v423
      %474 = vst.msk [vmem:[#allocation2 + $0xb4] sm:$0xf] %vm427, %v424
      %475 = vst.msk [vmem:[#allocation2 + $0xb8] sm:$0xf] %vm427, %v425
      %476 = vst.msk [vmem:[#allocation2 + $0xbc] sm:$0x1] %vm430, %v426
      %v477 = vld [vmem:[%s352] sm:$0xf]
      %v478 = vld [vmem:[%s352 + $0x4] sm:$0xf]
      %v479 = vld [vmem:[%s352 + $0x8] sm:$0x1]
      %v480 = vld [vmem:[%s352 + $0xc] sm:$0xf]
      %v481 = vld [vmem:[%s352 + $0x10] sm:$0xf]
      %v482 = vld [vmem:[%s352 + $0x14] sm:$0x1]
      %s483 = scalar_lea.vmem [#allocation2], 192
      %484 = vst.msk [vmem:[%s483] sm:$0xf] %vm427, %v477
      %485 = vst.msk [vmem:[%s483 + $0x4] sm:$0xf] %vm427, %v478
      %486 = vst.msk [vmem:[%s483 + $0x8] sm:$0x1] %vm430, %v479
      %487 = vst.msk [vmem:[%s483 + $0xc] sm:$0xf] %vm427, %v480
      %488 = vst.msk [vmem:[%s483 + $0x10] sm:$0xf] %vm427, %v481
      %489 = vst.msk [vmem:[%s483 + $0x14] sm:$0x1] %vm430, %v482
      %v490 = vld [vmem:[#allocation2] sm:$0xf]
      %v491 = vld [vmem:[#allocation2 + $0x4] sm:$0xf]
      %v492 = vld [vmem:[#allocation2 + $0xc] sm:$0xf]
      %v493 = vld [vmem:[#allocation2 + $0x10] sm:$0xf]
      %v494 = vld [vmem:[#allocation2 + $0x18] sm:$0xf]
      %v495 = vld [vmem:[#allocation2 + $0x1c] sm:$0xf]
      %v496 = vld [vmem:[#allocation2 + $0x24] sm:$0xf]
      %v497 = vld [vmem:[#allocation2 + $0x28] sm:$0xf]
      %v498 = vld [vmem:[#allocation2 + $0x30] sm:$0xf]
      %v499 = vld [vmem:[#allocation2 + $0x34] sm:$0xf]
      %v500 = vld [vmem:[#allocation2 + $0x3c] sm:$0xf]
      %v501 = vld [vmem:[#allocation2 + $0x40] sm:$0xf]
      %v502 = vld [vmem:[#allocation2 + $0x48] sm:$0xf]
      %v503 = vld [vmem:[#allocation2 + $0x4c] sm:$0xf]
      %v504 = vld [vmem:[#allocation2 + $0x54] sm:$0xf]
      %v505 = vld [vmem:[#allocation2 + $0x58] sm:$0xf]
      %v506 = vld [vmem:[#allocation2 + $0x60] sm:$0xf]
      %v507 = vld [vmem:[#allocation2 + $0x64] sm:$0xf]
      %v508 = vld [vmem:[#allocation2 + $0x6c] sm:$0xf]
      %v509 = vld [vmem:[#allocation2 + $0x70] sm:$0xf]
      %v510 = vld [vmem:[#allocation2 + $0x78] sm:$0xf]
      %v511 = vld [vmem:[#allocation2 + $0x7c] sm:$0xf]
      %v512 = vld [vmem:[#allocation2 + $0x84] sm:$0xf]
      %v513 = vld [vmem:[#allocation2 + $0x88] sm:$0xf]
      %v514 = vld [vmem:[#allocation2 + $0x90] sm:$0xf]
      %v515 = vld [vmem:[#allocation2 + $0x94] sm:$0xf]
      %v516 = vld [vmem:[#allocation2 + $0x9c] sm:$0xf]
      %v517 = vld [vmem:[#allocation2 + $0xa0] sm:$0xf]
      %v518 = vld [vmem:[#allocation2 + $0xa8] sm:$0xf]
      %v519 = vld [vmem:[#allocation2 + $0xac] sm:$0xf]
      %v520 = vld [vmem:[#allocation2 + $0xb4] sm:$0xf]
      %v521 = vld [vmem:[#allocation2 + $0xb8] sm:$0xf]
      %v522 = vld [vmem:[%s2] sm:$0xf]
      %v523 = vld [vmem:[%s2 + $0x4] sm:$0xf]
      %v524 = vld [vmem:[%s2 + $0x8] sm:$0xf]
      %v525 = vld [vmem:[%s2 + $0xc] sm:$0xf]
      %v526 = vld [vmem:[#allocation2 + $0x8] sm:$0x1]
      %v527 = vld [vmem:[#allocation2 + $0x14] sm:$0x1]
      %v528 = vld [vmem:[#allocation2 + $0x20] sm:$0x1]
      %v529 = vld [vmem:[#allocation2 + $0x2c] sm:$0x1]
      %v530 = vld [vmem:[#allocation2 + $0x38] sm:$0x1]
      %v531 = vld [vmem:[#allocation2 + $0x44] sm:$0x1]
      %v532 = vld [vmem:[#allocation2 + $0x50] sm:$0x1]
      %v533 = vld [vmem:[#allocation2 + $0x5c] sm:$0x1]
      %v534 = vld [vmem:[#allocation2 + $0x68] sm:$0x1]
      %v535 = vld [vmem:[#allocation2 + $0x74] sm:$0x1]
      %v536 = vld [vmem:[#allocation2 + $0x80] sm:$0x1]
      %v537 = vld [vmem:[#allocation2 + $0x8c] sm:$0x1]
      %v538 = vld [vmem:[#allocation2 + $0x98] sm:$0x1]
      %v539 = vld [vmem:[#allocation2 + $0xa4] sm:$0x1]
      %v540 = vld [vmem:[#allocation2 + $0xb0] sm:$0x1]
      %v541 = vld [vmem:[#allocation2 + $0xbc] sm:$0x1]
      %vm542 = vsmask.f32 3328
      %vm543 = vsmask.f32 7440
      %vm544 = vmor %vm542, %vm543
      %v546 = vshrl.u32 %v490, 16
      %v548 = vrot.slane %v546, 4
      %v549 = vshll.u32 %v490, 16
      %v551 = vrot.slane %v549, 5
      %v552 = vor.u32 %v548, %v551
      %v553 = vrot.slane %v552, 4
      %v555 = vshll.u32 %v491, 16
      %v557 = vrot.slane %v555, 5
      %v558 = vsel %vm544, %v553, %v557
      %v559 = vshrl.u32 %v491, 16
      %v561 = vrot.slane %v559, 4
      %v562 = vor.u32 %v561, %v557
      %v563 = vrot.slane %v562, 4
      %v565 = vshll.u32 %v526, 16
      %v567 = vrot.slane %v565, 5
      %v568 = vsel %vm544, %v563, %v567
      %v570 = vshrl.u32 %v492, 16
      %v572 = vrot.slane %v570, 4
      %v573 = vshll.u32 %v492, 16
      %v575 = vrot.slane %v573, 5
      %v576 = vor.u32 %v572, %v575
      %v577 = vrot.slane %v576, 4
      %v579 = vshll.u32 %v493, 16
      %v581 = vrot.slane %v579, 5
      %v582 = vsel %vm544, %v577, %v581
      %v583 = vshrl.u32 %v493, 16
      %v585 = vrot.slane %v583, 4
      %v586 = vor.u32 %v585, %v581
      %v587 = vrot.slane %v586, 4
      %v589 = vshll.u32 %v527, 16
      %v591 = vrot.slane %v589, 5
      %v592 = vsel %vm544, %v587, %v591
      %v594 = vshrl.u32 %v494, 16
      %v596 = vrot.slane %v594, 4
      %v597 = vshll.u32 %v494, 16
      %v599 = vrot.slane %v597, 5
      %v600 = vor.u32 %v596, %v599
      %v601 = vrot.slane %v600, 4
      %v603 = vshll.u32 %v495, 16
      %v605 = vrot.slane %v603, 5
      %v606 = vsel %vm544, %v601, %v605
      %v607 = vshrl.u32 %v495, 16
      %v609 = vrot.slane %v607, 4
      %v610 = vor.u32 %v609, %v605
      %v611 = vrot.slane %v610, 4
      %v613 = vshll.u32 %v528, 16
      %v615 = vrot.slane %v613, 5
      %v616 = vsel %vm544, %v611, %v615
      %v618 = vshrl.u32 %v496, 16
      %v620 = vrot.slane %v618, 4
      %v621 = vshll.u32 %v496, 16
      %v623 = vrot.slane %v621, 5
      %v624 = vor.u32 %v620, %v623
      %v625 = vrot.slane %v624, 4
      %v627 = vshll.u32 %v497, 16
      %v629 = vrot.slane %v627, 5
      %v630 = vsel %vm544, %v625, %v629
      %v631 = vshrl.u32 %v497, 16
      %v633 = vrot.slane %v631, 4
      %v634 = vor.u32 %v633, %v629
      %v635 = vrot.slane %v634, 4
      %v637 = vshll.u32 %v529, 16
      %v639 = vrot.slane %v637, 5
      %v640 = vsel %vm544, %v635, %v639
      %v642 = vshrl.u32 %v498, 16
      %v644 = vrot.slane %v642, 4
      %v645 = vshll.u32 %v498, 16
      %v647 = vrot.slane %v645, 5
      %v648 = vor.u32 %v644, %v647
      %v649 = vrot.slane %v648, 4
      %v651 = vshll.u32 %v499, 16
      %v653 = vrot.slane %v651, 5
      %v654 = vsel %vm544, %v649, %v653
      %v655 = vshrl.u32 %v499, 16
      %v657 = vrot.slane %v655, 4
      %v658 = vor.u32 %v657, %v653
      %v659 = vrot.slane %v658, 4
      %v661 = vshll.u32 %v530, 16
      %v663 = vrot.slane %v661, 5
      %v664 = vsel %vm544, %v659, %v663
      %v666 = vshrl.u32 %v500, 16
      %v668 = vrot.slane %v666, 4
      %v669 = vshll.u32 %v500, 16
      %v671 = vrot.slane %v669, 5
      %v672 = vor.u32 %v668, %v671
      %v673 = vrot.slane %v672, 4
      %v675 = vshll.u32 %v501, 16
      %v677 = vrot.slane %v675, 5
      %v678 = vsel %vm544, %v673, %v677
      %v679 = vshrl.u32 %v501, 16
      %v681 = vrot.slane %v679, 4
      %v682 = vor.u32 %v681, %v677
      %v683 = vrot.slane %v682, 4
      %v685 = vshll.u32 %v531, 16
      %v687 = vrot.slane %v685, 5
      %v688 = vsel %vm544, %v683, %v687
      %v690 = vshrl.u32 %v502, 16
      %v692 = vrot.slane %v690, 4
      %v693 = vshll.u32 %v502, 16
      %v695 = vrot.slane %v693, 5
      %v696 = vor.u32 %v692, %v695
      %v697 = vrot.slane %v696, 4
      %v699 = vshll.u32 %v503, 16
      %v701 = vrot.slane %v699, 5
      %v702 = vsel %vm544, %v697, %v701
      %v703 = vshrl.u32 %v503, 16
      %v705 = vrot.slane %v703, 4
      %v706 = vor.u32 %v705, %v701
      %v707 = vrot.slane %v706, 4
      %v709 = vshll.u32 %v532, 16
      %v711 = vrot.slane %v709, 5
      %v712 = vsel %vm544, %v707, %v711
      %v714 = vshrl.u32 %v504, 16
      %v716 = vrot.slane %v714, 4
      %v717 = vshll.u32 %v504, 16
      %v719 = vrot.slane %v717, 5
      %v720 = vor.u32 %v716, %v719
      %v721 = vrot.slane %v720, 4
      %v723 = vshll.u32 %v505, 16
      %v725 = vrot.slane %v723, 5
      %v726 = vsel %vm544, %v721, %v725
      %v727 = vshrl.u32 %v505, 16
      %v729 = vrot.slane %v727, 4
      %v730 = vor.u32 %v729, %v725
      %v731 = vrot.slane %v730, 4
      %v733 = vshll.u32 %v533, 16
      %v735 = vrot.slane %v733, 5
      %v736 = vsel %vm544, %v731, %v735
      %v738 = vshrl.u32 %v506, 16
      %v740 = vrot.slane %v738, 4
      %v741 = vshll.u32 %v506, 16
      %v743 = vrot.slane %v741, 5
      %v744 = vor.u32 %v740, %v743
      %v745 = vrot.slane %v744, 4
      %v747 = vshll.u32 %v507, 16
      %v749 = vrot.slane %v747, 5
      %v750 = vsel %vm544, %v745, %v749
      %v751 = vshrl.u32 %v507, 16
      %v753 = vrot.slane %v751, 4
      %v754 = vor.u32 %v753, %v749
      %v755 = vrot.slane %v754, 4
      %v757 = vshll.u32 %v534, 16
      %v759 = vrot.slane %v757, 5
      %v760 = vsel %vm544, %v755, %v759
      %v762 = vshrl.u32 %v508, 16
      %v764 = vrot.slane %v762, 4
      %v765 = vshll.u32 %v508, 16
      %v767 = vrot.slane %v765, 5
      %v768 = vor.u32 %v764, %v767
      %v769 = vrot.slane %v768, 4
      %v771 = vshll.u32 %v509, 16
      %v773 = vrot.slane %v771, 5
      %v774 = vsel %vm544, %v769, %v773
      %v775 = vshrl.u32 %v509, 16
      %v777 = vrot.slane %v775, 4
      %v778 = vor.u32 %v777, %v773
      %v779 = vrot.slane %v778, 4
      %v781 = vshll.u32 %v535, 16
      %v783 = vrot.slane %v781, 5
      %v784 = vsel %vm544, %v779, %v783
      %v786 = vshrl.u32 %v510, 16
      %v788 = vrot.slane %v786, 4
      %v789 = vshll.u32 %v510, 16
      %v791 = vrot.slane %v789, 5
      %v792 = vor.u32 %v788, %v791
      %v793 = vrot.slane %v792, 4
      %v795 = vshll.u32 %v511, 16
      %v797 = vrot.slane %v795, 5
      %v798 = vsel %vm544, %v793, %v797
      %v799 = vshrl.u32 %v511, 16
      %v801 = vrot.slane %v799, 4
      %v802 = vor.u32 %v801, %v797
      %v803 = vrot.slane %v802, 4
      %v805 = vshll.u32 %v536, 16
      %v807 = vrot.slane %v805, 5
      %v808 = vsel %vm544, %v803, %v807
      %v810 = vshrl.u32 %v512, 16
      %v812 = vrot.slane %v810, 4
      %v813 = vshll.u32 %v512, 16
      %v815 = vrot.slane %v813, 5
      %v816 = vor.u32 %v812, %v815
      %v817 = vrot.slane %v816, 4
      %v819 = vshll.u32 %v513, 16
      %v821 = vrot.slane %v819, 5
      %v822 = vsel %vm544, %v817, %v821
      %v823 = vshrl.u32 %v513, 16
      %v825 = vrot.slane %v823, 4
      %v826 = vor.u32 %v825, %v821
      %v827 = vrot.slane %v826, 4
      %v829 = vshll.u32 %v537, 16
      %v831 = vrot.slane %v829, 5
      %v832 = vsel %vm544, %v827, %v831
      %v834 = vshrl.u32 %v514, 16
      %v836 = vrot.slane %v834, 4
      %v837 = vshll.u32 %v514, 16
      %v839 = vrot.slane %v837, 5
      %v840 = vor.u32 %v836, %v839
      %v841 = vrot.slane %v840, 4
      %v843 = vshll.u32 %v515, 16
      %v845 = vrot.slane %v843, 5
      %v846 = vsel %vm544, %v841, %v845
      %v847 = vshrl.u32 %v515, 16
      %v849 = vrot.slane %v847, 4
      %v850 = vor.u32 %v849, %v845
      %v851 = vrot.slane %v850, 4
      %v853 = vshll.u32 %v538, 16
      %v855 = vrot.slane %v853, 5
      %v856 = vsel %vm544, %v851, %v855
      %v858 = vshrl.u32 %v516, 16
      %v860 = vrot.slane %v858, 4
      %v861 = vshll.u32 %v516, 16
      %v863 = vrot.slane %v861, 5
      %v864 = vor.u32 %v860, %v863
      %v865 = vrot.slane %v864, 4
      %v867 = vshll.u32 %v517, 16
      %v869 = vrot.slane %v867, 5
      %v870 = vsel %vm544, %v865, %v869
      %v871 = vshrl.u32 %v517, 16
      %v873 = vrot.slane %v871, 4
      %v874 = vor.u32 %v873, %v869
      %v875 = vrot.slane %v874, 4
      %v877 = vshll.u32 %v539, 16
      %v879 = vrot.slane %v877, 5
      %v880 = vsel %vm544, %v875, %v879
      %v882 = vshrl.u32 %v518, 16
      %v884 = vrot.slane %v882, 4
      %v885 = vshll.u32 %v518, 16
      %v887 = vrot.slane %v885, 5
      %v888 = vor.u32 %v884, %v887
      %v889 = vrot.slane %v888, 4
      %v891 = vshll.u32 %v519, 16
      %v893 = vrot.slane %v891, 5
      %v894 = vsel %vm544, %v889, %v893
      %v895 = vshrl.u32 %v519, 16
      %v897 = vrot.slane %v895, 4
      %v898 = vor.u32 %v897, %v893
      %v899 = vrot.slane %v898, 4
      %v901 = vshll.u32 %v540, 16
      %v903 = vrot.slane %v901, 5
      %v904 = vsel %vm544, %v899, %v903
      %v906 = vshrl.u32 %v520, 16
      %v908 = vrot.slane %v906, 4
      %v909 = vshll.u32 %v520, 16
      %v911 = vrot.slane %v909, 5
      %v912 = vor.u32 %v908, %v911
      %v913 = vrot.slane %v912, 4
      %v915 = vshll.u32 %v521, 16
      %v917 = vrot.slane %v915, 5
      %v918 = vsel %vm544, %v913, %v917
      %v919 = vshrl.u32 %v521, 16
      %v921 = vrot.slane %v919, 4
      %v922 = vor.u32 %v921, %v917
      %v923 = vrot.slane %v922, 4
      %v925 = vshll.u32 %v541, 16
      %v927 = vrot.slane %v925, 5
      %v928 = vsel %vm544, %v923, %v927
      %s929 = scalar_lea.vmem %s2, 16
      %v930 = vld [vmem:[%s929] sm:$0xf]
      %v931 = vld [vmem:[%s929 + $0x4] sm:$0xf]
      %v932 = vld [vmem:[%s929 + $0x8] sm:$0xf]
      %v933 = vld [vmem:[%s929 + $0xc] sm:$0xf]
      %v934 = vunpack.c.l.b16 %v558
      %v935 = vunpack.c.l.b16 %v568
      %v936 = vunpack.c.l.b16 %v582
      %v937 = vunpack.c.l.b16 %v592
      %v938 = vunpack.c.l.b16 %v606
      %v939 = vunpack.c.l.b16 %v616
      %v940 = vunpack.c.l.b16 %v630
      %v941 = vunpack.c.l.b16 %v640
      %v942 = vunpack.c.l.b16 %v654
      %v943 = vunpack.c.l.b16 %v664
      %v944 = vunpack.c.l.b16 %v678
      %v945 = vunpack.c.l.b16 %v688
      %v946 = vunpack.c.l.b16 %v702
      %v947 = vunpack.c.l.b16 %v712
      %v948 = vunpack.c.l.b16 %v726
      %v949 = vunpack.c.l.b16 %v736
      %v950 = vunpack.c.l.b16 %v750
      %v951 = vunpack.c.l.b16 %v760
      %v952 = vunpack.c.l.b16 %v774
      %v953 = vunpack.c.l.b16 %v784
      %v954 = vunpack.c.l.b16 %v798
      %v955 = vunpack.c.l.b16 %v808
      %v956 = vunpack.c.l.b16 %v822
      %v957 = vunpack.c.l.b16 %v832
      %v958 = vunpack.c.l.b16 %v846
      %v959 = vunpack.c.l.b16 %v856
      %v960 = vunpack.c.l.b16 %v870
      %v961 = vunpack.c.l.b16 %v880
      %v962 = vunpack.c.l.b16 %v894
      %v963 = vunpack.c.l.b16 %v904
      %v964 = vunpack.c.l.b16 %v918
      %v965 = vunpack.c.l.b16 %v928
      %v966 = vpack.c.b16 %v935, %v934
      %v967 = vpack.c.b16 %v937, %v936
      %v968 = vpack.c.b16 %v939, %v938
      %v969 = vpack.c.b16 %v941, %v940
      %v970 = vpack.c.b16 %v943, %v942
      %v971 = vpack.c.b16 %v945, %v944
      %v972 = vpack.c.b16 %v947, %v946
      %v973 = vpack.c.b16 %v949, %v948
      %v974 = vpack.c.b16 %v951, %v950
      %v975 = vpack.c.b16 %v953, %v952
      %v976 = vpack.c.b16 %v955, %v954
      %v977 = vpack.c.b16 %v957, %v956
      %v978 = vpack.c.b16 %v959, %v958
      %v979 = vpack.c.b16 %v961, %v960
      %v980 = vpack.c.b16 %v963, %v962
      %v981 = vpack.c.b16 %v965, %v964
      %v986 = vunpack.c.l.b16 %v930
      %v987 = vunpack.c.l.b16 %v931
      %v988 = vunpack.c.l.b16 %v932
      %v989 = vunpack.c.l.b16 %v933
      %v990 = vpack.c.b16 %v987, %v986
      %v991 = vpack.c.b16 %v989, %v988
      %vm994 = vcmask 261120
      %v996 = vsel %vm994, %v966, 0
      %v999 = vsel %vm994, %v967, 0
      %v1002 = vsel %vm994, %v968, 0
      %v1005 = vsel %vm994, %v969, 0
      %v1008 = vsel %vm994, %v970, 0
      %v1011 = vsel %vm994, %v971, 0
      %v1014 = vsel %vm994, %v972, 0
      %v1017 = vsel %vm994, %v973, 0
      %v1020 = vsel %vm994, %v974, 0
      %v1023 = vsel %vm994, %v975, 0
      %v1026 = vsel %vm994, %v976, 0
      %v1029 = vsel %vm994, %v977, 0
      %v1032 = vsel %vm994, %v978, 0
      %v1035 = vsel %vm994, %v979, 0
      %v1038 = vsel %vm994, %v980, 0
      %v1041 = vsel %vm994, %v981, 0
      %1043 = vmatprep.subr.bf16.mxu0 0
      %1044 = vmatpush1.bf16.msra.mxu0 %v990
      %1045 = vmatprep.subr.bf16.mxu0 0
      %1046 = vmatpush1.bf16.msra.mxu0 %v991
      %1047 = vmatprep.subr.bf16.mxu0 0
      %1048 = vmatpush1.bf16.msra.mxu0 0
      %1049 = vmatprep.subr.bf16.mxu0 0
      %1050 = vmatpush1.bf16.msra.mxu0 0
      %1051 = vmatprep.subr.bf16.mxu0 0
      %1052 = vmatpush1.bf16.msra.mxu0 0
      %1053 = vmatprep.subr.bf16.mxu0 0
      %1054 = vmatpush1.bf16.msra.mxu0 0
      %1055 = vmatprep.subr.bf16.mxu0 0
      %1056 = vmatpush1.bf16.msra.mxu0 0
      %1057 = vmatprep.subr.bf16.mxu0 0
      %1058 = vmatpush1.bf16.msra.mxu0 0
      %1059 = vmatprep.subr.bf16.mxu0 0
      %1060 = vmatpush1.bf16.msra.mxu0 0
      %1061 = vmatprep.subr.bf16.mxu0 0
      %1062 = vmatpush1.bf16.msra.mxu0 0
      %1063 = vmatprep.subr.bf16.mxu0 0
      %1064 = vmatpush1.bf16.msra.mxu0 0
      %1065 = vmatprep.subr.bf16.mxu0 0
      %1066 = vmatpush1.bf16.msra.mxu0 0
      %1067 = vmatprep.subr.bf16.mxu0 0
      %1068 = vmatpush1.bf16.msra.mxu0 0
      %1069 = vmatprep.subr.bf16.mxu0 0
      %1070 = vmatpush1.bf16.msra.mxu0 0
      %1071 = vmatprep.subr.bf16.mxu0 0
      %1072 = vmatpush1.bf16.msra.mxu0 0
      %1073 = vmatprep.subr.bf16.mxu0 0
      %1074 = vmatpush1.bf16.msra.mxu0 0
      %1075 = vmatprep.mubr.bf16.mxu0 0
      %1076 = vmatmul.mubr.bf16.gmra.mrb[0].mxu0 %v996
      %v1077 = vpop.f32.mrb[0].mxu0
      %v1078 = vadd.f32 0.0, %v1077
      %v1079 = vpop.f32.mrb[0].mxu0
      %v1080 = vpop.f32.mrb[0].mxu0
      %v1081 = vadd.f32 0.0, %v1080
      %v1082 = vpop.f32.mrb[0].mxu0
      %1083 = vmatprep.mubr.bf16.mxu0 0
      %1084 = vmatmul.mubr.bf16.gmra.mrb[0].mxu0 %v999
      %v1085 = vpop.f32.mrb[0].mxu0
      %v1086 = vadd.f32 0.0, %v1085
      %v1087 = vpop.f32.mrb[0].mxu0
      %v1088 = vpop.f32.mrb[0].mxu0
      %v1089 = vadd.f32 0.0, %v1088
      %v1090 = vpop.f32.mrb[0].mxu0
      %1091 = vmatprep.mubr.bf16.mxu0 0
      %1092 = vmatmul.mubr.bf16.gmra.mrb[0].mxu0 %v1002
      %v1093 = vpop.f32.mrb[0].mxu0
      %v1094 = vadd.f32 0.0, %v1093
      %v1095 = vpop.f32.mrb[0].mxu0
      %v1096 = vpop.f32.mrb[0].mxu0
      %v1097 = vadd.f32 0.0, %v1096
      %v1098 = vpop.f32.mrb[0].mxu0
      %1099 = vmatprep.mubr.bf16.mxu0 0
      %1100 = vmatmul.mubr.bf16.gmra.mrb[0].mxu0 %v1005
      %v1101 = vpop.f32.mrb[0].mxu0
      %v1102 = vadd.f32 0.0, %v1101
      %v1103 = vpop.f32.mrb[0].mxu0
      %v1104 = vpop.f32.mrb[0].mxu0
      %v1105 = vadd.f32 0.0, %v1104
      %v1106 = vpop.f32.mrb[0].mxu0
      %1107 = vmatprep.mubr.bf16.mxu0 0
      %1108 = vmatmul.mubr.bf16.gmra.mrb[0].mxu0 %v1008
      %v1109 = vpop.f32.mrb[0].mxu0
      %v1110 = vadd.f32 0.0, %v1109
      %v1111 = vpop.f32.mrb[0].mxu0
      %v1112 = vpop.f32.mrb[0].mxu0
      %v1113 = vadd.f32 0.0, %v1112
      %v1114 = vpop.f32.mrb[0].mxu0
      %1115 = vmatprep.mubr.bf16.mxu0 0
      %1116 = vmatmul.mubr.bf16.gmra.mrb[0].mxu0 %v1011
      %v1117 = vpop.f32.mrb[0].mxu0
      %v1118 = vadd.f32 0.0, %v1117
      %v1119 = vpop.f32.mrb[0].mxu0
      %v1120 = vpop.f32.mrb[0].mxu0
      %v1121 = vadd.f32 0.0, %v1120
      %v1122 = vpop.f32.mrb[0].mxu0
      %1123 = vmatprep.mubr.bf16.mxu0 0
      %1124 = vmatmul.mubr.bf16.gmra.mrb[0].mxu0 %v1014
      %v1125 = vpop.f32.mrb[0].mxu0
      %v1126 = vadd.f32 0.0, %v1125
      %v1127 = vpop.f32.mrb[0].mxu0
      %v1128 = vpop.f32.mrb[0].mxu0
      %v1129 = vadd.f32 0.0, %v1128
      %v1130 = vpop.f32.mrb[0].mxu0
      %1131 = vmatprep.mubr.bf16.mxu0 0
      %1132 = vmatmul.mubr.bf16.gmra.mrb[0].mxu0 %v1017
      %v1133 = vpop.f32.mrb[0].mxu0
      %v1134 = vadd.f32 0.0, %v1133
      %v1135 = vpop.f32.mrb[0].mxu0
      %v1136 = vpop.f32.mrb[0].mxu0
      %v1137 = vadd.f32 0.0, %v1136
      %v1138 = vpop.f32.mrb[0].mxu0
      %1139 = vmatprep.mubr.bf16.mxu0 0
      %1140 = vmatmul.mubr.bf16.gmra.mrb[0].mxu0 %v1020
      %v1141 = vpop.f32.mrb[0].mxu0
      %v1142 = vadd.f32 0.0, %v1141
      %v1143 = vpop.f32.mrb[0].mxu0
      %v1144 = vpop.f32.mrb[0].mxu0
      %v1145 = vadd.f32 0.0, %v1144
      %v1146 = vpop.f32.mrb[0].mxu0
      %1147 = vmatprep.mubr.bf16.mxu0 0
      %1148 = vmatmul.mubr.bf16.gmra.mrb[0].mxu0 %v1023
      %v1149 = vpop.f32.mrb[0].mxu0
      %v1150 = vadd.f32 0.0, %v1149
      %v1151 = vpop.f32.mrb[0].mxu0
      %v1152 = vpop.f32.mrb[0].mxu0
      %v1153 = vadd.f32 0.0, %v1152
      %v1154 = vpop.f32.mrb[0].mxu0
      %1155 = vmatprep.mubr.bf16.mxu0 0
      %1156 = vmatmul.mubr.bf16.gmra.mrb[0].mxu0 %v1026
      %v1157 = vpop.f32.mrb[0].mxu0
      %v1158 = vadd.f32 0.0, %v1157
      %v1159 = vpop.f32.mrb[0].mxu0
      %v1160 = vpop.f32.mrb[0].mxu0
      %v1161 = vadd.f32 0.0, %v1160
      %v1162 = vpop.f32.mrb[0].mxu0
      %1163 = vmatprep.mubr.bf16.mxu0 0
      %1164 = vmatmul.mubr.bf16.gmra.mrb[0].mxu0 %v1029
      %v1165 = vpop.f32.mrb[0].mxu0
      %v1166 = vadd.f32 0.0, %v1165
      %v1167 = vpop.f32.mrb[0].mxu0
      %v1168 = vpop.f32.mrb[0].mxu0
      %v1169 = vadd.f32 0.0, %v1168
      %v1170 = vpop.f32.mrb[0].mxu0
      %1171 = vmatprep.mubr.bf16.mxu0 0
      %1172 = vmatmul.mubr.bf16.gmra.mrb[0].mxu0 %v1032
      %v1173 = vpop.f32.mrb[0].mxu0
      %v1174 = vadd.f32 0.0, %v1173
      %v1175 = vpop.f32.mrb[0].mxu0
      %v1176 = vpop.f32.mrb[0].mxu0
      %v1177 = vadd.f32 0.0, %v1176
      %v1178 = vpop.f32.mrb[0].mxu0
      %1179 = vmatprep.mubr.bf16.mxu0 0
      %1180 = vmatmul.mubr.bf16.gmra.mrb[0].mxu0 %v1035
      %v1181 = vpop.f32.mrb[0].mxu0
      %v1182 = vadd.f32 0.0, %v1181
      %v1183 = vpop.f32.mrb[0].mxu0
      %v1184 = vpop.f32.mrb[0].mxu0
      %v1185 = vadd.f32 0.0, %v1184
      %v1186 = vpop.f32.mrb[0].mxu0
      %1187 = vmatprep.mubr.bf16.mxu0 0
      %1188 = vmatmul.mubr.bf16.gmra.mrb[0].mxu0 %v1038
      %v1189 = vpop.f32.mrb[0].mxu0
      %v1190 = vadd.f32 0.0, %v1189
      %v1191 = vpop.f32.mrb[0].mxu0
      %v1192 = vpop.f32.mrb[0].mxu0
      %v1193 = vadd.f32 0.0, %v1192
      %v1194 = vpop.f32.mrb[0].mxu0
      %1195 = vmatprep.mubr.bf16.mxu0 0
      %1196 = vmatmul.mubr.bf16.gmra.mrb[0].mxu0 %v1041
      %v1197 = vpop.f32.mrb[0].mxu0
      %v1198 = vadd.f32 0.0, %v1197
      %v1199 = vpop.f32.mrb[0].mxu0
      %v1200 = vpop.f32.mrb[0].mxu0
      %v1201 = vadd.f32 0.0, %v1200
      %v1202 = vpop.f32.mrb[0].mxu0
      %1203 = vdwg.mxu0
      %v1236 = vunpack.c.l.b16 %v490
      %v1237 = vunpack.c.l.b16 %v491
      %v1238 = vunpack.c.l.b16 %v492
      %v1239 = vunpack.c.l.b16 %v493
      %v1240 = vunpack.c.l.b16 %v494
      %v1241 = vunpack.c.l.b16 %v495
      %v1242 = vunpack.c.l.b16 %v496
      %v1243 = vunpack.c.l.b16 %v497
      %v1244 = vunpack.c.l.b16 %v498
      %v1245 = vunpack.c.l.b16 %v499
      %v1246 = vunpack.c.l.b16 %v500
      %v1247 = vunpack.c.l.b16 %v501
      %v1248 = vunpack.c.l.b16 %v502
      %v1249 = vunpack.c.l.b16 %v503
      %v1250 = vunpack.c.l.b16 %v504
      %v1251 = vunpack.c.l.b16 %v505
      %v1252 = vunpack.c.l.b16 %v506
      %v1253 = vunpack.c.l.b16 %v507
      %v1254 = vunpack.c.l.b16 %v508
      %v1255 = vunpack.c.l.b16 %v509
      %v1256 = vunpack.c.l.b16 %v510
      %v1257 = vunpack.c.l.b16 %v511
      %v1258 = vunpack.c.l.b16 %v512
      %v1259 = vunpack.c.l.b16 %v513
      %v1260 = vunpack.c.l.b16 %v514
      %v1261 = vunpack.c.l.b16 %v515
      %v1262 = vunpack.c.l.b16 %v516
      %v1263 = vunpack.c.l.b16 %v517
      %v1264 = vunpack.c.l.b16 %v518
      %v1265 = vunpack.c.l.b16 %v519
      %v1266 = vunpack.c.l.b16 %v520
      %v1267 = vunpack.c.l.b16 %v521
      %v1268 = vpack.c.b16 %v1237, %v1236
      %v1269 = vpack.c.b16 %v1239, %v1238
      %v1270 = vpack.c.b16 %v1241, %v1240
      %v1271 = vpack.c.b16 %v1243, %v1242
      %v1272 = vpack.c.b16 %v1245, %v1244
      %v1273 = vpack.c.b16 %v1247, %v1246
      %v1274 = vpack.c.b16 %v1249, %v1248
      %v1275 = vpack.c.b16 %v1251, %v1250
      %v1276 = vpack.c.b16 %v1253, %v1252
      %v1277 = vpack.c.b16 %v1255, %v1254
      %v1278 = vpack.c.b16 %v1257, %v1256
      %v1279 = vpack.c.b16 %v1259, %v1258
      %v1280 = vpack.c.b16 %v1261, %v1260
      %v1281 = vpack.c.b16 %v1263, %v1262
      %v1282 = vpack.c.b16 %v1265, %v1264
      %v1283 = vpack.c.b16 %v1267, %v1266
      %v1288 = vunpack.c.l.b16 %v522
      %v1289 = vunpack.c.l.b16 %v523
      %v1290 = vunpack.c.l.b16 %v524
      %v1291 = vunpack.c.l.b16 %v525
      %v1292 = vpack.c.b16 %v1289, %v1288
      %v1293 = vpack.c.b16 %v1291, %v1290
      %v1297 = vsel %vm994, %v1268, 0
      %v1300 = vsel %vm994, %v1269, 0
      %v1303 = vsel %vm994, %v1270, 0
      %v1306 = vsel %vm994, %v1271, 0
      %v1309 = vsel %vm994, %v1272, 0
      %v1312 = vsel %vm994, %v1273, 0
      %v1315 = vsel %vm994, %v1274, 0
      %v1318 = vsel %vm994, %v1275, 0
      %v1321 = vsel %vm994, %v1276, 0
      %v1324 = vsel %vm994, %v1277, 0
      %v1327 = vsel %vm994, %v1278, 0
      %v1330 = vsel %vm994, %v1279, 0
      %v1333 = vsel %vm994, %v1280, 0
      %v1336 = vsel %vm994, %v1281, 0
      %v1339 = vsel %vm994, %v1282, 0
      %v1342 = vsel %vm994, %v1283, 0
      %1344 = vmatprep.subr.bf16.mxu0 0
      %1345 = vmatpush1.bf16.msra.mxu0 %v1292
      %1346 = vmatprep.subr.bf16.mxu0 0
      %1347 = vmatpush1.bf16.msra.mxu0 %v1293
      %1348 = vmatprep.subr.bf16.mxu0 0
      %1349 = vmatpush1.bf16.msra.mxu0 0
      %1350 = vmatprep.subr.bf16.mxu0 0
      %1351 = vmatpush1.bf16.msra.mxu0 0
      %1352 = vmatprep.subr.bf16.mxu0 0
      %1353 = vmatpush1.bf16.msra.mxu0 0
      %1354 = vmatprep.subr.bf16.mxu0 0
      %1355 = vmatpush1.bf16.msra.mxu0 0
      %1356 = vmatprep.subr.bf16.mxu0 0
      %1357 = vmatpush1.bf16.msra.mxu0 0
      %1358 = vmatprep.subr.bf16.mxu0 0
      %1359 = vmatpush1.bf16.msra.mxu0 0
      %1360 = vmatprep.subr.bf16.mxu0 0
      %1361 = vmatpush1.bf16.msra.mxu0 0
      %1362 = vmatprep.subr.bf16.mxu0 0
      %1363 = vmatpush1.bf16.msra.mxu0 0
      %1364 = vmatprep.subr.bf16.mxu0 0
      %1365 = vmatpush1.bf16.msra.mxu0 0
      %1366 = vmatprep.subr.bf16.mxu0 0
      %1367 = vmatpush1.bf16.msra.mxu0 0
      %1368 = vmatprep.subr.bf16.mxu0 0
      %1369 = vmatpush1.bf16.msra.mxu0 0
      %1370 = vmatprep.subr.bf16.mxu0 0
      %1371 = vmatpush1.bf16.msra.mxu0 0
      %1372 = vmatprep.subr.bf16.mxu0 0
      %1373 = vmatpush1.bf16.msra.mxu0 0
      %1374 = vmatprep.subr.bf16.mxu0 0
      %1375 = vmatpush1.bf16.msra.mxu0 0
      %1376 = vmatprep.mubr.bf16.mxu0 0
      %1377 = vmatmul.mubr.bf16.gmra.mrb[0].mxu0 %v1297
      %v1378 = vpop.f32.mrb[0].mxu0
      %v1379 = vadd.f32 %v1078, %v1378
      %v1380 = vpop.f32.mrb[0].mxu0
      %v1381 = vpop.f32.mrb[0].mxu0
      %v1382 = vadd.f32 %v1081, %v1381
      %v1383 = vpop.f32.mrb[0].mxu0
      %1384 = vmatprep.mubr.bf16.mxu0 0
      %1385 = vmatmul.mubr.bf16.gmra.mrb[0].mxu0 %v1300
      %v1386 = vpop.f32.mrb[0].mxu0
      %v1387 = vadd.f32 %v1086, %v1386
      %v1388 = vpop.f32.mrb[0].mxu0
      %v1389 = vpop.f32.mrb[0].mxu0
      %v1390 = vadd.f32 %v1089, %v1389
      %v1391 = vpop.f32.mrb[0].mxu0
      %1392 = vmatprep.mubr.bf16.mxu0 0
      %1393 = vmatmul.mubr.bf16.gmra.mrb[0].mxu0 %v1303
      %v1394 = vpop.f32.mrb[0].mxu0
      %v1395 = vadd.f32 %v1094, %v1394
      %v1396 = vpop.f32.mrb[0].mxu0
      %v1397 = vpop.f32.mrb[0].mxu0
      %v1398 = vadd.f32 %v1097, %v1397
      %v1399 = vpop.f32.mrb[0].mxu0
      %1400 = vmatprep.mubr.bf16.mxu0 0
      %1401 = vmatmul.mubr.bf16.gmra.mrb[0].mxu0 %v1306
      %v1402 = vpop.f32.mrb[0].mxu0
      %v1403 = vadd.f32 %v1102, %v1402
      %v1404 = vpop.f32.mrb[0].mxu0
      %v1405 = vpop.f32.mrb[0].mxu0
      %v1406 = vadd.f32 %v1105, %v1405
      %v1407 = vpop.f32.mrb[0].mxu0
      %1408 = vmatprep.mubr.bf16.mxu0 0
      %1409 = vmatmul.mubr.bf16.gmra.mrb[0].mxu0 %v1309
      %v1410 = vpop.f32.mrb[0].mxu0
      %v1411 = vadd.f32 %v1110, %v1410
      %v1412 = vpop.f32.mrb[0].mxu0
      %v1413 = vpop.f32.mrb[0].mxu0
      %v1414 = vadd.f32 %v1113, %v1413
      %v1415 = vpop.f32.mrb[0].mxu0
      %1416 = vmatprep.mubr.bf16.mxu0 0
      %1417 = vmatmul.mubr.bf16.gmra.mrb[0].mxu0 %v1312
      %v1418 = vpop.f32.mrb[0].mxu0
      %v1419 = vadd.f32 %v1118, %v1418
      %v1420 = vpop.f32.mrb[0].mxu0
      %v1421 = vpop.f32.mrb[0].mxu0
      %v1422 = vadd.f32 %v1121, %v1421
      %v1423 = vpop.f32.mrb[0].mxu0
      %1424 = vmatprep.mubr.bf16.mxu0 0
      %1425 = vmatmul.mubr.bf16.gmra.mrb[0].mxu0 %v1315
      %v1426 = vpop.f32.mrb[0].mxu0
      %v1427 = vadd.f32 %v1126, %v1426
      %v1428 = vpop.f32.mrb[0].mxu0
      %v1429 = vpop.f32.mrb[0].mxu0
      %v1430 = vadd.f32 %v1129, %v1429
      %v1431 = vpop.f32.mrb[0].mxu0
      %1432 = vmatprep.mubr.bf16.mxu0 0
      %1433 = vmatmul.mubr.bf16.gmra.mrb[0].mxu0 %v1318
      %v1434 = vpop.f32.mrb[0].mxu0
      %v1435 = vadd.f32 %v1134, %v1434
      %v1436 = vpop.f32.mrb[0].mxu0
      %v1437 = vpop.f32.mrb[0].mxu0
      %v1438 = vadd.f32 %v1137, %v1437
      %v1439 = vpop.f32.mrb[0].mxu0
      %1440 = vmatprep.mubr.bf16.mxu0 0
      %1441 = vmatmul.mubr.bf16.gmra.mrb[0].mxu0 %v1321
      %v1442 = vpop.f32.mrb[0].mxu0
      %v1443 = vadd.f32 %v1142, %v1442
      %v1444 = vpop.f32.mrb[0].mxu0
      %v1445 = vpop.f32.mrb[0].mxu0
      %v1446 = vadd.f32 %v1145, %v1445
      %v1447 = vpop.f32.mrb[0].mxu0
      %1448 = vmatprep.mubr.bf16.mxu0 0
      %1449 = vmatmul.mubr.bf16.gmra.mrb[0].mxu0 %v1324
      %v1450 = vpop.f32.mrb[0].mxu0
      %v1451 = vadd.f32 %v1150, %v1450
      %v1452 = vpop.f32.mrb[0].mxu0
      %v1453 = vpop.f32.mrb[0].mxu0
      %v1454 = vadd.f32 %v1153, %v1453
      %v1455 = vpop.f32.mrb[0].mxu0
      %1456 = vmatprep.mubr.bf16.mxu0 0
      %1457 = vmatmul.mubr.bf16.gmra.mrb[0].mxu0 %v1327
      %v1458 = vpop.f32.mrb[0].mxu0
      %v1459 = vadd.f32 %v1158, %v1458
      %v1460 = vpop.f32.mrb[0].mxu0
      %v1461 = vpop.f32.mrb[0].mxu0
      %v1462 = vadd.f32 %v1161, %v1461
      %v1463 = vpop.f32.mrb[0].mxu0
      %1464 = vmatprep.mubr.bf16.mxu0 0
      %1465 = vmatmul.mubr.bf16.gmra.mrb[0].mxu0 %v1330
      %v1466 = vpop.f32.mrb[0].mxu0
      %v1467 = vadd.f32 %v1166, %v1466
      %v1468 = vpop.f32.mrb[0].mxu0
      %v1469 = vpop.f32.mrb[0].mxu0
      %v1470 = vadd.f32 %v1169, %v1469
      %v1471 = vpop.f32.mrb[0].mxu0
      %1472 = vmatprep.mubr.bf16.mxu0 0
      %1473 = vmatmul.mubr.bf16.gmra.mrb[0].mxu0 %v1333
      %v1474 = vpop.f32.mrb[0].mxu0
      %v1475 = vadd.f32 %v1174, %v1474
      %v1476 = vpop.f32.mrb[0].mxu0
      %v1477 = vpop.f32.mrb[0].mxu0
      %v1478 = vadd.f32 %v1177, %v1477
      %v1479 = vpop.f32.mrb[0].mxu0
      %1480 = vmatprep.mubr.bf16.mxu0 0
      %1481 = vmatmul.mubr.bf16.gmra.mrb[0].mxu0 %v1336
      %v1482 = vpop.f32.mrb[0].mxu0
      %v1483 = vadd.f32 %v1182, %v1482
      %v1484 = vpop.f32.mrb[0].mxu0
      %v1485 = vpop.f32.mrb[0].mxu0
      %v1486 = vadd.f32 %v1185, %v1485
      %v1487 = vpop.f32.mrb[0].mxu0
      %1488 = vmatprep.mubr.bf16.mxu0 0
      %1489 = vmatmul.mubr.bf16.gmra.mrb[0].mxu0 %v1339
      %v1490 = vpop.f32.mrb[0].mxu0
      %v1491 = vadd.f32 %v1190, %v1490
      %v1492 = vpop.f32.mrb[0].mxu0
      %v1493 = vpop.f32.mrb[0].mxu0
      %v1494 = vadd.f32 %v1193, %v1493
      %v1495 = vpop.f32.mrb[0].mxu0
      %1496 = vmatprep.mubr.bf16.mxu0 0
      %1497 = vmatmul.mubr.bf16.gmra.mrb[0].mxu0 %v1342
      %v1498 = vpop.f32.mrb[0].mxu0
      %v1499 = vadd.f32 %v1198, %v1498
      %v1500 = vpop.f32.mrb[0].mxu0
      %v1501 = vpop.f32.mrb[0].mxu0
      %v1502 = vadd.f32 %v1201, %v1501
      %v1503 = vpop.f32.mrb[0].mxu0
      %1504 = vdwg.mxu0
      %v1505 = vld [vmem:[#allocation2] sm:$0xe]
      %v1506 = vld [vmem:[#allocation2 + $0xc] sm:$0xe]
      %v1507 = vld [vmem:[#allocation2 + $0x18] sm:$0xe]
      %v1508 = vld [vmem:[#allocation2 + $0x24] sm:$0xe]
      %v1509 = vld [vmem:[#allocation2 + $0x30] sm:$0xe]
      %v1510 = vld [vmem:[#allocation2 + $0x3c] sm:$0xe]
      %v1511 = vld [vmem:[#allocation2 + $0x48] sm:$0xe]
      %v1512 = vld [vmem:[#allocation2 + $0x54] sm:$0xe]
      %v1513 = vld [vmem:[#allocation2 + $0x60] sm:$0xe]
      %v1514 = vld [vmem:[#allocation2 + $0x6c] sm:$0xe]
      %v1515 = vld [vmem:[#allocation2 + $0x78] sm:$0xe]
      %v1516 = vld [vmem:[#allocation2 + $0x84] sm:$0xe]
      %v1517 = vld [vmem:[#allocation2 + $0x90] sm:$0xe]
      %v1518 = vld [vmem:[#allocation2 + $0x9c] sm:$0xe]
      %v1519 = vld [vmem:[#allocation2 + $0xa8] sm:$0xe]
      %v1520 = vld [vmem:[#allocation2 + $0xb4] sm:$0xe]
      %vm1553 = vcmask 1042432
      %vm1554 = vcmask 1046532
      %vm1555 = vmor %vm1553, %vm1554
      %v1556 = vrot.slane %v1505, 5
      %v1557 = vrot.slane %v1556, 4
      %v1558 = vrot.slane %v491, 5
      %v1559 = vsel %vm1555, %v1557, %v1558
      %v1560 = vrot.slane %v1558, 4
      %v1561 = vrot.slane %v526, 5
      %v1562 = vsel %vm1555, %v1560, %v1561
      %v1563 = vrot.slane %v1506, 5
      %v1564 = vrot.slane %v1563, 4
      %v1565 = vrot.slane %v493, 5
      %v1566 = vsel %vm1555, %v1564, %v1565
      %v1567 = vrot.slane %v1565, 4
      %v1568 = vrot.slane %v527, 5
      %v1569 = vsel %vm1555, %v1567, %v1568
      %v1570 = vrot.slane %v1507, 5
      %v1571 = vrot.slane %v1570, 4
      %v1572 = vrot.slane %v495, 5
      %v1573 = vsel %vm1555, %v1571, %v1572
      %v1574 = vrot.slane %v1572, 4
      %v1575 = vrot.slane %v528, 5
      %v1576 = vsel %vm1555, %v1574, %v1575
      %v1577 = vrot.slane %v1508, 5
      %v1578 = vrot.slane %v1577, 4
      %v1579 = vrot.slane %v497, 5
      %v1580 = vsel %vm1555, %v1578, %v1579
      %v1581 = vrot.slane %v1579, 4
      %v1582 = vrot.slane %v529, 5
      %v1583 = vsel %vm1555, %v1581, %v1582
      %v1584 = vrot.slane %v1509, 5
      %v1585 = vrot.slane %v1584, 4
      %v1586 = vrot.slane %v499, 5
      %v1587 = vsel %vm1555, %v1585, %v1586
      %v1588 = vrot.slane %v1586, 4
      %v1589 = vrot.slane %v530, 5
      %v1590 = vsel %vm1555, %v1588, %v1589
      %v1591 = vrot.slane %v1510, 5
      %v1592 = vrot.slane %v1591, 4
      %v1593 = vrot.slane %v501, 5
      %v1594 = vsel %vm1555, %v1592, %v1593
      %v1595 = vrot.slane %v1593, 4
      %v1596 = vrot.slane %v531, 5
      %v1597 = vsel %vm1555, %v1595, %v1596
      %v1598 = vrot.slane %v1511, 5
      %v1599 = vrot.slane %v1598, 4
      %v1600 = vrot.slane %v503, 5
      %v1601 = vsel %vm1555, %v1599, %v1600
      %v1602 = vrot.slane %v1600, 4
      %v1603 = vrot.slane %v532, 5
      %v1604 = vsel %vm1555, %v1602, %v1603
      %v1605 = vrot.slane %v1512, 5
      %v1606 = vrot.slane %v1605, 4
      %v1607 = vrot.slane %v505, 5
      %v1608 = vsel %vm1555, %v1606, %v1607
      %v1609 = vrot.slane %v1607, 4
      %v1610 = vrot.slane %v533, 5
      %v1611 = vsel %vm1555, %v1609, %v1610
      %v1612 = vrot.slane %v1513, 5
      %v1613 = vrot.slane %v1612, 4
      %v1614 = vrot.slane %v507, 5
      %v1615 = vsel %vm1555, %v1613, %v1614
      %v1616 = vrot.slane %v1614, 4
      %v1617 = vrot.slane %v534, 5
      %v1618 = vsel %vm1555, %v1616, %v1617
      %v1619 = vrot.slane %v1514, 5
      %v1620 = vrot.slane %v1619, 4
      %v1621 = vrot.slane %v509, 5
      %v1622 = vsel %vm1555, %v1620, %v1621
      %v1623 = vrot.slane %v1621, 4
      %v1624 = vrot.slane %v535, 5
      %v1625 = vsel %vm1555, %v1623, %v1624
      %v1626 = vrot.slane %v1515, 5
      %v1627 = vrot.slane %v1626, 4
      %v1628 = vrot.slane %v511, 5
      %v1629 = vsel %vm1555, %v1627, %v1628
      %v1630 = vrot.slane %v1628, 4
      %v1631 = vrot.slane %v536, 5
      %v1632 = vsel %vm1555, %v1630, %v1631
      %v1633 = vrot.slane %v1516, 5
      %v1634 = vrot.slane %v1633, 4
      %v1635 = vrot.slane %v513, 5
      %v1636 = vsel %vm1555, %v1634, %v1635
      %v1637 = vrot.slane %v1635, 4
      %v1638 = vrot.slane %v537, 5
      %v1639 = vsel %vm1555, %v1637, %v1638
      %v1640 = vrot.slane %v1517, 5
      %v1641 = vrot.slane %v1640, 4
      %v1642 = vrot.slane %v515, 5
      %v1643 = vsel %vm1555, %v1641, %v1642
      %v1644 = vrot.slane %v1642, 4
      %v1645 = vrot.slane %v538, 5
      %v1646 = vsel %vm1555, %v1644, %v1645
      %v1647 = vrot.slane %v1518, 5
      %v1648 = vrot.slane %v1647, 4
      %v1649 = vrot.slane %v517, 5
      %v1650 = vsel %vm1555, %v1648, %v1649
      %v1651 = vrot.slane %v1649, 4
      %v1652 = vrot.slane %v539, 5
      %v1653 = vsel %vm1555, %v1651, %v1652
      %v1654 = vrot.slane %v1519, 5
      %v1655 = vrot.slane %v1654, 4
      %v1656 = vrot.slane %v519, 5
      %v1657 = vsel %vm1555, %v1655, %v1656
      %v1658 = vrot.slane %v1656, 4
      %v1659 = vrot.slane %v540, 5
      %v1660 = vsel %vm1555, %v1658, %v1659
      %v1661 = vrot.slane %v1520, 5
      %v1662 = vrot.slane %v1661, 4
      %v1663 = vrot.slane %v521, 5
      %v1664 = vsel %vm1555, %v1662, %v1663
      %v1665 = vrot.slane %v1663, 4
      %v1666 = vrot.slane %v541, 5
      %v1667 = vsel %vm1555, %v1665, %v1666
      %s1668 = scalar_lea.vmem %s2, 32
      %v1669 = vld [vmem:[%s1668] sm:$0xf]
      %v1670 = vld [vmem:[%s1668 + $0x4] sm:$0xf]
      %v1671 = vld [vmem:[%s1668 + $0x8] sm:$0xf]
      %v1672 = vld [vmem:[%s1668 + $0xc] sm:$0xf]
      %v1673 = vunpack.c.l.b16 %v1559
      %v1674 = vunpack.c.l.b16 %v1562
      %v1675 = vunpack.c.l.b16 %v1566
      %v1676 = vunpack.c.l.b16 %v1569
      %v1677 = vunpack.c.l.b16 %v1573
      %v1678 = vunpack.c.l.b16 %v1576
      %v1679 = vunpack.c.l.b16 %v1580
      %v1680 = vunpack.c.l.b16 %v1583
      %v1681 = vunpack.c.l.b16 %v1587
      %v1682 = vunpack.c.l.b16 %v1590
      %v1683 = vunpack.c.l.b16 %v1594
      %v1684 = vunpack.c.l.b16 %v1597
      %v1685 = vunpack.c.l.b16 %v1601
      %v1686 = vunpack.c.l.b16 %v1604
      %v1687 = vunpack.c.l.b16 %v1608
      %v1688 = vunpack.c.l.b16 %v1611
      %v1689 = vunpack.c.l.b16 %v1615
      %v1690 = vunpack.c.l.b16 %v1618
      %v1691 = vunpack.c.l.b16 %v1622
      %v1692 = vunpack.c.l.b16 %v1625
      %v1693 = vunpack.c.l.b16 %v1629
      %v1694 = vunpack.c.l.b16 %v1632
      %v1695 = vunpack.c.l.b16 %v1636
      %v1696 = vunpack.c.l.b16 %v1639
      %v1697 = vunpack.c.l.b16 %v1643
      %v1698 = vunpack.c.l.b16 %v1646
      %v1699 = vunpack.c.l.b16 %v1650
      %v1700 = vunpack.c.l.b16 %v1653
      %v1701 = vunpack.c.l.b16 %v1657
      %v1702 = vunpack.c.l.b16 %v1660
      %v1703 = vunpack.c.l.b16 %v1664
      %v1704 = vunpack.c.l.b16 %v1667
      %v1705 = vpack.c.b16 %v1674, %v1673
      %v1706 = vpack.c.b16 %v1676, %v1675
      %v1707 = vpack.c.b16 %v1678, %v1677
      %v1708 = vpack.c.b16 %v1680, %v1679
      %v1709 = vpack.c.b16 %v1682, %v1681
      %v1710 = vpack.c.b16 %v1684, %v1683
      %v1711 = vpack.c.b16 %v1686, %v1685
      %v1712 = vpack.c.b16 %v1688, %v1687
      %v1713 = vpack.c.b16 %v1690, %v1689
      %v1714 = vpack.c.b16 %v1692, %v1691
      %v1715 = vpack.c.b16 %v1694, %v1693
      %v1716 = vpack.c.b16 %v1696, %v1695
      %v1717 = vpack.c.b16 %v1698, %v1697
      %v1718 = vpack.c.b16 %v1700, %v1699
      %v1719 = vpack.c.b16 %v1702, %v1701
      %v1720 = vpack.c.b16 %v1704, %v1703
      %v1725 = vunpack.c.l.b16 %v1669
      %v1726 = vunpack.c.l.b16 %v1670
      %v1727 = vunpack.c.l.b16 %v1671
      %v1728 = vunpack.c.l.b16 %v1672
      %v1729 = vpack.c.b16 %v1726, %v1725
      %v1730 = vpack.c.b16 %v1728, %v1727
      %v1734 = vsel %vm994, %v1705, 0
      %v1737 = vsel %vm994, %v1706, 0
      %v1740 = vsel %vm994, %v1707, 0
      %v1743 = vsel %vm994, %v1708, 0
      %v1746 = vsel %vm994, %v1709, 0
      %v1749 = vsel %vm994, %v1710, 0
      %v1752 = vsel %vm994, %v1711, 0
      %v1755 = vsel %vm994, %v1712, 0
      %v1758 = vsel %vm994, %v1713, 0
      %v1761 = vsel %vm994, %v1714, 0
      %v1764 = vsel %vm994, %v1715, 0
      %v1767 = vsel %vm994, %v1716, 0
      %v1770 = vsel %vm994, %v1717, 0
      %v1773 = vsel %vm994, %v1718, 0
      %v1776 = vsel %vm994, %v1719, 0
      %v1779 = vsel %vm994, %v1720, 0
      %1781 = vmatprep.subr.bf16.mxu0 0
      %1782 = vmatpush1.bf16.msra.mxu0 %v1729
      %1783 = vmatprep.subr.bf16.mxu0 0
      %1784 = vmatpush1.bf16.msra.mxu0 %v1730
      %1785 = vmatprep.subr.bf16.mxu0 0
      %1786 = vmatpush1.bf16.msra.mxu0 0
      %1787 = vmatprep.subr.bf16.mxu0 0
      %1788 = vmatpush1.bf16.msra.mxu0 0
      %1789 = vmatprep.subr.bf16.mxu0 0
      %1790 = vmatpush1.bf16.msra.mxu0 0
      %1791 = vmatprep.subr.bf16.mxu0 0
      %1792 = vmatpush1.bf16.msra.mxu0 0
      %1793 = vmatprep.subr.bf16.mxu0 0
      %1794 = vmatpush1.bf16.msra.mxu0 0
      %1795 = vmatprep.subr.bf16.mxu0 0
      %1796 = vmatpush1.bf16.msra.mxu0 0
      %1797 = vmatprep.subr.bf16.mxu0 0
      %1798 = vmatpush1.bf16.msra.mxu0 0
      %1799 = vmatprep.subr.bf16.mxu0 0
      %1800 = vmatpush1.bf16.msra.mxu0 0
      %1801 = vmatprep.subr.bf16.mxu0 0
      %1802 = vmatpush1.bf16.msra.mxu0 0
      %1803 = vmatprep.subr.bf16.mxu0 0
      %1804 = vmatpush1.bf16.msra.mxu0 0
      %1805 = vmatprep.subr.bf16.mxu0 0
      %1806 = vmatpush1.bf16.msra.mxu0 0
      %1807 = vmatprep.subr.bf16.mxu0 0
      %1808 = vmatpush1.bf16.msra.mxu0 0
      %1809 = vmatprep.subr.bf16.mxu0 0
      %1810 = vmatpush1.bf16.msra.mxu0 0
      %1811 = vmatprep.subr.bf16.mxu0 0
      %1812 = vmatpush1.bf16.msra.mxu0 0
      %1813 = vmatprep.mubr.bf16.mxu0 0
      %1814 = vmatmul.mubr.bf16.gmra.mrb[0].mxu0 %v1734
      %v1815 = vpop.f32.mrb[0].mxu0
      %v1816 = vadd.f32 0.0, %v1815
      %v1817 = vpop.f32.mrb[0].mxu0
      %v1818 = vpop.f32.mrb[0].mxu0
      %v1819 = vadd.f32 0.0, %v1818
      %v1820 = vpop.f32.mrb[0].mxu0
      %1821 = vmatprep.mubr.bf16.mxu0 0
      %1822 = vmatmul.mubr.bf16.gmra.mrb[0].mxu0 %v1737
      %v1823 = vpop.f32.mrb[0].mxu0
      %v1824 = vadd.f32 0.0, %v1823
      %v1825 = vpop.f32.mrb[0].mxu0
      %v1826 = vpop.f32.mrb[0].mxu0
      %v1827 = vadd.f32 0.0, %v1826
      %v1828 = vpop.f32.mrb[0].mxu0
      %1829 = vmatprep.mubr.bf16.mxu0 0
      %1830 = vmatmul.mubr.bf16.gmra.mrb[0].mxu0 %v1740
      %v1831 = vpop.f32.mrb[0].mxu0
      %v1832 = vadd.f32 0.0, %v1831
      %v1833 = vpop.f32.mrb[0].mxu0
      %v1834 = vpop.f32.mrb[0].mxu0
      %v1835 = vadd.f32 0.0, %v1834
      %v1836 = vpop.f32.mrb[0].mxu0
      %1837 = vmatprep.mubr.bf16.mxu0 0
      %1838 = vmatmul.mubr.bf16.gmra.mrb[0].mxu0 %v1743
      %v1839 = vpop.f32.mrb[0].mxu0
      %v1840 = vadd.f32 0.0, %v1839
      %v1841 = vpop.f32.mrb[0].mxu0
      %v1842 = vpop.f32.mrb[0].mxu0
      %v1843 = vadd.f32 0.0, %v1842
      %v1844 = vpop.f32.mrb[0].mxu0
      %1845 = vmatprep.mubr.bf16.mxu0 0
      %1846 = vmatmul.mubr.bf16.gmra.mrb[0].mxu0 %v1746
      %v1847 = vpop.f32.mrb[0].mxu0
      %v1848 = vadd.f32 0.0, %v1847
      %v1849 = vpop.f32.mrb[0].mxu0
      %v1850 = vpop.f32.mrb[0].mxu0
      %v1851 = vadd.f32 0.0, %v1850
      %v1852 = vpop.f32.mrb[0].mxu0
      %1853 = vmatprep.mubr.bf16.mxu0 0
      %1854 = vmatmul.mubr.bf16.gmra.mrb[0].mxu0 %v1749
      %v1855 = vpop.f32.mrb[0].mxu0
      %v1856 = vadd.f32 0.0, %v1855
      %v1857 = vpop.f32.mrb[0].mxu0
      %v1858 = vpop.f32.mrb[0].mxu0
      %v1859 = vadd.f32 0.0, %v1858
      %v1860 = vpop.f32.mrb[0].mxu0
      %1861 = vmatprep.mubr.bf16.mxu0 0
      %1862 = vmatmul.mubr.bf16.gmra.mrb[0].mxu0 %v1752
      %v1863 = vpop.f32.mrb[0].mxu0
      %v1864 = vadd.f32 0.0, %v1863
      %v1865 = vpop.f32.mrb[0].mxu0
      %v1866 = vpop.f32.mrb[0].mxu0
      %v1867 = vadd.f32 0.0, %v1866
      %v1868 = vpop.f32.mrb[0].mxu0
      %1869 = vmatprep.mubr.bf16.mxu0 0
      %1870 = vmatmul.mubr.bf16.gmra.mrb[0].mxu0 %v1755
      %v1871 = vpop.f32.mrb[0].mxu0
      %v1872 = vadd.f32 0.0, %v1871
      %v1873 = vpop.f32.mrb[0].mxu0
      %v1874 = vpop.f32.mrb[0].mxu0
      %v1875 = vadd.f32 0.0, %v1874
      %v1876 = vpop.f32.mrb[0].mxu0
      %1877 = vmatprep.mubr.bf16.mxu0 0
      %1878 = vmatmul.mubr.bf16.gmra.mrb[0].mxu0 %v1758
      %v1879 = vpop.f32.mrb[0].mxu0
      %v1880 = vadd.f32 0.0, %v1879
      %v1881 = vpop.f32.mrb[0].mxu0
      %v1882 = vpop.f32.mrb[0].mxu0
      %v1883 = vadd.f32 0.0, %v1882
      %v1884 = vpop.f32.mrb[0].mxu0
      %1885 = vmatprep.mubr.bf16.mxu0 0
      %1886 = vmatmul.mubr.bf16.gmra.mrb[0].mxu0 %v1761
      %v1887 = vpop.f32.mrb[0].mxu0
      %v1888 = vadd.f32 0.0, %v1887
      %v1889 = vpop.f32.mrb[0].mxu0
      %v1890 = vpop.f32.mrb[0].mxu0
      %v1891 = vadd.f32 0.0, %v1890
      %v1892 = vpop.f32.mrb[0].mxu0
      %1893 = vmatprep.mubr.bf16.mxu0 0
      %1894 = vmatmul.mubr.bf16.gmra.mrb[0].mxu0 %v1764
      %v1895 = vpop.f32.mrb[0].mxu0
      %v1896 = vadd.f32 0.0, %v1895
      %v1897 = vpop.f32.mrb[0].mxu0
      %v1898 = vpop.f32.mrb[0].mxu0
      %v1899 = vadd.f32 0.0, %v1898
      %v1900 = vpop.f32.mrb[0].mxu0
      %1901 = vmatprep.mubr.bf16.mxu0 0
      %1902 = vmatmul.mubr.bf16.gmra.mrb[0].mxu0 %v1767
      %v1903 = vpop.f32.mrb[0].mxu0
      %v1904 = vadd.f32 0.0, %v1903
      %v1905 = vpop.f32.mrb[0].mxu0
      %v1906 = vpop.f32.mrb[0].mxu0
      %v1907 = vadd.f32 0.0, %v1906
      %v1908 = vpop.f32.mrb[0].mxu0
      %1909 = vmatprep.mubr.bf16.mxu0 0
      %1910 = vmatmul.mubr.bf16.gmra.mrb[0].mxu0 %v1770
      %v1911 = vpop.f32.mrb[0].mxu0
      %v1912 = vadd.f32 0.0, %v1911
      %v1913 = vpop.f32.mrb[0].mxu0
      %v1914 = vpop.f32.mrb[0].mxu0
      %v1915 = vadd.f32 0.0, %v1914
      %v1916 = vpop.f32.mrb[0].mxu0
      %1917 = vmatprep.mubr.bf16.mxu0 0
      %1918 = vmatmul.mubr.bf16.gmra.mrb[0].mxu0 %v1773
      %v1919 = vpop.f32.mrb[0].mxu0
      %v1920 = vadd.f32 0.0, %v1919
      %v1921 = vpop.f32.mrb[0].mxu0
      %v1922 = vpop.f32.mrb[0].mxu0
      %v1923 = vadd.f32 0.0, %v1922
      %v1924 = vpop.f32.mrb[0].mxu0
      %1925 = vmatprep.mubr.bf16.mxu0 0
      %1926 = vmatmul.mubr.bf16.gmra.mrb[0].mxu0 %v1776
      %v1927 = vpop.f32.mrb[0].mxu0
      %v1928 = vadd.f32 0.0, %v1927
      %v1929 = vpop.f32.mrb[0].mxu0
      %v1930 = vpop.f32.mrb[0].mxu0
      %v1931 = vadd.f32 0.0, %v1930
      %v1932 = vpop.f32.mrb[0].mxu0
      %1933 = vmatprep.mubr.bf16.mxu0 0
      %1934 = vmatmul.mubr.bf16.gmra.mrb[0].mxu0 %v1779
      %v1935 = vpop.f32.mrb[0].mxu0
      %v1936 = vadd.f32 0.0, %v1935
      %v1937 = vpop.f32.mrb[0].mxu0
      %v1938 = vpop.f32.mrb[0].mxu0
      %v1939 = vadd.f32 0.0, %v1938
      %v1940 = vpop.f32.mrb[0].mxu0
      %1941 = vdwg.mxu0
      %v1942 = vadd.f32 %v1379, %v1816
      %v1943 = vadd.f32 %v1382, %v1819
      %v1944 = vadd.f32 %v1387, %v1824
      %v1945 = vadd.f32 %v1390, %v1827
      %v1946 = vadd.f32 %v1395, %v1832
      %v1947 = vadd.f32 %v1398, %v1835
      %v1948 = vadd.f32 %v1403, %v1840
      %v1949 = vadd.f32 %v1406, %v1843
      %v1950 = vadd.f32 %v1411, %v1848
      %v1951 = vadd.f32 %v1414, %v1851
      %v1952 = vadd.f32 %v1419, %v1856
      %v1953 = vadd.f32 %v1422, %v1859
      %v1954 = vadd.f32 %v1427, %v1864
      %v1955 = vadd.f32 %v1430, %v1867
      %v1956 = vadd.f32 %v1435, %v1872
      %v1957 = vadd.f32 %v1438, %v1875
      %v1958 = vadd.f32 %v1443, %v1880
      %v1959 = vadd.f32 %v1446, %v1883
      %v1960 = vadd.f32 %v1451, %v1888
      %v1961 = vadd.f32 %v1454, %v1891
      %v1962 = vadd.f32 %v1459, %v1896
      %v1963 = vadd.f32 %v1462, %v1899
      %v1964 = vadd.f32 %v1467, %v1904
      %v1965 = vadd.f32 %v1470, %v1907
      %v1966 = vadd.f32 %v1475, %v1912
      %v1967 = vadd.f32 %v1478, %v1915
      %v1968 = vadd.f32 %v1483, %v1920
      %v1969 = vadd.f32 %v1486, %v1923
      %v1970 = vadd.f32 %v1491, %v1928
      %v1971 = vadd.f32 %v1494, %v1931
      %v1972 = vadd.f32 %v1499, %v1936
      %v1973 = vadd.f32 %v1502, %v1939
      %s1974 = scalar_lea.vmem [#allocation2], 12
      %v1975 = vld [vmem:[%s1974] sm:$0xf]
      %v1976 = vld [vmem:[%s1974 + $0x4] sm:$0xf]
      %v1977 = vld [vmem:[%s1974 + $0xc] sm:$0xf]
      %v1978 = vld [vmem:[%s1974 + $0x10] sm:$0xf]
      %v1979 = vld [vmem:[%s1974 + $0x18] sm:$0xf]
      %v1980 = vld [vmem:[%s1974 + $0x1c] sm:$0xf]
      %v1981 = vld [vmem:[%s1974 + $0x24] sm:$0xf]
      %v1982 = vld [vmem:[%s1974 + $0x28] sm:$0xf]
      %v1983 = vld [vmem:[%s1974 + $0x30] sm:$0xf]
      %v1984 = vld [vmem:[%s1974 + $0x34] sm:$0xf]
      %v1985 = vld [vmem:[%s1974 + $0x3c] sm:$0xf]
      %v1986 = vld [vmem:[%s1974 + $0x40] sm:$0xf]
      %v1987 = vld [vmem:[%s1974 + $0x48] sm:$0xf]
      %v1988 = vld [vmem:[%s1974 + $0x4c] sm:$0xf]
      %v1989 = vld [vmem:[%s1974 + $0x54] sm:$0xf]
      %v1990 = vld [vmem:[%s1974 + $0x58] sm:$0xf]
      %v1991 = vld [vmem:[%s1974 + $0x60] sm:$0xf]
      %v1992 = vld [vmem:[%s1974 + $0x64] sm:$0xf]
      %v1993 = vld [vmem:[%s1974 + $0x6c] sm:$0xf]
      %v1994 = vld [vmem:[%s1974 + $0x70] sm:$0xf]
      %v1995 = vld [vmem:[%s1974 + $0x78] sm:$0xf]
      %v1996 = vld [vmem:[%s1974 + $0x7c] sm:$0xf]
      %v1997 = vld [vmem:[%s1974 + $0x84] sm:$0xf]
      %v1998 = vld [vmem:[%s1974 + $0x88] sm:$0xf]
      %v1999 = vld [vmem:[%s1974 + $0x90] sm:$0xf]
      %v2000 = vld [vmem:[%s1974 + $0x94] sm:$0xf]
      %v2001 = vld [vmem:[%s1974 + $0x9c] sm:$0xf]
      %v2002 = vld [vmem:[%s1974 + $0xa0] sm:$0xf]
      %v2003 = vld [vmem:[%s1974 + $0xa8] sm:$0xf]
      %v2004 = vld [vmem:[%s1974 + $0xac] sm:$0xf]
      %v2005 = vld [vmem:[%s1974 + $0xb4] sm:$0xf]
      %v2006 = vld [vmem:[%s1974 + $0xb8] sm:$0xf]
      %s2007 = scalar_lea.vmem %s2, 48
      %v2008 = vld [vmem:[%s2007] sm:$0xf]
      %v2009 = vld [vmem:[%s2007 + $0x4] sm:$0xf]
      %v2010 = vld [vmem:[%s2007 + $0x8] sm:$0xf]
      %v2011 = vld [vmem:[%s2007 + $0xc] sm:$0xf]
      %v2044 = vunpack.c.l.b16 %v1975
      %v2045 = vunpack.c.l.b16 %v1976
      %v2046 = vunpack.c.l.b16 %v1977
      %v2047 = vunpack.c.l.b16 %v1978
      %v2048 = vunpack.c.l.b16 %v1979
      %v2049 = vunpack.c.l.b16 %v1980
      %v2050 = vunpack.c.l.b16 %v1981
      %v2051 = vunpack.c.l.b16 %v1982
      %v2052 = vunpack.c.l.b16 %v1983
      %v2053 = vunpack.c.l.b16 %v1984
      %v2054 = vunpack.c.l.b16 %v1985
      %v2055 = vunpack.c.l.b16 %v1986
      %v2056 = vunpack.c.l.b16 %v1987
      %v2057 = vunpack.c.l.b16 %v1988
      %v2058 = vunpack.c.l.b16 %v1989
      %v2059 = vunpack.c.l.b16 %v1990
      %v2060 = vunpack.c.l.b16 %v1991
      %v2061 = vunpack.c.l.b16 %v1992
      %v2062 = vunpack.c.l.b16 %v1993
      %v2063 = vunpack.c.l.b16 %v1994
      %v2064 = vunpack.c.l.b16 %v1995
      %v2065 = vunpack.c.l.b16 %v1996
      %v2066 = vunpack.c.l.b16 %v1997
      %v2067 = vunpack.c.l.b16 %v1998
      %v2068 = vunpack.c.l.b16 %v1999
      %v2069 = vunpack.c.l.b16 %v2000
      %v2070 = vunpack.c.l.b16 %v2001
      %v2071 = vunpack.c.l.b16 %v2002
      %v2072 = vunpack.c.l.b16 %v2003
      %v2073 = vunpack.c.l.b16 %v2004
      %v2074 = vunpack.c.l.b16 %v2005
      %v2075 = vunpack.c.l.b16 %v2006
      %v2076 = vpack.c.b16 %v2045, %v2044
      %v2077 = vpack.c.b16 %v2047, %v2046
      %v2078 = vpack.c.b16 %v2049, %v2048
      %v2079 = vpack.c.b16 %v2051, %v2050
      %v2080 = vpack.c.b16 %v2053, %v2052
      %v2081 = vpack.c.b16 %v2055, %v2054
      %v2082 = vpack.c.b16 %v2057, %v2056
      %v2083 = vpack.c.b16 %v2059, %v2058
      %v2084 = vpack.c.b16 %v2061, %v2060
      %v2085 = vpack.c.b16 %v2063, %v2062
      %v2086 = vpack.c.b16 %v2065, %v2064
      %v2087 = vpack.c.b16 %v2067, %v2066
      %v2088 = vpack.c.b16 %v2069, %v2068
      %v2089 = vpack.c.b16 %v2071, %v2070
      %v2090 = vpack.c.b16 %v2073, %v2072
      %v2091 = vpack.c.b16 %v2075, %v2074
      %v2096 = vunpack.c.l.b16 %v2008
      %v2097 = vunpack.c.l.b16 %v2009
      %v2098 = vunpack.c.l.b16 %v2010
      %v2099 = vunpack.c.l.b16 %v2011
      %v2100 = vpack.c.b16 %v2097, %v2096
      %v2101 = vpack.c.b16 %v2099, %v2098
      %v2105 = vsel %vm994, %v2076, 0
      %v2108 = vsel %vm994, %v2077, 0
      %v2111 = vsel %vm994, %v2078, 0
      %v2114 = vsel %vm994, %v2079, 0
      %v2117 = vsel %vm994, %v2080, 0
      %v2120 = vsel %vm994, %v2081, 0
      %v2123 = vsel %vm994, %v2082, 0
      %v2126 = vsel %vm994, %v2083, 0
      %v2129 = vsel %vm994, %v2084, 0
      %v2132 = vsel %vm994, %v2085, 0
      %v2135 = vsel %vm994, %v2086, 0
      %v2138 = vsel %vm994, %v2087, 0
      %v2141 = vsel %vm994, %v2088, 0
      %v2144 = vsel %vm994, %v2089, 0
      %v2147 = vsel %vm994, %v2090, 0
      %v2150 = vsel %vm994, %v2091, 0
      %2152 = vmatprep.subr.bf16.mxu0 0
      %2153 = vmatpush1.bf16.msra.mxu0 %v2100
      %2154 = vmatprep.subr.bf16.mxu0 0
      %2155 = vmatpush1.bf16.msra.mxu0 %v2101
      %2156 = vmatprep.subr.bf16.mxu0 0
      %2157 = vmatpush1.bf16.msra.mxu0 0
      %2158 = vmatprep.subr.bf16.mxu0 0
      %2159 = vmatpush1.bf16.msra.mxu0 0
      %2160 = vmatprep.subr.bf16.mxu0 0
      %2161 = vmatpush1.bf16.msra.mxu0 0
      %2162 = vmatprep.subr.bf16.mxu0 0
      %2163 = vmatpush1.bf16.msra.mxu0 0
      %2164 = vmatprep.subr.bf16.mxu0 0
      %2165 = vmatpush1.bf16.msra.mxu0 0
      %2166 = vmatprep.subr.bf16.mxu0 0
      %2167 = vmatpush1.bf16.msra.mxu0 0
      %2168 = vmatprep.subr.bf16.mxu0 0
      %2169 = vmatpush1.bf16.msra.mxu0 0
      %2170 = vmatprep.subr.bf16.mxu0 0
      %2171 = vmatpush1.bf16.msra.mxu0 0
      %2172 = vmatprep.subr.bf16.mxu0 0
      %2173 = vmatpush1.bf16.msra.mxu0 0
      %2174 = vmatprep.subr.bf16.mxu0 0
      %2175 = vmatpush1.bf16.msra.mxu0 0
      %2176 = vmatprep.subr.bf16.mxu0 0
      %2177 = vmatpush1.bf16.msra.mxu0 0
      %2178 = vmatprep.subr.bf16.mxu0 0
      %2179 = vmatpush1.bf16.msra.mxu0 0
      %2180 = vmatprep.subr.bf16.mxu0 0
      %2181 = vmatpush1.bf16.msra.mxu0 0
      %2182 = vmatprep.subr.bf16.mxu0 0
      %2183 = vmatpush1.bf16.msra.mxu0 0
      %2184 = vmatprep.mubr.bf16.mxu0 0
      %2185 = vmatmul.mubr.bf16.gmra.mrb[0].mxu0 %v2105
      %v2186 = vpop.f32.mrb[0].mxu0
      %v2187 = vadd.f32 0.0, %v2186
      %v2188 = vpop.f32.mrb[0].mxu0
      %v2189 = vpop.f32.mrb[0].mxu0
      %v2190 = vadd.f32 0.0, %v2189
      %v2191 = vpop.f32.mrb[0].mxu0
      %2192 = vmatprep.mubr.bf16.mxu0 0
      %2193 = vmatmul.mubr.bf16.gmra.mrb[0].mxu0 %v2108
      %v2194 = vpop.f32.mrb[0].mxu0
      %v2195 = vadd.f32 0.0, %v2194
      %v2196 = vpop.f32.mrb[0].mxu0
      %v2197 = vpop.f32.mrb[0].mxu0
      %v2198 = vadd.f32 0.0, %v2197
      %v2199 = vpop.f32.mrb[0].mxu0
      %2200 = vmatprep.mubr.bf16.mxu0 0
      %2201 = vmatmul.mubr.bf16.gmra.mrb[0].mxu0 %v2111
      %v2202 = vpop.f32.mrb[0].mxu0
      %v2203 = vadd.f32 0.0, %v2202
      %v2204 = vpop.f32.mrb[0].mxu0
      %v2205 = vpop.f32.mrb[0].mxu0
      %v2206 = vadd.f32 0.0, %v2205
      %v2207 = vpop.f32.mrb[0].mxu0
      %2208 = vmatprep.mubr.bf16.mxu0 0
      %2209 = vmatmul.mubr.bf16.gmra.mrb[0].mxu0 %v2114
      %v2210 = vpop.f32.mrb[0].mxu0
      %v2211 = vadd.f32 0.0, %v2210
      %v2212 = vpop.f32.mrb[0].mxu0
      %v2213 = vpop.f32.mrb[0].mxu0
      %v2214 = vadd.f32 0.0, %v2213
      %v2215 = vpop.f32.mrb[0].mxu0
      %2216 = vmatprep.mubr.bf16.mxu0 0
      %2217 = vmatmul.mubr.bf16.gmra.mrb[0].mxu0 %v2117
      %v2218 = vpop.f32.mrb[0].mxu0
      %v2219 = vadd.f32 0.0, %v2218
      %v2220 = vpop.f32.mrb[0].mxu0
      %v2221 = vpop.f32.mrb[0].mxu0
      %v2222 = vadd.f32 0.0, %v2221
      %v2223 = vpop.f32.mrb[0].mxu0
      %2224 = vmatprep.mubr.bf16.mxu0 0
      %2225 = vmatmul.mubr.bf16.gmra.mrb[0].mxu0 %v2120
      %v2226 = vpop.f32.mrb[0].mxu0
      %v2227 = vadd.f32 0.0, %v2226
      %v2228 = vpop.f32.mrb[0].mxu0
      %v2229 = vpop.f32.mrb[0].mxu0
      %v2230 = vadd.f32 0.0, %v2229
      %v2231 = vpop.f32.mrb[0].mxu0
      %2232 = vmatprep.mubr.bf16.mxu0 0
      %2233 = vmatmul.mubr.bf16.gmra.mrb[0].mxu0 %v2123
      %v2234 = vpop.f32.mrb[0].mxu0
      %v2235 = vadd.f32 0.0, %v2234
      %v2236 = vpop.f32.mrb[0].mxu0
      %v2237 = vpop.f32.mrb[0].mxu0
      %v2238 = vadd.f32 0.0, %v2237
      %v2239 = vpop.f32.mrb[0].mxu0
      %2240 = vmatprep.mubr.bf16.mxu0 0
      %2241 = vmatmul.mubr.bf16.gmra.mrb[0].mxu0 %v2126
      %v2242 = vpop.f32.mrb[0].mxu0
      %v2243 = vadd.f32 0.0, %v2242
      %v2244 = vpop.f32.mrb[0].mxu0
      %v2245 = vpop.f32.mrb[0].mxu0
      %v2246 = vadd.f32 0.0, %v2245
      %v2247 = vpop.f32.mrb[0].mxu0
      %2248 = vmatprep.mubr.bf16.mxu0 0
      %2249 = vmatmul.mubr.bf16.gmra.mrb[0].mxu0 %v2129
      %v2250 = vpop.f32.mrb[0].mxu0
      %v2251 = vadd.f32 0.0, %v2250
      %v2252 = vpop.f32.mrb[0].mxu0
      %v2253 = vpop.f32.mrb[0].mxu0
      %v2254 = vadd.f32 0.0, %v2253
      %v2255 = vpop.f32.mrb[0].mxu0
      %2256 = vmatprep.mubr.bf16.mxu0 0
      %2257 = vmatmul.mubr.bf16.gmra.mrb[0].mxu0 %v2132
      %v2258 = vpop.f32.mrb[0].mxu0
      %v2259 = vadd.f32 0.0, %v2258
      %v2260 = vpop.f32.mrb[0].mxu0
      %v2261 = vpop.f32.mrb[0].mxu0
      %v2262 = vadd.f32 0.0, %v2261
      %v2263 = vpop.f32.mrb[0].mxu0
      %2264 = vmatprep.mubr.bf16.mxu0 0
      %2265 = vmatmul.mubr.bf16.gmra.mrb[0].mxu0 %v2135
      %v2266 = vpop.f32.mrb[0].mxu0
      %v2267 = vadd.f32 0.0, %v2266
      %v2268 = vpop.f32.mrb[0].mxu0
      %v2269 = vpop.f32.mrb[0].mxu0
      %v2270 = vadd.f32 0.0, %v2269
      %v2271 = vpop.f32.mrb[0].mxu0
      %2272 = vmatprep.mubr.bf16.mxu0 0
      %2273 = vmatmul.mubr.bf16.gmra.mrb[0].mxu0 %v2138
      %v2274 = vpop.f32.mrb[0].mxu0
      %v2275 = vadd.f32 0.0, %v2274
      %v2276 = vpop.f32.mrb[0].mxu0
      %v2277 = vpop.f32.mrb[0].mxu0
      %v2278 = vadd.f32 0.0, %v2277
      %v2279 = vpop.f32.mrb[0].mxu0
      %2280 = vmatprep.mubr.bf16.mxu0 0
      %2281 = vmatmul.mubr.bf16.gmra.mrb[0].mxu0 %v2141
      %v2282 = vpop.f32.mrb[0].mxu0
      %v2283 = vadd.f32 0.0, %v2282
      %v2284 = vpop.f32.mrb[0].mxu0
      %v2285 = vpop.f32.mrb[0].mxu0
      %v2286 = vadd.f32 0.0, %v2285
      %v2287 = vpop.f32.mrb[0].mxu0
      %2288 = vmatprep.mubr.bf16.mxu0 0
      %2289 = vmatmul.mubr.bf16.gmra.mrb[0].mxu0 %v2144
      %v2290 = vpop.f32.mrb[0].mxu0
      %v2291 = vadd.f32 0.0, %v2290
      %v2292 = vpop.f32.mrb[0].mxu0
      %v2293 = vpop.f32.mrb[0].mxu0
      %v2294 = vadd.f32 0.0, %v2293
      %v2295 = vpop.f32.mrb[0].mxu0
      %2296 = vmatprep.mubr.bf16.mxu0 0
      %2297 = vmatmul.mubr.bf16.gmra.mrb[0].mxu0 %v2147
      %v2298 = vpop.f32.mrb[0].mxu0
      %v2299 = vadd.f32 0.0, %v2298
      %v2300 = vpop.f32.mrb[0].mxu0
      %v2301 = vpop.f32.mrb[0].mxu0
      %v2302 = vadd.f32 0.0, %v2301
      %v2303 = vpop.f32.mrb[0].mxu0
      %2304 = vmatprep.mubr.bf16.mxu0 0
      %2305 = vmatmul.mubr.bf16.gmra.mrb[0].mxu0 %v2150
      %v2306 = vpop.f32.mrb[0].mxu0
      %v2307 = vadd.f32 0.0, %v2306
      %v2308 = vpop.f32.mrb[0].mxu0
      %v2309 = vpop.f32.mrb[0].mxu0
      %v2310 = vadd.f32 0.0, %v2309
      %v2311 = vpop.f32.mrb[0].mxu0
      %2312 = vdwg.mxu0
      %v2313 = vadd.f32 %v1942, %v2187
      %v2314 = vadd.f32 %v1943, %v2190
      %v2315 = vadd.f32 %v1944, %v2195
      %v2316 = vadd.f32 %v1945, %v2198
      %v2317 = vadd.f32 %v1946, %v2203
      %v2318 = vadd.f32 %v1947, %v2206
      %v2319 = vadd.f32 %v1948, %v2211
      %v2320 = vadd.f32 %v1949, %v2214
      %v2321 = vadd.f32 %v1950, %v2219
      %v2322 = vadd.f32 %v1951, %v2222
      %v2323 = vadd.f32 %v1952, %v2227
      %v2324 = vadd.f32 %v1953, %v2230
      %v2325 = vadd.f32 %v1954, %v2235
      %v2326 = vadd.f32 %v1955, %v2238
      %v2327 = vadd.f32 %v1956, %v2243
      %v2328 = vadd.f32 %v1957, %v2246
      %v2329 = vadd.f32 %v1958, %v2251
      %v2330 = vadd.f32 %v1959, %v2254
      %v2331 = vadd.f32 %v1960, %v2259
      %v2332 = vadd.f32 %v1961, %v2262
      %v2333 = vadd.f32 %v1962, %v2267
      %v2334 = vadd.f32 %v1963, %v2270
      %v2335 = vadd.f32 %v1964, %v2275
      %v2336 = vadd.f32 %v1965, %v2278
      %v2337 = vadd.f32 %v1966, %v2283
      %v2338 = vadd.f32 %v1967, %v2286
      %v2339 = vadd.f32 %v1968, %v2291
      %v2340 = vadd.f32 %v1969, %v2294
      %v2341 = vadd.f32 %v1970, %v2299
      %v2342 = vadd.f32 %v1971, %v2302
      %v2343 = vadd.f32 %v1972, %v2307
      %v2344 = vadd.f32 %v1973, %v2310
      %v2345 = vld [vmem:[%s1974] sm:$0xf]
      %v2346 = vld [vmem:[%s1974 + $0x4] sm:$0xf]
      %v2347 = vld [vmem:[%s1974 + $0x8] sm:$0x1]
      %v2348 = vld [vmem:[%s1974 + $0xc] sm:$0xf]
      %v2349 = vld [vmem:[%s1974 + $0x10] sm:$0xf]
      %v2350 = vld [vmem:[%s1974 + $0x14] sm:$0x1]
      %v2351 = vld [vmem:[%s1974 + $0x18] sm:$0xf]
      %v2352 = vld [vmem:[%s1974 + $0x1c] sm:$0xf]
      %v2353 = vld [vmem:[%s1974 + $0x20] sm:$0x1]
      %v2354 = vld [vmem:[%s1974 + $0x24] sm:$0xf]
      %v2355 = vld [vmem:[%s1974 + $0x28] sm:$0xf]
      %v2356 = vld [vmem:[%s1974 + $0x2c] sm:$0x1]
      %v2357 = vld [vmem:[%s1974 + $0x30] sm:$0xf]
      %v2358 = vld [vmem:[%s1974 + $0x34] sm:$0xf]
      %v2359 = vld [vmem:[%s1974 + $0x38] sm:$0x1]
      %v2360 = vld [vmem:[%s1974 + $0x3c] sm:$0xf]
      %v2361 = vld [vmem:[%s1974 + $0x40] sm:$0xf]
      %v2362 = vld [vmem:[%s1974 + $0x44] sm:$0x1]
      %v2363 = vld [vmem:[%s1974 + $0x48] sm:$0xf]
      %v2364 = vld [vmem:[%s1974 + $0x4c] sm:$0xf]
      %v2365 = vld [vmem:[%s1974 + $0x50] sm:$0x1]
      %v2366 = vld [vmem:[%s1974 + $0x54] sm:$0xf]
      %v2367 = vld [vmem:[%s1974 + $0x58] sm:$0xf]
      %v2368 = vld [vmem:[%s1974 + $0x5c] sm:$0x1]
      %v2369 = vld [vmem:[%s1974 + $0x60] sm:$0xf]
      %v2370 = vld [vmem:[%s1974 + $0x64] sm:$0xf]
      %v2371 = vld [vmem:[%s1974 + $0x68] sm:$0x1]
      %v2372 = vld [vmem:[%s1974 + $0x6c] sm:$0xf]
      %v2373 = vld [vmem:[%s1974 + $0x70] sm:$0xf]
      %v2374 = vld [vmem:[%s1974 + $0x74] sm:$0x1]
      %v2375 = vld [vmem:[%s1974 + $0x78] sm:$0xf]
      %v2376 = vld [vmem:[%s1974 + $0x7c] sm:$0xf]
      %v2377 = vld [vmem:[%s1974 + $0x80] sm:$0x1]
      %v2378 = vld [vmem:[%s1974 + $0x84] sm:$0xf]
      %v2379 = vld [vmem:[%s1974 + $0x88] sm:$0xf]
      %v2380 = vld [vmem:[%s1974 + $0x8c] sm:$0x1]
      %v2381 = vld [vmem:[%s1974 + $0x90] sm:$0xf]
      %v2382 = vld [vmem:[%s1974 + $0x94] sm:$0xf]
      %v2383 = vld [vmem:[%s1974 + $0x98] sm:$0x1]
      %v2384 = vld [vmem:[%s1974 + $0x9c] sm:$0xf]
      %v2385 = vld [vmem:[%s1974 + $0xa0] sm:$0xf]
      %v2386 = vld [vmem:[%s1974 + $0xa4] sm:$0x1]
      %v2387 = vld [vmem:[%s1974 + $0xa8] sm:$0xf]
      %v2388 = vld [vmem:[%s1974 + $0xac] sm:$0xf]
      %v2389 = vld [vmem:[%s1974 + $0xb0] sm:$0x1]
      %v2390 = vld [vmem:[%s1974 + $0xb4] sm:$0xf]
      %v2391 = vld [vmem:[%s1974 + $0xb8] sm:$0xf]
      %v2392 = vld [vmem:[%s1974 + $0xbc] sm:$0x1]
      %v2394 = vshrl.u32 %v2345, 16
      %v2396 = vrot.slane %v2394, 4
      %v2397 = vshll.u32 %v2345, 16
      %v2399 = vrot.slane %v2397, 5
      %v2400 = vor.u32 %v2396, %v2399
      %v2401 = vrot.slane %v2400, 4
      %v2403 = vshll.u32 %v2346, 16
      %v2405 = vrot.slane %v2403, 5
      %v2406 = vsel %vm544, %v2401, %v2405
      %v2407 = vshrl.u32 %v2346, 16
      %v2409 = vrot.slane %v2407, 4
      %v2410 = vor.u32 %v2409, %v2405
      %v2411 = vrot.slane %v2410, 4
      %v2413 = vshll.u32 %v2347, 16
      %v2415 = vrot.slane %v2413, 5
      %v2416 = vsel %vm544, %v2411, %v2415
      %v2418 = vshrl.u32 %v2348, 16
      %v2420 = vrot.slane %v2418, 4
      %v2421 = vshll.u32 %v2348, 16
      %v2423 = vrot.slane %v2421, 5
      %v2424 = vor.u32 %v2420, %v2423
      %v2425 = vrot.slane %v2424, 4
      %v2427 = vshll.u32 %v2349, 16
      %v2429 = vrot.slane %v2427, 5
      %v2430 = vsel %vm544, %v2425, %v2429
      %v2431 = vshrl.u32 %v2349, 16
      %v2433 = vrot.slane %v2431, 4
      %v2434 = vor.u32 %v2433, %v2429
      %v2435 = vrot.slane %v2434, 4
      %v2437 = vshll.u32 %v2350, 16
      %v2439 = vrot.slane %v2437, 5
      %v2440 = vsel %vm544, %v2435, %v2439
      %v2442 = vshrl.u32 %v2351, 16
      %v2444 = vrot.slane %v2442, 4
      %v2445 = vshll.u32 %v2351, 16
      %v2447 = vrot.slane %v2445, 5
      %v2448 = vor.u32 %v2444, %v2447
      %v2449 = vrot.slane %v2448, 4
      %v2451 = vshll.u32 %v2352, 16
      %v2453 = vrot.slane %v2451, 5
      %v2454 = vsel %vm544, %v2449, %v2453
      %v2455 = vshrl.u32 %v2352, 16
      %v2457 = vrot.slane %v2455, 4
      %v2458 = vor.u32 %v2457, %v2453
      %v2459 = vrot.slane %v2458, 4
      %v2461 = vshll.u32 %v2353, 16
      %v2463 = vrot.slane %v2461, 5
      %v2464 = vsel %vm544, %v2459, %v2463
      %v2466 = vshrl.u32 %v2354, 16
      %v2468 = vrot.slane %v2466, 4
      %v2469 = vshll.u32 %v2354, 16
      %v2471 = vrot.slane %v2469, 5
      %v2472 = vor.u32 %v2468, %v2471
      %v2473 = vrot.slane %v2472, 4
      %v2475 = vshll.u32 %v2355, 16
      %v2477 = vrot.slane %v2475, 5
      %v2478 = vsel %vm544, %v2473, %v2477
      %v2479 = vshrl.u32 %v2355, 16
      %v2481 = vrot.slane %v2479, 4
      %v2482 = vor.u32 %v2481, %v2477
      %v2483 = vrot.slane %v2482, 4
      %v2485 = vshll.u32 %v2356, 16
      %v2487 = vrot.slane %v2485, 5
      %v2488 = vsel %vm544, %v2483, %v2487
      %v2490 = vshrl.u32 %v2357, 16
      %v2492 = vrot.slane %v2490, 4
      %v2493 = vshll.u32 %v2357, 16
      %v2495 = vrot.slane %v2493, 5
      %v2496 = vor.u32 %v2492, %v2495
      %v2497 = vrot.slane %v2496, 4
      %v2499 = vshll.u32 %v2358, 16
      %v2501 = vrot.slane %v2499, 5
      %v2502 = vsel %vm544, %v2497, %v2501
      %v2503 = vshrl.u32 %v2358, 16
      %v2505 = vrot.slane %v2503, 4
      %v2506 = vor.u32 %v2505, %v2501
      %v2507 = vrot.slane %v2506, 4
      %v2509 = vshll.u32 %v2359, 16
      %v2511 = vrot.slane %v2509, 5
      %v2512 = vsel %vm544, %v2507, %v2511
      %v2514 = vshrl.u32 %v2360, 16
      %v2516 = vrot.slane %v2514, 4
      %v2517 = vshll.u32 %v2360, 16
      %v2519 = vrot.slane %v2517, 5
      %v2520 = vor.u32 %v2516, %v2519
      %v2521 = vrot.slane %v2520, 4
      %v2523 = vshll.u32 %v2361, 16
      %v2525 = vrot.slane %v2523, 5
      %v2526 = vsel %vm544, %v2521, %v2525
      %v2527 = vshrl.u32 %v2361, 16
      %v2529 = vrot.slane %v2527, 4
      %v2530 = vor.u32 %v2529, %v2525
      %v2531 = vrot.slane %v2530, 4
      %v2533 = vshll.u32 %v2362, 16
      %v2535 = vrot.slane %v2533, 5
      %v2536 = vsel %vm544, %v2531, %v2535
      %v2538 = vshrl.u32 %v2363, 16
      %v2540 = vrot.slane %v2538, 4
      %v2541 = vshll.u32 %v2363, 16
      %v2543 = vrot.slane %v2541, 5
      %v2544 = vor.u32 %v2540, %v2543
      %v2545 = vrot.slane %v2544, 4
      %v2547 = vshll.u32 %v2364, 16
      %v2549 = vrot.slane %v2547, 5
      %v2550 = vsel %vm544, %v2545, %v2549
      %v2551 = vshrl.u32 %v2364, 16
      %v2553 = vrot.slane %v2551, 4
      %v2554 = vor.u32 %v2553, %v2549
      %v2555 = vrot.slane %v2554, 4
      %v2557 = vshll.u32 %v2365, 16
      %v2559 = vrot.slane %v2557, 5
      %v2560 = vsel %vm544, %v2555, %v2559
      %v2562 = vshrl.u32 %v2366, 16
      %v2564 = vrot.slane %v2562, 4
      %v2565 = vshll.u32 %v2366, 16
      %v2567 = vrot.slane %v2565, 5
      %v2568 = vor.u32 %v2564, %v2567
      %v2569 = vrot.slane %v2568, 4
      %v2571 = vshll.u32 %v2367, 16
      %v2573 = vrot.slane %v2571, 5
      %v2574 = vsel %vm544, %v2569, %v2573
      %v2575 = vshrl.u32 %v2367, 16
      %v2577 = vrot.slane %v2575, 4
      %v2578 = vor.u32 %v2577, %v2573
      %v2579 = vrot.slane %v2578, 4
      %v2581 = vshll.u32 %v2368, 16
      %v2583 = vrot.slane %v2581, 5
      %v2584 = vsel %vm544, %v2579, %v2583
      %v2586 = vshrl.u32 %v2369, 16
      %v2588 = vrot.slane %v2586, 4
      %v2589 = vshll.u32 %v2369, 16
      %v2591 = vrot.slane %v2589, 5
      %v2592 = vor.u32 %v2588, %v2591
      %v2593 = vrot.slane %v2592, 4
      %v2595 = vshll.u32 %v2370, 16
      %v2597 = vrot.slane %v2595, 5
      %v2598 = vsel %vm544, %v2593, %v2597
      %v2599 = vshrl.u32 %v2370, 16
      %v2601 = vrot.slane %v2599, 4
      %v2602 = vor.u32 %v2601, %v2597
      %v2603 = vrot.slane %v2602, 4
      %v2605 = vshll.u32 %v2371, 16
      %v2607 = vrot.slane %v2605, 5
      %v2608 = vsel %vm544, %v2603, %v2607
      %v2610 = vshrl.u32 %v2372, 16
      %v2612 = vrot.slane %v2610, 4
      %v2613 = vshll.u32 %v2372, 16
      %v2615 = vrot.slane %v2613, 5
      %v2616 = vor.u32 %v2612, %v2615
      %v2617 = vrot.slane %v2616, 4
      %v2619 = vshll.u32 %v2373, 16
      %v2621 = vrot.slane %v2619, 5
      %v2622 = vsel %vm544, %v2617, %v2621
      %v2623 = vshrl.u32 %v2373, 16
      %v2625 = vrot.slane %v2623, 4
      %v2626 = vor.u32 %v2625, %v2621
      %v2627 = vrot.slane %v2626, 4
      %v2629 = vshll.u32 %v2374, 16
      %v2631 = vrot.slane %v2629, 5
      %v2632 = vsel %vm544, %v2627, %v2631
      %v2634 = vshrl.u32 %v2375, 16
      %v2636 = vrot.slane %v2634, 4
      %v2637 = vshll.u32 %v2375, 16
      %v2639 = vrot.slane %v2637, 5
      %v2640 = vor.u32 %v2636, %v2639
      %v2641 = vrot.slane %v2640, 4
      %v2643 = vshll.u32 %v2376, 16
      %v2645 = vrot.slane %v2643, 5
      %v2646 = vsel %vm544, %v2641, %v2645
      %v2647 = vshrl.u32 %v2376, 16
      %v2649 = vrot.slane %v2647, 4
      %v2650 = vor.u32 %v2649, %v2645
      %v2651 = vrot.slane %v2650, 4
      %v2653 = vshll.u32 %v2377, 16
      %v2655 = vrot.slane %v2653, 5
      %v2656 = vsel %vm544, %v2651, %v2655
      %v2658 = vshrl.u32 %v2378, 16
      %v2660 = vrot.slane %v2658, 4
      %v2661 = vshll.u32 %v2378, 16
      %v2663 = vrot.slane %v2661, 5
      %v2664 = vor.u32 %v2660, %v2663
      %v2665 = vrot.slane %v2664, 4
      %v2667 = vshll.u32 %v2379, 16
      %v2669 = vrot.slane %v2667, 5
      %v2670 = vsel %vm544, %v2665, %v2669
      %v2671 = vshrl.u32 %v2379, 16
      %v2673 = vrot.slane %v2671, 4
      %v2674 = vor.u32 %v2673, %v2669
      %v2675 = vrot.slane %v2674, 4
      %v2677 = vshll.u32 %v2380, 16
      %v2679 = vrot.slane %v2677, 5
      %v2680 = vsel %vm544, %v2675, %v2679
      %v2682 = vshrl.u32 %v2381, 16
      %v2684 = vrot.slane %v2682, 4
      %v2685 = vshll.u32 %v2381, 16
      %v2687 = vrot.slane %v2685, 5
      %v2688 = vor.u32 %v2684, %v2687
      %v2689 = vrot.slane %v2688, 4
      %v2691 = vshll.u32 %v2382, 16
      %v2693 = vrot.slane %v2691, 5
      %v2694 = vsel %vm544, %v2689, %v2693
      %v2695 = vshrl.u32 %v2382, 16
      %v2697 = vrot.slane %v2695, 4
      %v2698 = vor.u32 %v2697, %v2693
      %v2699 = vrot.slane %v2698, 4
      %v2701 = vshll.u32 %v2383, 16
      %v2703 = vrot.slane %v2701, 5
      %v2704 = vsel %vm544, %v2699, %v2703
      %v2706 = vshrl.u32 %v2384, 16
      %v2708 = vrot.slane %v2706, 4
      %v2709 = vshll.u32 %v2384, 16
      %v2711 = vrot.slane %v2709, 5
      %v2712 = vor.u32 %v2708, %v2711
      %v2713 = vrot.slane %v2712, 4
      %v2715 = vshll.u32 %v2385, 16
      %v2717 = vrot.slane %v2715, 5
      %v2718 = vsel %vm544, %v2713, %v2717
      %v2719 = vshrl.u32 %v2385, 16
      %v2721 = vrot.slane %v2719, 4
      %v2722 = vor.u32 %v2721, %v2717
      %v2723 = vrot.slane %v2722, 4
      %v2725 = vshll.u32 %v2386, 16
      %v2727 = vrot.slane %v2725, 5
      %v2728 = vsel %vm544, %v2723, %v2727
      %v2730 = vshrl.u32 %v2387, 16
      %v2732 = vrot.slane %v2730, 4
      %v2733 = vshll.u32 %v2387, 16
      %v2735 = vrot.slane %v2733, 5
      %v2736 = vor.u32 %v2732, %v2735
      %v2737 = vrot.slane %v2736, 4
      %v2739 = vshll.u32 %v2388, 16
      %v2741 = vrot.slane %v2739, 5
      %v2742 = vsel %vm544, %v2737, %v2741
      %v2743 = vshrl.u32 %v2388, 16
      %v2745 = vrot.slane %v2743, 4
      %v2746 = vor.u32 %v2745, %v2741
      %v2747 = vrot.slane %v2746, 4
      %v2749 = vshll.u32 %v2389, 16
      %v2751 = vrot.slane %v2749, 5
      %v2752 = vsel %vm544, %v2747, %v2751
      %v2754 = vshrl.u32 %v2390, 16
      %v2756 = vrot.slane %v2754, 4
      %v2757 = vshll.u32 %v2390, 16
      %v2759 = vrot.slane %v2757, 5
      %v2760 = vor.u32 %v2756, %v2759
      %v2761 = vrot.slane %v2760, 4
      %v2763 = vshll.u32 %v2391, 16
      %v2765 = vrot.slane %v2763, 5
      %v2766 = vsel %vm544, %v2761, %v2765
      %v2767 = vshrl.u32 %v2391, 16
      %v2769 = vrot.slane %v2767, 4
      %v2770 = vor.u32 %v2769, %v2765
      %v2771 = vrot.slane %v2770, 4
      %v2773 = vshll.u32 %v2392, 16
      %v2775 = vrot.slane %v2773, 5
      %v2776 = vsel %vm544, %v2771, %v2775
      %s2777 = scalar_lea.vmem %s2, 64
      %v2778 = vld [vmem:[%s2777] sm:$0xf]
      %v2779 = vld [vmem:[%s2777 + $0x4] sm:$0xf]
      %v2780 = vld [vmem:[%s2777 + $0x8] sm:$0xf]
      %v2781 = vld [vmem:[%s2777 + $0xc] sm:$0xf]
      %v2782 = vunpack.c.l.b16 %v2406
      %v2783 = vunpack.c.l.b16 %v2416
      %v2784 = vunpack.c.l.b16 %v2430
      %v2785 = vunpack.c.l.b16 %v2440
      %v2786 = vunpack.c.l.b16 %v2454
      %v2787 = vunpack.c.l.b16 %v2464
      %v2788 = vunpack.c.l.b16 %v2478
      %v2789 = vunpack.c.l.b16 %v2488
      %v2790 = vunpack.c.l.b16 %v2502
      %v2791 = vunpack.c.l.b16 %v2512
      %v2792 = vunpack.c.l.b16 %v2526
      %v2793 = vunpack.c.l.b16 %v2536
      %v2794 = vunpack.c.l.b16 %v2550
      %v2795 = vunpack.c.l.b16 %v2560
      %v2796 = vunpack.c.l.b16 %v2574
      %v2797 = vunpack.c.l.b16 %v2584
      %v2798 = vunpack.c.l.b16 %v2598
      %v2799 = vunpack.c.l.b16 %v2608
      %v2800 = vunpack.c.l.b16 %v2622
      %v2801 = vunpack.c.l.b16 %v2632
      %v2802 = vunpack.c.l.b16 %v2646
      %v2803 = vunpack.c.l.b16 %v2656
      %v2804 = vunpack.c.l.b16 %v2670
      %v2805 = vunpack.c.l.b16 %v2680
      %v2806 = vunpack.c.l.b16 %v2694
      %v2807 = vunpack.c.l.b16 %v2704
      %v2808 = vunpack.c.l.b16 %v2718
      %v2809 = vunpack.c.l.b16 %v2728
      %v2810 = vunpack.c.l.b16 %v2742
      %v2811 = vunpack.c.l.b16 %v2752
      %v2812 = vunpack.c.l.b16 %v2766
      %v2813 = vunpack.c.l.b16 %v2776
      %v2814 = vpack.c.b16 %v2783, %v2782
      %v2815 = vpack.c.b16 %v2785, %v2784
      %v2816 = vpack.c.b16 %v2787, %v2786
      %v2817 = vpack.c.b16 %v2789, %v2788
      %v2818 = vpack.c.b16 %v2791, %v2790
      %v2819 = vpack.c.b16 %v2793, %v2792
      %v2820 = vpack.c.b16 %v2795, %v2794
      %v2821 = vpack.c.b16 %v2797, %v2796
      %v2822 = vpack.c.b16 %v2799, %v2798
      %v2823 = vpack.c.b16 %v2801, %v2800
      %v2824 = vpack.c.b16 %v2803, %v2802
      %v2825 = vpack.c.b16 %v2805, %v2804
      %v2826 = vpack.c.b16 %v2807, %v2806
      %v2827 = vpack.c.b16 %v2809, %v2808
      %v2828 = vpack.c.b16 %v2811, %v2810
      %v2829 = vpack.c.b16 %v2813, %v2812
      %v2834 = vunpack.c.l.b16 %v2778
      %v2835 = vunpack.c.l.b16 %v2779
      %v2836 = vunpack.c.l.b16 %v2780
      %v2837 = vunpack.c.l.b16 %v2781
      %v2838 = vpack.c.b16 %v2835, %v2834
      %v2839 = vpack.c.b16 %v2837, %v2836
      %v2843 = vsel %vm994, %v2814, 0
      %v2846 = vsel %vm994, %v2815, 0
      %v2849 = vsel %vm994, %v2816, 0
      %v2852 = vsel %vm994, %v2817, 0
      %v2855 = vsel %vm994, %v2818, 0
      %v2858 = vsel %vm994, %v2819, 0
      %v2861 = vsel %vm994, %v2820, 0
      %v2864 = vsel %vm994, %v2821, 0
      %v2867 = vsel %vm994, %v2822, 0
      %v2870 = vsel %vm994, %v2823, 0
      %v2873 = vsel %vm994, %v2824, 0
      %v2876 = vsel %vm994, %v2825, 0
      %v2879 = vsel %vm994, %v2826, 0
      %v2882 = vsel %vm994, %v2827, 0
      %v2885 = vsel %vm994, %v2828, 0
      %v2888 = vsel %vm994, %v2829, 0
      %2890 = vmatprep.subr.bf16.mxu0 0
      %2891 = vmatpush1.bf16.msra.mxu0 %v2838
      %2892 = vmatprep.subr.bf16.mxu0 0
      %2893 = vmatpush1.bf16.msra.mxu0 %v2839
      %2894 = vmatprep.subr.bf16.mxu0 0
      %2895 = vmatpush1.bf16.msra.mxu0 0
      %2896 = vmatprep.subr.bf16.mxu0 0
      %2897 = vmatpush1.bf16.msra.mxu0 0
      %2898 = vmatprep.subr.bf16.mxu0 0
      %2899 = vmatpush1.bf16.msra.mxu0 0
      %2900 = vmatprep.subr.bf16.mxu0 0
      %2901 = vmatpush1.bf16.msra.mxu0 0
      %2902 = vmatprep.subr.bf16.mxu0 0
      %2903 = vmatpush1.bf16.msra.mxu0 0
      %2904 = vmatprep.subr.bf16.mxu0 0
      %2905 = vmatpush1.bf16.msra.mxu0 0
      %2906 = vmatprep.subr.bf16.mxu0 0
      %2907 = vmatpush1.bf16.msra.mxu0 0
      %2908 = vmatprep.subr.bf16.mxu0 0
      %2909 = vmatpush1.bf16.msra.mxu0 0
      %2910 = vmatprep.subr.bf16.mxu0 0
      %2911 = vmatpush1.bf16.msra.mxu0 0
      %2912 = vmatprep.subr.bf16.mxu0 0
      %2913 = vmatpush1.bf16.msra.mxu0 0
      %2914 = vmatprep.subr.bf16.mxu0 0
      %2915 = vmatpush1.bf16.msra.mxu0 0
      %2916 = vmatprep.subr.bf16.mxu0 0
      %2917 = vmatpush1.bf16.msra.mxu0 0
      %2918 = vmatprep.subr.bf16.mxu0 0
      %2919 = vmatpush1.bf16.msra.mxu0 0
      %2920 = vmatprep.subr.bf16.mxu0 0
      %2921 = vmatpush1.bf16.msra.mxu0 0
      %2922 = vmatprep.mubr.bf16.mxu0 0
      %2923 = vmatmul.mubr.bf16.gmra.mrb[0].mxu0 %v2843
      %v2924 = vpop.f32.mrb[0].mxu0
      %v2925 = vadd.f32 0.0, %v2924
      %v2926 = vpop.f32.mrb[0].mxu0
      %v2927 = vpop.f32.mrb[0].mxu0
      %v2928 = vadd.f32 0.0, %v2927
      %v2929 = vpop.f32.mrb[0].mxu0
      %2930 = vmatprep.mubr.bf16.mxu0 0
      %2931 = vmatmul.mubr.bf16.gmra.mrb[0].mxu0 %v2846
      %v2932 = vpop.f32.mrb[0].mxu0
      %v2933 = vadd.f32 0.0, %v2932
      %v2934 = vpop.f32.mrb[0].mxu0
      %v2935 = vpop.f32.mrb[0].mxu0
      %v2936 = vadd.f32 0.0, %v2935
      %v2937 = vpop.f32.mrb[0].mxu0
      %2938 = vmatprep.mubr.bf16.mxu0 0
      %2939 = vmatmul.mubr.bf16.gmra.mrb[0].mxu0 %v2849
      %v2940 = vpop.f32.mrb[0].mxu0
      %v2941 = vadd.f32 0.0, %v2940
      %v2942 = vpop.f32.mrb[0].mxu0
      %v2943 = vpop.f32.mrb[0].mxu0
      %v2944 = vadd.f32 0.0, %v2943
      %v2945 = vpop.f32.mrb[0].mxu0
      %2946 = vmatprep.mubr.bf16.mxu0 0
      %2947 = vmatmul.mubr.bf16.gmra.mrb[0].mxu0 %v2852
      %v2948 = vpop.f32.mrb[0].mxu0
      %v2949 = vadd.f32 0.0, %v2948
      %v2950 = vpop.f32.mrb[0].mxu0
      %v2951 = vpop.f32.mrb[0].mxu0
      %v2952 = vadd.f32 0.0, %v2951
      %v2953 = vpop.f32.mrb[0].mxu0
      %2954 = vmatprep.mubr.bf16.mxu0 0
      %2955 = vmatmul.mubr.bf16.gmra.mrb[0].mxu0 %v2855
      %v2956 = vpop.f32.mrb[0].mxu0
      %v2957 = vadd.f32 0.0, %v2956
      %v2958 = vpop.f32.mrb[0].mxu0
      %v2959 = vpop.f32.mrb[0].mxu0
      %v2960 = vadd.f32 0.0, %v2959
      %v2961 = vpop.f32.mrb[0].mxu0
      %2962 = vmatprep.mubr.bf16.mxu0 0
      %2963 = vmatmul.mubr.bf16.gmra.mrb[0].mxu0 %v2858
      %v2964 = vpop.f32.mrb[0].mxu0
      %v2965 = vadd.f32 0.0, %v2964
      %v2966 = vpop.f32.mrb[0].mxu0
      %v2967 = vpop.f32.mrb[0].mxu0
      %v2968 = vadd.f32 0.0, %v2967
      %v2969 = vpop.f32.mrb[0].mxu0
      %2970 = vmatprep.mubr.bf16.mxu0 0
      %2971 = vmatmul.mubr.bf16.gmra.mrb[0].mxu0 %v2861
      %v2972 = vpop.f32.mrb[0].mxu0
      %v2973 = vadd.f32 0.0, %v2972
      %v2974 = vpop.f32.mrb[0].mxu0
      %v2975 = vpop.f32.mrb[0].mxu0
      %v2976 = vadd.f32 0.0, %v2975
      %v2977 = vpop.f32.mrb[0].mxu0
      %2978 = vmatprep.mubr.bf16.mxu0 0
      %2979 = vmatmul.mubr.bf16.gmra.mrb[0].mxu0 %v2864
      %v2980 = vpop.f32.mrb[0].mxu0
      %v2981 = vadd.f32 0.0, %v2980
      %v2982 = vpop.f32.mrb[0].mxu0
      %v2983 = vpop.f32.mrb[0].mxu0
      %v2984 = vadd.f32 0.0, %v2983
      %v2985 = vpop.f32.mrb[0].mxu0
      %2986 = vmatprep.mubr.bf16.mxu0 0
      %2987 = vmatmul.mubr.bf16.gmra.mrb[0].mxu0 %v2867
      %v2988 = vpop.f32.mrb[0].mxu0
      %v2989 = vadd.f32 0.0, %v2988
      %v2990 = vpop.f32.mrb[0].mxu0
      %v2991 = vpop.f32.mrb[0].mxu0
      %v2992 = vadd.f32 0.0, %v2991
      %v2993 = vpop.f32.mrb[0].mxu0
      %2994 = vmatprep.mubr.bf16.mxu0 0
      %2995 = vmatmul.mubr.bf16.gmra.mrb[0].mxu0 %v2870
      %v2996 = vpop.f32.mrb[0].mxu0
      %v2997 = vadd.f32 0.0, %v2996
      %v2998 = vpop.f32.mrb[0].mxu0
      %v2999 = vpop.f32.mrb[0].mxu0
      %v3000 = vadd.f32 0.0, %v2999
      %v3001 = vpop.f32.mrb[0].mxu0
      %3002 = vmatprep.mubr.bf16.mxu0 0
      %3003 = vmatmul.mubr.bf16.gmra.mrb[0].mxu0 %v2873
      %v3004 = vpop.f32.mrb[0].mxu0
      %v3005 = vadd.f32 0.0, %v3004
      %v3006 = vpop.f32.mrb[0].mxu0
      %v3007 = vpop.f32.mrb[0].mxu0
      %v3008 = vadd.f32 0.0, %v3007
      %v3009 = vpop.f32.mrb[0].mxu0
      %3010 = vmatprep.mubr.bf16.mxu0 0
      %3011 = vmatmul.mubr.bf16.gmra.mrb[0].mxu0 %v2876
      %v3012 = vpop.f32.mrb[0].mxu0
      %v3013 = vadd.f32 0.0, %v3012
      %v3014 = vpop.f32.mrb[0].mxu0
      %v3015 = vpop.f32.mrb[0].mxu0
      %v3016 = vadd.f32 0.0, %v3015
      %v3017 = vpop.f32.mrb[0].mxu0
      %3018 = vmatprep.mubr.bf16.mxu0 0
      %3019 = vmatmul.mubr.bf16.gmra.mrb[0].mxu0 %v2879
      %v3020 = vpop.f32.mrb[0].mxu0
      %v3021 = vadd.f32 0.0, %v3020
      %v3022 = vpop.f32.mrb[0].mxu0
      %v3023 = vpop.f32.mrb[0].mxu0
      %v3024 = vadd.f32 0.0, %v3023
      %v3025 = vpop.f32.mrb[0].mxu0
      %3026 = vmatprep.mubr.bf16.mxu0 0
      %3027 = vmatmul.mubr.bf16.gmra.mrb[0].mxu0 %v2882
      %v3028 = vpop.f32.mrb[0].mxu0
      %v3029 = vadd.f32 0.0, %v3028
      %v3030 = vpop.f32.mrb[0].mxu0
      %v3031 = vpop.f32.mrb[0].mxu0
      %v3032 = vadd.f32 0.0, %v3031
      %v3033 = vpop.f32.mrb[0].mxu0
      %3034 = vmatprep.mubr.bf16.mxu0 0
      %3035 = vmatmul.mubr.bf16.gmra.mrb[0].mxu0 %v2885
      %v3036 = vpop.f32.mrb[0].mxu0
      %v3037 = vadd.f32 0.0, %v3036
      %v3038 = vpop.f32.mrb[0].mxu0
      %v3039 = vpop.f32.mrb[0].mxu0
      %v3040 = vadd.f32 0.0, %v3039
      %v3041 = vpop.f32.mrb[0].mxu0
      %3042 = vmatprep.mubr.bf16.mxu0 0
      %3043 = vmatmul.mubr.bf16.gmra.mrb[0].mxu0 %v2888
      %v3044 = vpop.f32.mrb[0].mxu0
      %v3045 = vadd.f32 0.0, %v3044
      %v3046 = vpop.f32.mrb[0].mxu0
      %v3047 = vpop.f32.mrb[0].mxu0
      %v3048 = vadd.f32 0.0, %v3047
      %v3049 = vpop.f32.mrb[0].mxu0
      %3050 = vdwg.mxu0
      %v3051 = vadd.f32 %v2313, %v2925
      %v3052 = vadd.f32 %v2314, %v2928
      %v3053 = vadd.f32 %v2315, %v2933
      %v3054 = vadd.f32 %v2316, %v2936
      %v3055 = vadd.f32 %v2317, %v2941
      %v3056 = vadd.f32 %v2318, %v2944
      %v3057 = vadd.f32 %v2319, %v2949
      %v3058 = vadd.f32 %v2320, %v2952
      %v3059 = vadd.f32 %v2321, %v2957
      %v3060 = vadd.f32 %v2322, %v2960
      %v3061 = vadd.f32 %v2323, %v2965
      %v3062 = vadd.f32 %v2324, %v2968
      %v3063 = vadd.f32 %v2325, %v2973
      %v3064 = vadd.f32 %v2326, %v2976
      %v3065 = vadd.f32 %v2327, %v2981
      %v3066 = vadd.f32 %v2328, %v2984
      %v3067 = vadd.f32 %v2329, %v2989
      %v3068 = vadd.f32 %v2330, %v2992
      %v3069 = vadd.f32 %v2331, %v2997
      %v3070 = vadd.f32 %v2332, %v3000
      %v3071 = vadd.f32 %v2333, %v3005
      %v3072 = vadd.f32 %v2334, %v3008
      %v3073 = vadd.f32 %v2335, %v3013
      %v3074 = vadd.f32 %v2336, %v3016
      %v3075 = vadd.f32 %v2337, %v3021
      %v3076 = vadd.f32 %v2338, %v3024
      %v3077 = vadd.f32 %v2339, %v3029
      %v3078 = vadd.f32 %v2340, %v3032
      %v3079 = vadd.f32 %v2341, %v3037
      %v3080 = vadd.f32 %v2342, %v3040
      %v3081 = vadd.f32 %v2343, %v3045
      %v3082 = vadd.f32 %v2344, %v3048
      %v3083 = vld [vmem:[%s1974] sm:$0xe]
      %v3084 = vld [vmem:[%s1974 + $0xc] sm:$0xe]
      %v3085 = vld [vmem:[%s1974 + $0x18] sm:$0xe]
      %v3086 = vld [vmem:[%s1974 + $0x24] sm:$0xe]
      %v3087 = vld [vmem:[%s1974 + $0x30] sm:$0xe]
      %v3088 = vld [vmem:[%s1974 + $0x3c] sm:$0xe]
      %v3089 = vld [vmem:[%s1974 + $0x48] sm:$0xe]
      %v3090 = vld [vmem:[%s1974 + $0x54] sm:$0xe]
      %v3091 = vld [vmem:[%s1974 + $0x60] sm:$0xe]
      %v3092 = vld [vmem:[%s1974 + $0x6c] sm:$0xe]
      %v3093 = vld [vmem:[%s1974 + $0x78] sm:$0xe]
      %v3094 = vld [vmem:[%s1974 + $0x84] sm:$0xe]
      %v3095 = vld [vmem:[%s1974 + $0x90] sm:$0xe]
      %v3096 = vld [vmem:[%s1974 + $0x9c] sm:$0xe]
      %v3097 = vld [vmem:[%s1974 + $0xa8] sm:$0xe]
      %v3098 = vld [vmem:[%s1974 + $0xb4] sm:$0xe]
      %v3147 = vrot.slane %v3083, 5
      %v3148 = vrot.slane %v3147, 4
      %v3149 = vrot.slane %v2346, 5
      %v3150 = vsel %vm1555, %v3148, %v3149
      %v3151 = vrot.slane %v3149, 4
      %v3152 = vrot.slane %v2347, 5
      %v3153 = vsel %vm1555, %v3151, %v3152
      %v3154 = vrot.slane %v3084, 5
      %v3155 = vrot.slane %v3154, 4
      %v3156 = vrot.slane %v2349, 5
      %v3157 = vsel %vm1555, %v3155, %v3156
      %v3158 = vrot.slane %v3156, 4
      %v3159 = vrot.slane %v2350, 5
      %v3160 = vsel %vm1555, %v3158, %v3159
      %v3161 = vrot.slane %v3085, 5
      %v3162 = vrot.slane %v3161, 4
      %v3163 = vrot.slane %v2352, 5
      %v3164 = vsel %vm1555, %v3162, %v3163
      %v3165 = vrot.slane %v3163, 4
      %v3166 = vrot.slane %v2353, 5
      %v3167 = vsel %vm1555, %v3165, %v3166
      %v3168 = vrot.slane %v3086, 5
      %v3169 = vrot.slane %v3168, 4
      %v3170 = vrot.slane %v2355, 5
      %v3171 = vsel %vm1555, %v3169, %v3170
      %v3172 = vrot.slane %v3170, 4
      %v3173 = vrot.slane %v2356, 5
      %v3174 = vsel %vm1555, %v3172, %v3173
      %v3175 = vrot.slane %v3087, 5
      %v3176 = vrot.slane %v3175, 4
      %v3177 = vrot.slane %v2358, 5
      %v3178 = vsel %vm1555, %v3176, %v3177
      %v3179 = vrot.slane %v3177, 4
      %v3180 = vrot.slane %v2359, 5
      %v3181 = vsel %vm1555, %v3179, %v3180
      %v3182 = vrot.slane %v3088, 5
      %v3183 = vrot.slane %v3182, 4
      %v3184 = vrot.slane %v2361, 5
      %v3185 = vsel %vm1555, %v3183, %v3184
      %v3186 = vrot.slane %v3184, 4
      %v3187 = vrot.slane %v2362, 5
      %v3188 = vsel %vm1555, %v3186, %v3187
      %v3189 = vrot.slane %v3089, 5
      %v3190 = vrot.slane %v3189, 4
      %v3191 = vrot.slane %v2364, 5
      %v3192 = vsel %vm1555, %v3190, %v3191
      %v3193 = vrot.slane %v3191, 4
      %v3194 = vrot.slane %v2365, 5
      %v3195 = vsel %vm1555, %v3193, %v3194
      %v3196 = vrot.slane %v3090, 5
      %v3197 = vrot.slane %v3196, 4
      %v3198 = vrot.slane %v2367, 5
      %v3199 = vsel %vm1555, %v3197, %v3198
      %v3200 = vrot.slane %v3198, 4
      %v3201 = vrot.slane %v2368, 5
      %v3202 = vsel %vm1555, %v3200, %v3201
      %v3203 = vrot.slane %v3091, 5
      %v3204 = vrot.slane %v3203, 4
      %v3205 = vrot.slane %v2370, 5
      %v3206 = vsel %vm1555, %v3204, %v3205
      %v3207 = vrot.slane %v3205, 4
      %v3208 = vrot.slane %v2371, 5
      %v3209 = vsel %vm1555, %v3207, %v3208
      %v3210 = vrot.slane %v3092, 5
      %v3211 = vrot.slane %v3210, 4
      %v3212 = vrot.slane %v2373, 5
      %v3213 = vsel %vm1555, %v3211, %v3212
      %v3214 = vrot.slane %v3212, 4
      %v3215 = vrot.slane %v2374, 5
      %v3216 = vsel %vm1555, %v3214, %v3215
      %v3217 = vrot.slane %v3093, 5
      %v3218 = vrot.slane %v3217, 4
      %v3219 = vrot.slane %v2376, 5
      %v3220 = vsel %vm1555, %v3218, %v3219
      %v3221 = vrot.slane %v3219, 4
      %v3222 = vrot.slane %v2377, 5
      %v3223 = vsel %vm1555, %v3221, %v3222
      %v3224 = vrot.slane %v3094, 5
      %v3225 = vrot.slane %v3224, 4
      %v3226 = vrot.slane %v2379, 5
      %v3227 = vsel %vm1555, %v3225, %v3226
      %v3228 = vrot.slane %v3226, 4
      %v3229 = vrot.slane %v2380, 5
      %v3230 = vsel %vm1555, %v3228, %v3229
      %v3231 = vrot.slane %v3095, 5
      %v3232 = vrot.slane %v3231, 4
      %v3233 = vrot.slane %v2382, 5
      %v3234 = vsel %vm1555, %v3232, %v3233
      %v3235 = vrot.slane %v3233, 4
      %v3236 = vrot.slane %v2383, 5
      %v3237 = vsel %vm1555, %v3235, %v3236
      %v3238 = vrot.slane %v3096, 5
      %v3239 = vrot.slane %v3238, 4
      %v3240 = vrot.slane %v2385, 5
      %v3241 = vsel %vm1555, %v3239, %v3240
      %v3242 = vrot.slane %v3240, 4
      %v3243 = vrot.slane %v2386, 5
      %v3244 = vsel %vm1555, %v3242, %v3243
      %v3245 = vrot.slane %v3097, 5
      %v3246 = vrot.slane %v3245, 4
      %v3247 = vrot.slane %v2388, 5
      %v3248 = vsel %vm1555, %v3246, %v3247
      %v3249 = vrot.slane %v3247, 4
      %v3250 = vrot.slane %v2389, 5
      %v3251 = vsel %vm1555, %v3249, %v3250
      %v3252 = vrot.slane %v3098, 5
      %v3253 = vrot.slane %v3252, 4
      %v3254 = vrot.slane %v2391, 5
      %v3255 = vsel %vm1555, %v3253, %v3254
      %v3256 = vrot.slane %v3254, 4
      %v3257 = vrot.slane %v2392, 5
      %v3258 = vsel %vm1555, %v3256, %v3257
      %s3259 = scalar_lea.vmem %s2, 80
      %v3260 = vld [vmem:[%s3259] sm:$0xf]
      %v3261 = vld [vmem:[%s3259 + $0x4] sm:$0xf]
      %v3262 = vld [vmem:[%s3259 + $0x8] sm:$0xf]
      %v3263 = vld [vmem:[%s3259 + $0xc] sm:$0xf]
      %v3264 = vunpack.c.l.b16 %v3150
      %v3265 = vunpack.c.l.b16 %v3153
      %v3266 = vunpack.c.l.b16 %v3157
      %v3267 = vunpack.c.l.b16 %v3160
      %v3268 = vunpack.c.l.b16 %v3164
      %v3269 = vunpack.c.l.b16 %v3167
      %v3270 = vunpack.c.l.b16 %v3171
      %v3271 = vunpack.c.l.b16 %v3174
      %v3272 = vunpack.c.l.b16 %v3178
      %v3273 = vunpack.c.l.b16 %v3181
      %v3274 = vunpack.c.l.b16 %v3185
      %v3275 = vunpack.c.l.b16 %v3188
      %v3276 = vunpack.c.l.b16 %v3192
      %v3277 = vunpack.c.l.b16 %v3195
      %v3278 = vunpack.c.l.b16 %v3199
      %v3279 = vunpack.c.l.b16 %v3202
      %v3280 = vunpack.c.l.b16 %v3206
      %v3281 = vunpack.c.l.b16 %v3209
      %v3282 = vunpack.c.l.b16 %v3213
      %v3283 = vunpack.c.l.b16 %v3216
      %v3284 = vunpack.c.l.b16 %v3220
      %v3285 = vunpack.c.l.b16 %v3223
      %v3286 = vunpack.c.l.b16 %v3227
      %v3287 = vunpack.c.l.b16 %v3230
      %v3288 = vunpack.c.l.b16 %v3234
      %v3289 = vunpack.c.l.b16 %v3237
      %v3290 = vunpack.c.l.b16 %v3241
      %v3291 = vunpack.c.l.b16 %v3244
      %v3292 = vunpack.c.l.b16 %v3248
      %v3293 = vunpack.c.l.b16 %v3251
      %v3294 = vunpack.c.l.b16 %v3255
      %v3295 = vunpack.c.l.b16 %v3258
      %v3296 = vpack.c.b16 %v3265, %v3264
      %v3297 = vpack.c.b16 %v3267, %v3266
      %v3298 = vpack.c.b16 %v3269, %v3268
      %v3299 = vpack.c.b16 %v3271, %v3270
      %v3300 = vpack.c.b16 %v3273, %v3272
      %v3301 = vpack.c.b16 %v3275, %v3274
      %v3302 = vpack.c.b16 %v3277, %v3276
      %v3303 = vpack.c.b16 %v3279, %v3278
      %v3304 = vpack.c.b16 %v3281, %v3280
      %v3305 = vpack.c.b16 %v3283, %v3282
      %v3306 = vpack.c.b16 %v3285, %v3284
      %v3307 = vpack.c.b16 %v3287, %v3286
      %v3308 = vpack.c.b16 %v3289, %v3288
      %v3309 = vpack.c.b16 %v3291, %v3290
      %v3310 = vpack.c.b16 %v3293, %v3292
      %v3311 = vpack.c.b16 %v3295, %v3294
      %v3316 = vunpack.c.l.b16 %v3260
      %v3317 = vunpack.c.l.b16 %v3261
      %v3318 = vunpack.c.l.b16 %v3262
      %v3319 = vunpack.c.l.b16 %v3263
      %v3320 = vpack.c.b16 %v3317, %v3316
      %v3321 = vpack.c.b16 %v3319, %v3318
      %v3325 = vsel %vm994, %v3296, 0
      %v3328 = vsel %vm994, %v3297, 0
      %v3331 = vsel %vm994, %v3298, 0
      %v3334 = vsel %vm994, %v3299, 0
      %v3337 = vsel %vm994, %v3300, 0
      %v3340 = vsel %vm994, %v3301, 0
      %v3343 = vsel %vm994, %v3302, 0
      %v3346 = vsel %vm994, %v3303, 0
      %v3349 = vsel %vm994, %v3304, 0
      %v3352 = vsel %vm994, %v3305, 0
      %v3355 = vsel %vm994, %v3306, 0
      %v3358 = vsel %vm994, %v3307, 0
      %v3361 = vsel %vm994, %v3308, 0
      %v3364 = vsel %vm994, %v3309, 0
      %v3367 = vsel %vm994, %v3310, 0
      %v3370 = vsel %vm994, %v3311, 0
      %3372 = vmatprep.subr.bf16.mxu0 0
      %3373 = vmatpush1.bf16.msra.mxu0 %v3320
      %3374 = vmatprep.subr.bf16.mxu0 0
      %3375 = vmatpush1.bf16.msra.mxu0 %v3321
      %3376 = vmatprep.subr.bf16.mxu0 0
      %3377 = vmatpush1.bf16.msra.mxu0 0
      %3378 = vmatprep.subr.bf16.mxu0 0
      %3379 = vmatpush1.bf16.msra.mxu0 0
      %3380 = vmatprep.subr.bf16.mxu0 0
      %3381 = vmatpush1.bf16.msra.mxu0 0
      %3382 = vmatprep.subr.bf16.mxu0 0
      %3383 = vmatpush1.bf16.msra.mxu0 0
      %3384 = vmatprep.subr.bf16.mxu0 0
      %3385 = vmatpush1.bf16.msra.mxu0 0
      %3386 = vmatprep.subr.bf16.mxu0 0
      %3387 = vmatpush1.bf16.msra.mxu0 0
      %3388 = vmatprep.subr.bf16.mxu0 0
      %3389 = vmatpush1.bf16.msra.mxu0 0
      %3390 = vmatprep.subr.bf16.mxu0 0
      %3391 = vmatpush1.bf16.msra.mxu0 0
      %3392 = vmatprep.subr.bf16.mxu0 0
      %3393 = vmatpush1.bf16.msra.mxu0 0
      %3394 = vmatprep.subr.bf16.mxu0 0
      %3395 = vmatpush1.bf16.msra.mxu0 0
      %3396 = vmatprep.subr.bf16.mxu0 0
      %3397 = vmatpush1.bf16.msra.mxu0 0
      %3398 = vmatprep.subr.bf16.mxu0 0
      %3399 = vmatpush1.bf16.msra.mxu0 0
      %3400 = vmatprep.subr.bf16.mxu0 0
      %3401 = vmatpush1.bf16.msra.mxu0 0
      %3402 = vmatprep.subr.bf16.mxu0 0
      %3403 = vmatpush1.bf16.msra.mxu0 0
      %3404 = vmatprep.mubr.bf16.mxu0 0
      %3405 = vmatmul.mubr.bf16.gmra.mrb[0].mxu0 %v3325
      %v3406 = vpop.f32.mrb[0].mxu0
      %v3407 = vadd.f32 0.0, %v3406
      %v3408 = vpop.f32.mrb[0].mxu0
      %v3409 = vpop.f32.mrb[0].mxu0
      %v3410 = vadd.f32 0.0, %v3409
      %v3411 = vpop.f32.mrb[0].mxu0
      %3412 = vmatprep.mubr.bf16.mxu0 0
      %3413 = vmatmul.mubr.bf16.gmra.mrb[0].mxu0 %v3328
      %v3414 = vpop.f32.mrb[0].mxu0
      %v3415 = vadd.f32 0.0, %v3414
      %v3416 = vpop.f32.mrb[0].mxu0
      %v3417 = vpop.f32.mrb[0].mxu0
      %v3418 = vadd.f32 0.0, %v3417
      %v3419 = vpop.f32.mrb[0].mxu0
      %3420 = vmatprep.mubr.bf16.mxu0 0
      %3421 = vmatmul.mubr.bf16.gmra.mrb[0].mxu0 %v3331
      %v3422 = vpop.f32.mrb[0].mxu0
      %v3423 = vadd.f32 0.0, %v3422
      %v3424 = vpop.f32.mrb[0].mxu0
      %v3425 = vpop.f32.mrb[0].mxu0
      %v3426 = vadd.f32 0.0, %v3425
      %v3427 = vpop.f32.mrb[0].mxu0
      %3428 = vmatprep.mubr.bf16.mxu0 0
      %3429 = vmatmul.mubr.bf16.gmra.mrb[0].mxu0 %v3334
      %v3430 = vpop.f32.mrb[0].mxu0
      %v3431 = vadd.f32 0.0, %v3430
      %v3432 = vpop.f32.mrb[0].mxu0
      %v3433 = vpop.f32.mrb[0].mxu0
      %v3434 = vadd.f32 0.0, %v3433
      %v3435 = vpop.f32.mrb[0].mxu0
      %3436 = vmatprep.mubr.bf16.mxu0 0
      %3437 = vmatmul.mubr.bf16.gmra.mrb[0].mxu0 %v3337
      %v3438 = vpop.f32.mrb[0].mxu0
      %v3439 = vadd.f32 0.0, %v3438
      %v3440 = vpop.f32.mrb[0].mxu0
      %v3441 = vpop.f32.mrb[0].mxu0
      %v3442 = vadd.f32 0.0, %v3441
      %v3443 = vpop.f32.mrb[0].mxu0
      %3444 = vmatprep.mubr.bf16.mxu0 0
      %3445 = vmatmul.mubr.bf16.gmra.mrb[0].mxu0 %v3340
      %v3446 = vpop.f32.mrb[0].mxu0
      %v3447 = vadd.f32 0.0, %v3446
      %v3448 = vpop.f32.mrb[0].mxu0
      %v3449 = vpop.f32.mrb[0].mxu0
      %v3450 = vadd.f32 0.0, %v3449
      %v3451 = vpop.f32.mrb[0].mxu0
      %3452 = vmatprep.mubr.bf16.mxu0 0
      %3453 = vmatmul.mubr.bf16.gmra.mrb[0].mxu0 %v3343
      %v3454 = vpop.f32.mrb[0].mxu0
      %v3455 = vadd.f32 0.0, %v3454
      %v3456 = vpop.f32.mrb[0].mxu0
      %v3457 = vpop.f32.mrb[0].mxu0
      %v3458 = vadd.f32 0.0, %v3457
      %v3459 = vpop.f32.mrb[0].mxu0
      %3460 = vmatprep.mubr.bf16.mxu0 0
      %3461 = vmatmul.mubr.bf16.gmra.mrb[0].mxu0 %v3346
      %v3462 = vpop.f32.mrb[0].mxu0
      %v3463 = vadd.f32 0.0, %v3462
      %v3464 = vpop.f32.mrb[0].mxu0
      %v3465 = vpop.f32.mrb[0].mxu0
      %v3466 = vadd.f32 0.0, %v3465
      %v3467 = vpop.f32.mrb[0].mxu0
      %3468 = vmatprep.mubr.bf16.mxu0 0
      %3469 = vmatmul.mubr.bf16.gmra.mrb[0].mxu0 %v3349
      %v3470 = vpop.f32.mrb[0].mxu0
      %v3471 = vadd.f32 0.0, %v3470
      %v3472 = vpop.f32.mrb[0].mxu0
      %v3473 = vpop.f32.mrb[0].mxu0
      %v3474 = vadd.f32 0.0, %v3473
      %v3475 = vpop.f32.mrb[0].mxu0
      %3476 = vmatprep.mubr.bf16.mxu0 0
      %3477 = vmatmul.mubr.bf16.gmra.mrb[0].mxu0 %v3352
      %v3478 = vpop.f32.mrb[0].mxu0
      %v3479 = vadd.f32 0.0, %v3478
      %v3480 = vpop.f32.mrb[0].mxu0
      %v3481 = vpop.f32.mrb[0].mxu0
      %v3482 = vadd.f32 0.0, %v3481
      %v3483 = vpop.f32.mrb[0].mxu0
      %3484 = vmatprep.mubr.bf16.mxu0 0
      %3485 = vmatmul.mubr.bf16.gmra.mrb[0].mxu0 %v3355
      %v3486 = vpop.f32.mrb[0].mxu0
      %v3487 = vadd.f32 0.0, %v3486
      %v3488 = vpop.f32.mrb[0].mxu0
      %v3489 = vpop.f32.mrb[0].mxu0
      %v3490 = vadd.f32 0.0, %v3489
      %v3491 = vpop.f32.mrb[0].mxu0
      %3492 = vmatprep.mubr.bf16.mxu0 0
      %3493 = vmatmul.mubr.bf16.gmra.mrb[0].mxu0 %v3358
      %v3494 = vpop.f32.mrb[0].mxu0
      %v3495 = vadd.f32 0.0, %v3494
      %v3496 = vpop.f32.mrb[0].mxu0
      %v3497 = vpop.f32.mrb[0].mxu0
      %v3498 = vadd.f32 0.0, %v3497
      %v3499 = vpop.f32.mrb[0].mxu0
      %3500 = vmatprep.mubr.bf16.mxu0 0
      %3501 = vmatmul.mubr.bf16.gmra.mrb[0].mxu0 %v3361
      %v3502 = vpop.f32.mrb[0].mxu0
      %v3503 = vadd.f32 0.0, %v3502
      %v3504 = vpop.f32.mrb[0].mxu0
      %v3505 = vpop.f32.mrb[0].mxu0
      %v3506 = vadd.f32 0.0, %v3505
      %v3507 = vpop.f32.mrb[0].mxu0
      %3508 = vmatprep.mubr.bf16.mxu0 0
      %3509 = vmatmul.mubr.bf16.gmra.mrb[0].mxu0 %v3364
      %v3510 = vpop.f32.mrb[0].mxu0
      %v3511 = vadd.f32 0.0, %v3510
      %v3512 = vpop.f32.mrb[0].mxu0
      %v3513 = vpop.f32.mrb[0].mxu0
      %v3514 = vadd.f32 0.0, %v3513
      %v3515 = vpop.f32.mrb[0].mxu0
      %3516 = vmatprep.mubr.bf16.mxu0 0
      %3517 = vmatmul.mubr.bf16.gmra.mrb[0].mxu0 %v3367
      %v3518 = vpop.f32.mrb[0].mxu0
      %v3519 = vadd.f32 0.0, %v3518
      %v3520 = vpop.f32.mrb[0].mxu0
      %v3521 = vpop.f32.mrb[0].mxu0
      %v3522 = vadd.f32 0.0, %v3521
      %v3523 = vpop.f32.mrb[0].mxu0
      %3524 = vmatprep.mubr.bf16.mxu0 0
      %3525 = vmatmul.mubr.bf16.gmra.mrb[0].mxu0 %v3370
      %v3526 = vpop.f32.mrb[0].mxu0
      %v3527 = vadd.f32 0.0, %v3526
      %v3528 = vpop.f32.mrb[0].mxu0
      %v3529 = vpop.f32.mrb[0].mxu0
      %v3530 = vadd.f32 0.0, %v3529
      %v3531 = vpop.f32.mrb[0].mxu0
      %3532 = vdwg.mxu0
      %v3533 = vadd.f32 %v3051, %v3407
      %v3534 = vadd.f32 %v3052, %v3410
      %v3535 = vadd.f32 %v3053, %v3415
      %v3536 = vadd.f32 %v3054, %v3418
      %v3537 = vadd.f32 %v3055, %v3423
      %v3538 = vadd.f32 %v3056, %v3426
      %v3539 = vadd.f32 %v3057, %v3431
      %v3540 = vadd.f32 %v3058, %v3434
      %v3541 = vadd.f32 %v3059, %v3439
      %v3542 = vadd.f32 %v3060, %v3442
      %v3543 = vadd.f32 %v3061, %v3447
      %v3544 = vadd.f32 %v3062, %v3450
      %v3545 = vadd.f32 %v3063, %v3455
      %v3546 = vadd.f32 %v3064, %v3458
      %v3547 = vadd.f32 %v3065, %v3463
      %v3548 = vadd.f32 %v3066, %v3466
      %v3549 = vadd.f32 %v3067, %v3471
      %v3550 = vadd.f32 %v3068, %v3474
      %v3551 = vadd.f32 %v3069, %v3479
      %v3552 = vadd.f32 %v3070, %v3482
      %v3553 = vadd.f32 %v3071, %v3487
      %v3554 = vadd.f32 %v3072, %v3490
      %v3555 = vadd.f32 %v3073, %v3495
      %v3556 = vadd.f32 %v3074, %v3498
      %v3557 = vadd.f32 %v3075, %v3503
      %v3558 = vadd.f32 %v3076, %v3506
      %v3559 = vadd.f32 %v3077, %v3511
      %v3560 = vadd.f32 %v3078, %v3514
      %v3561 = vadd.f32 %v3079, %v3519
      %v3562 = vadd.f32 %v3080, %v3522
      %v3563 = vadd.f32 %v3081, %v3527
      %v3564 = vadd.f32 %v3082, %v3530
      %s3565 = scalar_lea.vmem [#allocation2], 24
      %v3566 = vld [vmem:[%s3565] sm:$0xf]
      %v3567 = vld [vmem:[%s3565 + $0x4] sm:$0xf]
      %v3568 = vld [vmem:[%s3565 + $0xc] sm:$0xf]
      %v3569 = vld [vmem:[%s3565 + $0x10] sm:$0xf]
      %v3570 = vld [vmem:[%s3565 + $0x18] sm:$0xf]
      %v3571 = vld [vmem:[%s3565 + $0x1c] sm:$0xf]
      %v3572 = vld [vmem:[%s3565 + $0x24] sm:$0xf]
      %v3573 = vld [vmem:[%s3565 + $0x28] sm:$0xf]
      %v3574 = vld [vmem:[%s3565 + $0x30] sm:$0xf]
      %v3575 = vld [vmem:[%s3565 + $0x34] sm:$0xf]
      %v3576 = vld [vmem:[%s3565 + $0x3c] sm:$0xf]
      %v3577 = vld [vmem:[%s3565 + $0x40] sm:$0xf]
      %v3578 = vld [vmem:[%s3565 + $0x48] sm:$0xf]
      %v3579 = vld [vmem:[%s3565 + $0x4c] sm:$0xf]
      %v3580 = vld [vmem:[%s3565 + $0x54] sm:$0xf]
      %v3581 = vld [vmem:[%s3565 + $0x58] sm:$0xf]
      %v3582 = vld [vmem:[%s3565 + $0x60] sm:$0xf]
      %v3583 = vld [vmem:[%s3565 + $0x64] sm:$0xf]
      %v3584 = vld [vmem:[%s3565 + $0x6c] sm:$0xf]
      %v3585 = vld [vmem:[%s3565 + $0x70] sm:$0xf]
      %v3586 = vld [vmem:[%s3565 + $0x78] sm:$0xf]
      %v3587 = vld [vmem:[%s3565 + $0x7c] sm:$0xf]
      %v3588 = vld [vmem:[%s3565 + $0x84] sm:$0xf]
      %v3589 = vld [vmem:[%s3565 + $0x88] sm:$0xf]
      %v3590 = vld [vmem:[%s3565 + $0x90] sm:$0xf]
      %v3591 = vld [vmem:[%s3565 + $0x94] sm:$0xf]
      %v3592 = vld [vmem:[%s3565 + $0x9c] sm:$0xf]
      %v3593 = vld [vmem:[%s3565 + $0xa0] sm:$0xf]
      %v3594 = vld [vmem:[%s3565 + $0xa8] sm:$0xf]
      %v3595 = vld [vmem:[%s3565 + $0xac] sm:$0xf]
      %v3596 = vld [vmem:[%s3565 + $0xb4] sm:$0xf]
      %v3597 = vld [vmem:[%s3565 + $0xb8] sm:$0xf]
      %s3598 = scalar_lea.vmem %s2, 96
      %v3599 = vld [vmem:[%s3598] sm:$0xf]
      %v3600 = vld [vmem:[%s3598 + $0x4] sm:$0xf]
      %v3601 = vld [vmem:[%s3598 + $0x8] sm:$0xf]
      %v3602 = vld [vmem:[%s3598 + $0xc] sm:$0xf]
      %v3635 = vunpack.c.l.b16 %v3566
      %v3636 = vunpack.c.l.b16 %v3567
      %v3637 = vunpack.c.l.b16 %v3568
      %v3638 = vunpack.c.l.b16 %v3569
      %v3639 = vunpack.c.l.b16 %v3570
      %v3640 = vunpack.c.l.b16 %v3571
      %v3641 = vunpack.c.l.b16 %v3572
      %v3642 = vunpack.c.l.b16 %v3573
      %v3643 = vunpack.c.l.b16 %v3574
      %v3644 = vunpack.c.l.b16 %v3575
      %v3645 = vunpack.c.l.b16 %v3576
      %v3646 = vunpack.c.l.b16 %v3577
      %v3647 = vunpack.c.l.b16 %v3578
      %v3648 = vunpack.c.l.b16 %v3579
      %v3649 = vunpack.c.l.b16 %v3580
      %v3650 = vunpack.c.l.b16 %v3581
      %v3651 = vunpack.c.l.b16 %v3582
      %v3652 = vunpack.c.l.b16 %v3583
      %v3653 = vunpack.c.l.b16 %v3584
      %v3654 = vunpack.c.l.b16 %v3585
      %v3655 = vunpack.c.l.b16 %v3586
      %v3656 = vunpack.c.l.b16 %v3587
      %v3657 = vunpack.c.l.b16 %v3588
      %v3658 = vunpack.c.l.b16 %v3589
      %v3659 = vunpack.c.l.b16 %v3590
      %v3660 = vunpack.c.l.b16 %v3591
      %v3661 = vunpack.c.l.b16 %v3592
      %v3662 = vunpack.c.l.b16 %v3593
      %v3663 = vunpack.c.l.b16 %v3594
      %v3664 = vunpack.c.l.b16 %v3595
      %v3665 = vunpack.c.l.b16 %v3596
      %v3666 = vunpack.c.l.b16 %v3597
      %v3667 = vpack.c.b16 %v3636, %v3635
      %v3668 = vpack.c.b16 %v3638, %v3637
      %v3669 = vpack.c.b16 %v3640, %v3639
      %v3670 = vpack.c.b16 %v3642, %v3641
      %v3671 = vpack.c.b16 %v3644, %v3643
      %v3672 = vpack.c.b16 %v3646, %v3645
      %v3673 = vpack.c.b16 %v3648, %v3647
      %v3674 = vpack.c.b16 %v3650, %v3649
      %v3675 = vpack.c.b16 %v3652, %v3651
      %v3676 = vpack.c.b16 %v3654, %v3653
      %v3677 = vpack.c.b16 %v3656, %v3655
      %v3678 = vpack.c.b16 %v3658, %v3657
      %v3679 = vpack.c.b16 %v3660, %v3659
      %v3680 = vpack.c.b16 %v3662, %v3661
      %v3681 = vpack.c.b16 %v3664, %v3663
      %v3682 = vpack.c.b16 %v3666, %v3665
      %v3687 = vunpack.c.l.b16 %v3599
      %v3688 = vunpack.c.l.b16 %v3600
      %v3689 = vunpack.c.l.b16 %v3601
      %v3690 = vunpack.c.l.b16 %v3602
      %v3691 = vpack.c.b16 %v3688, %v3687
      %v3692 = vpack.c.b16 %v3690, %v3689
      %v3696 = vsel %vm994, %v3667, 0
      %v3699 = vsel %vm994, %v3668, 0
      %v3702 = vsel %vm994, %v3669, 0
      %v3705 = vsel %vm994, %v3670, 0
      %v3708 = vsel %vm994, %v3671, 0
      %v3711 = vsel %vm994, %v3672, 0
      %v3714 = vsel %vm994, %v3673, 0
      %v3717 = vsel %vm994, %v3674, 0
      %v3720 = vsel %vm994, %v3675, 0
      %v3723 = vsel %vm994, %v3676, 0
      %v3726 = vsel %vm994, %v3677, 0
      %v3729 = vsel %vm994, %v3678, 0
      %v3732 = vsel %vm994, %v3679, 0
      %v3735 = vsel %vm994, %v3680, 0
      %v3738 = vsel %vm994, %v3681, 0
      %v3741 = vsel %vm994, %v3682, 0
      %3743 = vmatprep.subr.bf16.mxu0 0
      %3744 = vmatpush1.bf16.msra.mxu0 %v3691
      %3745 = vmatprep.subr.bf16.mxu0 0
      %3746 = vmatpush1.bf16.msra.mxu0 %v3692
      %3747 = vmatprep.subr.bf16.mxu0 0
      %3748 = vmatpush1.bf16.msra.mxu0 0
      %3749 = vmatprep.subr.bf16.mxu0 0
      %3750 = vmatpush1.bf16.msra.mxu0 0
      %3751 = vmatprep.subr.bf16.mxu0 0
      %3752 = vmatpush1.bf16.msra.mxu0 0
      %3753 = vmatprep.subr.bf16.mxu0 0
      %3754 = vmatpush1.bf16.msra.mxu0 0
      %3755 = vmatprep.subr.bf16.mxu0 0
      %3756 = vmatpush1.bf16.msra.mxu0 0
      %3757 = vmatprep.subr.bf16.mxu0 0
      %3758 = vmatpush1.bf16.msra.mxu0 0
      %3759 = vmatprep.subr.bf16.mxu0 0
      %3760 = vmatpush1.bf16.msra.mxu0 0
      %3761 = vmatprep.subr.bf16.mxu0 0
      %3762 = vmatpush1.bf16.msra.mxu0 0
      %3763 = vmatprep.subr.bf16.mxu0 0
      %3764 = vmatpush1.bf16.msra.mxu0 0
      %3765 = vmatprep.subr.bf16.mxu0 0
      %3766 = vmatpush1.bf16.msra.mxu0 0
      %3767 = vmatprep.subr.bf16.mxu0 0
      %3768 = vmatpush1.bf16.msra.mxu0 0
      %3769 = vmatprep.subr.bf16.mxu0 0
      %3770 = vmatpush1.bf16.msra.mxu0 0
      %3771 = vmatprep.subr.bf16.mxu0 0
      %3772 = vmatpush1.bf16.msra.mxu0 0
      %3773 = vmatprep.subr.bf16.mxu0 0
      %3774 = vmatpush1.bf16.msra.mxu0 0
      %3775 = vmatprep.mubr.bf16.mxu0 0
      %3776 = vmatmul.mubr.bf16.gmra.mrb[0].mxu0 %v3696
      %v3777 = vpop.f32.mrb[0].mxu0
      %v3778 = vadd.f32 0.0, %v3777
      %v3779 = vpop.f32.mrb[0].mxu0
      %v3780 = vpop.f32.mrb[0].mxu0
      %v3781 = vadd.f32 0.0, %v3780
      %v3782 = vpop.f32.mrb[0].mxu0
      %3783 = vmatprep.mubr.bf16.mxu0 0
      %3784 = vmatmul.mubr.bf16.gmra.mrb[0].mxu0 %v3699
      %v3785 = vpop.f32.mrb[0].mxu0
      %v3786 = vadd.f32 0.0, %v3785
      %v3787 = vpop.f32.mrb[0].mxu0
      %v3788 = vpop.f32.mrb[0].mxu0
      %v3789 = vadd.f32 0.0, %v3788
      %v3790 = vpop.f32.mrb[0].mxu0
      %3791 = vmatprep.mubr.bf16.mxu0 0
      %3792 = vmatmul.mubr.bf16.gmra.mrb[0].mxu0 %v3702
      %v3793 = vpop.f32.mrb[0].mxu0
      %v3794 = vadd.f32 0.0, %v3793
      %v3795 = vpop.f32.mrb[0].mxu0
      %v3796 = vpop.f32.mrb[0].mxu0
      %v3797 = vadd.f32 0.0, %v3796
      %v3798 = vpop.f32.mrb[0].mxu0
      %3799 = vmatprep.mubr.bf16.mxu0 0
      %3800 = vmatmul.mubr.bf16.gmra.mrb[0].mxu0 %v3705
      %v3801 = vpop.f32.mrb[0].mxu0
      %v3802 = vadd.f32 0.0, %v3801
      %v3803 = vpop.f32.mrb[0].mxu0
      %v3804 = vpop.f32.mrb[0].mxu0
      %v3805 = vadd.f32 0.0, %v3804
      %v3806 = vpop.f32.mrb[0].mxu0
      %3807 = vmatprep.mubr.bf16.mxu0 0
      %3808 = vmatmul.mubr.bf16.gmra.mrb[0].mxu0 %v3708
      %v3809 = vpop.f32.mrb[0].mxu0
      %v3810 = vadd.f32 0.0, %v3809
      %v3811 = vpop.f32.mrb[0].mxu0
      %v3812 = vpop.f32.mrb[0].mxu0
      %v3813 = vadd.f32 0.0, %v3812
      %v3814 = vpop.f32.mrb[0].mxu0
      %3815 = vmatprep.mubr.bf16.mxu0 0
      %3816 = vmatmul.mubr.bf16.gmra.mrb[0].mxu0 %v3711
      %v3817 = vpop.f32.mrb[0].mxu0
      %v3818 = vadd.f32 0.0, %v3817
      %v3819 = vpop.f32.mrb[0].mxu0
      %v3820 = vpop.f32.mrb[0].mxu0
      %v3821 = vadd.f32 0.0, %v3820
      %v3822 = vpop.f32.mrb[0].mxu0
      %3823 = vmatprep.mubr.bf16.mxu0 0
      %3824 = vmatmul.mubr.bf16.gmra.mrb[0].mxu0 %v3714
      %v3825 = vpop.f32.mrb[0].mxu0
      %v3826 = vadd.f32 0.0, %v3825
      %v3827 = vpop.f32.mrb[0].mxu0
      %v3828 = vpop.f32.mrb[0].mxu0
      %v3829 = vadd.f32 0.0, %v3828
      %v3830 = vpop.f32.mrb[0].mxu0
      %3831 = vmatprep.mubr.bf16.mxu0 0
      %3832 = vmatmul.mubr.bf16.gmra.mrb[0].mxu0 %v3717
      %v3833 = vpop.f32.mrb[0].mxu0
      %v3834 = vadd.f32 0.0, %v3833
      %v3835 = vpop.f32.mrb[0].mxu0
      %v3836 = vpop.f32.mrb[0].mxu0
      %v3837 = vadd.f32 0.0, %v3836
      %v3838 = vpop.f32.mrb[0].mxu0
      %3839 = vmatprep.mubr.bf16.mxu0 0
      %3840 = vmatmul.mubr.bf16.gmra.mrb[0].mxu0 %v3720
      %v3841 = vpop.f32.mrb[0].mxu0
      %v3842 = vadd.f32 0.0, %v3841
      %v3843 = vpop.f32.mrb[0].mxu0
      %v3844 = vpop.f32.mrb[0].mxu0
      %v3845 = vadd.f32 0.0, %v3844
      %v3846 = vpop.f32.mrb[0].mxu0
      %3847 = vmatprep.mubr.bf16.mxu0 0
      %3848 = vmatmul.mubr.bf16.gmra.mrb[0].mxu0 %v3723
      %v3849 = vpop.f32.mrb[0].mxu0
      %v3850 = vadd.f32 0.0, %v3849
      %v3851 = vpop.f32.mrb[0].mxu0
      %v3852 = vpop.f32.mrb[0].mxu0
      %v3853 = vadd.f32 0.0, %v3852
      %v3854 = vpop.f32.mrb[0].mxu0
      %3855 = vmatprep.mubr.bf16.mxu0 0
      %3856 = vmatmul.mubr.bf16.gmra.mrb[0].mxu0 %v3726
      %v3857 = vpop.f32.mrb[0].mxu0
      %v3858 = vadd.f32 0.0, %v3857
      %v3859 = vpop.f32.mrb[0].mxu0
      %v3860 = vpop.f32.mrb[0].mxu0
      %v3861 = vadd.f32 0.0, %v3860
      %v3862 = vpop.f32.mrb[0].mxu0
      %3863 = vmatprep.mubr.bf16.mxu0 0
      %3864 = vmatmul.mubr.bf16.gmra.mrb[0].mxu0 %v3729
      %v3865 = vpop.f32.mrb[0].mxu0
      %v3866 = vadd.f32 0.0, %v3865
      %v3867 = vpop.f32.mrb[0].mxu0
      %v3868 = vpop.f32.mrb[0].mxu0
      %v3869 = vadd.f32 0.0, %v3868
      %v3870 = vpop.f32.mrb[0].mxu0
      %3871 = vmatprep.mubr.bf16.mxu0 0
      %3872 = vmatmul.mubr.bf16.gmra.mrb[0].mxu0 %v3732
      %v3873 = vpop.f32.mrb[0].mxu0
      %v3874 = vadd.f32 0.0, %v3873
      %v3875 = vpop.f32.mrb[0].mxu0
      %v3876 = vpop.f32.mrb[0].mxu0
      %v3877 = vadd.f32 0.0, %v3876
      %v3878 = vpop.f32.mrb[0].mxu0
      %3879 = vmatprep.mubr.bf16.mxu0 0
      %3880 = vmatmul.mubr.bf16.gmra.mrb[0].mxu0 %v3735
      %v3881 = vpop.f32.mrb[0].mxu0
      %v3882 = vadd.f32 0.0, %v3881
      %v3883 = vpop.f32.mrb[0].mxu0
      %v3884 = vpop.f32.mrb[0].mxu0
      %v3885 = vadd.f32 0.0, %v3884
      %v3886 = vpop.f32.mrb[0].mxu0
      %3887 = vmatprep.mubr.bf16.mxu0 0
      %3888 = vmatmul.mubr.bf16.gmra.mrb[0].mxu0 %v3738
      %v3889 = vpop.f32.mrb[0].mxu0
      %v3890 = vadd.f32 0.0, %v3889
      %v3891 = vpop.f32.mrb[0].mxu0
      %v3892 = vpop.f32.mrb[0].mxu0
      %v3893 = vadd.f32 0.0, %v3892
      %v3894 = vpop.f32.mrb[0].mxu0
      %3895 = vmatprep.mubr.bf16.mxu0 0
      %3896 = vmatmul.mubr.bf16.gmra.mrb[0].mxu0 %v3741
      %v3897 = vpop.f32.mrb[0].mxu0
      %v3898 = vadd.f32 0.0, %v3897
      %v3899 = vpop.f32.mrb[0].mxu0
      %v3900 = vpop.f32.mrb[0].mxu0
      %v3901 = vadd.f32 0.0, %v3900
      %v3902 = vpop.f32.mrb[0].mxu0
      %3903 = vdwg.mxu0
      %v3904 = vadd.f32 %v3533, %v3778
      %v3905 = vadd.f32 %v3534, %v3781
      %v3906 = vadd.f32 %v3535, %v3786
      %v3907 = vadd.f32 %v3536, %v3789
      %v3908 = vadd.f32 %v3537, %v3794
      %v3909 = vadd.f32 %v3538, %v3797
      %v3910 = vadd.f32 %v3539, %v3802
      %v3911 = vadd.f32 %v3540, %v3805
      %v3912 = vadd.f32 %v3541, %v3810
      %v3913 = vadd.f32 %v3542, %v3813
      %v3914 = vadd.f32 %v3543, %v3818
      %v3915 = vadd.f32 %v3544, %v3821
      %v3916 = vadd.f32 %v3545, %v3826
      %v3917 = vadd.f32 %v3546, %v3829
      %v3918 = vadd.f32 %v3547, %v3834
      %v3919 = vadd.f32 %v3548, %v3837
      %v3920 = vadd.f32 %v3549, %v3842
      %v3921 = vadd.f32 %v3550, %v3845
      %v3922 = vadd.f32 %v3551, %v3850
      %v3923 = vadd.f32 %v3552, %v3853
      %v3924 = vadd.f32 %v3553, %v3858
      %v3925 = vadd.f32 %v3554, %v3861
      %v3926 = vadd.f32 %v3555, %v3866
      %v3927 = vadd.f32 %v3556, %v3869
      %v3928 = vadd.f32 %v3557, %v3874
      %v3929 = vadd.f32 %v3558, %v3877
      %v3930 = vadd.f32 %v3559, %v3882
      %v3931 = vadd.f32 %v3560, %v3885
      %v3932 = vadd.f32 %v3561, %v3890
      %v3933 = vadd.f32 %v3562, %v3893
      %v3934 = vadd.f32 %v3563, %v3898
      %v3935 = vadd.f32 %v3564, %v3901
      %v3936 = vld [vmem:[%s3565] sm:$0xf]
      %v3937 = vld [vmem:[%s3565 + $0x4] sm:$0xf]
      %v3938 = vld [vmem:[%s3565 + $0x8] sm:$0x1]
      %v3939 = vld [vmem:[%s3565 + $0xc] sm:$0xf]
      %v3940 = vld [vmem:[%s3565 + $0x10] sm:$0xf]
      %v3941 = vld [vmem:[%s3565 + $0x14] sm:$0x1]
      %v3942 = vld [vmem:[%s3565 + $0x18] sm:$0xf]
      %v3943 = vld [vmem:[%s3565 + $0x1c] sm:$0xf]
      %v3944 = vld [vmem:[%s3565 + $0x20] sm:$0x1]
      %v3945 = vld [vmem:[%s3565 + $0x24] sm:$0xf]
      %v3946 = vld [vmem:[%s3565 + $0x28] sm:$0xf]
      %v3947 = vld [vmem:[%s3565 + $0x2c] sm:$0x1]
      %v3948 = vld [vmem:[%s3565 + $0x30] sm:$0xf]
      %v3949 = vld [vmem:[%s3565 + $0x34] sm:$0xf]
      %v3950 = vld [vmem:[%s3565 + $0x38] sm:$0x1]
      %v3951 = vld [vmem:[%s3565 + $0x3c] sm:$0xf]
      %v3952 = vld [vmem:[%s3565 + $0x40] sm:$0xf]
      %v3953 = vld [vmem:[%s3565 + $0x44] sm:$0x1]
      %v3954 = vld [vmem:[%s3565 + $0x48] sm:$0xf]
      %v3955 = vld [vmem:[%s3565 + $0x4c] sm:$0xf]
      %v3956 = vld [vmem:[%s3565 + $0x50] sm:$0x1]
      %v3957 = vld [vmem:[%s3565 + $0x54] sm:$0xf]
      %v3958 = vld [vmem:[%s3565 + $0x58] sm:$0xf]
      %v3959 = vld [vmem:[%s3565 + $0x5c] sm:$0x1]
      %v3960 = vld [vmem:[%s3565 + $0x60] sm:$0xf]
      %v3961 = vld [vmem:[%s3565 + $0x64] sm:$0xf]
      %v3962 = vld [vmem:[%s3565 + $0x68] sm:$0x1]
      %v3963 = vld [vmem:[%s3565 + $0x6c] sm:$0xf]
      %v3964 = vld [vmem:[%s3565 + $0x70] sm:$0xf]
      %v3965 = vld [vmem:[%s3565 + $0x74] sm:$0x1]
      %v3966 = vld [vmem:[%s3565 + $0x78] sm:$0xf]
      %v3967 = vld [vmem:[%s3565 + $0x7c] sm:$0xf]
      %v3968 = vld [vmem:[%s3565 + $0x80] sm:$0x1]
      %v3969 = vld [vmem:[%s3565 + $0x84] sm:$0xf]
      %v3970 = vld [vmem:[%s3565 + $0x88] sm:$0xf]
      %v3971 = vld [vmem:[%s3565 + $0x8c] sm:$0x1]
      %v3972 = vld [vmem:[%s3565 + $0x90] sm:$0xf]
      %v3973 = vld [vmem:[%s3565 + $0x94] sm:$0xf]
      %v3974 = vld [vmem:[%s3565 + $0x98] sm:$0x1]
      %v3975 = vld [vmem:[%s3565 + $0x9c] sm:$0xf]
      %v3976 = vld [vmem:[%s3565 + $0xa0] sm:$0xf]
      %v3977 = vld [vmem:[%s3565 + $0xa4] sm:$0x1]
      %v3978 = vld [vmem:[%s3565 + $0xa8] sm:$0xf]
      %v3979 = vld [vmem:[%s3565 + $0xac] sm:$0xf]
      %v3980 = vld [vmem:[%s3565 + $0xb0] sm:$0x1]
      %v3981 = vld [vmem:[%s3565 + $0xb4] sm:$0xf]
      %v3982 = vld [vmem:[%s3565 + $0xb8] sm:$0xf]
      %v3983 = vld [vmem:[%s3565 + $0xbc] sm:$0x1]
      %v3985 = vshrl.u32 %v3936, 16
      %v3987 = vrot.slane %v3985, 4
      %v3988 = vshll.u32 %v3936, 16
      %v3990 = vrot.slane %v3988, 5
      %v3991 = vor.u32 %v3987, %v3990
      %v3992 = vrot.slane %v3991, 4
      %v3994 = vshll.u32 %v3937, 16
      %v3996 = vrot.slane %v3994, 5
      %v3997 = vsel %vm544, %v3992, %v3996
      %v3998 = vshrl.u32 %v3937, 16
      %v4000 = vrot.slane %v3998, 4
      %v4001 = vor.u32 %v4000, %v3996
      %v4002 = vrot.slane %v4001, 4
      %v4004 = vshll.u32 %v3938, 16
      %v4006 = vrot.slane %v4004, 5
      %v4007 = vsel %vm544, %v4002, %v4006
      %v4009 = vshrl.u32 %v3939, 16
      %v4011 = vrot.slane %v4009, 4
      %v4012 = vshll.u32 %v3939, 16
      %v4014 = vrot.slane %v4012, 5
      %v4015 = vor.u32 %v4011, %v4014
      %v4016 = vrot.slane %v4015, 4
      %v4018 = vshll.u32 %v3940, 16
      %v4020 = vrot.slane %v4018, 5
      %v4021 = vsel %vm544, %v4016, %v4020
      %v4022 = vshrl.u32 %v3940, 16
      %v4024 = vrot.slane %v4022, 4
      %v4025 = vor.u32 %v4024, %v4020
      %v4026 = vrot.slane %v4025, 4
      %v4028 = vshll.u32 %v3941, 16
      %v4030 = vrot.slane %v4028, 5
      %v4031 = vsel %vm544, %v4026, %v4030
      %v4033 = vshrl.u32 %v3942, 16
      %v4035 = vrot.slane %v4033, 4
      %v4036 = vshll.u32 %v3942, 16
      %v4038 = vrot.slane %v4036, 5
      %v4039 = vor.u32 %v4035, %v4038
      %v4040 = vrot.slane %v4039, 4
      %v4042 = vshll.u32 %v3943, 16
      %v4044 = vrot.slane %v4042, 5
      %v4045 = vsel %vm544, %v4040, %v4044
      %v4046 = vshrl.u32 %v3943, 16
      %v4048 = vrot.slane %v4046, 4
      %v4049 = vor.u32 %v4048, %v4044
      %v4050 = vrot.slane %v4049, 4
      %v4052 = vshll.u32 %v3944, 16
      %v4054 = vrot.slane %v4052, 5
      %v4055 = vsel %vm544, %v4050, %v4054
      %v4057 = vshrl.u32 %v3945, 16
      %v4059 = vrot.slane %v4057, 4
      %v4060 = vshll.u32 %v3945, 16
      %v4062 = vrot.slane %v4060, 5
      %v4063 = vor.u32 %v4059, %v4062
      %v4064 = vrot.slane %v4063, 4
      %v4066 = vshll.u32 %v3946, 16
      %v4068 = vrot.slane %v4066, 5
      %v4069 = vsel %vm544, %v4064, %v4068
      %v4070 = vshrl.u32 %v3946, 16
      %v4072 = vrot.slane %v4070, 4
      %v4073 = vor.u32 %v4072, %v4068
      %v4074 = vrot.slane %v4073, 4
      %v4076 = vshll.u32 %v3947, 16
      %v4078 = vrot.slane %v4076, 5
      %v4079 = vsel %vm544, %v4074, %v4078
      %v4081 = vshrl.u32 %v3948, 16
      %v4083 = vrot.slane %v4081, 4
      %v4084 = vshll.u32 %v3948, 16
      %v4086 = vrot.slane %v4084, 5
      %v4087 = vor.u32 %v4083, %v4086
      %v4088 = vrot.slane %v4087, 4
      %v4090 = vshll.u32 %v3949, 16
      %v4092 = vrot.slane %v4090, 5
      %v4093 = vsel %vm544, %v4088, %v4092
      %v4094 = vshrl.u32 %v3949, 16
      %v4096 = vrot.slane %v4094, 4
      %v4097 = vor.u32 %v4096, %v4092
      %v4098 = vrot.slane %v4097, 4
      %v4100 = vshll.u32 %v3950, 16
      %v4102 = vrot.slane %v4100, 5
      %v4103 = vsel %vm544, %v4098, %v4102
      %v4105 = vshrl.u32 %v3951, 16
      %v4107 = vrot.slane %v4105, 4
      %v4108 = vshll.u32 %v3951, 16
      %v4110 = vrot.slane %v4108, 5
      %v4111 = vor.u32 %v4107, %v4110
      %v4112 = vrot.slane %v4111, 4
      %v4114 = vshll.u32 %v3952, 16
      %v4116 = vrot.slane %v4114, 5
      %v4117 = vsel %vm544, %v4112, %v4116
      %v4118 = vshrl.u32 %v3952, 16
      %v4120 = vrot.slane %v4118, 4
      %v4121 = vor.u32 %v4120, %v4116
      %v4122 = vrot.slane %v4121, 4
      %v4124 = vshll.u32 %v3953, 16
      %v4126 = vrot.slane %v4124, 5
      %v4127 = vsel %vm544, %v4122, %v4126
      %v4129 = vshrl.u32 %v3954, 16
      %v4131 = vrot.slane %v4129, 4
      %v4132 = vshll.u32 %v3954, 16
      %v4134 = vrot.slane %v4132, 5
      %v4135 = vor.u32 %v4131, %v4134
      %v4136 = vrot.slane %v4135, 4
      %v4138 = vshll.u32 %v3955, 16
      %v4140 = vrot.slane %v4138, 5
      %v4141 = vsel %vm544, %v4136, %v4140
      %v4142 = vshrl.u32 %v3955, 16
      %v4144 = vrot.slane %v4142, 4
      %v4145 = vor.u32 %v4144, %v4140
      %v4146 = vrot.slane %v4145, 4
      %v4148 = vshll.u32 %v3956, 16
      %v4150 = vrot.slane %v4148, 5
      %v4151 = vsel %vm544, %v4146, %v4150
      %v4153 = vshrl.u32 %v3957, 16
      %v4155 = vrot.slane %v4153, 4
      %v4156 = vshll.u32 %v3957, 16
      %v4158 = vrot.slane %v4156, 5
      %v4159 = vor.u32 %v4155, %v4158
      %v4160 = vrot.slane %v4159, 4
      %v4162 = vshll.u32 %v3958, 16
      %v4164 = vrot.slane %v4162, 5
      %v4165 = vsel %vm544, %v4160, %v4164
      %v4166 = vshrl.u32 %v3958, 16
      %v4168 = vrot.slane %v4166, 4
      %v4169 = vor.u32 %v4168, %v4164
      %v4170 = vrot.slane %v4169, 4
      %v4172 = vshll.u32 %v3959, 16
      %v4174 = vrot.slane %v4172, 5
      %v4175 = vsel %vm544, %v4170, %v4174
      %v4177 = vshrl.u32 %v3960, 16
      %v4179 = vrot.slane %v4177, 4
      %v4180 = vshll.u32 %v3960, 16
      %v4182 = vrot.slane %v4180, 5
      %v4183 = vor.u32 %v4179, %v4182
      %v4184 = vrot.slane %v4183, 4
      %v4186 = vshll.u32 %v3961, 16
      %v4188 = vrot.slane %v4186, 5
      %v4189 = vsel %vm544, %v4184, %v4188
      %v4190 = vshrl.u32 %v3961, 16
      %v4192 = vrot.slane %v4190, 4
      %v4193 = vor.u32 %v4192, %v4188
      %v4194 = vrot.slane %v4193, 4
      %v4196 = vshll.u32 %v3962, 16
      %v4198 = vrot.slane %v4196, 5
      %v4199 = vsel %vm544, %v4194, %v4198
      %v4201 = vshrl.u32 %v3963, 16
      %v4203 = vrot.slane %v4201, 4
      %v4204 = vshll.u32 %v3963, 16
      %v4206 = vrot.slane %v4204, 5
      %v4207 = vor.u32 %v4203, %v4206
      %v4208 = vrot.slane %v4207, 4
      %v4210 = vshll.u32 %v3964, 16
      %v4212 = vrot.slane %v4210, 5
      %v4213 = vsel %vm544, %v4208, %v4212
      %v4214 = vshrl.u32 %v3964, 16
      %v4216 = vrot.slane %v4214, 4
      %v4217 = vor.u32 %v4216, %v4212
      %v4218 = vrot.slane %v4217, 4
      %v4220 = vshll.u32 %v3965, 16
      %v4222 = vrot.slane %v4220, 5
      %v4223 = vsel %vm544, %v4218, %v4222
      %v4225 = vshrl.u32 %v3966, 16
      %v4227 = vrot.slane %v4225, 4
      %v4228 = vshll.u32 %v3966, 16
      %v4230 = vrot.slane %v4228, 5
      %v4231 = vor.u32 %v4227, %v4230
      %v4232 = vrot.slane %v4231, 4
      %v4234 = vshll.u32 %v3967, 16
      %v4236 = vrot.slane %v4234, 5
      %v4237 = vsel %vm544, %v4232, %v4236
      %v4238 = vshrl.u32 %v3967, 16
      %v4240 = vrot.slane %v4238, 4
      %v4241 = vor.u32 %v4240, %v4236
      %v4242 = vrot.slane %v4241, 4
      %v4244 = vshll.u32 %v3968, 16
      %v4246 = vrot.slane %v4244, 5
      %v4247 = vsel %vm544, %v4242, %v4246
      %v4249 = vshrl.u32 %v3969, 16
      %v4251 = vrot.slane %v4249, 4
      %v4252 = vshll.u32 %v3969, 16
      %v4254 = vrot.slane %v4252, 5
      %v4255 = vor.u32 %v4251, %v4254
      %v4256 = vrot.slane %v4255, 4
      %v4258 = vshll.u32 %v3970, 16
      %v4260 = vrot.slane %v4258, 5
      %v4261 = vsel %vm544, %v4256, %v4260
      %v4262 = vshrl.u32 %v3970, 16
      %v4264 = vrot.slane %v4262, 4
      %v4265 = vor.u32 %v4264, %v4260
      %v4266 = vrot.slane %v4265, 4
      %v4268 = vshll.u32 %v3971, 16
      %v4270 = vrot.slane %v4268, 5
      %v4271 = vsel %vm544, %v4266, %v4270
      %v4273 = vshrl.u32 %v3972, 16
      %v4275 = vrot.slane %v4273, 4
      %v4276 = vshll.u32 %v3972, 16
      %v4278 = vrot.slane %v4276, 5
      %v4279 = vor.u32 %v4275, %v4278
      %v4280 = vrot.slane %v4279, 4
      %v4282 = vshll.u32 %v3973, 16
      %v4284 = vrot.slane %v4282, 5
      %v4285 = vsel %vm544, %v4280, %v4284
      %v4286 = vshrl.u32 %v3973, 16
      %v4288 = vrot.slane %v4286, 4
      %v4289 = vor.u32 %v4288, %v4284
      %v4290 = vrot.slane %v4289, 4
      %v4292 = vshll.u32 %v3974, 16
      %v4294 = vrot.slane %v4292, 5
      %v4295 = vsel %vm544, %v4290, %v4294
      %v4297 = vshrl.u32 %v3975, 16
      %v4299 = vrot.slane %v4297, 4
      %v4300 = vshll.u32 %v3975, 16
      %v4302 = vrot.slane %v4300, 5
      %v4303 = vor.u32 %v4299, %v4302
      %v4304 = vrot.slane %v4303, 4
      %v4306 = vshll.u32 %v3976, 16
      %v4308 = vrot.slane %v4306, 5
      %v4309 = vsel %vm544, %v4304, %v4308
      %v4310 = vshrl.u32 %v3976, 16
      %v4312 = vrot.slane %v4310, 4
      %v4313 = vor.u32 %v4312, %v4308
      %v4314 = vrot.slane %v4313, 4
      %v4316 = vshll.u32 %v3977, 16
      %v4318 = vrot.slane %v4316, 5
      %v4319 = vsel %vm544, %v4314, %v4318
      %v4321 = vshrl.u32 %v3978, 16
      %v4323 = vrot.slane %v4321, 4
      %v4324 = vshll.u32 %v3978, 16
      %v4326 = vrot.slane %v4324, 5
      %v4327 = vor.u32 %v4323, %v4326
      %v4328 = vrot.slane %v4327, 4
      %v4330 = vshll.u32 %v3979, 16
      %v4332 = vrot.slane %v4330, 5
      %v4333 = vsel %vm544, %v4328, %v4332
      %v4334 = vshrl.u32 %v3979, 16
      %v4336 = vrot.slane %v4334, 4
      %v4337 = vor.u32 %v4336, %v4332
      %v4338 = vrot.slane %v4337, 4
      %v4340 = vshll.u32 %v3980, 16
      %v4342 = vrot.slane %v4340, 5
      %v4343 = vsel %vm544, %v4338, %v4342
      %v4345 = vshrl.u32 %v3981, 16
      %v4347 = vrot.slane %v4345, 4
      %v4348 = vshll.u32 %v3981, 16
      %v4350 = vrot.slane %v4348, 5
      %v4351 = vor.u32 %v4347, %v4350
      %v4352 = vrot.slane %v4351, 4
      %v4354 = vshll.u32 %v3982, 16
      %v4356 = vrot.slane %v4354, 5
      %v4357 = vsel %vm544, %v4352, %v4356
      %v4358 = vshrl.u32 %v3982, 16
      %v4360 = vrot.slane %v4358, 4
      %v4361 = vor.u32 %v4360, %v4356
      %v4362 = vrot.slane %v4361, 4
      %v4364 = vshll.u32 %v3983, 16
      %v4366 = vrot.slane %v4364, 5
      %v4367 = vsel %vm544, %v4362, %v4366
      %s4368 = scalar_lea.vmem %s2, 112
      %v4369 = vld [vmem:[%s4368] sm:$0xf]
      %v4370 = vld [vmem:[%s4368 + $0x4] sm:$0xf]
      %v4371 = vld [vmem:[%s4368 + $0x8] sm:$0xf]
      %v4372 = vld [vmem:[%s4368 + $0xc] sm:$0xf]
      %v4373 = vunpack.c.l.b16 %v3997
      %v4374 = vunpack.c.l.b16 %v4007
      %v4375 = vunpack.c.l.b16 %v4021
      %v4376 = vunpack.c.l.b16 %v4031
      %v4377 = vunpack.c.l.b16 %v4045
      %v4378 = vunpack.c.l.b16 %v4055
      %v4379 = vunpack.c.l.b16 %v4069
      %v4380 = vunpack.c.l.b16 %v4079
      %v4381 = vunpack.c.l.b16 %v4093
      %v4382 = vunpack.c.l.b16 %v4103
      %v4383 = vunpack.c.l.b16 %v4117
      %v4384 = vunpack.c.l.b16 %v4127
      %v4385 = vunpack.c.l.b16 %v4141
      %v4386 = vunpack.c.l.b16 %v4151
      %v4387 = vunpack.c.l.b16 %v4165
      %v4388 = vunpack.c.l.b16 %v4175
      %v4389 = vunpack.c.l.b16 %v4189
      %v4390 = vunpack.c.l.b16 %v4199
      %v4391 = vunpack.c.l.b16 %v4213
      %v4392 = vunpack.c.l.b16 %v4223
      %v4393 = vunpack.c.l.b16 %v4237
      %v4394 = vunpack.c.l.b16 %v4247
      %v4395 = vunpack.c.l.b16 %v4261
      %v4396 = vunpack.c.l.b16 %v4271
      %v4397 = vunpack.c.l.b16 %v4285
      %v4398 = vunpack.c.l.b16 %v4295
      %v4399 = vunpack.c.l.b16 %v4309
      %v4400 = vunpack.c.l.b16 %v4319
      %v4401 = vunpack.c.l.b16 %v4333
      %v4402 = vunpack.c.l.b16 %v4343
      %v4403 = vunpack.c.l.b16 %v4357
      %v4404 = vunpack.c.l.b16 %v4367
      %v4405 = vpack.c.b16 %v4374, %v4373
      %v4406 = vpack.c.b16 %v4376, %v4375
      %v4407 = vpack.c.b16 %v4378, %v4377
      %v4408 = vpack.c.b16 %v4380, %v4379
      %v4409 = vpack.c.b16 %v4382, %v4381
      %v4410 = vpack.c.b16 %v4384, %v4383
      %v4411 = vpack.c.b16 %v4386, %v4385
      %v4412 = vpack.c.b16 %v4388, %v4387
      %v4413 = vpack.c.b16 %v4390, %v4389
      %v4414 = vpack.c.b16 %v4392, %v4391
      %v4415 = vpack.c.b16 %v4394, %v4393
      %v4416 = vpack.c.b16 %v4396, %v4395
      %v4417 = vpack.c.b16 %v4398, %v4397
      %v4418 = vpack.c.b16 %v4400, %v4399
      %v4419 = vpack.c.b16 %v4402, %v4401
      %v4420 = vpack.c.b16 %v4404, %v4403
      %v4425 = vunpack.c.l.b16 %v4369
      %v4426 = vunpack.c.l.b16 %v4370
      %v4427 = vunpack.c.l.b16 %v4371
      %v4428 = vunpack.c.l.b16 %v4372
      %v4429 = vpack.c.b16 %v4426, %v4425
      %v4430 = vpack.c.b16 %v4428, %v4427
      %v4434 = vsel %vm994, %v4405, 0
      %v4437 = vsel %vm994, %v4406, 0
      %v4440 = vsel %vm994, %v4407, 0
      %v4443 = vsel %vm994, %v4408, 0
      %v4446 = vsel %vm994, %v4409, 0
      %v4449 = vsel %vm994, %v4410, 0
      %v4452 = vsel %vm994, %v4411, 0
      %v4455 = vsel %vm994, %v4412, 0
      %v4458 = vsel %vm994, %v4413, 0
      %v4461 = vsel %vm994, %v4414, 0
      %v4464 = vsel %vm994, %v4415, 0
      %v4467 = vsel %vm994, %v4416, 0
      %v4470 = vsel %vm994, %v4417, 0
      %v4473 = vsel %vm994, %v4418, 0
      %v4476 = vsel %vm994, %v4419, 0
      %v4479 = vsel %vm994, %v4420, 0
      %4481 = vmatprep.subr.bf16.mxu0 0
      %4482 = vmatpush1.bf16.msra.mxu0 %v4429
      %4483 = vmatprep.subr.bf16.mxu0 0
      %4484 = vmatpush1.bf16.msra.mxu0 %v4430
      %4485 = vmatprep.subr.bf16.mxu0 0
      %4486 = vmatpush1.bf16.msra.mxu0 0
      %4487 = vmatprep.subr.bf16.mxu0 0
      %4488 = vmatpush1.bf16.msra.mxu0 0
      %4489 = vmatprep.subr.bf16.mxu0 0
      %4490 = vmatpush1.bf16.msra.mxu0 0
      %4491 = vmatprep.subr.bf16.mxu0 0
      %4492 = vmatpush1.bf16.msra.mxu0 0
      %4493 = vmatprep.subr.bf16.mxu0 0
      %4494 = vmatpush1.bf16.msra.mxu0 0
      %4495 = vmatprep.subr.bf16.mxu0 0
      %4496 = vmatpush1.bf16.msra.mxu0 0
      %4497 = vmatprep.subr.bf16.mxu0 0
      %4498 = vmatpush1.bf16.msra.mxu0 0
      %4499 = vmatprep.subr.bf16.mxu0 0
      %4500 = vmatpush1.bf16.msra.mxu0 0
      %4501 = vmatprep.subr.bf16.mxu0 0
      %4502 = vmatpush1.bf16.msra.mxu0 0
      %4503 = vmatprep.subr.bf16.mxu0 0
      %4504 = vmatpush1.bf16.msra.mxu0 0
      %4505 = vmatprep.subr.bf16.mxu0 0
      %4506 = vmatpush1.bf16.msra.mxu0 0
      %4507 = vmatprep.subr.bf16.mxu0 0
      %4508 = vmatpush1.bf16.msra.mxu0 0
      %4509 = vmatprep.subr.bf16.mxu0 0
      %4510 = vmatpush1.bf16.msra.mxu0 0
      %4511 = vmatprep.subr.bf16.mxu0 0
      %4512 = vmatpush1.bf16.msra.mxu0 0
      %4513 = vmatprep.mubr.bf16.mxu0 0
      %4514 = vmatmul.mubr.bf16.gmra.mrb[0].mxu0 %v4434
      %v4515 = vpop.f32.mrb[0].mxu0
      %v4516 = vadd.f32 0.0, %v4515
      %v4517 = vpop.f32.mrb[0].mxu0
      %v4518 = vpop.f32.mrb[0].mxu0
      %v4519 = vadd.f32 0.0, %v4518
      %v4520 = vpop.f32.mrb[0].mxu0
      %4521 = vmatprep.mubr.bf16.mxu0 0
      %4522 = vmatmul.mubr.bf16.gmra.mrb[0].mxu0 %v4437
      %v4523 = vpop.f32.mrb[0].mxu0
      %v4524 = vadd.f32 0.0, %v4523
      %v4525 = vpop.f32.mrb[0].mxu0
      %v4526 = vpop.f32.mrb[0].mxu0
      %v4527 = vadd.f32 0.0, %v4526
      %v4528 = vpop.f32.mrb[0].mxu0
      %4529 = vmatprep.mubr.bf16.mxu0 0
      %4530 = vmatmul.mubr.bf16.gmra.mrb[0].mxu0 %v4440
      %v4531 = vpop.f32.mrb[0].mxu0
      %v4532 = vadd.f32 0.0, %v4531
      %v4533 = vpop.f32.mrb[0].mxu0
      %v4534 = vpop.f32.mrb[0].mxu0
      %v4535 = vadd.f32 0.0, %v4534
      %v4536 = vpop.f32.mrb[0].mxu0
      %4537 = vmatprep.mubr.bf16.mxu0 0
      %4538 = vmatmul.mubr.bf16.gmra.mrb[0].mxu0 %v4443
      %v4539 = vpop.f32.mrb[0].mxu0
      %v4540 = vadd.f32 0.0, %v4539
      %v4541 = vpop.f32.mrb[0].mxu0
      %v4542 = vpop.f32.mrb[0].mxu0
      %v4543 = vadd.f32 0.0, %v4542
      %v4544 = vpop.f32.mrb[0].mxu0
      %4545 = vmatprep.mubr.bf16.mxu0 0
      %4546 = vmatmul.mubr.bf16.gmra.mrb[0].mxu0 %v4446
      %v4547 = vpop.f32.mrb[0].mxu0
      %v4548 = vadd.f32 0.0, %v4547
      %v4549 = vpop.f32.mrb[0].mxu0
      %v4550 = vpop.f32.mrb[0].mxu0
      %v4551 = vadd.f32 0.0, %v4550
      %v4552 = vpop.f32.mrb[0].mxu0
      %4553 = vmatprep.mubr.bf16.mxu0 0
      %4554 = vmatmul.mubr.bf16.gmra.mrb[0].mxu0 %v4449
      %v4555 = vpop.f32.mrb[0].mxu0
      %v4556 = vadd.f32 0.0, %v4555
      %v4557 = vpop.f32.mrb[0].mxu0
      %v4558 = vpop.f32.mrb[0].mxu0
      %v4559 = vadd.f32 0.0, %v4558
      %v4560 = vpop.f32.mrb[0].mxu0
      %4561 = vmatprep.mubr.bf16.mxu0 0
      %4562 = vmatmul.mubr.bf16.gmra.mrb[0].mxu0 %v4452
      %v4563 = vpop.f32.mrb[0].mxu0
      %v4564 = vadd.f32 0.0, %v4563
      %v4565 = vpop.f32.mrb[0].mxu0
      %v4566 = vpop.f32.mrb[0].mxu0
      %v4567 = vadd.f32 0.0, %v4566
      %v4568 = vpop.f32.mrb[0].mxu0
      %4569 = vmatprep.mubr.bf16.mxu0 0
      %4570 = vmatmul.mubr.bf16.gmra.mrb[0].mxu0 %v4455
      %v4571 = vpop.f32.mrb[0].mxu0
      %v4572 = vadd.f32 0.0, %v4571
      %v4573 = vpop.f32.mrb[0].mxu0
      %v4574 = vpop.f32.mrb[0].mxu0
      %v4575 = vadd.f32 0.0, %v4574
      %v4576 = vpop.f32.mrb[0].mxu0
      %4577 = vmatprep.mubr.bf16.mxu0 0
      %4578 = vmatmul.mubr.bf16.gmra.mrb[0].mxu0 %v4458
      %v4579 = vpop.f32.mrb[0].mxu0
      %v4580 = vadd.f32 0.0, %v4579
      %v4581 = vpop.f32.mrb[0].mxu0
      %v4582 = vpop.f32.mrb[0].mxu0
      %v4583 = vadd.f32 0.0, %v4582
      %v4584 = vpop.f32.mrb[0].mxu0
      %4585 = vmatprep.mubr.bf16.mxu0 0
      %4586 = vmatmul.mubr.bf16.gmra.mrb[0].mxu0 %v4461
      %v4587 = vpop.f32.mrb[0].mxu0
      %v4588 = vadd.f32 0.0, %v4587
      %v4589 = vpop.f32.mrb[0].mxu0
      %v4590 = vpop.f32.mrb[0].mxu0
      %v4591 = vadd.f32 0.0, %v4590
      %v4592 = vpop.f32.mrb[0].mxu0
      %4593 = vmatprep.mubr.bf16.mxu0 0
      %4594 = vmatmul.mubr.bf16.gmra.mrb[0].mxu0 %v4464
      %v4595 = vpop.f32.mrb[0].mxu0
      %v4596 = vadd.f32 0.0, %v4595
      %v4597 = vpop.f32.mrb[0].mxu0
      %v4598 = vpop.f32.mrb[0].mxu0
      %v4599 = vadd.f32 0.0, %v4598
      %v4600 = vpop.f32.mrb[0].mxu0
      %4601 = vmatprep.mubr.bf16.mxu0 0
      %4602 = vmatmul.mubr.bf16.gmra.mrb[0].mxu0 %v4467
      %v4603 = vpop.f32.mrb[0].mxu0
      %v4604 = vadd.f32 0.0, %v4603
      %v4605 = vpop.f32.mrb[0].mxu0
      %v4606 = vpop.f32.mrb[0].mxu0
      %v4607 = vadd.f32 0.0, %v4606
      %v4608 = vpop.f32.mrb[0].mxu0
      %4609 = vmatprep.mubr.bf16.mxu0 0
      %4610 = vmatmul.mubr.bf16.gmra.mrb[0].mxu0 %v4470
      %v4611 = vpop.f32.mrb[0].mxu0
      %v4612 = vadd.f32 0.0, %v4611
      %v4613 = vpop.f32.mrb[0].mxu0
      %v4614 = vpop.f32.mrb[0].mxu0
      %v4615 = vadd.f32 0.0, %v4614
      %v4616 = vpop.f32.mrb[0].mxu0
      %4617 = vmatprep.mubr.bf16.mxu0 0
      %4618 = vmatmul.mubr.bf16.gmra.mrb[0].mxu0 %v4473
      %v4619 = vpop.f32.mrb[0].mxu0
      %v4620 = vadd.f32 0.0, %v4619
      %v4621 = vpop.f32.mrb[0].mxu0
      %v4622 = vpop.f32.mrb[0].mxu0
      %v4623 = vadd.f32 0.0, %v4622
      %v4624 = vpop.f32.mrb[0].mxu0
      %4625 = vmatprep.mubr.bf16.mxu0 0
      %4626 = vmatmul.mubr.bf16.gmra.mrb[0].mxu0 %v4476
      %v4627 = vpop.f32.mrb[0].mxu0
      %v4628 = vadd.f32 0.0, %v4627
      %v4629 = vpop.f32.mrb[0].mxu0
      %v4630 = vpop.f32.mrb[0].mxu0
      %v4631 = vadd.f32 0.0, %v4630
      %v4632 = vpop.f32.mrb[0].mxu0
      %4633 = vmatprep.mubr.bf16.mxu0 0
      %4634 = vmatmul.mubr.bf16.gmra.mrb[0].mxu0 %v4479
      %v4635 = vpop.f32.mrb[0].mxu0
      %v4636 = vadd.f32 0.0, %v4635
      %v4637 = vpop.f32.mrb[0].mxu0
      %v4638 = vpop.f32.mrb[0].mxu0
      %v4639 = vadd.f32 0.0, %v4638
      %v4640 = vpop.f32.mrb[0].mxu0
      %4641 = vdwg.mxu0
      %v4642 = vadd.f32 %v3904, %v4516
      %v4643 = vadd.f32 %v3905, %v4519
      %v4644 = vadd.f32 %v3906, %v4524
      %v4645 = vadd.f32 %v3907, %v4527
      %v4646 = vadd.f32 %v3908, %v4532
      %v4647 = vadd.f32 %v3909, %v4535
      %v4648 = vadd.f32 %v3910, %v4540
      %v4649 = vadd.f32 %v3911, %v4543
      %v4650 = vadd.f32 %v3912, %v4548
      %v4651 = vadd.f32 %v3913, %v4551
      %v4652 = vadd.f32 %v3914, %v4556
      %v4653 = vadd.f32 %v3915, %v4559
      %v4654 = vadd.f32 %v3916, %v4564
      %v4655 = vadd.f32 %v3917, %v4567
      %v4656 = vadd.f32 %v3918, %v4572
      %v4657 = vadd.f32 %v3919, %v4575
      %v4658 = vadd.f32 %v3920, %v4580
      %v4659 = vadd.f32 %v3921, %v4583
      %v4660 = vadd.f32 %v3922, %v4588
      %v4661 = vadd.f32 %v3923, %v4591
      %v4662 = vadd.f32 %v3924, %v4596
      %v4663 = vadd.f32 %v3925, %v4599
      %v4664 = vadd.f32 %v3926, %v4604
      %v4665 = vadd.f32 %v3927, %v4607
      %v4666 = vadd.f32 %v3928, %v4612
      %v4667 = vadd.f32 %v3929, %v4615
      %v4668 = vadd.f32 %v3930, %v4620
      %v4669 = vadd.f32 %v3931, %v4623
      %v4670 = vadd.f32 %v3932, %v4628
      %v4671 = vadd.f32 %v3933, %v4631
      %v4672 = vadd.f32 %v3934, %v4636
      %v4673 = vadd.f32 %v3935, %v4639
      %v4674 = vld [vmem:[%s3565] sm:$0xe]
      %v4675 = vld [vmem:[%s3565 + $0xc] sm:$0xe]
      %v4676 = vld [vmem:[%s3565 + $0x18] sm:$0xe]
      %v4677 = vld [vmem:[%s3565 + $0x24] sm:$0xe]
      %v4678 = vld [vmem:[%s3565 + $0x30] sm:$0xe]
      %v4679 = vld [vmem:[%s3565 + $0x3c] sm:$0xe]
      %v4680 = vld [vmem:[%s3565 + $0x48] sm:$0xe]
      %v4681 = vld [vmem:[%s3565 + $0x54] sm:$0xe]
      %v4682 = vld [vmem:[%s3565 + $0x60] sm:$0xe]
      %v4683 = vld [vmem:[%s3565 + $0x6c] sm:$0xe]
      %v4684 = vld [vmem:[%s3565 + $0x78] sm:$0xe]
      %v4685 = vld [vmem:[%s3565 + $0x84] sm:$0xe]
      %v4686 = vld [vmem:[%s3565 + $0x90] sm:$0xe]
      %v4687 = vld [vmem:[%s3565 + $0x9c] sm:$0xe]
      %v4688 = vld [vmem:[%s3565 + $0xa8] sm:$0xe]
      %v4689 = vld [vmem:[%s3565 + $0xb4] sm:$0xe]
      %v4738 = vrot.slane %v4674, 5
      %v4739 = vrot.slane %v4738, 4
      %v4740 = vrot.slane %v3937, 5
      %v4741 = vsel %vm1555, %v4739, %v4740
      %v4742 = vrot.slane %v4740, 4
      %v4743 = vrot.slane %v3938, 5
      %v4744 = vsel %vm1555, %v4742, %v4743
      %v4745 = vrot.slane %v4675, 5
      %v4746 = vrot.slane %v4745, 4
      %v4747 = vrot.slane %v3940, 5
      %v4748 = vsel %vm1555, %v4746, %v4747
      %v4749 = vrot.slane %v4747, 4
      %v4750 = vrot.slane %v3941, 5
      %v4751 = vsel %vm1555, %v4749, %v4750
      %v4752 = vrot.slane %v4676, 5
      %v4753 = vrot.slane %v4752, 4
      %v4754 = vrot.slane %v3943, 5
      %v4755 = vsel %vm1555, %v4753, %v4754
      %v4756 = vrot.slane %v4754, 4
      %v4757 = vrot.slane %v3944, 5
      %v4758 = vsel %vm1555, %v4756, %v4757
      %v4759 = vrot.slane %v4677, 5
      %v4760 = vrot.slane %v4759, 4
      %v4761 = vrot.slane %v3946, 5
      %v4762 = vsel %vm1555, %v4760, %v4761
      %v4763 = vrot.slane %v4761, 4
      %v4764 = vrot.slane %v3947, 5
      %v4765 = vsel %vm1555, %v4763, %v4764
      %v4766 = vrot.slane %v4678, 5
      %v4767 = vrot.slane %v4766, 4
      %v4768 = vrot.slane %v3949, 5
      %v4769 = vsel %vm1555, %v4767, %v4768
      %v4770 = vrot.slane %v4768, 4
      %v4771 = vrot.slane %v3950, 5
      %v4772 = vsel %vm1555, %v4770, %v4771
      %v4773 = vrot.slane %v4679, 5
      %v4774 = vrot.slane %v4773, 4
      %v4775 = vrot.slane %v3952, 5
      %v4776 = vsel %vm1555, %v4774, %v4775
      %v4777 = vrot.slane %v4775, 4
      %v4778 = vrot.slane %v3953, 5
      %v4779 = vsel %vm1555, %v4777, %v4778
      %v4780 = vrot.slane %v4680, 5
      %v4781 = vrot.slane %v4780, 4
      %v4782 = vrot.slane %v3955, 5
      %v4783 = vsel %vm1555, %v4781, %v4782
      %v4784 = vrot.slane %v4782, 4
      %v4785 = vrot.slane %v3956, 5
      %v4786 = vsel %vm1555, %v4784, %v4785
      %v4787 = vrot.slane %v4681, 5
      %v4788 = vrot.slane %v4787, 4
      %v4789 = vrot.slane %v3958, 5
      %v4790 = vsel %vm1555, %v4788, %v4789
      %v4791 = vrot.slane %v4789, 4
      %v4792 = vrot.slane %v3959, 5
      %v4793 = vsel %vm1555, %v4791, %v4792
      %v4794 = vrot.slane %v4682, 5
      %v4795 = vrot.slane %v4794, 4
      %v4796 = vrot.slane %v3961, 5
      %v4797 = vsel %vm1555, %v4795, %v4796
      %v4798 = vrot.slane %v4796, 4
      %v4799 = vrot.slane %v3962, 5
      %v4800 = vsel %vm1555, %v4798, %v4799
      %v4801 = vrot.slane %v4683, 5
      %v4802 = vrot.slane %v4801, 4
      %v4803 = vrot.slane %v3964, 5
      %v4804 = vsel %vm1555, %v4802, %v4803
      %v4805 = vrot.slane %v4803, 4
      %v4806 = vrot.slane %v3965, 5
      %v4807 = vsel %vm1555, %v4805, %v4806
      %v4808 = vrot.slane %v4684, 5
      %v4809 = vrot.slane %v4808, 4
      %v4810 = vrot.slane %v3967, 5
      %v4811 = vsel %vm1555, %v4809, %v4810
      %v4812 = vrot.slane %v4810, 4
      %v4813 = vrot.slane %v3968, 5
      %v4814 = vsel %vm1555, %v4812, %v4813
      %v4815 = vrot.slane %v4685, 5
      %v4816 = vrot.slane %v4815, 4
      %v4817 = vrot.slane %v3970, 5
      %v4818 = vsel %vm1555, %v4816, %v4817
      %v4819 = vrot.slane %v4817, 4
      %v4820 = vrot.slane %v3971, 5
      %v4821 = vsel %vm1555, %v4819, %v4820
      %v4822 = vrot.slane %v4686, 5
      %v4823 = vrot.slane %v4822, 4
      %v4824 = vrot.slane %v3973, 5
      %v4825 = vsel %vm1555, %v4823, %v4824
      %v4826 = vrot.slane %v4824, 4
      %v4827 = vrot.slane %v3974, 5
      %v4828 = vsel %vm1555, %v4826, %v4827
      %v4829 = vrot.slane %v4687, 5
      %v4830 = vrot.slane %v4829, 4
      %v4831 = vrot.slane %v3976, 5
      %v4832 = vsel %vm1555, %v4830, %v4831
      %v4833 = vrot.slane %v4831, 4
      %v4834 = vrot.slane %v3977, 5
      %v4835 = vsel %vm1555, %v4833, %v4834
      %v4836 = vrot.slane %v4688, 5
      %v4837 = vrot.slane %v4836, 4
      %v4838 = vrot.slane %v3979, 5
      %v4839 = vsel %vm1555, %v4837, %v4838
      %v4840 = vrot.slane %v4838, 4
      %v4841 = vrot.slane %v3980, 5
      %v4842 = vsel %vm1555, %v4840, %v4841
      %v4843 = vrot.slane %v4689, 5
      %v4844 = vrot.slane %v4843, 4
      %v4845 = vrot.slane %v3982, 5
      %v4846 = vsel %vm1555, %v4844, %v4845
      %v4847 = vrot.slane %v4845, 4
      %v4848 = vrot.slane %v3983, 5
      %v4849 = vsel %vm1555, %v4847, %v4848
      %s4850 = scalar_lea.vmem %s2, 128
      %v4851 = vld [vmem:[%s4850] sm:$0xf]
      %v4852 = vld [vmem:[%s4850 + $0x4] sm:$0xf]
      %v4853 = vld [vmem:[%s4850 + $0x8] sm:$0xf]
      %v4854 = vld [vmem:[%s4850 + $0xc] sm:$0xf]
      %v4855 = vunpack.c.l.b16 %v4741
      %v4856 = vunpack.c.l.b16 %v4744
      %v4857 = vunpack.c.l.b16 %v4748
      %v4858 = vunpack.c.l.b16 %v4751
      %v4859 = vunpack.c.l.b16 %v4755
      %v4860 = vunpack.c.l.b16 %v4758
      %v4861 = vunpack.c.l.b16 %v4762
      %v4862 = vunpack.c.l.b16 %v4765
      %v4863 = vunpack.c.l.b16 %v4769
      %v4864 = vunpack.c.l.b16 %v4772
      %v4865 = vunpack.c.l.b16 %v4776
      %v4866 = vunpack.c.l.b16 %v4779
      %v4867 = vunpack.c.l.b16 %v4783
      %v4868 = vunpack.c.l.b16 %v4786
      %v4869 = vunpack.c.l.b16 %v4790
      %v4870 = vunpack.c.l.b16 %v4793
      %v4871 = vunpack.c.l.b16 %v4797
      %v4872 = vunpack.c.l.b16 %v4800
      %v4873 = vunpack.c.l.b16 %v4804
      %v4874 = vunpack.c.l.b16 %v4807
      %v4875 = vunpack.c.l.b16 %v4811
      %v4876 = vunpack.c.l.b16 %v4814
      %v4877 = vunpack.c.l.b16 %v4818
      %v4878 = vunpack.c.l.b16 %v4821
      %v4879 = vunpack.c.l.b16 %v4825
      %v4880 = vunpack.c.l.b16 %v4828
      %v4881 = vunpack.c.l.b16 %v4832
      %v4882 = vunpack.c.l.b16 %v4835
      %v4883 = vunpack.c.l.b16 %v4839
      %v4884 = vunpack.c.l.b16 %v4842
      %v4885 = vunpack.c.l.b16 %v4846
      %v4886 = vunpack.c.l.b16 %v4849
      %v4887 = vpack.c.b16 %v4856, %v4855
      %v4888 = vpack.c.b16 %v4858, %v4857
      %v4889 = vpack.c.b16 %v4860, %v4859
      %v4890 = vpack.c.b16 %v4862, %v4861
      %v4891 = vpack.c.b16 %v4864, %v4863
      %v4892 = vpack.c.b16 %v4866, %v4865
      %v4893 = vpack.c.b16 %v4868, %v4867
      %v4894 = vpack.c.b16 %v4870, %v4869
      %v4895 = vpack.c.b16 %v4872, %v4871
      %v4896 = vpack.c.b16 %v4874, %v4873
      %v4897 = vpack.c.b16 %v4876, %v4875
      %v4898 = vpack.c.b16 %v4878, %v4877
      %v4899 = vpack.c.b16 %v4880, %v4879
      %v4900 = vpack.c.b16 %v4882, %v4881
      %v4901 = vpack.c.b16 %v4884, %v4883
      %v4902 = vpack.c.b16 %v4886, %v4885
      %v4907 = vunpack.c.l.b16 %v4851
      %v4908 = vunpack.c.l.b16 %v4852
      %v4909 = vunpack.c.l.b16 %v4853
      %v4910 = vunpack.c.l.b16 %v4854
      %v4911 = vpack.c.b16 %v4908, %v4907
      %v4912 = vpack.c.b16 %v4910, %v4909
      %v4916 = vsel %vm994, %v4887, 0
      %v4919 = vsel %vm994, %v4888, 0
      %v4922 = vsel %vm994, %v4889, 0
      %v4925 = vsel %vm994, %v4890, 0
      %v4928 = vsel %vm994, %v4891, 0
      %v4931 = vsel %vm994, %v4892, 0
      %v4934 = vsel %vm994, %v4893, 0
      %v4937 = vsel %vm994, %v4894, 0
      %v4940 = vsel %vm994, %v4895, 0
      %v4943 = vsel %vm994, %v4896, 0
      %v4946 = vsel %vm994, %v4897, 0
      %v4949 = vsel %vm994, %v4898, 0
      %v4952 = vsel %vm994, %v4899, 0
      %v4955 = vsel %vm994, %v4900, 0
      %v4958 = vsel %vm994, %v4901, 0
      %v4961 = vsel %vm994, %v4902, 0
      %4963 = vmatprep.subr.bf16.mxu0 0
      %4964 = vmatpush1.bf16.msra.mxu0 %v4911
      %4965 = vmatprep.subr.bf16.mxu0 0
      %4966 = vmatpush1.bf16.msra.mxu0 %v4912
      %4967 = vmatprep.subr.bf16.mxu0 0
      %4968 = vmatpush1.bf16.msra.mxu0 0
      %4969 = vmatprep.subr.bf16.mxu0 0
      %4970 = vmatpush1.bf16.msra.mxu0 0
      %4971 = vmatprep.subr.bf16.mxu0 0
      %4972 = vmatpush1.bf16.msra.mxu0 0
      %4973 = vmatprep.subr.bf16.mxu0 0
      %4974 = vmatpush1.bf16.msra.mxu0 0
      %4975 = vmatprep.subr.bf16.mxu0 0
      %4976 = vmatpush1.bf16.msra.mxu0 0
      %4977 = vmatprep.subr.bf16.mxu0 0
      %4978 = vmatpush1.bf16.msra.mxu0 0
      %4979 = vmatprep.subr.bf16.mxu0 0
      %4980 = vmatpush1.bf16.msra.mxu0 0
      %4981 = vmatprep.subr.bf16.mxu0 0
      %4982 = vmatpush1.bf16.msra.mxu0 0
      %4983 = vmatprep.subr.bf16.mxu0 0
      %4984 = vmatpush1.bf16.msra.mxu0 0
      %4985 = vmatprep.subr.bf16.mxu0 0
      %4986 = vmatpush1.bf16.msra.mxu0 0
      %4987 = vmatprep.subr.bf16.mxu0 0
      %4988 = vmatpush1.bf16.msra.mxu0 0
      %4989 = vmatprep.subr.bf16.mxu0 0
      %4990 = vmatpush1.bf16.msra.mxu0 0
      %4991 = vmatprep.subr.bf16.mxu0 0
      %4992 = vmatpush1.bf16.msra.mxu0 0
      %4993 = vmatprep.subr.bf16.mxu0 0
      %4994 = vmatpush1.bf16.msra.mxu0 0
      %4995 = vmatprep.mubr.bf16.mxu0 0
      %4996 = vmatmul.mubr.bf16.gmra.mrb[0].mxu0 %v4916
      %v4997 = vpop.f32.mrb[0].mxu0
      %v4998 = vadd.f32 0.0, %v4997
      %v4999 = vpop.f32.mrb[0].mxu0
      %v5000 = vpop.f32.mrb[0].mxu0
      %v5001 = vadd.f32 0.0, %v5000
      %v5002 = vpop.f32.mrb[0].mxu0
      %5003 = vmatprep.mubr.bf16.mxu0 0
      %5004 = vmatmul.mubr.bf16.gmra.mrb[0].mxu0 %v4919
      %v5005 = vpop.f32.mrb[0].mxu0
      %v5006 = vadd.f32 0.0, %v5005
      %v5007 = vpop.f32.mrb[0].mxu0
      %v5008 = vpop.f32.mrb[0].mxu0
      %v5009 = vadd.f32 0.0, %v5008
      %v5010 = vpop.f32.mrb[0].mxu0
      %5011 = vmatprep.mubr.bf16.mxu0 0
      %5012 = vmatmul.mubr.bf16.gmra.mrb[0].mxu0 %v4922
      %v5013 = vpop.f32.mrb[0].mxu0
      %v5014 = vadd.f32 0.0, %v5013
      %v5015 = vpop.f32.mrb[0].mxu0
      %v5016 = vpop.f32.mrb[0].mxu0
      %v5017 = vadd.f32 0.0, %v5016
      %v5018 = vpop.f32.mrb[0].mxu0
      %5019 = vmatprep.mubr.bf16.mxu0 0
      %5020 = vmatmul.mubr.bf16.gmra.mrb[0].mxu0 %v4925
      %v5021 = vpop.f32.mrb[0].mxu0
      %v5022 = vadd.f32 0.0, %v5021
      %v5023 = vpop.f32.mrb[0].mxu0
      %v5024 = vpop.f32.mrb[0].mxu0
      %v5025 = vadd.f32 0.0, %v5024
      %v5026 = vpop.f32.mrb[0].mxu0
      %5027 = vmatprep.mubr.bf16.mxu0 0
      %5028 = vmatmul.mubr.bf16.gmra.mrb[0].mxu0 %v4928
      %v5029 = vpop.f32.mrb[0].mxu0
      %v5030 = vadd.f32 0.0, %v5029
      %v5031 = vpop.f32.mrb[0].mxu0
      %v5032 = vpop.f32.mrb[0].mxu0
      %v5033 = vadd.f32 0.0, %v5032
      %v5034 = vpop.f32.mrb[0].mxu0
      %5035 = vmatprep.mubr.bf16.mxu0 0
      %5036 = vmatmul.mubr.bf16.gmra.mrb[0].mxu0 %v4931
      %v5037 = vpop.f32.mrb[0].mxu0
      %v5038 = vadd.f32 0.0, %v5037
      %v5039 = vpop.f32.mrb[0].mxu0
      %v5040 = vpop.f32.mrb[0].mxu0
      %v5041 = vadd.f32 0.0, %v5040
      %v5042 = vpop.f32.mrb[0].mxu0
      %5043 = vmatprep.mubr.bf16.mxu0 0
      %5044 = vmatmul.mubr.bf16.gmra.mrb[0].mxu0 %v4934
      %v5045 = vpop.f32.mrb[0].mxu0
      %v5046 = vadd.f32 0.0, %v5045
      %v5047 = vpop.f32.mrb[0].mxu0
      %v5048 = vpop.f32.mrb[0].mxu0
      %v5049 = vadd.f32 0.0, %v5048
      %v5050 = vpop.f32.mrb[0].mxu0
      %5051 = vmatprep.mubr.bf16.mxu0 0
      %5052 = vmatmul.mubr.bf16.gmra.mrb[0].mxu0 %v4937
      %v5053 = vpop.f32.mrb[0].mxu0
      %v5054 = vadd.f32 0.0, %v5053
      %v5055 = vpop.f32.mrb[0].mxu0
      %v5056 = vpop.f32.mrb[0].mxu0
      %v5057 = vadd.f32 0.0, %v5056
      %v5058 = vpop.f32.mrb[0].mxu0
      %5059 = vmatprep.mubr.bf16.mxu0 0
      %5060 = vmatmul.mubr.bf16.gmra.mrb[0].mxu0 %v4940
      %v5061 = vpop.f32.mrb[0].mxu0
      %v5062 = vadd.f32 0.0, %v5061
      %v5063 = vpop.f32.mrb[0].mxu0
      %v5064 = vpop.f32.mrb[0].mxu0
      %v5065 = vadd.f32 0.0, %v5064
      %v5066 = vpop.f32.mrb[0].mxu0
      %5067 = vmatprep.mubr.bf16.mxu0 0
      %5068 = vmatmul.mubr.bf16.gmra.mrb[0].mxu0 %v4943
      %v5069 = vpop.f32.mrb[0].mxu0
      %v5070 = vadd.f32 0.0, %v5069
      %v5071 = vpop.f32.mrb[0].mxu0
      %v5072 = vpop.f32.mrb[0].mxu0
      %v5073 = vadd.f32 0.0, %v5072
      %v5074 = vpop.f32.mrb[0].mxu0
      %5075 = vmatprep.mubr.bf16.mxu0 0
      %5076 = vmatmul.mubr.bf16.gmra.mrb[0].mxu0 %v4946
      %v5077 = vpop.f32.mrb[0].mxu0
      %v5078 = vadd.f32 0.0, %v5077
      %v5079 = vpop.f32.mrb[0].mxu0
      %v5080 = vpop.f32.mrb[0].mxu0
      %v5081 = vadd.f32 0.0, %v5080
      %v5082 = vpop.f32.mrb[0].mxu0
      %5083 = vmatprep.mubr.bf16.mxu0 0
      %5084 = vmatmul.mubr.bf16.gmra.mrb[0].mxu0 %v4949
      %v5085 = vpop.f32.mrb[0].mxu0
      %v5086 = vadd.f32 0.0, %v5085
      %v5087 = vpop.f32.mrb[0].mxu0
      %v5088 = vpop.f32.mrb[0].mxu0
      %v5089 = vadd.f32 0.0, %v5088
      %v5090 = vpop.f32.mrb[0].mxu0
      %5091 = vmatprep.mubr.bf16.mxu0 0
      %5092 = vmatmul.mubr.bf16.gmra.mrb[0].mxu0 %v4952
      %v5093 = vpop.f32.mrb[0].mxu0
      %v5094 = vadd.f32 0.0, %v5093
      %v5095 = vpop.f32.mrb[0].mxu0
      %v5096 = vpop.f32.mrb[0].mxu0
      %v5097 = vadd.f32 0.0, %v5096
      %v5098 = vpop.f32.mrb[0].mxu0
      %5099 = vmatprep.mubr.bf16.mxu0 0
      %5100 = vmatmul.mubr.bf16.gmra.mrb[0].mxu0 %v4955
      %v5101 = vpop.f32.mrb[0].mxu0
      %v5102 = vadd.f32 0.0, %v5101
      %v5103 = vpop.f32.mrb[0].mxu0
      %v5104 = vpop.f32.mrb[0].mxu0
      %v5105 = vadd.f32 0.0, %v5104
      %v5106 = vpop.f32.mrb[0].mxu0
      %5107 = vmatprep.mubr.bf16.mxu0 0
      %5108 = vmatmul.mubr.bf16.gmra.mrb[0].mxu0 %v4958
      %v5109 = vpop.f32.mrb[0].mxu0
      %v5110 = vadd.f32 0.0, %v5109
      %v5111 = vpop.f32.mrb[0].mxu0
      %v5112 = vpop.f32.mrb[0].mxu0
      %v5113 = vadd.f32 0.0, %v5112
      %v5114 = vpop.f32.mrb[0].mxu0
      %5115 = vmatprep.mubr.bf16.mxu0 0
      %5116 = vmatmul.mubr.bf16.gmra.mrb[0].mxu0 %v4961
      %v5117 = vpop.f32.mrb[0].mxu0
      %v5118 = vadd.f32 0.0, %v5117
      %v5119 = vpop.f32.mrb[0].mxu0
      %v5120 = vpop.f32.mrb[0].mxu0
      %v5121 = vadd.f32 0.0, %v5120
      %v5122 = vpop.f32.mrb[0].mxu0
      %5123 = vdwg.mxu0
      %v5124 = vadd.f32 %v4642, %v4998
      %v5125 = vadd.f32 %v4643, %v5001
      %v5126 = vadd.f32 %v4644, %v5006
      %v5127 = vadd.f32 %v4645, %v5009
      %v5128 = vadd.f32 %v4646, %v5014
      %v5129 = vadd.f32 %v4647, %v5017
      %v5130 = vadd.f32 %v4648, %v5022
      %v5131 = vadd.f32 %v4649, %v5025
      %v5132 = vadd.f32 %v4650, %v5030
      %v5133 = vadd.f32 %v4651, %v5033
      %v5134 = vadd.f32 %v4652, %v5038
      %v5135 = vadd.f32 %v4653, %v5041
      %v5136 = vadd.f32 %v4654, %v5046
      %v5137 = vadd.f32 %v4655, %v5049
      %v5138 = vadd.f32 %v4656, %v5054
      %v5139 = vadd.f32 %v4657, %v5057
      %v5140 = vadd.f32 %v4658, %v5062
      %v5141 = vadd.f32 %v4659, %v5065
      %v5142 = vadd.f32 %v4660, %v5070
      %v5143 = vadd.f32 %v4661, %v5073
      %v5144 = vadd.f32 %v4662, %v5078
      %v5145 = vadd.f32 %v4663, %v5081
      %v5146 = vadd.f32 %v4664, %v5086
      %v5147 = vadd.f32 %v4665, %v5089
      %v5148 = vadd.f32 %v4666, %v5094
      %v5149 = vadd.f32 %v4667, %v5097
      %v5150 = vadd.f32 %v4668, %v5102
      %v5151 = vadd.f32 %v4669, %v5105
      %v5152 = vadd.f32 %v4670, %v5110
      %v5153 = vadd.f32 %v4671, %v5113
      %v5154 = vadd.f32 %v4672, %v5118
      %v5155 = vadd.f32 %v4673, %v5121
      %v5156 = vpack.c.bf16 %v5125, %v5124
      %v5157 = vpack.c.bf16 %v5127, %v5126
      %v5158 = vpack.c.bf16 %v5129, %v5128
      %v5159 = vpack.c.bf16 %v5131, %v5130
      %v5160 = vpack.c.bf16 %v5133, %v5132
      %v5161 = vpack.c.bf16 %v5135, %v5134
      %v5162 = vpack.c.bf16 %v5137, %v5136
      %v5163 = vpack.c.bf16 %v5139, %v5138
      %v5164 = vpack.c.bf16 %v5141, %v5140
      %v5165 = vpack.c.bf16 %v5143, %v5142
      %v5166 = vpack.c.bf16 %v5145, %v5144
      %v5167 = vpack.c.bf16 %v5147, %v5146
      %v5168 = vpack.c.bf16 %v5149, %v5148
      %v5169 = vpack.c.bf16 %v5151, %v5150
      %v5170 = vpack.c.bf16 %v5153, %v5152
      %v5171 = vpack.c.bf16 %v5155, %v5154
      %v5188 = vunpack.c.l.b16 %v5156
      %v5189 = vunpack.c.h.b16 %v5156
      %v5190 = vunpack.c.l.b16 %v5157
      %v5191 = vunpack.c.h.b16 %v5157
      %v5192 = vunpack.c.l.b16 %v5158
      %v5193 = vunpack.c.h.b16 %v5158
      %v5194 = vunpack.c.l.b16 %v5159
      %v5195 = vunpack.c.h.b16 %v5159
      %v5196 = vunpack.c.l.b16 %v5160
      %v5197 = vunpack.c.h.b16 %v5160
      %v5198 = vunpack.c.l.b16 %v5161
      %v5199 = vunpack.c.h.b16 %v5161
      %v5200 = vunpack.c.l.b16 %v5162
      %v5201 = vunpack.c.h.b16 %v5162
      %v5202 = vunpack.c.l.b16 %v5163
      %v5203 = vunpack.c.h.b16 %v5163
      %v5204 = vunpack.c.l.b16 %v5164
      %v5205 = vunpack.c.h.b16 %v5164
      %v5206 = vunpack.c.l.b16 %v5165
      %v5207 = vunpack.c.h.b16 %v5165
      %v5208 = vunpack.c.l.b16 %v5166
      %v5209 = vunpack.c.h.b16 %v5166
      %v5210 = vunpack.c.l.b16 %v5167
      %v5211 = vunpack.c.h.b16 %v5167
      %v5212 = vunpack.c.l.b16 %v5168
      %v5213 = vunpack.c.h.b16 %v5168
      %v5214 = vunpack.c.l.b16 %v5169
      %v5215 = vunpack.c.h.b16 %v5169
      %v5216 = vunpack.c.l.b16 %v5170
      %v5217 = vunpack.c.h.b16 %v5170
      %v5218 = vunpack.c.l.b16 %v5171
      %v5219 = vunpack.c.h.b16 %v5171
      %v5220 = vpack.c.b16 %v5188, %v5188
      %v5221 = vpack.c.b16 %v5189, %v5189
      %v5222 = vpack.c.b16 %v5190, %v5190
      %v5223 = vpack.c.b16 %v5191, %v5191
      %v5224 = vpack.c.b16 %v5192, %v5192
      %v5225 = vpack.c.b16 %v5193, %v5193
      %v5226 = vpack.c.b16 %v5194, %v5194
      %v5227 = vpack.c.b16 %v5195, %v5195
      %v5228 = vpack.c.b16 %v5196, %v5196
      %v5229 = vpack.c.b16 %v5197, %v5197
      %v5230 = vpack.c.b16 %v5198, %v5198
      %v5231 = vpack.c.b16 %v5199, %v5199
      %v5232 = vpack.c.b16 %v5200, %v5200
      %v5233 = vpack.c.b16 %v5201, %v5201
      %v5234 = vpack.c.b16 %v5202, %v5202
      %v5235 = vpack.c.b16 %v5203, %v5203
      %v5236 = vpack.c.b16 %v5204, %v5204
      %v5237 = vpack.c.b16 %v5205, %v5205
      %v5238 = vpack.c.b16 %v5206, %v5206
      %v5239 = vpack.c.b16 %v5207, %v5207
      %v5240 = vpack.c.b16 %v5208, %v5208
      %v5241 = vpack.c.b16 %v5209, %v5209
      %v5242 = vpack.c.b16 %v5210, %v5210
      %v5243 = vpack.c.b16 %v5211, %v5211
      %v5244 = vpack.c.b16 %v5212, %v5212
      %v5245 = vpack.c.b16 %v5213, %v5213
      %v5246 = vpack.c.b16 %v5214, %v5214
      %v5247 = vpack.c.b16 %v5215, %v5215
      %v5248 = vpack.c.b16 %v5216, %v5216
      %v5249 = vpack.c.b16 %v5217, %v5217
      %v5250 = vpack.c.b16 %v5218, %v5218
      %v5251 = vpack.c.b16 %v5219, %v5219
      %vm5284 = vcmask 125952
      %5285 = vst.msk [vmem:[%s364] sm:$0xf] %vm5284, %v5220
      %5286 = vst.msk [vmem:[%s364 + $0x4] sm:$0xf] %vm5284, %v5221
      %5287 = vst.msk [vmem:[%s364 + $0x8] sm:$0xf] %vm5284, %v5222
      %5288 = vst.msk [vmem:[%s364 + $0xc] sm:$0xf] %vm5284, %v5223
      %5289 = vst.msk [vmem:[%s364 + $0x10] sm:$0xf] %vm5284, %v5224
      %5290 = vst.msk [vmem:[%s364 + $0x14] sm:$0xf] %vm5284, %v5225
      %5291 = vst.msk [vmem:[%s364 + $0x18] sm:$0xf] %vm5284, %v5226
      %5292 = vst.msk [vmem:[%s364 + $0x1c] sm:$0xf] %vm5284, %v5227
      %5293 = vst.msk [vmem:[%s364 + $0x20] sm:$0xf] %vm5284, %v5228
      %5294 = vst.msk [vmem:[%s364 + $0x24] sm:$0xf] %vm5284, %v5229
      %5295 = vst.msk [vmem:[%s364 + $0x28] sm:$0xf] %vm5284, %v5230
      %5296 = vst.msk [vmem:[%s364 + $0x2c] sm:$0xf] %vm5284, %v5231
      %5297 = vst.msk [vmem:[%s364 + $0x30] sm:$0xf] %vm5284, %v5232
      %5298 = vst.msk [vmem:[%s364 + $0x34] sm:$0xf] %vm5284, %v5233
      %5299 = vst.msk [vmem:[%s364 + $0x38] sm:$0xf] %vm5284, %v5234
      %5300 = vst.msk [vmem:[%s364 + $0x3c] sm:$0xf] %vm5284, %v5235
      %5301 = vst.msk [vmem:[%s364 + $0x40] sm:$0xf] %vm5284, %v5236
      %5302 = vst.msk [vmem:[%s364 + $0x44] sm:$0xf] %vm5284, %v5237
      %5303 = vst.msk [vmem:[%s364 + $0x48] sm:$0xf] %vm5284, %v5238
      %5304 = vst.msk [vmem:[%s364 + $0x4c] sm:$0xf] %vm5284, %v5239
      %5305 = vst.msk [vmem:[%s364 + $0x50] sm:$0xf] %vm5284, %v5240
      %5306 = vst.msk [vmem:[%s364 + $0x54] sm:$0xf] %vm5284, %v5241
      %5307 = vst.msk [vmem:[%s364 + $0x58] sm:$0xf] %vm5284, %v5242
      %5308 = vst.msk [vmem:[%s364 + $0x5c] sm:$0xf] %vm5284, %v5243
      %5309 = vst.msk [vmem:[%s364 + $0x60] sm:$0xf] %vm5284, %v5244
      %5310 = vst.msk [vmem:[%s364 + $0x64] sm:$0xf] %vm5284, %v5245
      %5311 = vst.msk [vmem:[%s364 + $0x68] sm:$0xf] %vm5284, %v5246
      %5312 = vst.msk [vmem:[%s364 + $0x6c] sm:$0xf] %vm5284, %v5247
      %5313 = vst.msk [vmem:[%s364 + $0x70] sm:$0xf] %vm5284, %v5248
      %5314 = vst.msk [vmem:[%s364 + $0x74] sm:$0xf] %vm5284, %v5249
      %5315 = vst.msk [vmem:[%s364 + $0x78] sm:$0xf] %vm5284, %v5250
      %5316 = vst.msk [vmem:[%s364 + $0x7c] sm:$0xf] %vm5284, %v5251
      %vm5317 = vcmask 130048
      %v5318 = vsel %vm5317, %v5124, 0.0
      %v5319 = vsel %vm5317, %v5125, 0.0
      %v5320 = vadd.f32 %v5318, %v5319
      %v5321 = vsel %vm5317, %v5126, 0.0
      %v5322 = vadd.f32 %v5320, %v5321
      %v5323 = vsel %vm5317, %v5127, 0.0
      %v5324 = vadd.f32 %v5322, %v5323
      %v5325 = vsel %vm5317, %v5128, 0.0
      %v5326 = vadd.f32 %v5324, %v5325
      %v5327 = vsel %vm5317, %v5129, 0.0
      %v5328 = vadd.f32 %v5326, %v5327
      %v5329 = vsel %vm5317, %v5130, 0.0
      %v5330 = vadd.f32 %v5328, %v5329
      %v5331 = vsel %vm5317, %v5131, 0.0
      %v5332 = vadd.f32 %v5330, %v5331
      %v5333 = vsel %vm5317, %v5132, 0.0
      %v5334 = vadd.f32 %v5332, %v5333
      %v5335 = vsel %vm5317, %v5133, 0.0
      %v5336 = vadd.f32 %v5334, %v5335
      %v5337 = vsel %vm5317, %v5134, 0.0
      %v5338 = vadd.f32 %v5336, %v5337
      %v5339 = vsel %vm5317, %v5135, 0.0
      %v5340 = vadd.f32 %v5338, %v5339
      %v5341 = vsel %vm5317, %v5136, 0.0
      %v5342 = vadd.f32 %v5340, %v5341
      %v5343 = vsel %vm5317, %v5137, 0.0
      %v5344 = vadd.f32 %v5342, %v5343
      %v5345 = vsel %vm5317, %v5138, 0.0
      %v5346 = vadd.f32 %v5344, %v5345
      %v5347 = vsel %vm5317, %v5139, 0.0
      %v5348 = vadd.f32 %v5346, %v5347
      %v5349 = vsel %vm5317, %v5140, 0.0
      %v5350 = vadd.f32 %v5348, %v5349
      %v5351 = vsel %vm5317, %v5141, 0.0
      %v5352 = vadd.f32 %v5350, %v5351
      %v5353 = vsel %vm5317, %v5142, 0.0
      %v5354 = vadd.f32 %v5352, %v5353
      %v5355 = vsel %vm5317, %v5143, 0.0
      %v5356 = vadd.f32 %v5354, %v5355
      %v5357 = vsel %vm5317, %v5144, 0.0
      %v5358 = vadd.f32 %v5356, %v5357
      %v5359 = vsel %vm5317, %v5145, 0.0
      %v5360 = vadd.f32 %v5358, %v5359
      %v5361 = vsel %vm5317, %v5146, 0.0
      %v5362 = vadd.f32 %v5360, %v5361
      %v5363 = vsel %vm5317, %v5147, 0.0
      %v5364 = vadd.f32 %v5362, %v5363
      %v5365 = vsel %vm5317, %v5148, 0.0
      %v5366 = vadd.f32 %v5364, %v5365
      %v5367 = vsel %vm5317, %v5149, 0.0
      %v5368 = vadd.f32 %v5366, %v5367
      %v5369 = vsel %vm5317, %v5150, 0.0
      %v5370 = vadd.f32 %v5368, %v5369
      %v5371 = vsel %vm5317, %v5151, 0.0
      %v5372 = vadd.f32 %v5370, %v5371
      %v5373 = vsel %vm5317, %v5152, 0.0
      %v5374 = vadd.f32 %v5372, %v5373
      %v5375 = vsel %vm5317, %v5153, 0.0
      %v5376 = vadd.f32 %v5374, %v5375
      %v5377 = vsel %vm5317, %v5154, 0.0
      %v5378 = vadd.f32 %v5376, %v5377
      %v5379 = vsel %vm5317, %v5155, 0.0
      %v5380 = vadd.f32 %v5378, %v5379
      %v5381 = vrot.slane %v5380, 4
      %v5382 = vadd.f32 %v5380, %v5381
      %v5383 = vrot.slane %v5382, 2
      %v5384 = vadd.f32 %v5382, %v5383
      %v5385 = vrot.slane %v5384, 1
      %v5386 = vadd.f32 %v5384, %v5385
      %vm5387 = vcmask 122880
      %5388 = vst.msk [vmem:[%s371] sm:$0x1] %vm5387, %v5386
      %v5389 = vmul.f32 %v5124, %v5124
      %v5390 = vmul.f32 %v5125, %v5125
      %v5391 = vmul.f32 %v5126, %v5126
      %v5392 = vmul.f32 %v5127, %v5127
      %v5393 = vmul.f32 %v5128, %v5128
      %v5394 = vmul.f32 %v5129, %v5129
      %v5395 = vmul.f32 %v5130, %v5130
      %v5396 = vmul.f32 %v5131, %v5131
      %v5397 = vmul.f32 %v5132, %v5132
      %v5398 = vmul.f32 %v5133, %v5133
      %v5399 = vmul.f32 %v5134, %v5134
      %v5400 = vmul.f32 %v5135, %v5135
      %v5401 = vmul.f32 %v5136, %v5136
      %v5402 = vmul.f32 %v5137, %v5137
      %v5403 = vmul.f32 %v5138, %v5138
      %v5404 = vmul.f32 %v5139, %v5139
      %v5405 = vmul.f32 %v5140, %v5140
      %v5406 = vmul.f32 %v5141, %v5141
      %v5407 = vmul.f32 %v5142, %v5142
      %v5408 = vmul.f32 %v5143, %v5143
      %v5409 = vmul.f32 %v5144, %v5144
      %v5410 = vmul.f32 %v5145, %v5145
      %v5411 = vmul.f32 %v5146, %v5146
      %v5412 = vmul.f32 %v5147, %v5147
      %v5413 = vmul.f32 %v5148, %v5148
      %v5414 = vmul.f32 %v5149, %v5149
      %v5415 = vmul.f32 %v5150, %v5150
      %v5416 = vmul.f32 %v5151, %v5151
      %v5417 = vmul.f32 %v5152, %v5152
      %v5418 = vmul.f32 %v5153, %v5153
      %v5419 = vmul.f32 %v5154, %v5154
      %v5420 = vmul.f32 %v5155, %v5155
      %v5421 = vsel %vm5317, %v5389, 0.0
      %v5422 = vsel %vm5317, %v5390, 0.0
      %v5423 = vadd.f32 %v5421, %v5422
      %v5424 = vsel %vm5317, %v5391, 0.0
      %v5425 = vadd.f32 %v5423, %v5424
      %v5426 = vsel %vm5317, %v5392, 0.0
      %v5427 = vadd.f32 %v5425, %v5426
      %v5428 = vsel %vm5317, %v5393, 0.0
      %v5429 = vadd.f32 %v5427, %v5428
      %v5430 = vsel %vm5317, %v5394, 0.0
      %v5431 = vadd.f32 %v5429, %v5430
      %v5432 = vsel %vm5317, %v5395, 0.0
      %v5433 = vadd.f32 %v5431, %v5432
      %v5434 = vsel %vm5317, %v5396, 0.0
      %v5435 = vadd.f32 %v5433, %v5434
      %v5436 = vsel %vm5317, %v5397, 0.0
      %v5437 = vadd.f32 %v5435, %v5436
      %v5438 = vsel %vm5317, %v5398, 0.0
      %v5439 = vadd.f32 %v5437, %v5438
      %v5440 = vsel %vm5317, %v5399, 0.0
      %v5441 = vadd.f32 %v5439, %v5440
      %v5442 = vsel %vm5317, %v5400, 0.0
      %v5443 = vadd.f32 %v5441, %v5442
      %v5444 = vsel %vm5317, %v5401, 0.0
      %v5445 = vadd.f32 %v5443, %v5444
      %v5446 = vsel %vm5317, %v5402, 0.0
      %v5447 = vadd.f32 %v5445, %v5446
      %v5448 = vsel %vm5317, %v5403, 0.0
      %v5449 = vadd.f32 %v5447, %v5448
      %v5450 = vsel %vm5317, %v5404, 0.0
      %v5451 = vadd.f32 %v5449, %v5450
      %v5452 = vsel %vm5317, %v5405, 0.0
      %v5453 = vadd.f32 %v5451, %v5452
      %v5454 = vsel %vm5317, %v5406, 0.0
      %v5455 = vadd.f32 %v5453, %v5454
      %v5456 = vsel %vm5317, %v5407, 0.0
      %v5457 = vadd.f32 %v5455, %v5456
      %v5458 = vsel %vm5317, %v5408, 0.0
      %v5459 = vadd.f32 %v5457, %v5458
      %v5460 = vsel %vm5317, %v5409, 0.0
      %v5461 = vadd.f32 %v5459, %v5460
      %v5462 = vsel %vm5317, %v5410, 0.0
      %v5463 = vadd.f32 %v5461, %v5462
      %v5464 = vsel %vm5317, %v5411, 0.0
      %v5465 = vadd.f32 %v5463, %v5464
      %v5466 = vsel %vm5317, %v5412, 0.0
      %v5467 = vadd.f32 %v5465, %v5466
      %v5468 = vsel %vm5317, %v5413, 0.0
      %v5469 = vadd.f32 %v5467, %v5468
      %v5470 = vsel %vm5317, %v5414, 0.0
      %v5471 = vadd.f32 %v5469, %v5470
      %v5472 = vsel %vm5317, %v5415, 0.0
      %v5473 = vadd.f32 %v5471, %v5472
      %v5474 = vsel %vm5317, %v5416, 0.0
      %v5475 = vadd.f32 %v5473, %v5474
      %v5476 = vsel %vm5317, %v5417, 0.0
      %v5477 = vadd.f32 %v5475, %v5476
      %v5478 = vsel %vm5317, %v5418, 0.0
      %v5479 = vadd.f32 %v5477, %v5478
      %v5480 = vsel %vm5317, %v5419, 0.0
      %v5481 = vadd.f32 %v5479, %v5480
      %v5482 = vsel %vm5317, %v5420, 0.0
      %v5483 = vadd.f32 %v5481, %v5482
      %v5484 = vrot.slane %v5483, 4
      %v5485 = vadd.f32 %v5483, %v5484
      %v5486 = vrot.slane %v5485, 2
      %v5487 = vadd.f32 %v5485, %v5486
      %v5488 = vrot.slane %v5487, 1
      %v5489 = vadd.f32 %v5487, %v5488
      %5490 = vst.msk [vmem:[%s377] sm:$0x1] %vm5387, %v5489
      %s5491 = smul.u32 32, %s22
      %p5492 = scmp.lt.s32.totalorder %s21, 1
      %s5493 = scalar_select %p5492, %s21, 1
      %p5494 = scmp.lt.s32.totalorder %s5491, 31
      %s5495 = scalar_select %p5494, %s5491, 31
      %s5496 = smul.addr %s5493, 32
      %s5497 = sadd.s32 %s5495, %s5496
      %s5498 = smul.addr %s5497, 4
      %s5499 = scalar_lea.vmem %s3, %s5498
      %p5500 = scmp.lt.s32.totalorder %s21, 1
      %s5501 = scalar_select %p5500, %s21, 1
      %p5502 = scmp.lt.s32.totalorder %s22, 0
      %s5503 = scalar_select %p5502, %s22, 0
      %s5504 = sadd.s32 %s5503, %s5501
      %s5505 = scalar_lea.vmem %s4, %s5504
      %p5506 = scmp.lt.s32.totalorder %s21, 1
      %s5507 = scalar_select %p5506, %s21, 1
      %p5508 = scmp.lt.s32.totalorder %s22, 0
      %s5509 = scalar_select %p5508, %s22, 0
      %s5510 = sadd.s32 %s5509, %s5507
      %s5511 = scalar_lea.vmem %s5, %s5510
      // Predicated region
      $region33: #{vgg_block_forward.6} parent=31 // pred_check
        %p5512 = pneg %p130
      $region34: #{vgg_block_forward.6} parent=31 // pred_check_branch
        %5514 = sbr.rel (%p5512) target = $region36
      $region35: #{vgg_block_forward.6} parent=31 // pred_region
        %s5515 = smul.u32 32, %s22
      $region36: #{vgg_block_forward.6} parent=31 // pred_fallthru
        _
      // Predicated region
      $region37: #{vgg_block_forward.6} parent=31 // pred_check
        %p5516 = pneg %p158
      $region38: #{vgg_block_forward.6} parent=31 // pred_check_branch
        %5518 = sbr.rel (%p5516) target = $region40
      $region39: #{vgg_block_forward.6} parent=31 // pred_region
        _
      $region40: #{vgg_block_forward.6} parent=31 // pred_fallthru
        _
      // Predicated region
      $region41: #{vgg_block_forward.6} parent=31 // pred_check
        %p5519 = pneg %p186
      $region42: #{vgg_block_forward.6} parent=31 // pred_check_branch
        %5521 = sbr.rel (%p5519) target = $region44
      $region43: #{vgg_block_forward.6} parent=31 // pred_region
        _
      $region44: #{vgg_block_forward.6} parent=31 // pred_fallthru
        _
    $region32: #{vgg_block_forward.6} parent=5 // pred_fallthru
      _
    %p5522 = scmp.le.s32.totalorder 2, %s12
    // Predicated region
    $region45: #{vgg_block_forward.6} parent=5 // pred_check
      %p5523 = pneg %p5522
    $region46: #{vgg_block_forward.6} parent=5 // pred_check_branch
      %5525 = sbr.rel (%p5523) target = $region48
    $region47: #{vgg_block_forward.6} parent=5 // pred_region
      %s5526 = ssub.s32 %s12, 2
      // Predicated region
      $region49: #{vgg_block_forward.6} parent=47 // pred_check
        %p5527 = pneg %p136
      $region50: #{vgg_block_forward.6} parent=47 // pred_check_branch
        %5529 = sbr.rel (%p5527) target = $region52
      $region51: #{vgg_block_forward.6} parent=47 // pred_region
        %s5530 = smul.u32 32, %s24
        %p5531 = scmp.lt.s32.totalorder %s23, 1
        %s5532 = scalar_select %p5531, %s23, 1
        %p5533 = scmp.lt.s32.totalorder %s5530, 31
        %s5534 = scalar_select %p5533, %s5530, 31
        %s5535 = smul.addr %s5532, 32
        %s5536 = sadd.s32 %s5534, %s5535
        %s5537 = smul.addr %s5536, 4
        %s5538 = scalar_lea.vmem %s3, %s5537
      $region52: #{vgg_block_forward.6} parent=47 // pred_fallthru
        _
      // Predicated region
      $region53: #{vgg_block_forward.6} parent=47 // pred_check
        %p5539 = pneg %p164
      $region54: #{vgg_block_forward.6} parent=47 // pred_check_branch
        %5541 = sbr.rel (%p5539) target = $region56
      $region55: #{vgg_block_forward.6} parent=47 // pred_region
        %p5542 = scmp.lt.s32.totalorder %s23, 1
        %s5543 = scalar_select %p5542, %s23, 1
        %p5544 = scmp.lt.s32.totalorder %s24, 0
        %s5545 = scalar_select %p5544, %s24, 0
        %s5546 = sadd.s32 %s5545, %s5543
        %s5547 = scalar_lea.vmem %s4, %s5546
      $region56: #{vgg_block_forward.6} parent=47 // pred_fallthru
        _
      // Predicated region
      $region57: #{vgg_block_forward.6} parent=47 // pred_check
        %p5548 = pneg %p192
      $region58: #{vgg_block_forward.6} parent=47 // pred_check_branch
        %5550 = sbr.rel (%p5548) target = $region60
      $region59: #{vgg_block_forward.6} parent=47 // pred_region
        %p5551 = scmp.lt.s32.totalorder %s23, 1
        %s5552 = scalar_select %p5551, %s23, 1
        %p5553 = scmp.lt.s32.totalorder %s24, 0
        %s5554 = scalar_select %p5553, %s24, 0
        %s5555 = sadd.s32 %s5554, %s5552
        %s5556 = scalar_lea.vmem %s5, %s5555
      $region60: #{vgg_block_forward.6} parent=47 // pred_fallthru
        _
    $region48: #{vgg_block_forward.6} parent=5 // pred_fallthru
      _
  $region6: #{vgg_block_forward.6} parent=0 // loop_footer
    %s16 = sadd.s32 1, %s12
  $region7: #{vgg_block_forward.6} parent=0 // loop_footer_branch
    %11 = sbr.rel target = $region3
  $region8: #{vgg_block_forward.6} parent=0 // loop_exit
    _

</llo_original>
